<compile_context>
chip_gen: v6e
topology: v6e:2x2x1
jax: 0.10.0
libtpu: 0.0.40
codegen_flags: <defaults>
</compile_context>

<pallas_src>
import jax
import jax.numpy as jnp
from jax import lax
from jax.experimental import pallas as pl
from jax.experimental.pallas import tpu as pltpu

# ----------------------- config consistent with the module ------------------------
B = 2            # batch
N_POINTS = 64    # input points
PATCHES = 8      # npoint (S)
NSAMP = 8        # nsample (K)
PRAD = 0.3       # ball-query radius
IN_DIM = 6       # features = cat([xyz, rgb]) -> 6 channels
SA_DIM = 16
DIM = 32
DEPTH = 2
HEADS = 4
DIM_HEAD = 8
MLP_DIM = 64
INNER = HEADS * DIM_HEAD          # 32
SCALE = DIM_HEAD ** -0.5
SA_IN = IN_DIM + 3                # grouped channels: [xyz-cent (3), xyz (3), rgb (3)]
N_TOK = PATCHES + 1               # cls + patches (per batch element)
TOT = B * N_TOK                   # all tokens of all batch elements in one row slab
LN_EPS = 1e-5
SLAB_W = 3 * INNER                # widest packed parameter (fused qkv) = 96
_GELU_C = 0.7978845608028654      # sqrt(2/pi)


# ----------------------------- packed-parameter layout -----------------------------
def _build_layout():
    mats = [("saA", 3, 64), ("saC", 3, 64), ("sw2", 64, 64), ("sw3", 64, SA_DIM),
            ("lwx", 3, DIM), ("lwf", SA_DIM, DIM),
            ("mask", TOT, TOT), ("boff", B * PATCHES, 1)]
    for l in range(DEPTH):
        mats += [(f"qkv{l}", DIM, 3 * INNER), (f"wo{l}", INNER, DIM),
                 (f"fw1{l}", DIM, MLP_DIM), (f"fw2{l}", MLP_DIM, DIM)]
    vecs = [("saB", 64), ("sb2", 64), ("sb3", SA_DIM),
            ("lb", DIM), ("lg", DIM), ("lbe", DIM), ("cls", DIM)]
    for l in range(DEPTH):
        vecs += [(f"bo{l}", DIM), (f"alg{l}", DIM), (f"alb{l}", DIM),
                 (f"flg{l}", DIM), (f"flb{l}", DIM),
                 (f"fb1{l}", MLP_DIM), (f"fb2{l}", DIM)]
    layout, r = {}, 0
    for name, h, w in mats:                 # matrices: 8-row aligned blocks
        layout[name] = (r, h, w)
        r += -(-h // 8) * 8
    for name, w in vecs:                    # vectors: densely packed, one row each
        layout[name] = (r, 1, w)
        r += 1
    return layout, -(-r // 8) * 8


_LAYOUT, _P_ROWS = _build_layout()


def _p(ref, name):
    r, h, w = _LAYOUT[name]
    return ref[r:r + h, 0:w]


# ----------------------------- in-kernel helpers ------------------------------------
def _layernorm(x, g, b, eps=LN_EPS):
    mu = jnp.mean(x, axis=-1, keepdims=True)
    var = jnp.mean(jnp.square(x - mu), axis=-1, keepdims=True)
    return (x - mu) * lax.rsqrt(var + eps) * g + b


def _gelu(x):
    # TODO(synk): tanh-approx GELU (EUP tanh); torch nn.GELU() is exact-erf (~1e-3 max diff).
    return 0.5 * x * (1.0 + jnp.tanh(_GELU_C * (x + 0.044715 * x * x * x)))


def _fiota(shape, dim):
    return lax.broadcasted_iota(jnp.int32, shape, dim).astype(jnp.float32)


# --------------------------------- fused kernel -------------------------------------
def _fused_kernel(xcn_ref, pts_ref, p_ref, o_ref, cent_ref):
    f32 = jnp.float32
    N, S, K, Bq = N_POINTS, PATCHES, NSAMP, B
    NF = float(N)

    xcs = [xcn_ref[c] for c in range(3)]                    # 3 x (B, N) per-coordinate slabs
    lane_n = _fiota((Bq, N), 1)                             # (B, N) lane (point) index

    # ---------------- farthest point sampling (all batch elements at once) ----------
    # TODO(synk): deterministic start at point 0 (reference PointNet++ uses a random start).
    dist = jnp.full((Bq, N), 1e10, f32)
    far_oh = jnp.where(lane_n == 0.0, 1.0, 0.0)             # one-hot of current farthest
    for i in range(S):
        d_new = jnp.zeros((Bq, N), f32)
        cent_cols = []
        for c in range(3):
            xc = xcs[c]
            cc = jnp.sum(far_oh * xc, axis=-1, keepdims=True)       # (B,1) centroid coord
            cent_cols.append(cc)
            dif = xc - cc
            d_new = d_new + dif * dif
        cent_i = jnp.concatenate(cent_cols, axis=-1)                 # (B, 3)
        for b in range(Bq):
            cent_ref[b * S + i:b * S + i + 1, :] = cent_i[b:b + 1, :]
        dist = jnp.minimum(dist, d_new)
        mx = jnp.max(dist, axis=-1, keepdims=True)
        far_idx = jnp.min(jnp.where(dist >= mx, lane_n, NF), axis=-1, keepdims=True)
        far_oh = jnp.where(lane_n == far_idx, 1.0, 0.0)

    cent_all = cent_ref[...]                                         # (B*S, 3) batch-major

    # ---------------- ball query + grouping gather (one-hot matmul) -----------------
    lane_bs = _fiota((Bq * S, N), 1)
    sqrd = jnp.zeros((Bq * S, N), f32)
    for c in range(3):
        xc = xcs[c]
        xce = jnp.concatenate(
            [jnp.broadcast_to(xc[b:b + 1, :], (S, N)) for b in range(Bq)], axis=0)
        dif = cent_all[:, c:c + 1] - xce
        sqrd = sqrd + dif * dif
    valid = jnp.where(sqrd > PRAD * PRAD, NF, lane_bs)        # point index, or N if outside ball
    boff = _p(p_ref, "boff")                                  # (B*S, 1) per-row offset b*N
    glob = _fiota((1, Bq * N), 1)
    g_blocks = []
    first = None
    for k in range(K):                                        # k-th smallest valid index
        mk = jnp.min(valid, axis=-1, keepdims=True)
        idx_k = mk if k == 0 else jnp.where(mk >= NF, first, mk)
        if k == 0:
            first = mk
        valid = jnp.where(valid == mk, NF, valid)
        g_blocks.append(jnp.where(glob == idx_k + boff, 1.0, 0.0))   # (B*S, B*N) one-hot
    G = jnp.concatenate(g_blocks, axis=0)                      # (K*B*S, B*N) = (128, 128)
    gx = jnp.dot(G, pts_ref[...], preferred_element_type=f32)  # gathered xyz, K-major rows

    # ---------------- PointNet-SA pointwise MLP [64,64,SA_DIM] + max over K ----------
    # grouped channels [gx - cent, gx, rgb=0.4] are folded into saA / saC / saB on host.
    # TODO(synk): BatchNorm2d folded to eval-mode identity (default running stats).
    base = jnp.dot(cent_all, _p(p_ref, "saC"), preferred_element_type=f32) + _p(p_ref, "saB")
    h = jnp.dot(gx, _p(p_ref, "saA"), preferred_element_type=f32)
    h = jnp.maximum(h + jnp.concatenate([base] * K, axis=0), 0.0)
    h = jnp.maximum(jnp.dot(h, _p(p_ref, "sw2"), preferred_element_type=f32)
                    + _p(p_ref, "sb2"), 0.0)
    h = jnp.maximum(jnp.dot(h, _p(p_ref, "sw3"), preferred_element_type=f32)
                    + _p(p_ref, "sb3"), 0.0)
    rows = K * Bq * S
    while rows > Bq * S:                                       # tree max over the K samples
        rows //= 2
        h = jnp.maximum(h[0:rows, :], h[rows:2 * rows, :])
    feat = h                                                   # (B*S, SA_DIM)

    # ---------------- lift Conv1d(k=1) + LayerNorm, token assembly -------------------
    y = (jnp.dot(cent_all, _p(p_ref, "lwx"), preferred_element_type=f32)
         + jnp.dot(feat, _p(p_ref, "lwf"), preferred_element_type=f32) + _p(p_ref, "lb"))
    tok = _layernorm(y, _p(p_ref, "lg"), _p(p_ref, "lbe"))     # (B*S, DIM)
    # cls tokens appended as the last B rows (attention/LN/FFN are permutation
    # equivariant per batch; batch identity is enforced by the baked block-diag mask).
    x = jnp.concatenate([tok, jnp.broadcast_to(_p(p_ref, "cls"), (Bq, DIM))], axis=0)
    amask = _p(p_ref, "mask")                                  # (TOT, TOT): 0 / -1e9

    # ---------------- DEPTH x (PreNorm attention + PreNorm FFN) ----------------------
    for l in range(DEPTH):
        xn = _layernorm(x, _p(p_ref, f"alg{l}"), _p(p_ref, f"alb{l}"))
        qkv = jnp.dot(xn, _p(p_ref, f"qkv{l}"), preferred_element_type=f32)  # scale in Wq
        wo = _p(p_ref, f"wo{l}")
        attn_out = jnp.zeros((TOT, DIM), f32)
        for hh in range(HEADS):
            lo = hh * DIM_HEAD
            q = qkv[:, lo:lo + DIM_HEAD]
            kk = qkv[:, INNER + lo:INNER + lo + DIM_HEAD]
            v = qkv[:, 2 * INNER + lo:2 * INNER + lo + DIM_HEAD]
            dots = lax.dot_general(q, kk, (((1,), (1,)), ((), ())),
                                   preferred_element_type=f32) + amask
            mx = jnp.max(dots, axis=-1, keepdims=True)
            e = jnp.exp(dots - mx)
            a = e / jnp.sum(e, axis=-1, keepdims=True)         # exact softmax (torch parity)
            hv = jnp.dot(a, v, preferred_element_type=f32)
            attn_out = attn_out + jnp.dot(hv, wo[lo:lo + DIM_HEAD, :],
                                          preferred_element_type=f32)
        x = x + attn_out + _p(p_ref, f"bo{l}")
        xn = _layernorm(x, _p(p_ref, f"flg{l}"), _p(p_ref, f"flb{l}"))
        hm = _gelu(jnp.dot(xn, _p(p_ref, f"fw1{l}"), preferred_element_type=f32)
                   + _p(p_ref, f"fb1{l}"))
        x = x + jnp.dot(hm, _p(p_ref, f"fw2{l}"), preferred_element_type=f32) \
              + _p(p_ref, f"fb2{l}")

    # cls rows live at the tail of the slab -> one aligned (B, DIM) store
    o_ref[...] = x[Bq * S:Bq * S + Bq, :]


# ------------------------------ pallas_call wrapper ---------------------------------
def ppat_forward(packed, xyz):
    # Only two trivial layout reshapes of xyz remain on the XLA side:
    #   (3, B, N) per-coordinate slabs for FPS/ball-query, (B*N, 3) for the gather matmul.
    xcn = jnp.transpose(xyz, (2, 0, 1))
    pts = xyz.reshape(B * N_POINTS, 3)
    return pl.pallas_call(
        _fused_kernel,
        out_shape=jax.ShapeDtypeStruct((B, DIM), jnp.float32),
        grid=(1,),
        in_specs=[pl.BlockSpec((3, B, N_POINTS), lambda i: (0, 0, 0)),
                  pl.BlockSpec((B * N_POINTS, 3), lambda i: (0, 0)),
                  pl.BlockSpec((_P_ROWS, SLAB_W), lambda i: (0, 0))],
        out_specs=pl.BlockSpec((B, DIM), lambda i: (0, 0)),
        scratch_shapes=[pltpu.VMEM((B * PATCHES, 3), jnp.float32)],   # FPS centroid buffer
        # Single grid step, whole batch folded into rows (v5e/v6e best case).
        # TODO(synk): on v7x, split the batch across the two TensorCores via core_map.
        compiler_params=pltpu.CompilerParams(dimension_semantics=("arbitrary",)),
    )(xcn, pts, packed)


# --------------------------- parameters: init + host-side packing -------------------
def init_params(key):
    kit = iter(jax.random.split(key, 64))

    def w(shape, scale=0.05):
        return scale * jax.random.normal(next(kit), shape, dtype=jnp.float32)

    def stack(shape, scale=0.05):
        return jnp.stack([w(shape, scale) for _ in range(DEPTH)], axis=0)

    return dict(
        # PointNet-SA pointwise MLP [64, 64, SA_DIM]
        sw1=w((SA_IN, 64)), sb1=w((1, 64)),
        sw2=w((64, 64)), sb2=w((1, 64)),
        sw3=w((64, SA_DIM)), sb3=w((1, SA_DIM)),
        # lift Conv1d(SA_DIM+3, DIM, 1) + LayerNorm
        lw=w((3 + SA_DIM, DIM)), lb=w((1, DIM)),
        lg=jnp.ones((1, DIM), jnp.float32), lbe=jnp.zeros((1, DIM), jnp.float32),
        cls=w((1, DIM), 1.0),
        # transformer layers
        a_lng=jnp.ones((DEPTH, 1, DIM), jnp.float32),
        a_lnb=jnp.zeros((DEPTH, 1, DIM), jnp.float32),
        a_wq=stack((DIM, INNER)), a_wk=stack((DIM, INNER)), a_wv=stack((DIM, INNER)),
        a_wo=stack((INNER, DIM)), a_bo=stack((1, DIM)),
        f_lng=jnp.ones((DEPTH, 1, DIM), jnp.float32),
        f_lnb=jnp.zeros((DEPTH, 1, DIM), jnp.float32),
        f_w1=stack((DIM, MLP_DIM)), f_b1=stack((1, MLP_DIM)),
        f_w2=stack((MLP_DIM, DIM)), f_b2=stack((1, DIM)),
    )


def pack_params(p):
    """Fold constants and pack every parameter into one lane-dense f32 slab."""
    slab = jnp.zeros((_P_ROWS, SLAB_W), jnp.float32)

    def put(s, name, val):
        r, h, w = _LAYOUT[name]
        return s.at[r:r + h, :w].set(jnp.asarray(val, jnp.float32).reshape(h, w))

    # SA first conv folded over grouped channels [gx - cent, gx, rgb=0.4]
    w0, w1, w2 = p["sw1"][0:3], p["sw1"][3:6], p["sw1"][6:9]
    slab = put(slab, "saA", w0 + w1)
    slab = put(slab, "saC", -w0)
    slab = put(slab, "saB", p["sb1"] + 0.4 * jnp.sum(w2, axis=0, keepdims=True))
    slab = put(slab, "sw2", p["sw2"]); slab = put(slab, "sb2", p["sb2"])
    slab = put(slab, "sw3", p["sw3"]); slab = put(slab, "sb3", p["sb3"])
    # lift conv pre-split into centroid / feature halves + LayerNorm + cls
    slab = put(slab, "lwx", p["lw"][0:3]); slab = put(slab, "lwf", p["lw"][3:])
    slab = put(slab, "lb", p["lb"]); slab = put(slab, "lg", p["lg"])
    slab = put(slab, "lbe", p["lbe"]); slab = put(slab, "cls", p["cls"])
    # block-diagonal (within-batch) additive attention mask over the token slab
    batch_of = jnp.concatenate([jnp.repeat(jnp.arange(B), PATCHES), jnp.arange(B)])
    slab = put(slab, "mask",
               jnp.where(batch_of[:, None] == batch_of[None, :], 0.0, -1e9))
    # per-row column offsets (b*N) for the global one-hot gather
    slab = put(slab, "boff",
               jnp.repeat(jnp.arange(B) * N_POINTS, PATCHES)[:, None].astype(jnp.float32))
    # transformer layers: fused qkv (softmax scale folded into Wq at pack time)
    for l in range(DEPTH):
        slab = put(slab, f"qkv{l}",
                   jnp.concatenate([p["a_wq"][l] * SCALE, p["a_wk"][l], p["a_wv"][l]],
                                   axis=1))
        slab = put(slab, f"wo{l}", p["a_wo"][l]); slab = put(slab, f"bo{l}", p["a_bo"][l])
        slab = put(slab, f"alg{l}", p["a_lng"][l]); slab = put(slab, f"alb{l}", p["a_lnb"][l])
        slab = put(slab, f"flg{l}", p["f_lng"][l]); slab = put(slab, f"flb{l}", p["f_lnb"][l])
        slab = put(slab, f"fw1{l}", p["f_w1"][l]); slab = put(slab, f"fb1{l}", p["f_b1"][l])
        slab = put(slab, f"fw2{l}", p["f_w2"][l]); slab = put(slab, f"fb2{l}", p["f_b2"][l])
    return slab


# ------------------------------------ main -------------------------------------------
if __name__ == "__main__":
    key = jax.random.PRNGKey(0)
    kx, kp = jax.random.split(key)
    xyz = jax.random.uniform(kx, (B, N_POINTS, 3), dtype=jnp.float32)
    packed = pack_params(init_params(kp))          # one-time host-side fold + pack
    fwd = jax.jit(ppat_forward)
    out = jax.block_until_ready(fwd(packed, xyz))
    assert out.shape == (B, DIM) and bool(jnp.all(jnp.isfinite(out)))
    print("KERNEL_OK")
</pallas_src>

<mosaic_0001>
module attributes {stable_mosaic.version = 11 : i64} {
  func.func @_fused_kernel(%arg0: i32, %arg1: memref<3x2x64xf32, #tpu.memory_space<vmem>>, %arg2: memref<128x3xf32, #tpu.memory_space<vmem>>, %arg3: memref<552x96xf32, #tpu.memory_space<vmem>>, %arg4: memref<2x32xf32, #tpu.memory_space<vmem>>, %arg5: memref<16x3xf32, #tpu.memory_space<vmem>>) attributes {dimension_semantics = [#tpu.dimension_semantics<arbitrary>], iteration_bounds = array<i64: 1>, scalar_prefetch = 0 : i64, scratch_operands = 1 : i64, tpu.core_type = #tpu.core_type<tc>, window_params = [{pipeline_mode = #tpu.pipeline_mode<synchronous>, transform_indices = @transform_0, window_bounds = array<i64: 3, 2, 64>}, {pipeline_mode = #tpu.pipeline_mode<synchronous>, transform_indices = @transform_1, window_bounds = array<i64: 128, 3>}, {pipeline_mode = #tpu.pipeline_mode<synchronous>, transform_indices = @transform_2, window_bounds = array<i64: 552, 96>}, {pipeline_mode = #tpu.pipeline_mode<synchronous>, transform_indices = @transform_3, window_bounds = array<i64: 2, 32>}]} {
    %c0 = arith.constant 0 : index
    %c0_0 = arith.constant 0 : index
    %c0_1 = arith.constant 0 : index
    %0 = vector.load %arg1[%c0, %c0_0, %c0_1] : memref<3x2x64xf32, #tpu.memory_space<vmem>>, vector<1x2x64xf32>
    %1 = vector.shape_cast %0 : vector<1x2x64xf32> to vector<2x64xf32>
    %c1 = arith.constant 1 : index
    %c0_2 = arith.constant 0 : index
    %c0_3 = arith.constant 0 : index
    %2 = vector.load %arg1[%c1, %c0_2, %c0_3] : memref<3x2x64xf32, #tpu.memory_space<vmem>>, vector<1x2x64xf32>
    %3 = vector.shape_cast %2 : vector<1x2x64xf32> to vector<2x64xf32>
    %c2 = arith.constant 2 : index
    %c0_4 = arith.constant 0 : index
    %c0_5 = arith.constant 0 : index
    %4 = vector.load %arg1[%c2, %c0_4, %c0_5] : memref<3x2x64xf32, #tpu.memory_space<vmem>>, vector<1x2x64xf32>
    %5 = vector.shape_cast %4 : vector<1x2x64xf32> to vector<2x64xf32>
    %6 = tpu.iota {dimensions = array<i32: 1>} : vector<2x64xi32>
    %7 = arith.sitofp %6 : vector<2x64xi32> to vector<2x64xf32>
    %cst = arith.constant 1.000000e+10 : f32
    %8 = vector.broadcast %cst : f32 to vector<2x64xf32>
    %cst_6 = arith.constant 0.000000e+00 : f32
    %9 = vector.broadcast %cst_6 : f32 to vector<2x64xf32>
    %10 = arith.cmpf oeq, %7, %9 : vector<2x64xf32>
    %cst_7 = arith.constant 1.000000e+00 : f32
    %cst_8 = arith.constant 0.000000e+00 : f32
    %11 = vector.broadcast %cst_7 : f32 to vector<2x64xf32>
    %12 = vector.broadcast %cst_8 : f32 to vector<2x64xf32>
    %13 = arith.select %10, %11, %12 : vector<2x64xi1>, vector<2x64xf32>
    %cst_9 = arith.constant 0.000000e+00 : f32
    %14 = vector.broadcast %cst_9 : f32 to vector<2x64xf32>
    %15 = arith.mulf %13, %1 : vector<2x64xf32>
    %cst_10 = arith.constant dense<0.000000e+00> : vector<2xf32>
    %16 = vector.multi_reduction <add>, %15, %cst_10 [1] : vector<2x64xf32> to vector<2xf32>
    %17 = vector.shape_cast %16 : vector<2xf32> to vector<2x1xf32>
    %18 = vector.broadcast %17 : vector<2x1xf32> to vector<2x64xf32>
    %19 = arith.subf %1, %18 : vector<2x64xf32>
    %20 = arith.mulf %19, %19 : vector<2x64xf32>
    %21 = arith.addf %14, %20 : vector<2x64xf32>
    %22 = arith.mulf %13, %3 : vector<2x64xf32>
    %cst_11 = arith.constant dense<0.000000e+00> : vector<2xf32>
    %23 = vector.multi_reduction <add>, %22, %cst_11 [1] : vector<2x64xf32> to vector<2xf32>
    %24 = vector.shape_cast %23 : vector<2xf32> to vector<2x1xf32>
    %25 = vector.broadcast %24 : vector<2x1xf32> to vector<2x64xf32>
    %26 = arith.subf %3, %25 : vector<2x64xf32>
    %27 = arith.mulf %26, %26 : vector<2x64xf32>
    %28 = arith.addf %21, %27 : vector<2x64xf32>
    %29 = arith.mulf %13, %5 : vector<2x64xf32>
    %cst_12 = arith.constant dense<0.000000e+00> : vector<2xf32>
    %30 = vector.multi_reduction <add>, %29, %cst_12 [1] : vector<2x64xf32> to vector<2xf32>
    %31 = vector.shape_cast %30 : vector<2xf32> to vector<2x1xf32>
    %32 = vector.broadcast %31 : vector<2x1xf32> to vector<2x64xf32>
    %33 = arith.subf %5, %32 : vector<2x64xf32>
    %34 = arith.mulf %33, %33 : vector<2x64xf32>
    %35 = arith.addf %28, %34 : vector<2x64xf32>
    %36 = tpu.concatenate %17, %24, %31 in 1 : vector<2x1xf32>, vector<2x1xf32>, vector<2x1xf32> -> vector<2x3xf32>
    %37 = vector.extract_strided_slice %36 {offsets = [0, 0], sizes = [1, 3], strides = [1, 1]} : vector<2x3xf32> to vector<1x3xf32>
    %c0_13 = arith.constant 0 : index
    %c0_14 = arith.constant 0 : index
    %38 = vector.load %arg5[%c0_13, %c0_14] : memref<16x3xf32, #tpu.memory_space<vmem>>, vector<1x3xf32>
    tpu.vector_store %arg5[%c0_13, %c0_14], %37 {strides = array<i32>} : memref<16x3xf32, #tpu.memory_space<vmem>>, vector<1x3xf32>,
    %39 = vector.extract_strided_slice %36 {offsets = [1, 0], sizes = [1, 3], strides = [1, 1]} : vector<2x3xf32> to vector<1x3xf32>
    %c8 = arith.constant 8 : index
    %c0_15 = arith.constant 0 : index
    %40 = vector.load %arg5[%c8, %c0_15] : memref<16x3xf32, #tpu.memory_space<vmem>>, vector<1x3xf32>
    tpu.vector_store %arg5[%c8, %c0_15], %39 {strides = array<i32>} : memref<16x3xf32, #tpu.memory_space<vmem>>, vector<1x3xf32>,
    %41 = arith.minimumf %8, %35 : vector<2x64xf32>
    %cst_16 = arith.constant dense<0xFF800000> : vector<2xf32>
    %42 = vector.multi_reduction <maximumf>, %41, %cst_16 [1] : vector<2x64xf32> to vector<2xf32>
    %43 = vector.shape_cast %42 : vector<2xf32> to vector<2x1xf32>
    %44 = vector.broadcast %43 : vector<2x1xf32> to vector<2x64xf32>
    %45 = arith.cmpf oge, %41, %44 : vector<2x64xf32>
    %cst_17 = arith.constant 6.400000e+01 : f32
    %46 = vector.broadcast %cst_17 : f32 to vector<2x64xf32>
    %47 = arith.select %45, %7, %46 : vector<2x64xi1>, vector<2x64xf32>
    %cst_18 = arith.constant dense<0x7F800000> : vector<2xf32>
    %48 = vector.multi_reduction <minimumf>, %47, %cst_18 [1] : vector<2x64xf32> to vector<2xf32>
    %49 = vector.shape_cast %48 : vector<2xf32> to vector<2x1xf32>
    %50 = vector.broadcast %49 : vector<2x1xf32> to vector<2x64xf32>
    %51 = arith.cmpf oeq, %7, %50 : vector<2x64xf32>
    %cst_19 = arith.constant 1.000000e+00 : f32
    %cst_20 = arith.constant 0.000000e+00 : f32
    %52 = vector.broadcast %cst_19 : f32 to vector<2x64xf32>
    %53 = vector.broadcast %cst_20 : f32 to vector<2x64xf32>
    %54 = arith.select %51, %52, %53 : vector<2x64xi1>, vector<2x64xf32>
    %cst_21 = arith.constant 0.000000e+00 : f32
    %55 = vector.broadcast %cst_21 : f32 to vector<2x64xf32>
    %56 = arith.mulf %54, %1 : vector<2x64xf32>
    %cst_22 = arith.constant dense<0.000000e+00> : vector<2xf32>
    %57 = vector.multi_reduction <add>, %56, %cst_22 [1] : vector<2x64xf32> to vector<2xf32>
    %58 = vector.shape_cast %57 : vector<2xf32> to vector<2x1xf32>
    %59 = vector.broadcast %58 : vector<2x1xf32> to vector<2x64xf32>
    %60 = arith.subf %1, %59 : vector<2x64xf32>
    %61 = arith.mulf %60, %60 : vector<2x64xf32>
    %62 = arith.addf %55, %61 : vector<2x64xf32>
    %63 = arith.mulf %54, %3 : vector<2x64xf32>
    %cst_23 = arith.constant dense<0.000000e+00> : vector<2xf32>
    %64 = vector.multi_reduction <add>, %63, %cst_23 [1] : vector<2x64xf32> to vector<2xf32>
    %65 = vector.shape_cast %64 : vector<2xf32> to vector<2x1xf32>
    %66 = vector.broadcast %65 : vector<2x1xf32> to vector<2x64xf32>
    %67 = arith.subf %3, %66 : vector<2x64xf32>
    %68 = arith.mulf %67, %67 : vector<2x64xf32>
    %69 = arith.addf %62, %68 : vector<2x64xf32>
    %70 = arith.mulf %54, %5 : vector<2x64xf32>
    %cst_24 = arith.constant dense<0.000000e+00> : vector<2xf32>
    %71 = vector.multi_reduction <add>, %70, %cst_24 [1] : vector<2x64xf32> to vector<2xf32>
    %72 = vector.shape_cast %71 : vector<2xf32> to vector<2x1xf32>
    %73 = vector.broadcast %72 : vector<2x1xf32> to vector<2x64xf32>
    %74 = arith.subf %5, %73 : vector<2x64xf32>
    %75 = arith.mulf %74, %74 : vector<2x64xf32>
    %76 = arith.addf %69, %75 : vector<2x64xf32>
    %77 = tpu.concatenate %58, %65, %72 in 1 : vector<2x1xf32>, vector<2x1xf32>, vector<2x1xf32> -> vector<2x3xf32>
    %78 = vector.extract_strided_slice %77 {offsets = [0, 0], sizes = [1, 3], strides = [1, 1]} : vector<2x3xf32> to vector<1x3xf32>
    %c1_25 = arith.constant 1 : index
    %c0_26 = arith.constant 0 : index
    %79 = vector.load %arg5[%c1_25, %c0_26] : memref<16x3xf32, #tpu.memory_space<vmem>>, vector<1x3xf32>
    tpu.vector_store %arg5[%c1_25, %c0_26], %78 {strides = array<i32>} : memref<16x3xf32, #tpu.memory_space<vmem>>, vector<1x3xf32>,
    %80 = vector.extract_strided_slice %77 {offsets = [1, 0], sizes = [1, 3], strides = [1, 1]} : vector<2x3xf32> to vector<1x3xf32>
    %c9 = arith.constant 9 : index
    %c0_27 = arith.constant 0 : index
    %81 = vector.load %arg5[%c9, %c0_27] : memref<16x3xf32, #tpu.memory_space<vmem>>, vector<1x3xf32>
    tpu.vector_store %arg5[%c9, %c0_27], %80 {strides = array<i32>} : memref<16x3xf32, #tpu.memory_space<vmem>>, vector<1x3xf32>,
    %82 = arith.minimumf %41, %76 : vector<2x64xf32>
    %cst_28 = arith.constant dense<0xFF800000> : vector<2xf32>
    %83 = vector.multi_reduction <maximumf>, %82, %cst_28 [1] : vector<2x64xf32> to vector<2xf32>
    %84 = vector.shape_cast %83 : vector<2xf32> to vector<2x1xf32>
    %85 = vector.broadcast %84 : vector<2x1xf32> to vector<2x64xf32>
    %86 = arith.cmpf oge, %82, %85 : vector<2x64xf32>
    %cst_29 = arith.constant 6.400000e+01 : f32
    %87 = vector.broadcast %cst_29 : f32 to vector<2x64xf32>
    %88 = arith.select %86, %7, %87 : vector<2x64xi1>, vector<2x64xf32>
    %cst_30 = arith.constant dense<0x7F800000> : vector<2xf32>
    %89 = vector.multi_reduction <minimumf>, %88, %cst_30 [1] : vector<2x64xf32> to vector<2xf32>
    %90 = vector.shape_cast %89 : vector<2xf32> to vector<2x1xf32>
    %91 = vector.broadcast %90 : vector<2x1xf32> to vector<2x64xf32>
    %92 = arith.cmpf oeq, %7, %91 : vector<2x64xf32>
    %cst_31 = arith.constant 1.000000e+00 : f32
    %cst_32 = arith.constant 0.000000e+00 : f32
    %93 = vector.broadcast %cst_31 : f32 to vector<2x64xf32>
    %94 = vector.broadcast %cst_32 : f32 to vector<2x64xf32>
    %95 = arith.select %92, %93, %94 : vector<2x64xi1>, vector<2x64xf32>
    %cst_33 = arith.constant 0.000000e+00 : f32
    %96 = vector.broadcast %cst_33 : f32 to vector<2x64xf32>
    %97 = arith.mulf %95, %1 : vector<2x64xf32>
    %cst_34 = arith.constant dense<0.000000e+00> : vector<2xf32>
    %98 = vector.multi_reduction <add>, %97, %cst_34 [1] : vector<2x64xf32> to vector<2xf32>
    %99 = vector.shape_cast %98 : vector<2xf32> to vector<2x1xf32>
    %100 = vector.broadcast %99 : vector<2x1xf32> to vector<2x64xf32>
    %101 = arith.subf %1, %100 : vector<2x64xf32>
    %102 = arith.mulf %101, %101 : vector<2x64xf32>
    %103 = arith.addf %96, %102 : vector<2x64xf32>
    %104 = arith.mulf %95, %3 : vector<2x64xf32>
    %cst_35 = arith.constant dense<0.000000e+00> : vector<2xf32>
    %105 = vector.multi_reduction <add>, %104, %cst_35 [1] : vector<2x64xf32> to vector<2xf32>
    %106 = vector.shape_cast %105 : vector<2xf32> to vector<2x1xf32>
    %107 = vector.broadcast %106 : vector<2x1xf32> to vector<2x64xf32>
    %108 = arith.subf %3, %107 : vector<2x64xf32>
    %109 = arith.mulf %108, %108 : vector<2x64xf32>
    %110 = arith.addf %103, %109 : vector<2x64xf32>
    %111 = arith.mulf %95, %5 : vector<2x64xf32>
    %cst_36 = arith.constant dense<0.000000e+00> : vector<2xf32>
    %112 = vector.multi_reduction <add>, %111, %cst_36 [1] : vector<2x64xf32> to vector<2xf32>
    %113 = vector.shape_cast %112 : vector<2xf32> to vector<2x1xf32>
    %114 = vector.broadcast %113 : vector<2x1xf32> to vector<2x64xf32>
    %115 = arith.subf %5, %114 : vector<2x64xf32>
    %116 = arith.mulf %115, %115 : vector<2x64xf32>
    %117 = arith.addf %110, %116 : vector<2x64xf32>
    %118 = tpu.concatenate %99, %106, %113 in 1 : vector<2x1xf32>, vector<2x1xf32>, vector<2x1xf32> -> vector<2x3xf32>
    %119 = vector.extract_strided_slice %118 {offsets = [0, 0], sizes = [1, 3], strides = [1, 1]} : vector<2x3xf32> to vector<1x3xf32>
    %c2_37 = arith.constant 2 : index
    %c0_38 = arith.constant 0 : index
    %120 = vector.load %arg5[%c2_37, %c0_38] : memref<16x3xf32, #tpu.memory_space<vmem>>, vector<1x3xf32>
    tpu.vector_store %arg5[%c2_37, %c0_38], %119 {strides = array<i32>} : memref<16x3xf32, #tpu.memory_space<vmem>>, vector<1x3xf32>,
    %121 = vector.extract_strided_slice %118 {offsets = [1, 0], sizes = [1, 3], strides = [1, 1]} : vector<2x3xf32> to vector<1x3xf32>
    %c10 = arith.constant 10 : index
    %c0_39 = arith.constant 0 : index
    %122 = vector.load %arg5[%c10, %c0_39] : memref<16x3xf32, #tpu.memory_space<vmem>>, vector<1x3xf32>
    tpu.vector_store %arg5[%c10, %c0_39], %121 {strides = array<i32>} : memref<16x3xf32, #tpu.memory_space<vmem>>, vector<1x3xf32>,
    %123 = arith.minimumf %82, %117 : vector<2x64xf32>
    %cst_40 = arith.constant dense<0xFF800000> : vector<2xf32>
    %124 = vector.multi_reduction <maximumf>, %123, %cst_40 [1] : vector<2x64xf32> to vector<2xf32>
    %125 = vector.shape_cast %124 : vector<2xf32> to vector<2x1xf32>
    %126 = vector.broadcast %125 : vector<2x1xf32> to vector<2x64xf32>
    %127 = arith.cmpf oge, %123, %126 : vector<2x64xf32>
    %cst_41 = arith.constant 6.400000e+01 : f32
    %128 = vector.broadcast %cst_41 : f32 to vector<2x64xf32>
    %129 = arith.select %127, %7, %128 : vector<2x64xi1>, vector<2x64xf32>
    %cst_42 = arith.constant dense<0x7F800000> : vector<2xf32>
    %130 = vector.multi_reduction <minimumf>, %129, %cst_42 [1] : vector<2x64xf32> to vector<2xf32>
    %131 = vector.shape_cast %130 : vector<2xf32> to vector<2x1xf32>
    %132 = vector.broadcast %131 : vector<2x1xf32> to vector<2x64xf32>
    %133 = arith.cmpf oeq, %7, %132 : vector<2x64xf32>
    %cst_43 = arith.constant 1.000000e+00 : f32
    %cst_44 = arith.constant 0.000000e+00 : f32
    %134 = vector.broadcast %cst_43 : f32 to vector<2x64xf32>
    %135 = vector.broadcast %cst_44 : f32 to vector<2x64xf32>
    %136 = arith.select %133, %134, %135 : vector<2x64xi1>, vector<2x64xf32>
    %cst_45 = arith.constant 0.000000e+00 : f32
    %137 = vector.broadcast %cst_45 : f32 to vector<2x64xf32>
    %138 = arith.mulf %136, %1 : vector<2x64xf32>
    %cst_46 = arith.constant dense<0.000000e+00> : vector<2xf32>
    %139 = vector.multi_reduction <add>, %138, %cst_46 [1] : vector<2x64xf32> to vector<2xf32>
    %140 = vector.shape_cast %139 : vector<2xf32> to vector<2x1xf32>
    %141 = vector.broadcast %140 : vector<2x1xf32> to vector<2x64xf32>
    %142 = arith.subf %1, %141 : vector<2x64xf32>
    %143 = arith.mulf %142, %142 : vector<2x64xf32>
    %144 = arith.addf %137, %143 : vector<2x64xf32>
    %145 = arith.mulf %136, %3 : vector<2x64xf32>
    %cst_47 = arith.constant dense<0.000000e+00> : vector<2xf32>
    %146 = vector.multi_reduction <add>, %145, %cst_47 [1] : vector<2x64xf32> to vector<2xf32>
    %147 = vector.shape_cast %146 : vector<2xf32> to vector<2x1xf32>
    %148 = vector.broadcast %147 : vector<2x1xf32> to vector<2x64xf32>
    %149 = arith.subf %3, %148 : vector<2x64xf32>
    %150 = arith.mulf %149, %149 : vector<2x64xf32>
    %151 = arith.addf %144, %150 : vector<2x64xf32>
    %152 = arith.mulf %136, %5 : vector<2x64xf32>
    %cst_48 = arith.constant dense<0.000000e+00> : vector<2xf32>
    %153 = vector.multi_reduction <add>, %152, %cst_48 [1] : vector<2x64xf32> to vector<2xf32>
    %154 = vector.shape_cast %153 : vector<2xf32> to vector<2x1xf32>
    %155 = vector.broadcast %154 : vector<2x1xf32> to vector<2x64xf32>
    %156 = arith.subf %5, %155 : vector<2x64xf32>
    %157 = arith.mulf %156, %156 : vector<2x64xf32>
    %158 = arith.addf %151, %157 : vector<2x64xf32>
    %159 = tpu.concatenate %140, %147, %154 in 1 : vector<2x1xf32>, vector<2x1xf32>, vector<2x1xf32> -> vector<2x3xf32>
    %160 = vector.extract_strided_slice %159 {offsets = [0, 0], sizes = [1, 3], strides = [1, 1]} : vector<2x3xf32> to vector<1x3xf32>
    %c3 = arith.constant 3 : index
    %c0_49 = arith.constant 0 : index
    %161 = vector.load %arg5[%c3, %c0_49] : memref<16x3xf32, #tpu.memory_space<vmem>>, vector<1x3xf32>
    tpu.vector_store %arg5[%c3, %c0_49], %160 {strides = array<i32>} : memref<16x3xf32, #tpu.memory_space<vmem>>, vector<1x3xf32>,
    %162 = vector.extract_strided_slice %159 {offsets = [1, 0], sizes = [1, 3], strides = [1, 1]} : vector<2x3xf32> to vector<1x3xf32>
    %c11 = arith.constant 11 : index
    %c0_50 = arith.constant 0 : index
    %163 = vector.load %arg5[%c11, %c0_50] : memref<16x3xf32, #tpu.memory_space<vmem>>, vector<1x3xf32>
    tpu.vector_store %arg5[%c11, %c0_50], %162 {strides = array<i32>} : memref<16x3xf32, #tpu.memory_space<vmem>>, vector<1x3xf32>,
    %164 = arith.minimumf %123, %158 : vector<2x64xf32>
    %cst_51 = arith.constant dense<0xFF800000> : vector<2xf32>
    %165 = vector.multi_reduction <maximumf>, %164, %cst_51 [1] : vector<2x64xf32> to vector<2xf32>
    %166 = vector.shape_cast %165 : vector<2xf32> to vector<2x1xf32>
    %167 = vector.broadcast %166 : vector<2x1xf32> to vector<2x64xf32>
    %168 = arith.cmpf oge, %164, %167 : vector<2x64xf32>
    %cst_52 = arith.constant 6.400000e+01 : f32
    %169 = vector.broadcast %cst_52 : f32 to vector<2x64xf32>
    %170 = arith.select %168, %7, %169 : vector<2x64xi1>, vector<2x64xf32>
    %cst_53 = arith.constant dense<0x7F800000> : vector<2xf32>
    %171 = vector.multi_reduction <minimumf>, %170, %cst_53 [1] : vector<2x64xf32> to vector<2xf32>
    %172 = vector.shape_cast %171 : vector<2xf32> to vector<2x1xf32>
    %173 = vector.broadcast %172 : vector<2x1xf32> to vector<2x64xf32>
    %174 = arith.cmpf oeq, %7, %173 : vector<2x64xf32>
    %cst_54 = arith.constant 1.000000e+00 : f32
    %cst_55 = arith.constant 0.000000e+00 : f32
    %175 = vector.broadcast %cst_54 : f32 to vector<2x64xf32>
    %176 = vector.broadcast %cst_55 : f32 to vector<2x64xf32>
    %177 = arith.select %174, %175, %176 : vector<2x64xi1>, vector<2x64xf32>
    %cst_56 = arith.constant 0.000000e+00 : f32
    %178 = vector.broadcast %cst_56 : f32 to vector<2x64xf32>
    %179 = arith.mulf %177, %1 : vector<2x64xf32>
    %cst_57 = arith.constant dense<0.000000e+00> : vector<2xf32>
    %180 = vector.multi_reduction <add>, %179, %cst_57 [1] : vector<2x64xf32> to vector<2xf32>
    %181 = vector.shape_cast %180 : vector<2xf32> to vector<2x1xf32>
    %182 = vector.broadcast %181 : vector<2x1xf32> to vector<2x64xf32>
    %183 = arith.subf %1, %182 : vector<2x64xf32>
    %184 = arith.mulf %183, %183 : vector<2x64xf32>
    %185 = arith.addf %178, %184 : vector<2x64xf32>
    %186 = arith.mulf %177, %3 : vector<2x64xf32>
    %cst_58 = arith.constant dense<0.000000e+00> : vector<2xf32>
    %187 = vector.multi_reduction <add>, %186, %cst_58 [1] : vector<2x64xf32> to vector<2xf32>
    %188 = vector.shape_cast %187 : vector<2xf32> to vector<2x1xf32>
    %189 = vector.broadcast %188 : vector<2x1xf32> to vector<2x64xf32>
    %190 = arith.subf %3, %189 : vector<2x64xf32>
    %191 = arith.mulf %190, %190 : vector<2x64xf32>
    %192 = arith.addf %185, %191 : vector<2x64xf32>
    %193 = arith.mulf %177, %5 : vector<2x64xf32>
    %cst_59 = arith.constant dense<0.000000e+00> : vector<2xf32>
    %194 = vector.multi_reduction <add>, %193, %cst_59 [1] : vector<2x64xf32> to vector<2xf32>
    %195 = vector.shape_cast %194 : vector<2xf32> to vector<2x1xf32>
    %196 = vector.broadcast %195 : vector<2x1xf32> to vector<2x64xf32>
    %197 = arith.subf %5, %196 : vector<2x64xf32>
    %198 = arith.mulf %197, %197 : vector<2x64xf32>
    %199 = arith.addf %192, %198 : vector<2x64xf32>
    %200 = tpu.concatenate %181, %188, %195 in 1 : vector<2x1xf32>, vector<2x1xf32>, vector<2x1xf32> -> vector<2x3xf32>
    %201 = vector.extract_strided_slice %200 {offsets = [0, 0], sizes = [1, 3], strides = [1, 1]} : vector<2x3xf32> to vector<1x3xf32>
    %c4 = arith.constant 4 : index
    %c0_60 = arith.constant 0 : index
    %202 = vector.load %arg5[%c4, %c0_60] : memref<16x3xf32, #tpu.memory_space<vmem>>, vector<1x3xf32>
    tpu.vector_store %arg5[%c4, %c0_60], %201 {strides = array<i32>} : memref<16x3xf32, #tpu.memory_space<vmem>>, vector<1x3xf32>,
    %203 = vector.extract_strided_slice %200 {offsets = [1, 0], sizes = [1, 3], strides = [1, 1]} : vector<2x3xf32> to vector<1x3xf32>
    %c12 = arith.constant 12 : index
    %c0_61 = arith.constant 0 : index
    %204 = vector.load %arg5[%c12, %c0_61] : memref<16x3xf32, #tpu.memory_space<vmem>>, vector<1x3xf32>
    tpu.vector_store %arg5[%c12, %c0_61], %203 {strides = array<i32>} : memref<16x3xf32, #tpu.memory_space<vmem>>, vector<1x3xf32>,
    %205 = arith.minimumf %164, %199 : vector<2x64xf32>
    %cst_62 = arith.constant dense<0xFF800000> : vector<2xf32>
    %206 = vector.multi_reduction <maximumf>, %205, %cst_62 [1] : vector<2x64xf32> to vector<2xf32>
    %207 = vector.shape_cast %206 : vector<2xf32> to vector<2x1xf32>
    %208 = vector.broadcast %207 : vector<2x1xf32> to vector<2x64xf32>
    %209 = arith.cmpf oge, %205, %208 : vector<2x64xf32>
    %cst_63 = arith.constant 6.400000e+01 : f32
    %210 = vector.broadcast %cst_63 : f32 to vector<2x64xf32>
    %211 = arith.select %209, %7, %210 : vector<2x64xi1>, vector<2x64xf32>
    %cst_64 = arith.constant dense<0x7F800000> : vector<2xf32>
    %212 = vector.multi_reduction <minimumf>, %211, %cst_64 [1] : vector<2x64xf32> to vector<2xf32>
    %213 = vector.shape_cast %212 : vector<2xf32> to vector<2x1xf32>
    %214 = vector.broadcast %213 : vector<2x1xf32> to vector<2x64xf32>
    %215 = arith.cmpf oeq, %7, %214 : vector<2x64xf32>
    %cst_65 = arith.constant 1.000000e+00 : f32
    %cst_66 = arith.constant 0.000000e+00 : f32
    %216 = vector.broadcast %cst_65 : f32 to vector<2x64xf32>
    %217 = vector.broadcast %cst_66 : f32 to vector<2x64xf32>
    %218 = arith.select %215, %216, %217 : vector<2x64xi1>, vector<2x64xf32>
    %cst_67 = arith.constant 0.000000e+00 : f32
    %219 = vector.broadcast %cst_67 : f32 to vector<2x64xf32>
    %220 = arith.mulf %218, %1 : vector<2x64xf32>
    %cst_68 = arith.constant dense<0.000000e+00> : vector<2xf32>
    %221 = vector.multi_reduction <add>, %220, %cst_68 [1] : vector<2x64xf32> to vector<2xf32>
    %222 = vector.shape_cast %221 : vector<2xf32> to vector<2x1xf32>
    %223 = vector.broadcast %222 : vector<2x1xf32> to vector<2x64xf32>
    %224 = arith.subf %1, %223 : vector<2x64xf32>
    %225 = arith.mulf %224, %224 : vector<2x64xf32>
    %226 = arith.addf %219, %225 : vector<2x64xf32>
    %227 = arith.mulf %218, %3 : vector<2x64xf32>
    %cst_69 = arith.constant dense<0.000000e+00> : vector<2xf32>
    %228 = vector.multi_reduction <add>, %227, %cst_69 [1] : vector<2x64xf32> to vector<2xf32>
    %229 = vector.shape_cast %228 : vector<2xf32> to vector<2x1xf32>
    %230 = vector.broadcast %229 : vector<2x1xf32> to vector<2x64xf32>
    %231 = arith.subf %3, %230 : vector<2x64xf32>
    %232 = arith.mulf %231, %231 : vector<2x64xf32>
    %233 = arith.addf %226, %232 : vector<2x64xf32>
    %234 = arith.mulf %218, %5 : vector<2x64xf32>
    %cst_70 = arith.constant dense<0.000000e+00> : vector<2xf32>
    %235 = vector.multi_reduction <add>, %234, %cst_70 [1] : vector<2x64xf32> to vector<2xf32>
    %236 = vector.shape_cast %235 : vector<2xf32> to vector<2x1xf32>
    %237 = vector.broadcast %236 : vector<2x1xf32> to vector<2x64xf32>
    %238 = arith.subf %5, %237 : vector<2x64xf32>
    %239 = arith.mulf %238, %238 : vector<2x64xf32>
    %240 = arith.addf %233, %239 : vector<2x64xf32>
    %241 = tpu.concatenate %222, %229, %236 in 1 : vector<2x1xf32>, vector<2x1xf32>, vector<2x1xf32> -> vector<2x3xf32>
    %242 = vector.extract_strided_slice %241 {offsets = [0, 0], sizes = [1, 3], strides = [1, 1]} : vector<2x3xf32> to vector<1x3xf32>
    %c5 = arith.constant 5 : index
    %c0_71 = arith.constant 0 : index
    %243 = vector.load %arg5[%c5, %c0_71] : memref<16x3xf32, #tpu.memory_space<vmem>>, vector<1x3xf32>
    tpu.vector_store %arg5[%c5, %c0_71], %242 {strides = array<i32>} : memref<16x3xf32, #tpu.memory_space<vmem>>, vector<1x3xf32>,
    %244 = vector.extract_strided_slice %241 {offsets = [1, 0], sizes = [1, 3], strides = [1, 1]} : vector<2x3xf32> to vector<1x3xf32>
    %c13 = arith.constant 13 : index
    %c0_72 = arith.constant 0 : index
    %245 = vector.load %arg5[%c13, %c0_72] : memref<16x3xf32, #tpu.memory_space<vmem>>, vector<1x3xf32>
    tpu.vector_store %arg5[%c13, %c0_72], %244 {strides = array<i32>} : memref<16x3xf32, #tpu.memory_space<vmem>>, vector<1x3xf32>,
    %246 = arith.minimumf %205, %240 : vector<2x64xf32>
    %cst_73 = arith.constant dense<0xFF800000> : vector<2xf32>
    %247 = vector.multi_reduction <maximumf>, %246, %cst_73 [1] : vector<2x64xf32> to vector<2xf32>
    %248 = vector.shape_cast %247 : vector<2xf32> to vector<2x1xf32>
    %249 = vector.broadcast %248 : vector<2x1xf32> to vector<2x64xf32>
    %250 = arith.cmpf oge, %246, %249 : vector<2x64xf32>
    %cst_74 = arith.constant 6.400000e+01 : f32
    %251 = vector.broadcast %cst_74 : f32 to vector<2x64xf32>
    %252 = arith.select %250, %7, %251 : vector<2x64xi1>, vector<2x64xf32>
    %cst_75 = arith.constant dense<0x7F800000> : vector<2xf32>
    %253 = vector.multi_reduction <minimumf>, %252, %cst_75 [1] : vector<2x64xf32> to vector<2xf32>
    %254 = vector.shape_cast %253 : vector<2xf32> to vector<2x1xf32>
    %255 = vector.broadcast %254 : vector<2x1xf32> to vector<2x64xf32>
    %256 = arith.cmpf oeq, %7, %255 : vector<2x64xf32>
    %cst_76 = arith.constant 1.000000e+00 : f32
    %cst_77 = arith.constant 0.000000e+00 : f32
    %257 = vector.broadcast %cst_76 : f32 to vector<2x64xf32>
    %258 = vector.broadcast %cst_77 : f32 to vector<2x64xf32>
    %259 = arith.select %256, %257, %258 : vector<2x64xi1>, vector<2x64xf32>
    %cst_78 = arith.constant 0.000000e+00 : f32
    %260 = vector.broadcast %cst_78 : f32 to vector<2x64xf32>
    %261 = arith.mulf %259, %1 : vector<2x64xf32>
    %cst_79 = arith.constant dense<0.000000e+00> : vector<2xf32>
    %262 = vector.multi_reduction <add>, %261, %cst_79 [1] : vector<2x64xf32> to vector<2xf32>
    %263 = vector.shape_cast %262 : vector<2xf32> to vector<2x1xf32>
    %264 = vector.broadcast %263 : vector<2x1xf32> to vector<2x64xf32>
    %265 = arith.subf %1, %264 : vector<2x64xf32>
    %266 = arith.mulf %265, %265 : vector<2x64xf32>
    %267 = arith.addf %260, %266 : vector<2x64xf32>
    %268 = arith.mulf %259, %3 : vector<2x64xf32>
    %cst_80 = arith.constant dense<0.000000e+00> : vector<2xf32>
    %269 = vector.multi_reduction <add>, %268, %cst_80 [1] : vector<2x64xf32> to vector<2xf32>
    %270 = vector.shape_cast %269 : vector<2xf32> to vector<2x1xf32>
    %271 = vector.broadcast %270 : vector<2x1xf32> to vector<2x64xf32>
    %272 = arith.subf %3, %271 : vector<2x64xf32>
    %273 = arith.mulf %272, %272 : vector<2x64xf32>
    %274 = arith.addf %267, %273 : vector<2x64xf32>
    %275 = arith.mulf %259, %5 : vector<2x64xf32>
    %cst_81 = arith.constant dense<0.000000e+00> : vector<2xf32>
    %276 = vector.multi_reduction <add>, %275, %cst_81 [1] : vector<2x64xf32> to vector<2xf32>
    %277 = vector.shape_cast %276 : vector<2xf32> to vector<2x1xf32>
    %278 = vector.broadcast %277 : vector<2x1xf32> to vector<2x64xf32>
    %279 = arith.subf %5, %278 : vector<2x64xf32>
    %280 = arith.mulf %279, %279 : vector<2x64xf32>
    %281 = arith.addf %274, %280 : vector<2x64xf32>
    %282 = tpu.concatenate %263, %270, %277 in 1 : vector<2x1xf32>, vector<2x1xf32>, vector<2x1xf32> -> vector<2x3xf32>
    %283 = vector.extract_strided_slice %282 {offsets = [0, 0], sizes = [1, 3], strides = [1, 1]} : vector<2x3xf32> to vector<1x3xf32>
    %c6 = arith.constant 6 : index
    %c0_82 = arith.constant 0 : index
    %284 = vector.load %arg5[%c6, %c0_82] : memref<16x3xf32, #tpu.memory_space<vmem>>, vector<1x3xf32>
    tpu.vector_store %arg5[%c6, %c0_82], %283 {strides = array<i32>} : memref<16x3xf32, #tpu.memory_space<vmem>>, vector<1x3xf32>,
    %285 = vector.extract_strided_slice %282 {offsets = [1, 0], sizes = [1, 3], strides = [1, 1]} : vector<2x3xf32> to vector<1x3xf32>
    %c14 = arith.constant 14 : index
    %c0_83 = arith.constant 0 : index
    %286 = vector.load %arg5[%c14, %c0_83] : memref<16x3xf32, #tpu.memory_space<vmem>>, vector<1x3xf32>
    tpu.vector_store %arg5[%c14, %c0_83], %285 {strides = array<i32>} : memref<16x3xf32, #tpu.memory_space<vmem>>, vector<1x3xf32>,
    %287 = arith.minimumf %246, %281 : vector<2x64xf32>
    %cst_84 = arith.constant dense<0xFF800000> : vector<2xf32>
    %288 = vector.multi_reduction <maximumf>, %287, %cst_84 [1] : vector<2x64xf32> to vector<2xf32>
    %289 = vector.shape_cast %288 : vector<2xf32> to vector<2x1xf32>
    %290 = vector.broadcast %289 : vector<2x1xf32> to vector<2x64xf32>
    %291 = arith.cmpf oge, %287, %290 : vector<2x64xf32>
    %cst_85 = arith.constant 6.400000e+01 : f32
    %292 = vector.broadcast %cst_85 : f32 to vector<2x64xf32>
    %293 = arith.select %291, %7, %292 : vector<2x64xi1>, vector<2x64xf32>
    %cst_86 = arith.constant dense<0x7F800000> : vector<2xf32>
    %294 = vector.multi_reduction <minimumf>, %293, %cst_86 [1] : vector<2x64xf32> to vector<2xf32>
    %295 = vector.shape_cast %294 : vector<2xf32> to vector<2x1xf32>
    %296 = vector.broadcast %295 : vector<2x1xf32> to vector<2x64xf32>
    %297 = arith.cmpf oeq, %7, %296 : vector<2x64xf32>
    %cst_87 = arith.constant 1.000000e+00 : f32
    %cst_88 = arith.constant 0.000000e+00 : f32
    %298 = vector.broadcast %cst_87 : f32 to vector<2x64xf32>
    %299 = vector.broadcast %cst_88 : f32 to vector<2x64xf32>
    %300 = arith.select %297, %298, %299 : vector<2x64xi1>, vector<2x64xf32>
    %301 = arith.mulf %300, %1 : vector<2x64xf32>
    %cst_89 = arith.constant dense<0.000000e+00> : vector<2xf32>
    %302 = vector.multi_reduction <add>, %301, %cst_89 [1] : vector<2x64xf32> to vector<2xf32>
    %303 = vector.shape_cast %302 : vector<2xf32> to vector<2x1xf32>
    %304 = arith.mulf %300, %3 : vector<2x64xf32>
    %cst_90 = arith.constant dense<0.000000e+00> : vector<2xf32>
    %305 = vector.multi_reduction <add>, %304, %cst_90 [1] : vector<2x64xf32> to vector<2xf32>
    %306 = vector.shape_cast %305 : vector<2xf32> to vector<2x1xf32>
    %307 = arith.mulf %300, %5 : vector<2x64xf32>
    %cst_91 = arith.constant dense<0.000000e+00> : vector<2xf32>
    %308 = vector.multi_reduction <add>, %307, %cst_91 [1] : vector<2x64xf32> to vector<2xf32>
    %309 = vector.shape_cast %308 : vector<2xf32> to vector<2x1xf32>
    %310 = tpu.concatenate %303, %306, %309 in 1 : vector<2x1xf32>, vector<2x1xf32>, vector<2x1xf32> -> vector<2x3xf32>
    %311 = vector.extract_strided_slice %310 {offsets = [0, 0], sizes = [1, 3], strides = [1, 1]} : vector<2x3xf32> to vector<1x3xf32>
    %c7 = arith.constant 7 : index
    %c0_92 = arith.constant 0 : index
    %312 = vector.load %arg5[%c7, %c0_92] : memref<16x3xf32, #tpu.memory_space<vmem>>, vector<1x3xf32>
    tpu.vector_store %arg5[%c7, %c0_92], %311 {strides = array<i32>} : memref<16x3xf32, #tpu.memory_space<vmem>>, vector<1x3xf32>,
    %313 = vector.extract_strided_slice %310 {offsets = [1, 0], sizes = [1, 3], strides = [1, 1]} : vector<2x3xf32> to vector<1x3xf32>
    %c15 = arith.constant 15 : index
    %c0_93 = arith.constant 0 : index
    %314 = vector.load %arg5[%c15, %c0_93] : memref<16x3xf32, #tpu.memory_space<vmem>>, vector<1x3xf32>
    tpu.vector_store %arg5[%c15, %c0_93], %313 {strides = array<i32>} : memref<16x3xf32, #tpu.memory_space<vmem>>, vector<1x3xf32>,
    %c0_94 = arith.constant 0 : index
    %c0_95 = arith.constant 0 : index
    %315 = vector.load %arg5[%c0_94, %c0_95] : memref<16x3xf32, #tpu.memory_space<vmem>>, vector<16x3xf32>
    %316 = tpu.iota {dimensions = array<i32: 1>} : vector<16x64xi32>
    %317 = arith.sitofp %316 : vector<16x64xi32> to vector<16x64xf32>
    %cst_96 = arith.constant 0.000000e+00 : f32
    %318 = vector.broadcast %cst_96 : f32 to vector<16x64xf32>
    %319 = vector.extract_strided_slice %1 {offsets = [0, 0], sizes = [1, 64], strides = [1, 1]} : vector<2x64xf32> to vector<1x64xf32>
    %320 = vector.shape_cast %319 : vector<1x64xf32> to vector<1x64xf32>
    %321 = vector.broadcast %320 : vector<1x64xf32> to vector<8x64xf32>
    %322 = vector.extract_strided_slice %1 {offsets = [1, 0], sizes = [1, 64], strides = [1, 1]} : vector<2x64xf32> to vector<1x64xf32>
    %323 = vector.shape_cast %322 : vector<1x64xf32> to vector<1x64xf32>
    %324 = vector.broadcast %323 : vector<1x64xf32> to vector<8x64xf32>
    %325 = tpu.concatenate %321, %324 in 0 : vector<8x64xf32>, vector<8x64xf32> -> vector<16x64xf32>
    %326 = vector.extract_strided_slice %315 {offsets = [0, 0], sizes = [16, 1], strides = [1, 1]} : vector<16x3xf32> to vector<16x1xf32>
    %327 = vector.broadcast %326 : vector<16x1xf32> to vector<16x64xf32>
    %328 = arith.subf %327, %325 : vector<16x64xf32>
    %329 = arith.mulf %328, %328 : vector<16x64xf32>
    %330 = arith.addf %318, %329 : vector<16x64xf32>
    %331 = vector.extract_strided_slice %3 {offsets = [0, 0], sizes = [1, 64], strides = [1, 1]} : vector<2x64xf32> to vector<1x64xf32>
    %332 = vector.shape_cast %331 : vector<1x64xf32> to vector<1x64xf32>
    %333 = vector.broadcast %332 : vector<1x64xf32> to vector<8x64xf32>
    %334 = vector.extract_strided_slice %3 {offsets = [1, 0], sizes = [1, 64], strides = [1, 1]} : vector<2x64xf32> to vector<1x64xf32>
    %335 = vector.shape_cast %334 : vector<1x64xf32> to vector<1x64xf32>
    %336 = vector.broadcast %335 : vector<1x64xf32> to vector<8x64xf32>
    %337 = tpu.concatenate %333, %336 in 0 : vector<8x64xf32>, vector<8x64xf32> -> vector<16x64xf32>
    %338 = vector.extract_strided_slice %315 {offsets = [0, 1], sizes = [16, 1], strides = [1, 1]} : vector<16x3xf32> to vector<16x1xf32>
    %339 = vector.broadcast %338 : vector<16x1xf32> to vector<16x64xf32>
    %340 = arith.subf %339, %337 : vector<16x64xf32>
    %341 = arith.mulf %340, %340 : vector<16x64xf32>
    %342 = arith.addf %330, %341 : vector<16x64xf32>
    %343 = vector.extract_strided_slice %5 {offsets = [0, 0], sizes = [1, 64], strides = [1, 1]} : vector<2x64xf32> to vector<1x64xf32>
    %344 = vector.shape_cast %343 : vector<1x64xf32> to vector<1x64xf32>
    %345 = vector.broadcast %344 : vector<1x64xf32> to vector<8x64xf32>
    %346 = vector.extract_strided_slice %5 {offsets = [1, 0], sizes = [1, 64], strides = [1, 1]} : vector<2x64xf32> to vector<1x64xf32>
    %347 = vector.shape_cast %346 : vector<1x64xf32> to vector<1x64xf32>
    %348 = vector.broadcast %347 : vector<1x64xf32> to vector<8x64xf32>
    %349 = tpu.concatenate %345, %348 in 0 : vector<8x64xf32>, vector<8x64xf32> -> vector<16x64xf32>
    %350 = vector.extract_strided_slice %315 {offsets = [0, 2], sizes = [16, 1], strides = [1, 1]} : vector<16x3xf32> to vector<16x1xf32>
    %351 = vector.broadcast %350 : vector<16x1xf32> to vector<16x64xf32>
    %352 = arith.subf %351, %349 : vector<16x64xf32>
    %353 = arith.mulf %352, %352 : vector<16x64xf32>
    %354 = arith.addf %342, %353 : vector<16x64xf32>
    %cst_97 = arith.constant 9.000000e-02 : f32
    %355 = vector.broadcast %cst_97 : f32 to vector<16x64xf32>
    %356 = arith.cmpf ogt, %354, %355 : vector<16x64xf32>
    %cst_98 = arith.constant 6.400000e+01 : f32
    %357 = vector.broadcast %cst_98 : f32 to vector<16x64xf32>
    %358 = arith.select %356, %357, %317 : vector<16x64xi1>, vector<16x64xf32>
    %c192 = arith.constant 192 : index
    %c0_99 = arith.constant 0 : index
    %359 = vector.load %arg3[%c192, %c0_99] : memref<552x96xf32, #tpu.memory_space<vmem>>, vector<16x1xf32>
    %360 = tpu.iota {dimensions = array<i32: 1>} : vector<1x128xi32>
    %361 = arith.sitofp %360 : vector<1x128xi32> to vector<1x128xf32>
    %cst_100 = arith.constant dense<0x7F800000> : vector<16xf32>
    %362 = vector.multi_reduction <minimumf>, %358, %cst_100 [1] : vector<16x64xf32> to vector<16xf32>
    %363 = vector.shape_cast %362 : vector<16xf32> to vector<16x1xf32>
    %364 = vector.broadcast %363 : vector<16x1xf32> to vector<16x64xf32>
    %365 = arith.cmpf oeq, %358, %364 : vector<16x64xf32>
    %cst_101 = arith.constant 6.400000e+01 : f32
    %366 = vector.broadcast %cst_101 : f32 to vector<16x64xf32>
    %367 = arith.select %365, %366, %358 : vector<16x64xi1>, vector<16x64xf32>
    %368 = arith.addf %363, %359 : vector<16x1xf32>
    %369 = vector.broadcast %361 : vector<1x128xf32> to vector<16x128xf32>
    %370 = vector.broadcast %368 : vector<16x1xf32> to vector<16x128xf32>
    %371 = arith.cmpf oeq, %369, %370 : vector<16x128xf32>
    %cst_102 = arith.constant 1.000000e+00 : f32
    %cst_103 = arith.constant 0.000000e+00 : f32
    %372 = vector.broadcast %cst_102 : f32 to vector<16x128xf32>
    %373 = vector.broadcast %cst_103 : f32 to vector<16x128xf32>
    %374 = arith.select %371, %372, %373 : vector<16x128xi1>, vector<16x128xf32>
    %cst_104 = arith.constant dense<0x7F800000> : vector<16xf32>
    %375 = vector.multi_reduction <minimumf>, %367, %cst_104 [1] : vector<16x64xf32> to vector<16xf32>
    %376 = vector.shape_cast %375 : vector<16xf32> to vector<16x1xf32>
    %cst_105 = arith.constant 6.400000e+01 : f32
    %377 = vector.broadcast %cst_105 : f32 to vector<16x1xf32>
    %378 = arith.cmpf oge, %376, %377 : vector<16x1xf32>
    %379 = arith.select %378, %363, %376 : vector<16x1xi1>, vector<16x1xf32>
    %380 = vector.broadcast %376 : vector<16x1xf32> to vector<16x64xf32>
    %381 = arith.cmpf oeq, %367, %380 : vector<16x64xf32>
    %cst_106 = arith.constant 6.400000e+01 : f32
    %382 = vector.broadcast %cst_106 : f32 to vector<16x64xf32>
    %383 = arith.select %381, %382, %367 : vector<16x64xi1>, vector<16x64xf32>
    %384 = arith.addf %379, %359 : vector<16x1xf32>
    %385 = vector.broadcast %361 : vector<1x128xf32> to vector<16x128xf32>
    %386 = vector.broadcast %384 : vector<16x1xf32> to vector<16x128xf32>
    %387 = arith.cmpf oeq, %385, %386 : vector<16x128xf32>
    %cst_107 = arith.constant 1.000000e+00 : f32
    %cst_108 = arith.constant 0.000000e+00 : f32
    %388 = vector.broadcast %cst_107 : f32 to vector<16x128xf32>
    %389 = vector.broadcast %cst_108 : f32 to vector<16x128xf32>
    %390 = arith.select %387, %388, %389 : vector<16x128xi1>, vector<16x128xf32>
    %cst_109 = arith.constant dense<0x7F800000> : vector<16xf32>
    %391 = vector.multi_reduction <minimumf>, %383, %cst_109 [1] : vector<16x64xf32> to vector<16xf32>
    %392 = vector.shape_cast %391 : vector<16xf32> to vector<16x1xf32>
    %cst_110 = arith.constant 6.400000e+01 : f32
    %393 = vector.broadcast %cst_110 : f32 to vector<16x1xf32>
    %394 = arith.cmpf oge, %392, %393 : vector<16x1xf32>
    %395 = arith.select %394, %363, %392 : vector<16x1xi1>, vector<16x1xf32>
    %396 = vector.broadcast %392 : vector<16x1xf32> to vector<16x64xf32>
    %397 = arith.cmpf oeq, %383, %396 : vector<16x64xf32>
    %cst_111 = arith.constant 6.400000e+01 : f32
    %398 = vector.broadcast %cst_111 : f32 to vector<16x64xf32>
    %399 = arith.select %397, %398, %383 : vector<16x64xi1>, vector<16x64xf32>
    %400 = arith.addf %395, %359 : vector<16x1xf32>
    %401 = vector.broadcast %361 : vector<1x128xf32> to vector<16x128xf32>
    %402 = vector.broadcast %400 : vector<16x1xf32> to vector<16x128xf32>
    %403 = arith.cmpf oeq, %401, %402 : vector<16x128xf32>
    %cst_112 = arith.constant 1.000000e+00 : f32
    %cst_113 = arith.constant 0.000000e+00 : f32
    %404 = vector.broadcast %cst_112 : f32 to vector<16x128xf32>
    %405 = vector.broadcast %cst_113 : f32 to vector<16x128xf32>
    %406 = arith.select %403, %404, %405 : vector<16x128xi1>, vector<16x128xf32>
    %cst_114 = arith.constant dense<0x7F800000> : vector<16xf32>
    %407 = vector.multi_reduction <minimumf>, %399, %cst_114 [1] : vector<16x64xf32> to vector<16xf32>
    %408 = vector.shape_cast %407 : vector<16xf32> to vector<16x1xf32>
    %cst_115 = arith.constant 6.400000e+01 : f32
    %409 = vector.broadcast %cst_115 : f32 to vector<16x1xf32>
    %410 = arith.cmpf oge, %408, %409 : vector<16x1xf32>
    %411 = arith.select %410, %363, %408 : vector<16x1xi1>, vector<16x1xf32>
    %412 = vector.broadcast %408 : vector<16x1xf32> to vector<16x64xf32>
    %413 = arith.cmpf oeq, %399, %412 : vector<16x64xf32>
    %cst_116 = arith.constant 6.400000e+01 : f32
    %414 = vector.broadcast %cst_116 : f32 to vector<16x64xf32>
    %415 = arith.select %413, %414, %399 : vector<16x64xi1>, vector<16x64xf32>
    %416 = arith.addf %411, %359 : vector<16x1xf32>
    %417 = vector.broadcast %361 : vector<1x128xf32> to vector<16x128xf32>
    %418 = vector.broadcast %416 : vector<16x1xf32> to vector<16x128xf32>
    %419 = arith.cmpf oeq, %417, %418 : vector<16x128xf32>
    %cst_117 = arith.constant 1.000000e+00 : f32
    %cst_118 = arith.constant 0.000000e+00 : f32
    %420 = vector.broadcast %cst_117 : f32 to vector<16x128xf32>
    %421 = vector.broadcast %cst_118 : f32 to vector<16x128xf32>
    %422 = arith.select %419, %420, %421 : vector<16x128xi1>, vector<16x128xf32>
    %cst_119 = arith.constant dense<0x7F800000> : vector<16xf32>
    %423 = vector.multi_reduction <minimumf>, %415, %cst_119 [1] : vector<16x64xf32> to vector<16xf32>
    %424 = vector.shape_cast %423 : vector<16xf32> to vector<16x1xf32>
    %cst_120 = arith.constant 6.400000e+01 : f32
    %425 = vector.broadcast %cst_120 : f32 to vector<16x1xf32>
    %426 = arith.cmpf oge, %424, %425 : vector<16x1xf32>
    %427 = arith.select %426, %363, %424 : vector<16x1xi1>, vector<16x1xf32>
    %428 = vector.broadcast %424 : vector<16x1xf32> to vector<16x64xf32>
    %429 = arith.cmpf oeq, %415, %428 : vector<16x64xf32>
    %cst_121 = arith.constant 6.400000e+01 : f32
    %430 = vector.broadcast %cst_121 : f32 to vector<16x64xf32>
    %431 = arith.select %429, %430, %415 : vector<16x64xi1>, vector<16x64xf32>
    %432 = arith.addf %427, %359 : vector<16x1xf32>
    %433 = vector.broadcast %361 : vector<1x128xf32> to vector<16x128xf32>
    %434 = vector.broadcast %432 : vector<16x1xf32> to vector<16x128xf32>
    %435 = arith.cmpf oeq, %433, %434 : vector<16x128xf32>
    %cst_122 = arith.constant 1.000000e+00 : f32
    %cst_123 = arith.constant 0.000000e+00 : f32
    %436 = vector.broadcast %cst_122 : f32 to vector<16x128xf32>
    %437 = vector.broadcast %cst_123 : f32 to vector<16x128xf32>
    %438 = arith.select %435, %436, %437 : vector<16x128xi1>, vector<16x128xf32>
    %cst_124 = arith.constant dense<0x7F800000> : vector<16xf32>
    %439 = vector.multi_reduction <minimumf>, %431, %cst_124 [1] : vector<16x64xf32> to vector<16xf32>
    %440 = vector.shape_cast %439 : vector<16xf32> to vector<16x1xf32>
    %cst_125 = arith.constant 6.400000e+01 : f32
    %441 = vector.broadcast %cst_125 : f32 to vector<16x1xf32>
    %442 = arith.cmpf oge, %440, %441 : vector<16x1xf32>
    %443 = arith.select %442, %363, %440 : vector<16x1xi1>, vector<16x1xf32>
    %444 = vector.broadcast %440 : vector<16x1xf32> to vector<16x64xf32>
    %445 = arith.cmpf oeq, %431, %444 : vector<16x64xf32>
    %cst_126 = arith.constant 6.400000e+01 : f32
    %446 = vector.broadcast %cst_126 : f32 to vector<16x64xf32>
    %447 = arith.select %445, %446, %431 : vector<16x64xi1>, vector<16x64xf32>
    %448 = arith.addf %443, %359 : vector<16x1xf32>
    %449 = vector.broadcast %361 : vector<1x128xf32> to vector<16x128xf32>
    %450 = vector.broadcast %448 : vector<16x1xf32> to vector<16x128xf32>
    %451 = arith.cmpf oeq, %449, %450 : vector<16x128xf32>
    %cst_127 = arith.constant 1.000000e+00 : f32
    %cst_128 = arith.constant 0.000000e+00 : f32
    %452 = vector.broadcast %cst_127 : f32 to vector<16x128xf32>
    %453 = vector.broadcast %cst_128 : f32 to vector<16x128xf32>
    %454 = arith.select %451, %452, %453 : vector<16x128xi1>, vector<16x128xf32>
    %cst_129 = arith.constant dense<0x7F800000> : vector<16xf32>
    %455 = vector.multi_reduction <minimumf>, %447, %cst_129 [1] : vector<16x64xf32> to vector<16xf32>
    %456 = vector.shape_cast %455 : vector<16xf32> to vector<16x1xf32>
    %cst_130 = arith.constant 6.400000e+01 : f32
    %457 = vector.broadcast %cst_130 : f32 to vector<16x1xf32>
    %458 = arith.cmpf oge, %456, %457 : vector<16x1xf32>
    %459 = arith.select %458, %363, %456 : vector<16x1xi1>, vector<16x1xf32>
    %460 = vector.broadcast %456 : vector<16x1xf32> to vector<16x64xf32>
    %461 = arith.cmpf oeq, %447, %460 : vector<16x64xf32>
    %cst_131 = arith.constant 6.400000e+01 : f32
    %462 = vector.broadcast %cst_131 : f32 to vector<16x64xf32>
    %463 = arith.select %461, %462, %447 : vector<16x64xi1>, vector<16x64xf32>
    %464 = arith.addf %459, %359 : vector<16x1xf32>
    %465 = vector.broadcast %361 : vector<1x128xf32> to vector<16x128xf32>
    %466 = vector.broadcast %464 : vector<16x1xf32> to vector<16x128xf32>
    %467 = arith.cmpf oeq, %465, %466 : vector<16x128xf32>
    %cst_132 = arith.constant 1.000000e+00 : f32
    %cst_133 = arith.constant 0.000000e+00 : f32
    %468 = vector.broadcast %cst_132 : f32 to vector<16x128xf32>
    %469 = vector.broadcast %cst_133 : f32 to vector<16x128xf32>
    %470 = arith.select %467, %468, %469 : vector<16x128xi1>, vector<16x128xf32>
    %cst_134 = arith.constant dense<0x7F800000> : vector<16xf32>
    %471 = vector.multi_reduction <minimumf>, %463, %cst_134 [1] : vector<16x64xf32> to vector<16xf32>
    %472 = vector.shape_cast %471 : vector<16xf32> to vector<16x1xf32>
    %cst_135 = arith.constant 6.400000e+01 : f32
    %473 = vector.broadcast %cst_135 : f32 to vector<16x1xf32>
    %474 = arith.cmpf oge, %472, %473 : vector<16x1xf32>
    %475 = arith.select %474, %363, %472 : vector<16x1xi1>, vector<16x1xf32>
    %476 = arith.addf %475, %359 : vector<16x1xf32>
    %477 = vector.broadcast %361 : vector<1x128xf32> to vector<16x128xf32>
    %478 = vector.broadcast %476 : vector<16x1xf32> to vector<16x128xf32>
    %479 = arith.cmpf oeq, %477, %478 : vector<16x128xf32>
    %cst_136 = arith.constant 1.000000e+00 : f32
    %cst_137 = arith.constant 0.000000e+00 : f32
    %480 = vector.broadcast %cst_136 : f32 to vector<16x128xf32>
    %481 = vector.broadcast %cst_137 : f32 to vector<16x128xf32>
    %482 = arith.select %479, %480, %481 : vector<16x128xi1>, vector<16x128xf32>
    %483 = tpu.concatenate %374, %390, %406, %422, %438, %454, %470, %482 in 0 : vector<16x128xf32>, vector<16x128xf32>, vector<16x128xf32>, vector<16x128xf32>, vector<16x128xf32>, vector<16x128xf32>, vector<16x128xf32>, vector<16x128xf32> -> vector<128x128xf32>
    %c0_138 = arith.constant 0 : index
    %c0_139 = arith.constant 0 : index
    %484 = vector.load %arg2[%c0_138, %c0_139] : memref<128x3xf32, #tpu.memory_space<vmem>>, vector<128x3xf32>
    %cst_140 = arith.constant dense<0.000000e+00> : vector<128x3xf32>
    %485 = tpu.matmul %483, %484, %cst_140 {dimension_numbers = #tpu.dot_dimension_numbers<[1], [0], [0], [1], [0, 0, 1, 1], [], []>} : vector<128x128xf32>, vector<128x3xf32>, vector<128x3xf32> -> vector<128x3xf32>
    %c8_141 = arith.constant 8 : index
    %c0_142 = arith.constant 0 : index
    %486 = vector.load %arg3[%c8_141, %c0_142] : memref<552x96xf32, #tpu.memory_space<vmem>>, vector<3x64xf32>
    %cst_143 = arith.constant dense<0.000000e+00> : vector<16x64xf32>
    %487 = tpu.matmul %315, %486, %cst_143 {dimension_numbers = #tpu.dot_dimension_numbers<[1], [0], [0], [1], [0, 0, 1, 1], [], []>} : vector<16x3xf32>, vector<3x64xf32>, vector<16x64xf32> -> vector<16x64xf32>
    %c528 = arith.constant 528 : index
    %c0_144 = arith.constant 0 : index
    %488 = vector.load %arg3[%c528, %c0_144] : memref<552x96xf32, #tpu.memory_space<vmem>>, vector<1x64xf32>
    %489 = vector.broadcast %488 : vector<1x64xf32> to vector<16x64xf32>
    %490 = arith.addf %487, %489 : vector<16x64xf32>
    %c0_145 = arith.constant 0 : index
    %c0_146 = arith.constant 0 : index
    %491 = vector.load %arg3[%c0_145, %c0_146] : memref<552x96xf32, #tpu.memory_space<vmem>>, vector<3x64xf32>
    %cst_147 = arith.constant dense<0.000000e+00> : vector<128x64xf32>
    %492 = tpu.matmul %485, %491, %cst_147 {dimension_numbers = #tpu.dot_dimension_numbers<[1], [0], [0], [1], [0, 0, 1, 1], [], []>} : vector<128x3xf32>, vector<3x64xf32>, vector<128x64xf32> -> vector<128x64xf32>
    %493 = tpu.concatenate %490, %490, %490, %490, %490, %490, %490, %490 in 0 : vector<16x64xf32>, vector<16x64xf32>, vector<16x64xf32>, vector<16x64xf32>, vector<16x64xf32>, vector<16x64xf32>, vector<16x64xf32>, vector<16x64xf32> -> vector<128x64xf32>
    %494 = arith.addf %492, %493 : vector<128x64xf32>
    %cst_148 = arith.constant 0.000000e+00 : f32
    %495 = vector.broadcast %cst_148 : f32 to vector<128x64xf32>
    %496 = arith.maximumf %494, %495 : vector<128x64xf32>
    %c16 = arith.constant 16 : index
    %c0_149 = arith.constant 0 : index
    %497 = vector.load %arg3[%c16, %c0_149] : memref<552x96xf32, #tpu.memory_space<vmem>>, vector<64x64xf32>
    %cst_150 = arith.constant dense<0.000000e+00> : vector<128x64xf32>
    %498 = tpu.matmul %496, %497, %cst_150 {dimension_numbers = #tpu.dot_dimension_numbers<[1], [0], [0], [1], [0, 0, 1, 1], [], []>} : vector<128x64xf32>, vector<64x64xf32>, vector<128x64xf32> -> vector<128x64xf32>
    %c529 = arith.constant 529 : index
    %c0_151 = arith.constant 0 : index
    %499 = vector.load %arg3[%c529, %c0_151] : memref<552x96xf32, #tpu.memory_space<vmem>>, vector<1x64xf32>
    %500 = vector.broadcast %499 : vector<1x64xf32> to vector<128x64xf32>
    %501 = arith.addf %498, %500 : vector<128x64xf32>
    %cst_152 = arith.constant 0.000000e+00 : f32
    %502 = vector.broadcast %cst_152 : f32 to vector<128x64xf32>
    %503 = arith.maximumf %501, %502 : vector<128x64xf32>
    %c80 = arith.constant 80 : index
    %c0_153 = arith.constant 0 : index
    %504 = vector.load %arg3[%c80, %c0_153] : memref<552x96xf32, #tpu.memory_space<vmem>>, vector<64x16xf32>
    %cst_154 = arith.constant dense<0.000000e+00> : vector<128x16xf32>
    %505 = tpu.matmul %503, %504, %cst_154 {dimension_numbers = #tpu.dot_dimension_numbers<[1], [0], [0], [1], [0, 0, 1, 1], [], []>} : vector<128x64xf32>, vector<64x16xf32>, vector<128x16xf32> -> vector<128x16xf32>
    %c530 = arith.constant 530 : index
    %c0_155 = arith.constant 0 : index
    %506 = vector.load %arg3[%c530, %c0_155] : memref<552x96xf32, #tpu.memory_space<vmem>>, vector<1x16xf32>
    %507 = vector.broadcast %506 : vector<1x16xf32> to vector<128x16xf32>
    %508 = arith.addf %505, %507 : vector<128x16xf32>
    %cst_156 = arith.constant 0.000000e+00 : f32
    %509 = vector.broadcast %cst_156 : f32 to vector<128x16xf32>
    %510 = arith.maximumf %508, %509 : vector<128x16xf32>
    %511 = vector.extract_strided_slice %510 {offsets = [0, 0], sizes = [64, 16], strides = [1, 1]} : vector<128x16xf32> to vector<64x16xf32>
    %512 = vector.extract_strided_slice %510 {offsets = [64, 0], sizes = [64, 16], strides = [1, 1]} : vector<128x16xf32> to vector<64x16xf32>
    %513 = arith.maximumf %511, %512 : vector<64x16xf32>
    %514 = vector.extract_strided_slice %513 {offsets = [0, 0], sizes = [32, 16], strides = [1, 1]} : vector<64x16xf32> to vector<32x16xf32>
    %515 = vector.extract_strided_slice %513 {offsets = [32, 0], sizes = [32, 16], strides = [1, 1]} : vector<64x16xf32> to vector<32x16xf32>
    %516 = arith.maximumf %514, %515 : vector<32x16xf32>
    %517 = vector.extract_strided_slice %516 {offsets = [0, 0], sizes = [16, 16], strides = [1, 1]} : vector<32x16xf32> to vector<16x16xf32>
    %518 = vector.extract_strided_slice %516 {offsets = [16, 0], sizes = [16, 16], strides = [1, 1]} : vector<32x16xf32> to vector<16x16xf32>
    %519 = arith.maximumf %517, %518 : vector<16x16xf32>
    %c144 = arith.constant 144 : index
    %c0_157 = arith.constant 0 : index
    %520 = vector.load %arg3[%c144, %c0_157] : memref<552x96xf32, #tpu.memory_space<vmem>>, vector<3x32xf32>
    %cst_158 = arith.constant dense<0.000000e+00> : vector<16x32xf32>
    %521 = tpu.matmul %315, %520, %cst_158 {dimension_numbers = #tpu.dot_dimension_numbers<[1], [0], [0], [1], [0, 0, 1, 1], [], []>} : vector<16x3xf32>, vector<3x32xf32>, vector<16x32xf32> -> vector<16x32xf32>
    %c152 = arith.constant 152 : index
    %c0_159 = arith.constant 0 : index
    %522 = vector.load %arg3[%c152, %c0_159] : memref<552x96xf32, #tpu.memory_space<vmem>>, vector<16x32xf32>
    %cst_160 = arith.constant dense<0.000000e+00> : vector<16x32xf32>
    %523 = tpu.matmul %519, %522, %cst_160 {dimension_numbers = #tpu.dot_dimension_numbers<[1], [0], [0], [1], [0, 0, 1, 1], [], []>} : vector<16x16xf32>, vector<16x32xf32>, vector<16x32xf32> -> vector<16x32xf32>
    %524 = arith.addf %521, %523 : vector<16x32xf32>
    %c531 = arith.constant 531 : index
    %c0_161 = arith.constant 0 : index
    %525 = vector.load %arg3[%c531, %c0_161] : memref<552x96xf32, #tpu.memory_space<vmem>>, vector<1x32xf32>
    %526 = vector.broadcast %525 : vector<1x32xf32> to vector<16x32xf32>
    %527 = arith.addf %524, %526 : vector<16x32xf32>
    %c532 = arith.constant 532 : index
    %c0_162 = arith.constant 0 : index
    %528 = vector.load %arg3[%c532, %c0_162] : memref<552x96xf32, #tpu.memory_space<vmem>>, vector<1x32xf32>
    %c533 = arith.constant 533 : index
    %c0_163 = arith.constant 0 : index
    %529 = vector.load %arg3[%c533, %c0_163] : memref<552x96xf32, #tpu.memory_space<vmem>>, vector<1x32xf32>
    %cst_164 = arith.constant dense<0.000000e+00> : vector<16xf32>
    %530 = vector.multi_reduction <add>, %527, %cst_164 [1] : vector<16x32xf32> to vector<16xf32>
    %531 = vector.shape_cast %530 : vector<16xf32> to vector<16x1xf32>
    %cst_165 = arith.constant 3.200000e+01 : f32
    %532 = vector.broadcast %cst_165 : f32 to vector<16x1xf32>
    %533 = arith.divf %531, %532 : vector<16x1xf32>
    %534 = vector.broadcast %533 : vector<16x1xf32> to vector<16x32xf32>
    %535 = arith.subf %527, %534 : vector<16x32xf32>
    %536 = arith.mulf %535, %535 : vector<16x32xf32>
    %cst_166 = arith.constant dense<0.000000e+00> : vector<16xf32>
    %537 = vector.multi_reduction <add>, %536, %cst_166 [1] : vector<16x32xf32> to vector<16xf32>
    %538 = vector.shape_cast %537 : vector<16xf32> to vector<16x1xf32>
    %cst_167 = arith.constant 3.200000e+01 : f32
    %539 = vector.broadcast %cst_167 : f32 to vector<16x1xf32>
    %540 = arith.divf %538, %539 : vector<16x1xf32>
    %541 = vector.broadcast %533 : vector<16x1xf32> to vector<16x32xf32>
    %542 = arith.subf %527, %541 : vector<16x32xf32>
    %cst_168 = arith.constant 9.99999974E-6 : f32
    %543 = vector.broadcast %cst_168 : f32 to vector<16x1xf32>
    %544 = arith.addf %540, %543 : vector<16x1xf32>
    %545 = math.rsqrt %544 : vector<16x1xf32>
    %546 = vector.broadcast %545 : vector<16x1xf32> to vector<16x32xf32>
    %547 = arith.mulf %542, %546 : vector<16x32xf32>
    %548 = vector.broadcast %528 : vector<1x32xf32> to vector<16x32xf32>
    %549 = arith.mulf %547, %548 : vector<16x32xf32>
    %550 = vector.broadcast %529 : vector<1x32xf32> to vector<16x32xf32>
    %551 = arith.addf %549, %550 : vector<16x32xf32>
    %c534 = arith.constant 534 : index
    %c0_169 = arith.constant 0 : index
    %552 = vector.load %arg3[%c534, %c0_169] : memref<552x96xf32, #tpu.memory_space<vmem>>, vector<1x32xf32>
    %553 = vector.shape_cast %552 : vector<1x32xf32> to vector<1x32xf32>
    %554 = vector.broadcast %553 : vector<1x32xf32> to vector<2x32xf32>
    %555 = tpu.concatenate %551, %554 in 0 : vector<16x32xf32>, vector<2x32xf32> -> vector<18x32xf32>
    %c168 = arith.constant 168 : index
    %c0_170 = arith.constant 0 : index
    %556 = vector.load %arg3[%c168, %c0_170] : memref<552x96xf32, #tpu.memory_space<vmem>>, vector<18x18xf32>
    %c536 = arith.constant 536 : index
    %c0_171 = arith.constant 0 : index
    %557 = vector.load %arg3[%c536, %c0_171] : memref<552x96xf32, #tpu.memory_space<vmem>>, vector<1x32xf32>
    %c537 = arith.constant 537 : index
    %c0_172 = arith.constant 0 : index
    %558 = vector.load %arg3[%c537, %c0_172] : memref<552x96xf32, #tpu.memory_space<vmem>>, vector<1x32xf32>
    %cst_173 = arith.constant dense<0.000000e+00> : vector<18xf32>
    %559 = vector.multi_reduction <add>, %555, %cst_173 [1] : vector<18x32xf32> to vector<18xf32>
    %560 = vector.shape_cast %559 : vector<18xf32> to vector<18x1xf32>
    %cst_174 = arith.constant 3.200000e+01 : f32
    %561 = vector.broadcast %cst_174 : f32 to vector<18x1xf32>
    %562 = arith.divf %560, %561 : vector<18x1xf32>
    %563 = vector.broadcast %562 : vector<18x1xf32> to vector<18x32xf32>
    %564 = arith.subf %555, %563 : vector<18x32xf32>
    %565 = arith.mulf %564, %564 : vector<18x32xf32>
    %cst_175 = arith.constant dense<0.000000e+00> : vector<18xf32>
    %566 = vector.multi_reduction <add>, %565, %cst_175 [1] : vector<18x32xf32> to vector<18xf32>
    %567 = vector.shape_cast %566 : vector<18xf32> to vector<18x1xf32>
    %cst_176 = arith.constant 3.200000e+01 : f32
    %568 = vector.broadcast %cst_176 : f32 to vector<18x1xf32>
    %569 = arith.divf %567, %568 : vector<18x1xf32>
    %570 = vector.broadcast %562 : vector<18x1xf32> to vector<18x32xf32>
    %571 = arith.subf %555, %570 : vector<18x32xf32>
    %cst_177 = arith.constant 9.99999974E-6 : f32
    %572 = vector.broadcast %cst_177 : f32 to vector<18x1xf32>
    %573 = arith.addf %569, %572 : vector<18x1xf32>
    %574 = math.rsqrt %573 : vector<18x1xf32>
    %575 = vector.broadcast %574 : vector<18x1xf32> to vector<18x32xf32>
    %576 = arith.mulf %571, %575 : vector<18x32xf32>
    %577 = vector.broadcast %557 : vector<1x32xf32> to vector<18x32xf32>
    %578 = arith.mulf %576, %577 : vector<18x32xf32>
    %579 = vector.broadcast %558 : vector<1x32xf32> to vector<18x32xf32>
    %580 = arith.addf %578, %579 : vector<18x32xf32>
    %c208 = arith.constant 208 : index
    %c0_178 = arith.constant 0 : index
    %581 = vector.load %arg3[%c208, %c0_178] : memref<552x96xf32, #tpu.memory_space<vmem>>, vector<32x96xf32>
    %cst_179 = arith.constant dense<0.000000e+00> : vector<18x96xf32>
    %582 = tpu.matmul %580, %581, %cst_179 {dimension_numbers = #tpu.dot_dimension_numbers<[1], [0], [0], [1], [0, 0, 1, 1], [], []>} : vector<18x32xf32>, vector<32x96xf32>, vector<18x96xf32> -> vector<18x96xf32>
    %c240 = arith.constant 240 : index
    %c0_180 = arith.constant 0 : index
    %583 = vector.load %arg3[%c240, %c0_180] : memref<552x96xf32, #tpu.memory_space<vmem>>, vector<32x32xf32>
    %cst_181 = arith.constant 0.000000e+00 : f32
    %584 = vector.broadcast %cst_181 : f32 to vector<18x32xf32>
    %585 = vector.extract_strided_slice %582 {offsets = [0, 0], sizes = [18, 8], strides = [1, 1]} : vector<18x96xf32> to vector<18x8xf32>
    %586 = vector.extract_strided_slice %582 {offsets = [0, 32], sizes = [18, 8], strides = [1, 1]} : vector<18x96xf32> to vector<18x8xf32>
    %587 = vector.extract_strided_slice %582 {offsets = [0, 64], sizes = [18, 8], strides = [1, 1]} : vector<18x96xf32> to vector<18x8xf32>
    %cst_182 = arith.constant dense<0.000000e+00> : vector<18x18xf32>
    %588 = tpu.matmul %585, %586, %cst_182 {dimension_numbers = #tpu.dot_dimension_numbers<[1], [1], [0], [0], [0, 0, 1, 0], [], []>} : vector<18x8xf32>, vector<18x8xf32>, vector<18x18xf32> -> vector<18x18xf32>
    %589 = arith.addf %588, %556 : vector<18x18xf32>
    %cst_183 = arith.constant dense<0xFF800000> : vector<18xf32>
    %590 = vector.multi_reduction <maximumf>, %589, %cst_183 [1] : vector<18x18xf32> to vector<18xf32>
    %591 = vector.shape_cast %590 : vector<18xf32> to vector<18x1xf32>
    %592 = vector.broadcast %591 : vector<18x1xf32> to vector<18x18xf32>
    %593 = arith.subf %589, %592 : vector<18x18xf32>
    %594 = math.exp %593 : vector<18x18xf32>
    %cst_184 = arith.constant dense<0.000000e+00> : vector<18xf32>
    %595 = vector.multi_reduction <add>, %594, %cst_184 [1] : vector<18x18xf32> to vector<18xf32>
    %596 = vector.shape_cast %595 : vector<18xf32> to vector<18x1xf32>
    %597 = vector.broadcast %596 : vector<18x1xf32> to vector<18x18xf32>
    %598 = arith.divf %594, %597 : vector<18x18xf32>
    %cst_185 = arith.constant dense<0.000000e+00> : vector<18x8xf32>
    %599 = tpu.matmul %598, %587, %cst_185 {dimension_numbers = #tpu.dot_dimension_numbers<[1], [0], [0], [1], [0, 0, 1, 1], [], []>} : vector<18x18xf32>, vector<18x8xf32>, vector<18x8xf32> -> vector<18x8xf32>
    %600 = vector.extract_strided_slice %583 {offsets = [0, 0], sizes = [8, 32], strides = [1, 1]} : vector<32x32xf32> to vector<8x32xf32>
    %cst_186 = arith.constant dense<0.000000e+00> : vector<18x32xf32>
    %601 = tpu.matmul %599, %600, %cst_186 {dimension_numbers = #tpu.dot_dimension_numbers<[1], [0], [0], [1], [0, 0, 1, 1], [], []>} : vector<18x8xf32>, vector<8x32xf32>, vector<18x32xf32> -> vector<18x32xf32>
    %602 = arith.addf %584, %601 : vector<18x32xf32>
    %603 = vector.extract_strided_slice %582 {offsets = [0, 8], sizes = [18, 8], strides = [1, 1]} : vector<18x96xf32> to vector<18x8xf32>
    %604 = vector.extract_strided_slice %582 {offsets = [0, 40], sizes = [18, 8], strides = [1, 1]} : vector<18x96xf32> to vector<18x8xf32>
    %605 = vector.extract_strided_slice %582 {offsets = [0, 72], sizes = [18, 8], strides = [1, 1]} : vector<18x96xf32> to vector<18x8xf32>
    %cst_187 = arith.constant dense<0.000000e+00> : vector<18x18xf32>
    %606 = tpu.matmul %603, %604, %cst_187 {dimension_numbers = #tpu.dot_dimension_numbers<[1], [1], [0], [0], [0, 0, 1, 0], [], []>} : vector<18x8xf32>, vector<18x8xf32>, vector<18x18xf32> -> vector<18x18xf32>
    %607 = arith.addf %606, %556 : vector<18x18xf32>
    %cst_188 = arith.constant dense<0xFF800000> : vector<18xf32>
    %608 = vector.multi_reduction <maximumf>, %607, %cst_188 [1] : vector<18x18xf32> to vector<18xf32>
    %609 = vector.shape_cast %608 : vector<18xf32> to vector<18x1xf32>
    %610 = vector.broadcast %609 : vector<18x1xf32> to vector<18x18xf32>
    %611 = arith.subf %607, %610 : vector<18x18xf32>
    %612 = math.exp %611 : vector<18x18xf32>
    %cst_189 = arith.constant dense<0.000000e+00> : vector<18xf32>
    %613 = vector.multi_reduction <add>, %612, %cst_189 [1] : vector<18x18xf32> to vector<18xf32>
    %614 = vector.shape_cast %613 : vector<18xf32> to vector<18x1xf32>
    %615 = vector.broadcast %614 : vector<18x1xf32> to vector<18x18xf32>
    %616 = arith.divf %612, %615 : vector<18x18xf32>
    %cst_190 = arith.constant dense<0.000000e+00> : vector<18x8xf32>
    %617 = tpu.matmul %616, %605, %cst_190 {dimension_numbers = #tpu.dot_dimension_numbers<[1], [0], [0], [1], [0, 0, 1, 1], [], []>} : vector<18x18xf32>, vector<18x8xf32>, vector<18x8xf32> -> vector<18x8xf32>
    %618 = vector.extract_strided_slice %583 {offsets = [8, 0], sizes = [8, 32], strides = [1, 1]} : vector<32x32xf32> to vector<8x32xf32>
    %cst_191 = arith.constant dense<0.000000e+00> : vector<18x32xf32>
    %619 = tpu.matmul %617, %618, %cst_191 {dimension_numbers = #tpu.dot_dimension_numbers<[1], [0], [0], [1], [0, 0, 1, 1], [], []>} : vector<18x8xf32>, vector<8x32xf32>, vector<18x32xf32> -> vector<18x32xf32>
    %620 = arith.addf %602, %619 : vector<18x32xf32>
    %621 = vector.extract_strided_slice %582 {offsets = [0, 16], sizes = [18, 8], strides = [1, 1]} : vector<18x96xf32> to vector<18x8xf32>
    %622 = vector.extract_strided_slice %582 {offsets = [0, 48], sizes = [18, 8], strides = [1, 1]} : vector<18x96xf32> to vector<18x8xf32>
    %623 = vector.extract_strided_slice %582 {offsets = [0, 80], sizes = [18, 8], strides = [1, 1]} : vector<18x96xf32> to vector<18x8xf32>
    %cst_192 = arith.constant dense<0.000000e+00> : vector<18x18xf32>
    %624 = tpu.matmul %621, %622, %cst_192 {dimension_numbers = #tpu.dot_dimension_numbers<[1], [1], [0], [0], [0, 0, 1, 0], [], []>} : vector<18x8xf32>, vector<18x8xf32>, vector<18x18xf32> -> vector<18x18xf32>
    %625 = arith.addf %624, %556 : vector<18x18xf32>
    %cst_193 = arith.constant dense<0xFF800000> : vector<18xf32>
    %626 = vector.multi_reduction <maximumf>, %625, %cst_193 [1] : vector<18x18xf32> to vector<18xf32>
    %627 = vector.shape_cast %626 : vector<18xf32> to vector<18x1xf32>
    %628 = vector.broadcast %627 : vector<18x1xf32> to vector<18x18xf32>
    %629 = arith.subf %625, %628 : vector<18x18xf32>
    %630 = math.exp %629 : vector<18x18xf32>
    %cst_194 = arith.constant dense<0.000000e+00> : vector<18xf32>
    %631 = vector.multi_reduction <add>, %630, %cst_194 [1] : vector<18x18xf32> to vector<18xf32>
    %632 = vector.shape_cast %631 : vector<18xf32> to vector<18x1xf32>
    %633 = vector.broadcast %632 : vector<18x1xf32> to vector<18x18xf32>
    %634 = arith.divf %630, %633 : vector<18x18xf32>
    %cst_195 = arith.constant dense<0.000000e+00> : vector<18x8xf32>
    %635 = tpu.matmul %634, %623, %cst_195 {dimension_numbers = #tpu.dot_dimension_numbers<[1], [0], [0], [1], [0, 0, 1, 1], [], []>} : vector<18x18xf32>, vector<18x8xf32>, vector<18x8xf32> -> vector<18x8xf32>
    %636 = vector.extract_strided_slice %583 {offsets = [16, 0], sizes = [8, 32], strides = [1, 1]} : vector<32x32xf32> to vector<8x32xf32>
    %cst_196 = arith.constant dense<0.000000e+00> : vector<18x32xf32>
    %637 = tpu.matmul %635, %636, %cst_196 {dimension_numbers = #tpu.dot_dimension_numbers<[1], [0], [0], [1], [0, 0, 1, 1], [], []>} : vector<18x8xf32>, vector<8x32xf32>, vector<18x32xf32> -> vector<18x32xf32>
    %638 = arith.addf %620, %637 : vector<18x32xf32>
    %639 = vector.extract_strided_slice %582 {offsets = [0, 24], sizes = [18, 8], strides = [1, 1]} : vector<18x96xf32> to vector<18x8xf32>
    %640 = vector.extract_strided_slice %582 {offsets = [0, 56], sizes = [18, 8], strides = [1, 1]} : vector<18x96xf32> to vector<18x8xf32>
    %641 = vector.extract_strided_slice %582 {offsets = [0, 88], sizes = [18, 8], strides = [1, 1]} : vector<18x96xf32> to vector<18x8xf32>
    %cst_197 = arith.constant dense<0.000000e+00> : vector<18x18xf32>
    %642 = tpu.matmul %639, %640, %cst_197 {dimension_numbers = #tpu.dot_dimension_numbers<[1], [1], [0], [0], [0, 0, 1, 0], [], []>} : vector<18x8xf32>, vector<18x8xf32>, vector<18x18xf32> -> vector<18x18xf32>
    %643 = arith.addf %642, %556 : vector<18x18xf32>
    %cst_198 = arith.constant dense<0xFF800000> : vector<18xf32>
    %644 = vector.multi_reduction <maximumf>, %643, %cst_198 [1] : vector<18x18xf32> to vector<18xf32>
    %645 = vector.shape_cast %644 : vector<18xf32> to vector<18x1xf32>
    %646 = vector.broadcast %645 : vector<18x1xf32> to vector<18x18xf32>
    %647 = arith.subf %643, %646 : vector<18x18xf32>
    %648 = math.exp %647 : vector<18x18xf32>
    %cst_199 = arith.constant dense<0.000000e+00> : vector<18xf32>
    %649 = vector.multi_reduction <add>, %648, %cst_199 [1] : vector<18x18xf32> to vector<18xf32>
    %650 = vector.shape_cast %649 : vector<18xf32> to vector<18x1xf32>
    %651 = vector.broadcast %650 : vector<18x1xf32> to vector<18x18xf32>
    %652 = arith.divf %648, %651 : vector<18x18xf32>
    %cst_200 = arith.constant dense<0.000000e+00> : vector<18x8xf32>
    %653 = tpu.matmul %652, %641, %cst_200 {dimension_numbers = #tpu.dot_dimension_numbers<[1], [0], [0], [1], [0, 0, 1, 1], [], []>} : vector<18x18xf32>, vector<18x8xf32>, vector<18x8xf32> -> vector<18x8xf32>
    %654 = vector.extract_strided_slice %583 {offsets = [24, 0], sizes = [8, 32], strides = [1, 1]} : vector<32x32xf32> to vector<8x32xf32>
    %cst_201 = arith.constant dense<0.000000e+00> : vector<18x32xf32>
    %655 = tpu.matmul %653, %654, %cst_201 {dimension_numbers = #tpu.dot_dimension_numbers<[1], [0], [0], [1], [0, 0, 1, 1], [], []>} : vector<18x8xf32>, vector<8x32xf32>, vector<18x32xf32> -> vector<18x32xf32>
    %656 = arith.addf %638, %655 : vector<18x32xf32>
    %657 = arith.addf %555, %656 : vector<18x32xf32>
    %c535 = arith.constant 535 : index
    %c0_202 = arith.constant 0 : index
    %658 = vector.load %arg3[%c535, %c0_202] : memref<552x96xf32, #tpu.memory_space<vmem>>, vector<1x32xf32>
    %659 = vector.broadcast %658 : vector<1x32xf32> to vector<18x32xf32>
    %660 = arith.addf %657, %659 : vector<18x32xf32>
    %c538 = arith.constant 538 : index
    %c0_203 = arith.constant 0 : index
    %661 = vector.load %arg3[%c538, %c0_203] : memref<552x96xf32, #tpu.memory_space<vmem>>, vector<1x32xf32>
    %c539 = arith.constant 539 : index
    %c0_204 = arith.constant 0 : index
    %662 = vector.load %arg3[%c539, %c0_204] : memref<552x96xf32, #tpu.memory_space<vmem>>, vector<1x32xf32>
    %cst_205 = arith.constant dense<0.000000e+00> : vector<18xf32>
    %663 = vector.multi_reduction <add>, %660, %cst_205 [1] : vector<18x32xf32> to vector<18xf32>
    %664 = vector.shape_cast %663 : vector<18xf32> to vector<18x1xf32>
    %cst_206 = arith.constant 3.200000e+01 : f32
    %665 = vector.broadcast %cst_206 : f32 to vector<18x1xf32>
    %666 = arith.divf %664, %665 : vector<18x1xf32>
    %667 = vector.broadcast %666 : vector<18x1xf32> to vector<18x32xf32>
    %668 = arith.subf %660, %667 : vector<18x32xf32>
    %669 = arith.mulf %668, %668 : vector<18x32xf32>
    %cst_207 = arith.constant dense<0.000000e+00> : vector<18xf32>
    %670 = vector.multi_reduction <add>, %669, %cst_207 [1] : vector<18x32xf32> to vector<18xf32>
    %671 = vector.shape_cast %670 : vector<18xf32> to vector<18x1xf32>
    %cst_208 = arith.constant 3.200000e+01 : f32
    %672 = vector.broadcast %cst_208 : f32 to vector<18x1xf32>
    %673 = arith.divf %671, %672 : vector<18x1xf32>
    %674 = vector.broadcast %666 : vector<18x1xf32> to vector<18x32xf32>
    %675 = arith.subf %660, %674 : vector<18x32xf32>
    %cst_209 = arith.constant 9.99999974E-6 : f32
    %676 = vector.broadcast %cst_209 : f32 to vector<18x1xf32>
    %677 = arith.addf %673, %676 : vector<18x1xf32>
    %678 = math.rsqrt %677 : vector<18x1xf32>
    %679 = vector.broadcast %678 : vector<18x1xf32> to vector<18x32xf32>
    %680 = arith.mulf %675, %679 : vector<18x32xf32>
    %681 = vector.broadcast %661 : vector<1x32xf32> to vector<18x32xf32>
    %682 = arith.mulf %680, %681 : vector<18x32xf32>
    %683 = vector.broadcast %662 : vector<1x32xf32> to vector<18x32xf32>
    %684 = arith.addf %682, %683 : vector<18x32xf32>
    %c272 = arith.constant 272 : index
    %c0_210 = arith.constant 0 : index
    %685 = vector.load %arg3[%c272, %c0_210] : memref<552x96xf32, #tpu.memory_space<vmem>>, vector<32x64xf32>
    %cst_211 = arith.constant dense<0.000000e+00> : vector<18x64xf32>
    %686 = tpu.matmul %684, %685, %cst_211 {dimension_numbers = #tpu.dot_dimension_numbers<[1], [0], [0], [1], [0, 0, 1, 1], [], []>} : vector<18x32xf32>, vector<32x64xf32>, vector<18x64xf32> -> vector<18x64xf32>
    %c540 = arith.constant 540 : index
    %c0_212 = arith.constant 0 : index
    %687 = vector.load %arg3[%c540, %c0_212] : memref<552x96xf32, #tpu.memory_space<vmem>>, vector<1x64xf32>
    %688 = vector.broadcast %687 : vector<1x64xf32> to vector<18x64xf32>
    %689 = arith.addf %686, %688 : vector<18x64xf32>
    %cst_213 = arith.constant 5.000000e-01 : f32
    %690 = vector.broadcast %cst_213 : f32 to vector<18x64xf32>
    %691 = arith.mulf %690, %689 : vector<18x64xf32>
    %cst_214 = arith.constant 4.471500e-02 : f32
    %692 = vector.broadcast %cst_214 : f32 to vector<18x64xf32>
    %693 = arith.mulf %692, %689 : vector<18x64xf32>
    %694 = arith.mulf %693, %689 : vector<18x64xf32>
    %695 = arith.mulf %694, %689 : vector<18x64xf32>
    %696 = arith.addf %689, %695 : vector<18x64xf32>
    %cst_215 = arith.constant 0.797884583 : f32
    %697 = vector.broadcast %cst_215 : f32 to vector<18x64xf32>
    %698 = arith.mulf %697, %696 : vector<18x64xf32>
    %699 = math.tanh %698 : vector<18x64xf32>
    %cst_216 = arith.constant 1.000000e+00 : f32
    %700 = vector.broadcast %cst_216 : f32 to vector<18x64xf32>
    %701 = arith.addf %700, %699 : vector<18x64xf32>
    %702 = arith.mulf %691, %701 : vector<18x64xf32>
    %c304 = arith.constant 304 : index
    %c0_217 = arith.constant 0 : index
    %703 = vector.load %arg3[%c304, %c0_217] : memref<552x96xf32, #tpu.memory_space<vmem>>, vector<64x32xf32>
    %cst_218 = arith.constant dense<0.000000e+00> : vector<18x32xf32>
    %704 = tpu.matmul %702, %703, %cst_218 {dimension_numbers = #tpu.dot_dimension_numbers<[1], [0], [0], [1], [0, 0, 1, 1], [], []>} : vector<18x64xf32>, vector<64x32xf32>, vector<18x32xf32> -> vector<18x32xf32>
    %705 = arith.addf %660, %704 : vector<18x32xf32>
    %c541 = arith.constant 541 : index
    %c0_219 = arith.constant 0 : index
    %706 = vector.load %arg3[%c541, %c0_219] : memref<552x96xf32, #tpu.memory_space<vmem>>, vector<1x32xf32>
    %707 = vector.broadcast %706 : vector<1x32xf32> to vector<18x32xf32>
    %708 = arith.addf %705, %707 : vector<18x32xf32>
    %c543 = arith.constant 543 : index
    %c0_220 = arith.constant 0 : index
    %709 = vector.load %arg3[%c543, %c0_220] : memref<552x96xf32, #tpu.memory_space<vmem>>, vector<1x32xf32>
    %c544 = arith.constant 544 : index
    %c0_221 = arith.constant 0 : index
    %710 = vector.load %arg3[%c544, %c0_221] : memref<552x96xf32, #tpu.memory_space<vmem>>, vector<1x32xf32>
    %cst_222 = arith.constant dense<0.000000e+00> : vector<18xf32>
    %711 = vector.multi_reduction <add>, %708, %cst_222 [1] : vector<18x32xf32> to vector<18xf32>
    %712 = vector.shape_cast %711 : vector<18xf32> to vector<18x1xf32>
    %cst_223 = arith.constant 3.200000e+01 : f32
    %713 = vector.broadcast %cst_223 : f32 to vector<18x1xf32>
    %714 = arith.divf %712, %713 : vector<18x1xf32>
    %715 = vector.broadcast %714 : vector<18x1xf32> to vector<18x32xf32>
    %716 = arith.subf %708, %715 : vector<18x32xf32>
    %717 = arith.mulf %716, %716 : vector<18x32xf32>
    %cst_224 = arith.constant dense<0.000000e+00> : vector<18xf32>
    %718 = vector.multi_reduction <add>, %717, %cst_224 [1] : vector<18x32xf32> to vector<18xf32>
    %719 = vector.shape_cast %718 : vector<18xf32> to vector<18x1xf32>
    %cst_225 = arith.constant 3.200000e+01 : f32
    %720 = vector.broadcast %cst_225 : f32 to vector<18x1xf32>
    %721 = arith.divf %719, %720 : vector<18x1xf32>
    %722 = vector.broadcast %714 : vector<18x1xf32> to vector<18x32xf32>
    %723 = arith.subf %708, %722 : vector<18x32xf32>
    %cst_226 = arith.constant 9.99999974E-6 : f32
    %724 = vector.broadcast %cst_226 : f32 to vector<18x1xf32>
    %725 = arith.addf %721, %724 : vector<18x1xf32>
    %726 = math.rsqrt %725 : vector<18x1xf32>
    %727 = vector.broadcast %726 : vector<18x1xf32> to vector<18x32xf32>
    %728 = arith.mulf %723, %727 : vector<18x32xf32>
    %729 = vector.broadcast %709 : vector<1x32xf32> to vector<18x32xf32>
    %730 = arith.mulf %728, %729 : vector<18x32xf32>
    %731 = vector.broadcast %710 : vector<1x32xf32> to vector<18x32xf32>
    %732 = arith.addf %730, %731 : vector<18x32xf32>
    %c368 = arith.constant 368 : index
    %c0_227 = arith.constant 0 : index
    %733 = vector.load %arg3[%c368, %c0_227] : memref<552x96xf32, #tpu.memory_space<vmem>>, vector<32x96xf32>
    %cst_228 = arith.constant dense<0.000000e+00> : vector<18x96xf32>
    %734 = tpu.matmul %732, %733, %cst_228 {dimension_numbers = #tpu.dot_dimension_numbers<[1], [0], [0], [1], [0, 0, 1, 1], [], []>} : vector<18x32xf32>, vector<32x96xf32>, vector<18x96xf32> -> vector<18x96xf32>
    %c400 = arith.constant 400 : index
    %c0_229 = arith.constant 0 : index
    %735 = vector.load %arg3[%c400, %c0_229] : memref<552x96xf32, #tpu.memory_space<vmem>>, vector<32x32xf32>
    %cst_230 = arith.constant 0.000000e+00 : f32
    %736 = vector.broadcast %cst_230 : f32 to vector<18x32xf32>
    %737 = vector.extract_strided_slice %734 {offsets = [0, 0], sizes = [18, 8], strides = [1, 1]} : vector<18x96xf32> to vector<18x8xf32>
    %738 = vector.extract_strided_slice %734 {offsets = [0, 32], sizes = [18, 8], strides = [1, 1]} : vector<18x96xf32> to vector<18x8xf32>
    %739 = vector.extract_strided_slice %734 {offsets = [0, 64], sizes = [18, 8], strides = [1, 1]} : vector<18x96xf32> to vector<18x8xf32>
    %cst_231 = arith.constant dense<0.000000e+00> : vector<18x18xf32>
    %740 = tpu.matmul %737, %738, %cst_231 {dimension_numbers = #tpu.dot_dimension_numbers<[1], [1], [0], [0], [0, 0, 1, 0], [], []>} : vector<18x8xf32>, vector<18x8xf32>, vector<18x18xf32> -> vector<18x18xf32>
    %741 = arith.addf %740, %556 : vector<18x18xf32>
    %cst_232 = arith.constant dense<0xFF800000> : vector<18xf32>
    %742 = vector.multi_reduction <maximumf>, %741, %cst_232 [1] : vector<18x18xf32> to vector<18xf32>
    %743 = vector.shape_cast %742 : vector<18xf32> to vector<18x1xf32>
    %744 = vector.broadcast %743 : vector<18x1xf32> to vector<18x18xf32>
    %745 = arith.subf %741, %744 : vector<18x18xf32>
    %746 = math.exp %745 : vector<18x18xf32>
    %cst_233 = arith.constant dense<0.000000e+00> : vector<18xf32>
    %747 = vector.multi_reduction <add>, %746, %cst_233 [1] : vector<18x18xf32> to vector<18xf32>
    %748 = vector.shape_cast %747 : vector<18xf32> to vector<18x1xf32>
    %749 = vector.broadcast %748 : vector<18x1xf32> to vector<18x18xf32>
    %750 = arith.divf %746, %749 : vector<18x18xf32>
    %cst_234 = arith.constant dense<0.000000e+00> : vector<18x8xf32>
    %751 = tpu.matmul %750, %739, %cst_234 {dimension_numbers = #tpu.dot_dimension_numbers<[1], [0], [0], [1], [0, 0, 1, 1], [], []>} : vector<18x18xf32>, vector<18x8xf32>, vector<18x8xf32> -> vector<18x8xf32>
    %752 = vector.extract_strided_slice %735 {offsets = [0, 0], sizes = [8, 32], strides = [1, 1]} : vector<32x32xf32> to vector<8x32xf32>
    %cst_235 = arith.constant dense<0.000000e+00> : vector<18x32xf32>
    %753 = tpu.matmul %751, %752, %cst_235 {dimension_numbers = #tpu.dot_dimension_numbers<[1], [0], [0], [1], [0, 0, 1, 1], [], []>} : vector<18x8xf32>, vector<8x32xf32>, vector<18x32xf32> -> vector<18x32xf32>
    %754 = arith.addf %736, %753 : vector<18x32xf32>
    %755 = vector.extract_strided_slice %734 {offsets = [0, 8], sizes = [18, 8], strides = [1, 1]} : vector<18x96xf32> to vector<18x8xf32>
    %756 = vector.extract_strided_slice %734 {offsets = [0, 40], sizes = [18, 8], strides = [1, 1]} : vector<18x96xf32> to vector<18x8xf32>
    %757 = vector.extract_strided_slice %734 {offsets = [0, 72], sizes = [18, 8], strides = [1, 1]} : vector<18x96xf32> to vector<18x8xf32>
    %cst_236 = arith.constant dense<0.000000e+00> : vector<18x18xf32>
    %758 = tpu.matmul %755, %756, %cst_236 {dimension_numbers = #tpu.dot_dimension_numbers<[1], [1], [0], [0], [0, 0, 1, 0], [], []>} : vector<18x8xf32>, vector<18x8xf32>, vector<18x18xf32> -> vector<18x18xf32>
    %759 = arith.addf %758, %556 : vector<18x18xf32>
    %cst_237 = arith.constant dense<0xFF800000> : vector<18xf32>
    %760 = vector.multi_reduction <maximumf>, %759, %cst_237 [1] : vector<18x18xf32> to vector<18xf32>
    %761 = vector.shape_cast %760 : vector<18xf32> to vector<18x1xf32>
    %762 = vector.broadcast %761 : vector<18x1xf32> to vector<18x18xf32>
    %763 = arith.subf %759, %762 : vector<18x18xf32>
    %764 = math.exp %763 : vector<18x18xf32>
    %cst_238 = arith.constant dense<0.000000e+00> : vector<18xf32>
    %765 = vector.multi_reduction <add>, %764, %cst_238 [1] : vector<18x18xf32> to vector<18xf32>
    %766 = vector.shape_cast %765 : vector<18xf32> to vector<18x1xf32>
    %767 = vector.broadcast %766 : vector<18x1xf32> to vector<18x18xf32>
    %768 = arith.divf %764, %767 : vector<18x18xf32>
    %cst_239 = arith.constant dense<0.000000e+00> : vector<18x8xf32>
    %769 = tpu.matmul %768, %757, %cst_239 {dimension_numbers = #tpu.dot_dimension_numbers<[1], [0], [0], [1], [0, 0, 1, 1], [], []>} : vector<18x18xf32>, vector<18x8xf32>, vector<18x8xf32> -> vector<18x8xf32>
    %770 = vector.extract_strided_slice %735 {offsets = [8, 0], sizes = [8, 32], strides = [1, 1]} : vector<32x32xf32> to vector<8x32xf32>
    %cst_240 = arith.constant dense<0.000000e+00> : vector<18x32xf32>
    %771 = tpu.matmul %769, %770, %cst_240 {dimension_numbers = #tpu.dot_dimension_numbers<[1], [0], [0], [1], [0, 0, 1, 1], [], []>} : vector<18x8xf32>, vector<8x32xf32>, vector<18x32xf32> -> vector<18x32xf32>
    %772 = arith.addf %754, %771 : vector<18x32xf32>
    %773 = vector.extract_strided_slice %734 {offsets = [0, 16], sizes = [18, 8], strides = [1, 1]} : vector<18x96xf32> to vector<18x8xf32>
    %774 = vector.extract_strided_slice %734 {offsets = [0, 48], sizes = [18, 8], strides = [1, 1]} : vector<18x96xf32> to vector<18x8xf32>
    %775 = vector.extract_strided_slice %734 {offsets = [0, 80], sizes = [18, 8], strides = [1, 1]} : vector<18x96xf32> to vector<18x8xf32>
    %cst_241 = arith.constant dense<0.000000e+00> : vector<18x18xf32>
    %776 = tpu.matmul %773, %774, %cst_241 {dimension_numbers = #tpu.dot_dimension_numbers<[1], [1], [0], [0], [0, 0, 1, 0], [], []>} : vector<18x8xf32>, vector<18x8xf32>, vector<18x18xf32> -> vector<18x18xf32>
    %777 = arith.addf %776, %556 : vector<18x18xf32>
    %cst_242 = arith.constant dense<0xFF800000> : vector<18xf32>
    %778 = vector.multi_reduction <maximumf>, %777, %cst_242 [1] : vector<18x18xf32> to vector<18xf32>
    %779 = vector.shape_cast %778 : vector<18xf32> to vector<18x1xf32>
    %780 = vector.broadcast %779 : vector<18x1xf32> to vector<18x18xf32>
    %781 = arith.subf %777, %780 : vector<18x18xf32>
    %782 = math.exp %781 : vector<18x18xf32>
    %cst_243 = arith.constant dense<0.000000e+00> : vector<18xf32>
    %783 = vector.multi_reduction <add>, %782, %cst_243 [1] : vector<18x18xf32> to vector<18xf32>
    %784 = vector.shape_cast %783 : vector<18xf32> to vector<18x1xf32>
    %785 = vector.broadcast %784 : vector<18x1xf32> to vector<18x18xf32>
    %786 = arith.divf %782, %785 : vector<18x18xf32>
    %cst_244 = arith.constant dense<0.000000e+00> : vector<18x8xf32>
    %787 = tpu.matmul %786, %775, %cst_244 {dimension_numbers = #tpu.dot_dimension_numbers<[1], [0], [0], [1], [0, 0, 1, 1], [], []>} : vector<18x18xf32>, vector<18x8xf32>, vector<18x8xf32> -> vector<18x8xf32>
    %788 = vector.extract_strided_slice %735 {offsets = [16, 0], sizes = [8, 32], strides = [1, 1]} : vector<32x32xf32> to vector<8x32xf32>
    %cst_245 = arith.constant dense<0.000000e+00> : vector<18x32xf32>
    %789 = tpu.matmul %787, %788, %cst_245 {dimension_numbers = #tpu.dot_dimension_numbers<[1], [0], [0], [1], [0, 0, 1, 1], [], []>} : vector<18x8xf32>, vector<8x32xf32>, vector<18x32xf32> -> vector<18x32xf32>
    %790 = arith.addf %772, %789 : vector<18x32xf32>
    %791 = vector.extract_strided_slice %734 {offsets = [0, 24], sizes = [18, 8], strides = [1, 1]} : vector<18x96xf32> to vector<18x8xf32>
    %792 = vector.extract_strided_slice %734 {offsets = [0, 56], sizes = [18, 8], strides = [1, 1]} : vector<18x96xf32> to vector<18x8xf32>
    %793 = vector.extract_strided_slice %734 {offsets = [0, 88], sizes = [18, 8], strides = [1, 1]} : vector<18x96xf32> to vector<18x8xf32>
    %cst_246 = arith.constant dense<0.000000e+00> : vector<18x18xf32>
    %794 = tpu.matmul %791, %792, %cst_246 {dimension_numbers = #tpu.dot_dimension_numbers<[1], [1], [0], [0], [0, 0, 1, 0], [], []>} : vector<18x8xf32>, vector<18x8xf32>, vector<18x18xf32> -> vector<18x18xf32>
    %795 = arith.addf %794, %556 : vector<18x18xf32>
    %cst_247 = arith.constant dense<0xFF800000> : vector<18xf32>
    %796 = vector.multi_reduction <maximumf>, %795, %cst_247 [1] : vector<18x18xf32> to vector<18xf32>
    %797 = vector.shape_cast %796 : vector<18xf32> to vector<18x1xf32>
    %798 = vector.broadcast %797 : vector<18x1xf32> to vector<18x18xf32>
    %799 = arith.subf %795, %798 : vector<18x18xf32>
    %800 = math.exp %799 : vector<18x18xf32>
    %cst_248 = arith.constant dense<0.000000e+00> : vector<18xf32>
    %801 = vector.multi_reduction <add>, %800, %cst_248 [1] : vector<18x18xf32> to vector<18xf32>
    %802 = vector.shape_cast %801 : vector<18xf32> to vector<18x1xf32>
    %803 = vector.broadcast %802 : vector<18x1xf32> to vector<18x18xf32>
    %804 = arith.divf %800, %803 : vector<18x18xf32>
    %cst_249 = arith.constant dense<0.000000e+00> : vector<18x8xf32>
    %805 = tpu.matmul %804, %793, %cst_249 {dimension_numbers = #tpu.dot_dimension_numbers<[1], [0], [0], [1], [0, 0, 1, 1], [], []>} : vector<18x18xf32>, vector<18x8xf32>, vector<18x8xf32> -> vector<18x8xf32>
    %806 = vector.extract_strided_slice %735 {offsets = [24, 0], sizes = [8, 32], strides = [1, 1]} : vector<32x32xf32> to vector<8x32xf32>
    %cst_250 = arith.constant dense<0.000000e+00> : vector<18x32xf32>
    %807 = tpu.matmul %805, %806, %cst_250 {dimension_numbers = #tpu.dot_dimension_numbers<[1], [0], [0], [1], [0, 0, 1, 1], [], []>} : vector<18x8xf32>, vector<8x32xf32>, vector<18x32xf32> -> vector<18x32xf32>
    %808 = arith.addf %790, %807 : vector<18x32xf32>
    %809 = arith.addf %708, %808 : vector<18x32xf32>
    %c542 = arith.constant 542 : index
    %c0_251 = arith.constant 0 : index
    %810 = vector.load %arg3[%c542, %c0_251] : memref<552x96xf32, #tpu.memory_space<vmem>>, vector<1x32xf32>
    %811 = vector.broadcast %810 : vector<1x32xf32> to vector<18x32xf32>
    %812 = arith.addf %809, %811 : vector<18x32xf32>
    %c545 = arith.constant 545 : index
    %c0_252 = arith.constant 0 : index
    %813 = vector.load %arg3[%c545, %c0_252] : memref<552x96xf32, #tpu.memory_space<vmem>>, vector<1x32xf32>
    %c546 = arith.constant 546 : index
    %c0_253 = arith.constant 0 : index
    %814 = vector.load %arg3[%c546, %c0_253] : memref<552x96xf32, #tpu.memory_space<vmem>>, vector<1x32xf32>
    %cst_254 = arith.constant dense<0.000000e+00> : vector<18xf32>
    %815 = vector.multi_reduction <add>, %812, %cst_254 [1] : vector<18x32xf32> to vector<18xf32>
    %816 = vector.shape_cast %815 : vector<18xf32> to vector<18x1xf32>
    %cst_255 = arith.constant 3.200000e+01 : f32
    %817 = vector.broadcast %cst_255 : f32 to vector<18x1xf32>
    %818 = arith.divf %816, %817 : vector<18x1xf32>
    %819 = vector.broadcast %818 : vector<18x1xf32> to vector<18x32xf32>
    %820 = arith.subf %812, %819 : vector<18x32xf32>
    %821 = arith.mulf %820, %820 : vector<18x32xf32>
    %cst_256 = arith.constant dense<0.000000e+00> : vector<18xf32>
    %822 = vector.multi_reduction <add>, %821, %cst_256 [1] : vector<18x32xf32> to vector<18xf32>
    %823 = vector.shape_cast %822 : vector<18xf32> to vector<18x1xf32>
    %cst_257 = arith.constant 3.200000e+01 : f32
    %824 = vector.broadcast %cst_257 : f32 to vector<18x1xf32>
    %825 = arith.divf %823, %824 : vector<18x1xf32>
    %826 = vector.broadcast %818 : vector<18x1xf32> to vector<18x32xf32>
    %827 = arith.subf %812, %826 : vector<18x32xf32>
    %cst_258 = arith.constant 9.99999974E-6 : f32
    %828 = vector.broadcast %cst_258 : f32 to vector<18x1xf32>
    %829 = arith.addf %825, %828 : vector<18x1xf32>
    %830 = math.rsqrt %829 : vector<18x1xf32>
    %831 = vector.broadcast %830 : vector<18x1xf32> to vector<18x32xf32>
    %832 = arith.mulf %827, %831 : vector<18x32xf32>
    %833 = vector.broadcast %813 : vector<1x32xf32> to vector<18x32xf32>
    %834 = arith.mulf %832, %833 : vector<18x32xf32>
    %835 = vector.broadcast %814 : vector<1x32xf32> to vector<18x32xf32>
    %836 = arith.addf %834, %835 : vector<18x32xf32>
    %c432 = arith.constant 432 : index
    %c0_259 = arith.constant 0 : index
    %837 = vector.load %arg3[%c432, %c0_259] : memref<552x96xf32, #tpu.memory_space<vmem>>, vector<32x64xf32>
    %cst_260 = arith.constant dense<0.000000e+00> : vector<18x64xf32>
    %838 = tpu.matmul %836, %837, %cst_260 {dimension_numbers = #tpu.dot_dimension_numbers<[1], [0], [0], [1], [0, 0, 1, 1], [], []>} : vector<18x32xf32>, vector<32x64xf32>, vector<18x64xf32> -> vector<18x64xf32>
    %c547 = arith.constant 547 : index
    %c0_261 = arith.constant 0 : index
    %839 = vector.load %arg3[%c547, %c0_261] : memref<552x96xf32, #tpu.memory_space<vmem>>, vector<1x64xf32>
    %840 = vector.broadcast %839 : vector<1x64xf32> to vector<18x64xf32>
    %841 = arith.addf %838, %840 : vector<18x64xf32>
    %cst_262 = arith.constant 5.000000e-01 : f32
    %842 = vector.broadcast %cst_262 : f32 to vector<18x64xf32>
    %843 = arith.mulf %842, %841 : vector<18x64xf32>
    %cst_263 = arith.constant 4.471500e-02 : f32
    %844 = vector.broadcast %cst_263 : f32 to vector<18x64xf32>
    %845 = arith.mulf %844, %841 : vector<18x64xf32>
    %846 = arith.mulf %845, %841 : vector<18x64xf32>
    %847 = arith.mulf %846, %841 : vector<18x64xf32>
    %848 = arith.addf %841, %847 : vector<18x64xf32>
    %cst_264 = arith.constant 0.797884583 : f32
    %849 = vector.broadcast %cst_264 : f32 to vector<18x64xf32>
    %850 = arith.mulf %849, %848 : vector<18x64xf32>
    %851 = math.tanh %850 : vector<18x64xf32>
    %cst_265 = arith.constant 1.000000e+00 : f32
    %852 = vector.broadcast %cst_265 : f32 to vector<18x64xf32>
    %853 = arith.addf %852, %851 : vector<18x64xf32>
    %854 = arith.mulf %843, %853 : vector<18x64xf32>
    %c464 = arith.constant 464 : index
    %c0_266 = arith.constant 0 : index
    %855 = vector.load %arg3[%c464, %c0_266] : memref<552x96xf32, #tpu.memory_space<vmem>>, vector<64x32xf32>
    %cst_267 = arith.constant dense<0.000000e+00> : vector<18x32xf32>
    %856 = tpu.matmul %854, %855, %cst_267 {dimension_numbers = #tpu.dot_dimension_numbers<[1], [0], [0], [1], [0, 0, 1, 1], [], []>} : vector<18x64xf32>, vector<64x32xf32>, vector<18x32xf32> -> vector<18x32xf32>
    %857 = arith.addf %812, %856 : vector<18x32xf32>
    %c548 = arith.constant 548 : index
    %c0_268 = arith.constant 0 : index
    %858 = vector.load %arg3[%c548, %c0_268] : memref<552x96xf32, #tpu.memory_space<vmem>>, vector<1x32xf32>
    %859 = vector.broadcast %858 : vector<1x32xf32> to vector<18x32xf32>
    %860 = arith.addf %857, %859 : vector<18x32xf32>
    %861 = vector.extract_strided_slice %860 {offsets = [16, 0], sizes = [2, 32], strides = [1, 1]} : vector<18x32xf32> to vector<2x32xf32>
    %c0_269 = arith.constant 0 : index
    %c0_270 = arith.constant 0 : index
    %862 = vector.load %arg4[%c0_269, %c0_270] : memref<2x32xf32, #tpu.memory_space<vmem>>, vector<2x32xf32>
    tpu.vector_store %arg4[%c0_269, %c0_270], %861 {strides = array<i32>} : memref<2x32xf32, #tpu.memory_space<vmem>>, vector<2x32xf32>,
    return
  }
  func.func @transform_0(%arg0: i32) -> (i32, i32, i32) {
    %c0_i32 = arith.constant 0 : i32
    %c0_i32_0 = arith.constant 0 : i32
    %c0_i32_1 = arith.constant 0 : i32
    %c0_i32_2 = arith.constant 0 : i32
    return %c0_i32, %c0_i32_0, %c0_i32_1 : i32, i32, i32
  }
  func.func @transform_1(%arg0: i32) -> (i32, i32) {
    %c0_i32 = arith.constant 0 : i32
    %c0_i32_0 = arith.constant 0 : i32
    %c0_i32_1 = arith.constant 0 : i32
    return %c0_i32, %c0_i32_0 : i32, i32
  }
  func.func @transform_2(%arg0: i32) -> (i32, i32) {
    %c0_i32 = arith.constant 0 : i32
    %c0_i32_0 = arith.constant 0 : i32
    %c0_i32_1 = arith.constant 0 : i32
    return %c0_i32, %c0_i32_0 : i32, i32
  }
  func.func @transform_3(%arg0: i32) -> (i32, i32) {
    %c0_i32 = arith.constant 0 : i32
    %c0_i32_0 = arith.constant 0 : i32
    %c0_i32_1 = arith.constant 0 : i32
    return %c0_i32, %c0_i32_0 : i32, i32
  }
}

</mosaic_0001>

<llo_original>
// kernel: ppat_forward.1
$region0: #{ppat_forward.1}
  #allocation0 [shape = 'u32[]', space=smem, size = 0x4, offset = 0x4, fixed_abs, tag = 'smem constant byte address 0x4 - core index']
  #allocation1 [shape = 'u32[144,128]{1,0:T(1,128)}', space=vmem, size = 0x12000, scoped, tag = 'internal scratch']
  #allocation2 [shape = 'f32[16,3]{1,0:T(8,128)}', space=vmem, size = 0x2000, scoped, tag = 'scratch operand']
  %s0 = inlined_call_operand.vmem [shape: f32[3,2,64], index: 0, kind: input, shape index: {}]
  %s1 = inlined_call_operand.vmem [shape: f32[128,3], index: 1, kind: input, shape index: {}]
  %s2 = inlined_call_operand.vmem [shape: f32[552,96], index: 2, kind: input, shape index: {}]
  %s3 = inlined_call_operand.hbm [shape: f32[2,32], index: 3, kind: output, shape index: {}]
  %s4 = sld [smem:[#allocation0]]
  $region22: #{ppat_forward.1} parent=0
    _
  %s6 = ssub.s32 1, %s4
  %s7 = scalar_select 0, %s6, %s4
  $region1: #{ppat_forward.1} parent=0
    #allocation3 [shape = 'u8[1024]{0}', space=vmem, size = 0x400, scoped, tag = 'output window, operand 0, single buffered']
    #allocation4 [shape = 's32[1]{0}', space=sflag, size = 0x4, scoped, tag = 'scoped memory for ppat_forward.1']
    %8 = vsyncpa [#allocation4], 0
    // Predicated region
    $region2: #{ppat_forward.1} parent=1 // pred_check
      _
    $region3: #{ppat_forward.1} parent=1 // pred_check_branch
      %10 = sbr.rel (0) target = $region5
    $region4: #{ppat_forward.1} parent=1 // pred_region
      _
    $region5: #{ppat_forward.1} parent=1 // pred_fallthru
      _
    // Predicated region
    $region6: #{ppat_forward.1} parent=1 // pred_check
      _
    $region7: #{ppat_forward.1} parent=1 // pred_check_branch
      %12 = sbr.rel (0) target = $region9
    $region8: #{ppat_forward.1} parent=1 // pred_region
      _
    $region9: #{ppat_forward.1} parent=1 // pred_fallthru
      _
    // Predicated region
    $region10: #{ppat_forward.1} parent=1 // pred_check
      _
    $region11: #{ppat_forward.1} parent=1 // pred_check_branch
      %14 = sbr.rel (0) target = $region13
    $region12: #{ppat_forward.1} parent=1 // pred_region
      _
    $region13: #{ppat_forward.1} parent=1 // pred_fallthru
      _
    %v15 = vld [vmem:[%s0] sm:$0x3]
    %s16 = scalar_lea.vmem %s0, 2
    %v17 = vld [vmem:[%s16] sm:$0x3]
    %s18 = scalar_lea.vmem %s0, 4
    %v19 = vld [vmem:[%s18] sm:$0x3]
    %v20 = vlaneseq
    %v21 = vand.u32 %v20, 127
    %v22 = vcvt.s32.f32 %v21
    %vm23 = vcmp.eq.f32.partialorder %v22, 0.0
    %v24 = vsel %vm23, 1.0, 0.0
    %v25 = vmul.f32 %v24, %v15
    %vm26 = vcmask 517120
    %v27 = vsel %vm26, %v25, 0.0
    %28 = vadd.xlane.f32.xlu0 %v27
    %v29 = vpop.xlane.xlu0 %28
    %v30 = vsub.f32 %v15, %v29
    %v31 = vmul.f32 %v30, %v30
    %v32 = vadd.f32 %v31, 0.0
    %v33 = vmul.f32 %v24, %v17
    %v34 = vsel %vm26, %v33, 0.0
    %35 = vadd.xlane.f32.xlu0 %v34
    %v36 = vpop.xlane.xlu0 %35
    %v37 = vsub.f32 %v17, %v36
    %v38 = vmul.f32 %v37, %v37
    %v39 = vadd.f32 %v32, %v38
    %v40 = vmul.f32 %v24, %v19
    %v41 = vsel %vm26, %v40, 0.0
    %42 = vadd.xlane.f32.xlu0 %v41
    %v43 = vpop.xlane.xlu0 %42
    %v44 = vsub.f32 %v19, %v43
    %v45 = vmul.f32 %v44, %v44
    %v46 = vadd.f32 %v39, %v45
    %vm47 = vcmask 7168
    %v48 = vsel %vm47, %v29, %v36
    %vm49 = vcmask 15360
    %v50 = vsel %vm49, %v48, %v43
    %vm51 = vcmask 16384
    %52 = vst.msk [vmem:[#allocation2] sm:$0x1] %vm51, %v50
    %vm53 = vcmask 17409
    %54 = vst.msk [vmem:[#allocation2 + $0x7] sm:$0x2] %vm53, %v50
    %v55 = vmin.f32 %v46, 1e+10
    %v56 = vsel %vm26, %v55, -inf
    %57 = vmax.xlane.f32.xlu0 %v56
    %v58 = vpop.xlane.xlu0 %57
    %vm59 = vcmp.ge.f32.partialorder %v55, %v58
    %v60 = vsel %vm59, %v22, 64.0
    %v61 = vsel %vm26, %v60, inf
    %62 = vmin.xlane.f32.xlu0 %v61
    %v63 = vpop.xlane.xlu0 %62
    %vm64 = vcmp.eq.f32.partialorder %v22, %v63
    %v65 = vsel %vm64, 1.0, 0.0
    %v66 = vmul.f32 %v65, %v15
    %v67 = vsel %vm26, %v66, 0.0
    %68 = vadd.xlane.f32.xlu0 %v67
    %v69 = vpop.xlane.xlu0 %68
    %v70 = vsub.f32 %v15, %v69
    %v71 = vmul.f32 %v70, %v70
    %v72 = vadd.f32 %v71, 0.0
    %v73 = vmul.f32 %v65, %v17
    %v74 = vsel %vm26, %v73, 0.0
    %75 = vadd.xlane.f32.xlu0 %v74
    %v76 = vpop.xlane.xlu0 %75
    %v77 = vsub.f32 %v17, %v76
    %v78 = vmul.f32 %v77, %v77
    %v79 = vadd.f32 %v72, %v78
    %v80 = vmul.f32 %v65, %v19
    %v81 = vsel %vm26, %v80, 0.0
    %82 = vadd.xlane.f32.xlu0 %v81
    %v83 = vpop.xlane.xlu0 %82
    %v84 = vsub.f32 %v19, %v83
    %v85 = vmul.f32 %v84, %v84
    %v86 = vadd.f32 %v79, %v85
    %v87 = vsel %vm47, %v69, %v76
    %v88 = vsel %vm49, %v87, %v83
    %89 = vst.msk [vmem:[#allocation2 + $0x1] sm:$0x1] %vm51, %v88
    %90 = vst.msk [vmem:[#allocation2 + $0x8] sm:$0x2] %vm53, %v88
    %v91 = vmin.f32 %v55, %v86
    %v92 = vsel %vm26, %v91, -inf
    %93 = vmax.xlane.f32.xlu0 %v92
    %v94 = vpop.xlane.xlu0 %93
    %vm95 = vcmp.ge.f32.partialorder %v91, %v94
    %v96 = vsel %vm95, %v22, 64.0
    %v97 = vsel %vm26, %v96, inf
    %98 = vmin.xlane.f32.xlu0 %v97
    %v99 = vpop.xlane.xlu0 %98
    %vm100 = vcmp.eq.f32.partialorder %v22, %v99
    %v101 = vsel %vm100, 1.0, 0.0
    %v102 = vmul.f32 %v101, %v15
    %v103 = vsel %vm26, %v102, 0.0
    %104 = vadd.xlane.f32.xlu0 %v103
    %v105 = vpop.xlane.xlu0 %104
    %v106 = vsub.f32 %v15, %v105
    %v107 = vmul.f32 %v106, %v106
    %v108 = vadd.f32 %v107, 0.0
    %v109 = vmul.f32 %v101, %v17
    %v110 = vsel %vm26, %v109, 0.0
    %111 = vadd.xlane.f32.xlu0 %v110
    %v112 = vpop.xlane.xlu0 %111
    %v113 = vsub.f32 %v17, %v112
    %v114 = vmul.f32 %v113, %v113
    %v115 = vadd.f32 %v108, %v114
    %v116 = vmul.f32 %v101, %v19
    %v117 = vsel %vm26, %v116, 0.0
    %118 = vadd.xlane.f32.xlu0 %v117
    %v119 = vpop.xlane.xlu0 %118
    %v120 = vsub.f32 %v19, %v119
    %v121 = vmul.f32 %v120, %v120
    %v122 = vadd.f32 %v115, %v121
    %v123 = vsel %vm47, %v105, %v112
    %v124 = vsel %vm49, %v123, %v119
    %125 = vst.msk [vmem:[#allocation2 + $0x2] sm:$0x1] %vm51, %v124
    %126 = vst.msk [vmem:[#allocation2 + $0x9] sm:$0x2] %vm53, %v124
    %v127 = vmin.f32 %v91, %v122
    %v128 = vsel %vm26, %v127, -inf
    %129 = vmax.xlane.f32.xlu0 %v128
    %v130 = vpop.xlane.xlu0 %129
    %vm131 = vcmp.ge.f32.partialorder %v127, %v130
    %v132 = vsel %vm131, %v22, 64.0
    %v133 = vsel %vm26, %v132, inf
    %134 = vmin.xlane.f32.xlu0 %v133
    %v135 = vpop.xlane.xlu0 %134
    %vm136 = vcmp.eq.f32.partialorder %v22, %v135
    %v137 = vsel %vm136, 1.0, 0.0
    %v138 = vmul.f32 %v137, %v15
    %v139 = vsel %vm26, %v138, 0.0
    %140 = vadd.xlane.f32.xlu0 %v139
    %v141 = vpop.xlane.xlu0 %140
    %v142 = vsub.f32 %v15, %v141
    %v143 = vmul.f32 %v142, %v142
    %v144 = vadd.f32 %v143, 0.0
    %v145 = vmul.f32 %v137, %v17
    %v146 = vsel %vm26, %v145, 0.0
    %147 = vadd.xlane.f32.xlu0 %v146
    %v148 = vpop.xlane.xlu0 %147
    %v149 = vsub.f32 %v17, %v148
    %v150 = vmul.f32 %v149, %v149
    %v151 = vadd.f32 %v144, %v150
    %v152 = vmul.f32 %v137, %v19
    %v153 = vsel %vm26, %v152, 0.0
    %154 = vadd.xlane.f32.xlu0 %v153
    %v155 = vpop.xlane.xlu0 %154
    %v156 = vsub.f32 %v19, %v155
    %v157 = vmul.f32 %v156, %v156
    %v158 = vadd.f32 %v151, %v157
    %v159 = vsel %vm47, %v141, %v148
    %v160 = vsel %vm49, %v159, %v155
    %161 = vst.msk [vmem:[#allocation2 + $0x3] sm:$0x1] %vm51, %v160
    %162 = vst.msk [vmem:[#allocation2 + $0xa] sm:$0x2] %vm53, %v160
    %v163 = vmin.f32 %v127, %v158
    %v164 = vsel %vm26, %v163, -inf
    %165 = vmax.xlane.f32.xlu0 %v164
    %v166 = vpop.xlane.xlu0 %165
    %vm167 = vcmp.ge.f32.partialorder %v163, %v166
    %v168 = vsel %vm167, %v22, 64.0
    %v169 = vsel %vm26, %v168, inf
    %170 = vmin.xlane.f32.xlu0 %v169
    %v171 = vpop.xlane.xlu0 %170
    %vm172 = vcmp.eq.f32.partialorder %v22, %v171
    %v173 = vsel %vm172, 1.0, 0.0
    %v174 = vmul.f32 %v173, %v15
    %v175 = vsel %vm26, %v174, 0.0
    %176 = vadd.xlane.f32.xlu0 %v175
    %v177 = vpop.xlane.xlu0 %176
    %v178 = vsub.f32 %v15, %v177
    %v179 = vmul.f32 %v178, %v178
    %v180 = vadd.f32 %v179, 0.0
    %v181 = vmul.f32 %v173, %v17
    %v182 = vsel %vm26, %v181, 0.0
    %183 = vadd.xlane.f32.xlu0 %v182
    %v184 = vpop.xlane.xlu0 %183
    %v185 = vsub.f32 %v17, %v184
    %v186 = vmul.f32 %v185, %v185
    %v187 = vadd.f32 %v180, %v186
    %v188 = vmul.f32 %v173, %v19
    %v189 = vsel %vm26, %v188, 0.0
    %190 = vadd.xlane.f32.xlu0 %v189
    %v191 = vpop.xlane.xlu0 %190
    %v192 = vsub.f32 %v19, %v191
    %v193 = vmul.f32 %v192, %v192
    %v194 = vadd.f32 %v187, %v193
    %v195 = vsel %vm47, %v177, %v184
    %v196 = vsel %vm49, %v195, %v191
    %197 = vst.msk [vmem:[#allocation2 + $0x4] sm:$0x1] %vm51, %v196
    %198 = vst.msk [vmem:[#allocation2 + $0xb] sm:$0x2] %vm53, %v196
    %v199 = vmin.f32 %v163, %v194
    %v200 = vsel %vm26, %v199, -inf
    %201 = vmax.xlane.f32.xlu0 %v200
    %v202 = vpop.xlane.xlu0 %201
    %vm203 = vcmp.ge.f32.partialorder %v199, %v202
    %v204 = vsel %vm203, %v22, 64.0
    %v205 = vsel %vm26, %v204, inf
    %206 = vmin.xlane.f32.xlu0 %v205
    %v207 = vpop.xlane.xlu0 %206
    %vm208 = vcmp.eq.f32.partialorder %v22, %v207
    %v209 = vsel %vm208, 1.0, 0.0
    %v210 = vmul.f32 %v209, %v15
    %v211 = vsel %vm26, %v210, 0.0
    %212 = vadd.xlane.f32.xlu0 %v211
    %v213 = vpop.xlane.xlu0 %212
    %v214 = vsub.f32 %v15, %v213
    %v215 = vmul.f32 %v214, %v214
    %v216 = vadd.f32 %v215, 0.0
    %v217 = vmul.f32 %v209, %v17
    %v218 = vsel %vm26, %v217, 0.0
    %219 = vadd.xlane.f32.xlu0 %v218
    %v220 = vpop.xlane.xlu0 %219
    %v221 = vsub.f32 %v17, %v220
    %v222 = vmul.f32 %v221, %v221
    %v223 = vadd.f32 %v216, %v222
    %v224 = vmul.f32 %v209, %v19
    %v225 = vsel %vm26, %v224, 0.0
    %226 = vadd.xlane.f32.xlu0 %v225
    %v227 = vpop.xlane.xlu0 %226
    %v228 = vsub.f32 %v19, %v227
    %v229 = vmul.f32 %v228, %v228
    %v230 = vadd.f32 %v223, %v229
    %v231 = vsel %vm47, %v213, %v220
    %v232 = vsel %vm49, %v231, %v227
    %233 = vst.msk [vmem:[#allocation2 + $0x5] sm:$0x1] %vm51, %v232
    %234 = vst.msk [vmem:[#allocation2 + $0xc] sm:$0x2] %vm53, %v232
    %v235 = vmin.f32 %v199, %v230
    %v236 = vsel %vm26, %v235, -inf
    %237 = vmax.xlane.f32.xlu0 %v236
    %v238 = vpop.xlane.xlu0 %237
    %vm239 = vcmp.ge.f32.partialorder %v235, %v238
    %v240 = vsel %vm239, %v22, 64.0
    %v241 = vsel %vm26, %v240, inf
    %242 = vmin.xlane.f32.xlu0 %v241
    %v243 = vpop.xlane.xlu0 %242
    %vm244 = vcmp.eq.f32.partialorder %v22, %v243
    %v245 = vsel %vm244, 1.0, 0.0
    %v246 = vmul.f32 %v245, %v15
    %v247 = vsel %vm26, %v246, 0.0
    %248 = vadd.xlane.f32.xlu0 %v247
    %v249 = vpop.xlane.xlu0 %248
    %v250 = vsub.f32 %v15, %v249
    %v251 = vmul.f32 %v250, %v250
    %v252 = vadd.f32 %v251, 0.0
    %v253 = vmul.f32 %v245, %v17
    %v254 = vsel %vm26, %v253, 0.0
    %255 = vadd.xlane.f32.xlu0 %v254
    %v256 = vpop.xlane.xlu0 %255
    %v257 = vsub.f32 %v17, %v256
    %v258 = vmul.f32 %v257, %v257
    %v259 = vadd.f32 %v252, %v258
    %v260 = vmul.f32 %v245, %v19
    %v261 = vsel %vm26, %v260, 0.0
    %262 = vadd.xlane.f32.xlu0 %v261
    %v263 = vpop.xlane.xlu0 %262
    %v264 = vsub.f32 %v19, %v263
    %v265 = vmul.f32 %v264, %v264
    %v266 = vadd.f32 %v259, %v265
    %v267 = vsel %vm47, %v249, %v256
    %v268 = vsel %vm49, %v267, %v263
    %269 = vst.msk [vmem:[#allocation2 + $0x6] sm:$0x1] %vm51, %v268
    %270 = vst.msk [vmem:[#allocation2 + $0xd] sm:$0x2] %vm53, %v268
    %v271 = vmin.f32 %v235, %v266
    %v272 = vsel %vm26, %v271, -inf
    %273 = vmax.xlane.f32.xlu0 %v272
    %v274 = vpop.xlane.xlu0 %273
    %vm275 = vcmp.ge.f32.partialorder %v271, %v274
    %v276 = vsel %vm275, %v22, 64.0
    %v277 = vsel %vm26, %v276, inf
    %278 = vmin.xlane.f32.xlu0 %v277
    %v279 = vpop.xlane.xlu0 %278
    %vm280 = vcmp.eq.f32.partialorder %v22, %v279
    %v281 = vsel %vm280, 1.0, 0.0
    %v282 = vmul.f32 %v281, %v15
    %v283 = vsel %vm26, %v282, 0.0
    %284 = vadd.xlane.f32.xlu0 %v283
    %v285 = vpop.xlane.xlu0 %284
    %v286 = vmul.f32 %v281, %v17
    %v287 = vsel %vm26, %v286, 0.0
    %288 = vadd.xlane.f32.xlu0 %v287
    %v289 = vpop.xlane.xlu0 %288
    %v290 = vmul.f32 %v281, %v19
    %v291 = vsel %vm26, %v290, 0.0
    %292 = vadd.xlane.f32.xlu0 %v291
    %v293 = vpop.xlane.xlu0 %292
    %v294 = vsel %vm47, %v285, %v289
    %v295 = vsel %vm49, %v294, %v293
    %296 = vst.msk [vmem:[#allocation2 + $0x7] sm:$0x1] %vm51, %v295
    %297 = vst.msk [vmem:[#allocation2 + $0xe] sm:$0x2] %vm53, %v295
    %v298 = vld [vmem:[#allocation2] sm:$0xff]
    %v299 = vld [vmem:[#allocation2 + $0x8] sm:$0xff]
    %v300 = vlaneseq
    %v301 = vshrl.u32 %v300, 7
    %v302 = vsub.s32 0, %v301
    %v303 = vrot.slane %v15, %v302
    %v304 = vlaneseq
    %v305 = vshrl.u32 %v304, 7
    %v306 = vsub.s32 1, %v305
    %v307 = vrot.slane %v15, %v306
    %309 = vset.pattern.permute.xlu0 0
    %310 = vperm.xlu0 %309, %v298
    %v311 = vpop.permute.xlu0 %310
    %314 = vset.pattern.permute.xlu0 0
    %315 = vperm.xlu0 %314, %v299
    %v316 = vpop.permute.xlu0 %315
    %v318 = vsub.f32 %v311, %v303
    %v319 = vsub.f32 %v316, %v307
    %v320 = vmul.f32 %v318, %v318
    %v321 = vmul.f32 %v319, %v319
    %v322 = vadd.f32 %v320, 0.0
    %v323 = vadd.f32 %v321, 0.0
    %v324 = vlaneseq
    %v325 = vshrl.u32 %v324, 7
    %v326 = vsub.s32 0, %v325
    %v327 = vrot.slane %v17, %v326
    %v328 = vlaneseq
    %v329 = vshrl.u32 %v328, 7
    %v330 = vsub.s32 1, %v329
    %v331 = vrot.slane %v17, %v330
    %332 = vset.pattern.permute.xlu0 1
    %333 = vperm.xlu0 %332, %v298
    %v334 = vpop.permute.xlu0 %333
    %336 = vset.pattern.permute.xlu0 1
    %337 = vperm.xlu0 %336, %v299
    %v338 = vpop.permute.xlu0 %337
    %v340 = vsub.f32 %v334, %v327
    %v341 = vsub.f32 %v338, %v331
    %v342 = vmul.f32 %v340, %v340
    %v343 = vmul.f32 %v341, %v341
    %v344 = vadd.f32 %v322, %v342
    %v345 = vadd.f32 %v323, %v343
    %v346 = vlaneseq
    %v347 = vshrl.u32 %v346, 7
    %v348 = vsub.s32 0, %v347
    %v349 = vrot.slane %v19, %v348
    %v350 = vlaneseq
    %v351 = vshrl.u32 %v350, 7
    %v352 = vsub.s32 1, %v351
    %v353 = vrot.slane %v19, %v352
    %354 = vset.pattern.permute.xlu0 2
    %355 = vperm.xlu0 %354, %v298
    %v356 = vpop.permute.xlu0 %355
    %358 = vset.pattern.permute.xlu0 2
    %359 = vperm.xlu0 %358, %v299
    %v360 = vpop.permute.xlu0 %359
    %v362 = vsub.f32 %v356, %v349
    %v363 = vsub.f32 %v360, %v353
    %v364 = vmul.f32 %v362, %v362
    %v365 = vmul.f32 %v363, %v363
    %v366 = vadd.f32 %v344, %v364
    %v367 = vadd.f32 %v345, %v365
    %vm368 = vcmp.gt.f32.partialorder %v366, 0.09
    %vm369 = vcmp.gt.f32.partialorder %v367, 0.09
    %v370 = vsel %vm368, 64.0, %v22
    %v371 = vsel %vm369, 64.0, %v22
    %v372 = vld [vmem:[%s2 + $0xc0] sm:$0xff]
    %v373 = vld [vmem:[%s2 + $0xc8] sm:$0xff]
    %vm374 = vcmask 523264
    %v375 = vsel %vm374, %v370, inf
    %376 = vmin.xlane.f32.xlu0 %v375
    %v377 = vpop.xlane.xlu0 %376
    %v378 = vsel %vm374, %v371, inf
    %379 = vmin.xlane.f32.xlu0 %v378
    %v380 = vpop.xlane.xlu0 %379
    %vm381 = vcmp.eq.f32.partialorder %v370, %v377
    %vm382 = vcmp.eq.f32.partialorder %v371, %v380
    %v383 = vsel %vm381, 64.0, %v370
    %v384 = vsel %vm382, 64.0, %v371
    %v385 = vadd.f32 %v377, %v372
    %v386 = vadd.f32 %v380, %v373
    %388 = vset.pattern.permute.xlu0 0
    %389 = vperm.xlu0 %388, %v385
    %v390 = vpop.permute.xlu0 %389
    %393 = vset.pattern.permute.xlu0 0
    %394 = vperm.xlu0 %393, %v386
    %v395 = vpop.permute.xlu0 %394
    %vm397 = vcmp.eq.f32.partialorder %v22, %v390
    %vm398 = vcmp.eq.f32.partialorder %v22, %v395
    %v399 = vsel %vm397, 1.0, 0.0
    %v400 = vsel %vm398, 1.0, 0.0
    %v401 = vsel %vm374, %v383, inf
    %402 = vmin.xlane.f32.xlu0 %v401
    %v403 = vpop.xlane.xlu0 %402
    %v404 = vsel %vm374, %v384, inf
    %405 = vmin.xlane.f32.xlu0 %v404
    %v406 = vpop.xlane.xlu0 %405
    %vm407 = vcmp.ge.f32.partialorder %v403, 64.0
    %vm408 = vcmp.ge.f32.partialorder %v406, 64.0
    %v409 = vsel %vm407, %v377, %v403
    %v410 = vsel %vm408, %v380, %v406
    %vm411 = vcmp.eq.f32.partialorder %v383, %v403
    %vm412 = vcmp.eq.f32.partialorder %v384, %v406
    %v413 = vsel %vm411, 64.0, %v383
    %v414 = vsel %vm412, 64.0, %v384
    %v415 = vadd.f32 %v409, %v372
    %v416 = vadd.f32 %v410, %v373
    %418 = vset.pattern.permute.xlu0 0
    %419 = vperm.xlu0 %418, %v415
    %v420 = vpop.permute.xlu0 %419
    %423 = vset.pattern.permute.xlu0 0
    %424 = vperm.xlu0 %423, %v416
    %v425 = vpop.permute.xlu0 %424
    %vm427 = vcmp.eq.f32.partialorder %v22, %v420
    %vm428 = vcmp.eq.f32.partialorder %v22, %v425
    %v429 = vsel %vm427, 1.0, 0.0
    %v430 = vsel %vm428, 1.0, 0.0
    %v431 = vsel %vm374, %v413, inf
    %432 = vmin.xlane.f32.xlu0 %v431
    %v433 = vpop.xlane.xlu0 %432
    %v434 = vsel %vm374, %v414, inf
    %435 = vmin.xlane.f32.xlu0 %v434
    %v436 = vpop.xlane.xlu0 %435
    %vm437 = vcmp.ge.f32.partialorder %v433, 64.0
    %vm438 = vcmp.ge.f32.partialorder %v436, 64.0
    %v439 = vsel %vm437, %v377, %v433
    %v440 = vsel %vm438, %v380, %v436
    %vm441 = vcmp.eq.f32.partialorder %v413, %v433
    %vm442 = vcmp.eq.f32.partialorder %v414, %v436
    %v443 = vsel %vm441, 64.0, %v413
    %v444 = vsel %vm442, 64.0, %v414
    %v445 = vadd.f32 %v439, %v372
    %v446 = vadd.f32 %v440, %v373
    %448 = vset.pattern.permute.xlu0 0
    %449 = vperm.xlu0 %448, %v445
    %v450 = vpop.permute.xlu0 %449
    %453 = vset.pattern.permute.xlu0 0
    %454 = vperm.xlu0 %453, %v446
    %v455 = vpop.permute.xlu0 %454
    %vm457 = vcmp.eq.f32.partialorder %v22, %v450
    %vm458 = vcmp.eq.f32.partialorder %v22, %v455
    %v459 = vsel %vm457, 1.0, 0.0
    %v460 = vsel %vm458, 1.0, 0.0
    %v461 = vsel %vm374, %v443, inf
    %462 = vmin.xlane.f32.xlu0 %v461
    %v463 = vpop.xlane.xlu0 %462
    %v464 = vsel %vm374, %v444, inf
    %465 = vmin.xlane.f32.xlu0 %v464
    %v466 = vpop.xlane.xlu0 %465
    %vm467 = vcmp.ge.f32.partialorder %v463, 64.0
    %vm468 = vcmp.ge.f32.partialorder %v466, 64.0
    %v469 = vsel %vm467, %v377, %v463
    %v470 = vsel %vm468, %v380, %v466
    %vm471 = vcmp.eq.f32.partialorder %v443, %v463
    %vm472 = vcmp.eq.f32.partialorder %v444, %v466
    %v473 = vsel %vm471, 64.0, %v443
    %v474 = vsel %vm472, 64.0, %v444
    %v475 = vadd.f32 %v469, %v372
    %v476 = vadd.f32 %v470, %v373
    %478 = vset.pattern.permute.xlu0 0
    %479 = vperm.xlu0 %478, %v475
    %v480 = vpop.permute.xlu0 %479
    %483 = vset.pattern.permute.xlu0 0
    %484 = vperm.xlu0 %483, %v476
    %v485 = vpop.permute.xlu0 %484
    %vm487 = vcmp.eq.f32.partialorder %v22, %v480
    %vm488 = vcmp.eq.f32.partialorder %v22, %v485
    %v489 = vsel %vm487, 1.0, 0.0
    %v490 = vsel %vm488, 1.0, 0.0
    %v491 = vsel %vm374, %v473, inf
    %492 = vmin.xlane.f32.xlu0 %v491
    %v493 = vpop.xlane.xlu0 %492
    %v494 = vsel %vm374, %v474, inf
    %495 = vmin.xlane.f32.xlu0 %v494
    %v496 = vpop.xlane.xlu0 %495
    %vm497 = vcmp.ge.f32.partialorder %v493, 64.0
    %vm498 = vcmp.ge.f32.partialorder %v496, 64.0
    %v499 = vsel %vm497, %v377, %v493
    %v500 = vsel %vm498, %v380, %v496
    %vm501 = vcmp.eq.f32.partialorder %v473, %v493
    %vm502 = vcmp.eq.f32.partialorder %v474, %v496
    %v503 = vsel %vm501, 64.0, %v473
    %v504 = vsel %vm502, 64.0, %v474
    %v505 = vadd.f32 %v499, %v372
    %v506 = vadd.f32 %v500, %v373
    %508 = vset.pattern.permute.xlu0 0
    %509 = vperm.xlu0 %508, %v505
    %v510 = vpop.permute.xlu0 %509
    %513 = vset.pattern.permute.xlu0 0
    %514 = vperm.xlu0 %513, %v506
    %v515 = vpop.permute.xlu0 %514
    %vm517 = vcmp.eq.f32.partialorder %v22, %v510
    %vm518 = vcmp.eq.f32.partialorder %v22, %v515
    %v519 = vsel %vm517, 1.0, 0.0
    %v520 = vsel %vm518, 1.0, 0.0
    %v521 = vsel %vm374, %v503, inf
    %522 = vmin.xlane.f32.xlu0 %v521
    %v523 = vpop.xlane.xlu0 %522
    %v524 = vsel %vm374, %v504, inf
    %525 = vmin.xlane.f32.xlu0 %v524
    %v526 = vpop.xlane.xlu0 %525
    %vm527 = vcmp.ge.f32.partialorder %v523, 64.0
    %vm528 = vcmp.ge.f32.partialorder %v526, 64.0
    %v529 = vsel %vm527, %v377, %v523
    %v530 = vsel %vm528, %v380, %v526
    %vm531 = vcmp.eq.f32.partialorder %v503, %v523
    %vm532 = vcmp.eq.f32.partialorder %v504, %v526
    %v533 = vsel %vm531, 64.0, %v503
    %v534 = vsel %vm532, 64.0, %v504
    %v535 = vadd.f32 %v529, %v372
    %v536 = vadd.f32 %v530, %v373
    %538 = vset.pattern.permute.xlu0 0
    %539 = vperm.xlu0 %538, %v535
    %v540 = vpop.permute.xlu0 %539
    %543 = vset.pattern.permute.xlu0 0
    %544 = vperm.xlu0 %543, %v536
    %v545 = vpop.permute.xlu0 %544
    %vm547 = vcmp.eq.f32.partialorder %v22, %v540
    %vm548 = vcmp.eq.f32.partialorder %v22, %v545
    %v549 = vsel %vm547, 1.0, 0.0
    %v550 = vsel %vm548, 1.0, 0.0
    %v551 = vsel %vm374, %v533, inf
    %552 = vmin.xlane.f32.xlu0 %v551
    %v553 = vpop.xlane.xlu0 %552
    %v554 = vsel %vm374, %v534, inf
    %555 = vmin.xlane.f32.xlu0 %v554
    %v556 = vpop.xlane.xlu0 %555
    %vm557 = vcmp.ge.f32.partialorder %v553, 64.0
    %vm558 = vcmp.ge.f32.partialorder %v556, 64.0
    %v559 = vsel %vm557, %v377, %v553
    %v560 = vsel %vm558, %v380, %v556
    %vm561 = vcmp.eq.f32.partialorder %v533, %v553
    %vm562 = vcmp.eq.f32.partialorder %v534, %v556
    %v563 = vsel %vm561, 64.0, %v533
    %v564 = vsel %vm562, 64.0, %v534
    %v565 = vadd.f32 %v559, %v372
    %v566 = vadd.f32 %v560, %v373
    %568 = vset.pattern.permute.xlu0 0
    %569 = vperm.xlu0 %568, %v565
    %v570 = vpop.permute.xlu0 %569
    %573 = vset.pattern.permute.xlu0 0
    %574 = vperm.xlu0 %573, %v566
    %v575 = vpop.permute.xlu0 %574
    %vm577 = vcmp.eq.f32.partialorder %v22, %v570
    %vm578 = vcmp.eq.f32.partialorder %v22, %v575
    %v579 = vsel %vm577, 1.0, 0.0
    %v580 = vsel %vm578, 1.0, 0.0
    %v581 = vsel %vm374, %v563, inf
    %582 = vmin.xlane.f32.xlu0 %v581
    %v583 = vpop.xlane.xlu0 %582
    %v584 = vsel %vm374, %v564, inf
    %585 = vmin.xlane.f32.xlu0 %v584
    %v586 = vpop.xlane.xlu0 %585
    %vm587 = vcmp.ge.f32.partialorder %v583, 64.0
    %vm588 = vcmp.ge.f32.partialorder %v586, 64.0
    %v589 = vsel %vm587, %v377, %v583
    %v590 = vsel %vm588, %v380, %v586
    %v591 = vadd.f32 %v589, %v372
    %v592 = vadd.f32 %v590, %v373
    %594 = vset.pattern.permute.xlu0 0
    %595 = vperm.xlu0 %594, %v591
    %v596 = vpop.permute.xlu0 %595
    %599 = vset.pattern.permute.xlu0 0
    %600 = vperm.xlu0 %599, %v592
    %v601 = vpop.permute.xlu0 %600
    %vm603 = vcmp.eq.f32.partialorder %v22, %v596
    %vm604 = vcmp.eq.f32.partialorder %v22, %v601
    %v605 = vsel %vm603, 1.0, 0.0
    %v606 = vsel %vm604, 1.0, 0.0
    %v607 = vld [vmem:[%s1] sm:$0xff]
    %v608 = vld [vmem:[%s1 + $0x8] sm:$0xff]
    %v609 = vld [vmem:[%s1 + $0x10] sm:$0xff]
    %v610 = vld [vmem:[%s1 + $0x18] sm:$0xff]
    %v611 = vld [vmem:[%s1 + $0x20] sm:$0xff]
    %v612 = vld [vmem:[%s1 + $0x28] sm:$0xff]
    %v613 = vld [vmem:[%s1 + $0x30] sm:$0xff]
    %v614 = vld [vmem:[%s1 + $0x38] sm:$0xff]
    %v615 = vld [vmem:[%s1 + $0x40] sm:$0xff]
    %v616 = vld [vmem:[%s1 + $0x48] sm:$0xff]
    %v617 = vld [vmem:[%s1 + $0x50] sm:$0xff]
    %v618 = vld [vmem:[%s1 + $0x58] sm:$0xff]
    %v619 = vld [vmem:[%s1 + $0x60] sm:$0xff]
    %v620 = vld [vmem:[%s1 + $0x68] sm:$0xff]
    %v621 = vld [vmem:[%s1 + $0x70] sm:$0xff]
    %v622 = vld [vmem:[%s1 + $0x78] sm:$0xff]
    %623 = vmatprep.subr.mxu0 0.0
    %624 = vmatpush1.msra.mxu0 %v622
    %625 = vmatprep.subr.mxu0 0.0
    %626 = vmatpush1.msra.mxu0 %v621
    %627 = vmatprep.subr.mxu0 0.0
    %628 = vmatpush1.msra.mxu0 %v620
    %629 = vmatprep.subr.mxu0 0.0
    %630 = vmatpush1.msra.mxu0 %v619
    %631 = vmatprep.subr.mxu0 0.0
    %632 = vmatpush1.msra.mxu0 %v618
    %633 = vmatprep.subr.mxu0 0.0
    %634 = vmatpush1.msra.mxu0 %v617
    %635 = vmatprep.subr.mxu0 0.0
    %636 = vmatpush1.msra.mxu0 %v616
    %637 = vmatprep.subr.mxu0 0.0
    %638 = vmatpush1.msra.mxu0 %v615
    %639 = vmatprep.subr.mxu0 0.0
    %640 = vmatpush1.msra.mxu0 %v614
    %641 = vmatprep.subr.mxu0 0.0
    %642 = vmatpush1.msra.mxu0 %v613
    %643 = vmatprep.subr.mxu0 0.0
    %644 = vmatpush1.msra.mxu0 %v612
    %645 = vmatprep.subr.mxu0 0.0
    %646 = vmatpush1.msra.mxu0 %v611
    %647 = vmatprep.subr.mxu0 0.0
    %648 = vmatpush1.msra.mxu0 %v610
    %649 = vmatprep.subr.mxu0 0.0
    %650 = vmatpush1.msra.mxu0 %v609
    %651 = vmatprep.subr.mxu0 0.0
    %652 = vmatpush1.msra.mxu0 %v608
    %653 = vmatprep.subr.mxu0 0.0
    %654 = vmatpush1.msra.mxu0 %v607
    %655 = vmatprep.subr.mxu0 0.0
    %656 = vmatpush2.msra.mxu0 0.0
    %657 = vmatprep.subr.mxu0 0.0
    %658 = vmatpush2.msra.mxu0 0.0
    %659 = vmatprep.subr.mxu0 0.0
    %660 = vmatpush2.msra.mxu0 0.0
    %661 = vmatprep.subr.mxu0 0.0
    %662 = vmatpush2.msra.mxu0 0.0
    %663 = vmatprep.subr.mxu0 0.0
    %664 = vmatpush2.msra.mxu0 0.0
    %665 = vmatprep.subr.mxu0 0.0
    %666 = vmatpush2.msra.mxu0 0.0
    %667 = vmatprep.subr.mxu0 0.0
    %668 = vmatpush2.msra.mxu0 0.0
    %669 = vmatprep.subr.mxu0 0.0
    %670 = vmatpush2.msra.mxu0 0.0
    %671 = vmatprep.subr.mxu0 0.0
    %672 = vmatpush2.msra.mxu0 0.0
    %673 = vmatprep.subr.mxu0 0.0
    %674 = vmatpush2.msra.mxu0 0.0
    %675 = vmatprep.subr.mxu0 0.0
    %676 = vmatpush2.msra.mxu0 0.0
    %677 = vmatprep.subr.mxu0 0.0
    %678 = vmatpush2.msra.mxu0 0.0
    %679 = vmatprep.subr.mxu0 0.0
    %680 = vmatpush2.msra.mxu0 0.0
    %681 = vmatprep.subr.mxu0 0.0
    %682 = vmatpush2.msra.mxu0 0.0
    %683 = vmatprep.subr.mxu0 0.0
    %684 = vmatpush2.msra.mxu0 0.0
    %685 = vmatprep.subr.mxu0 0.0
    %686 = vmatpush2.msra.mxu0 0.0
    %687 = vmatprep.mubr.f32.mxu0 0.0
    %688 = vmatmul.mubr.f32.gmra.mxu0 %v399
    %v689 = vpop.f32.mrf.mxu0
    %v690 = vadd.f32 0.0, %v689
    %v691 = vpop.f32.mrf.mxu0
    %692 = vmatprep.mubr.f32.mxu0 0.0
    %693 = vmatmul.mubr.f32.gmra.mxu0 %v400
    %v694 = vpop.f32.mrf.mxu0
    %v695 = vadd.f32 0.0, %v694
    %v696 = vpop.f32.mrf.mxu0
    %697 = vmatprep.mubr.f32.mxu0 0.0
    %698 = vmatmul.mubr.f32.gmra.mxu0 %v429
    %v699 = vpop.f32.mrf.mxu0
    %v700 = vadd.f32 0.0, %v699
    %v701 = vpop.f32.mrf.mxu0
    %702 = vmatprep.mubr.f32.mxu0 0.0
    %703 = vmatmul.mubr.f32.gmra.mxu0 %v430
    %v704 = vpop.f32.mrf.mxu0
    %v705 = vadd.f32 0.0, %v704
    %v706 = vpop.f32.mrf.mxu0
    %707 = vmatprep.mubr.f32.mxu0 0.0
    %708 = vmatmul.mubr.f32.gmra.mxu0 %v459
    %v709 = vpop.f32.mrf.mxu0
    %v710 = vadd.f32 0.0, %v709
    %v711 = vpop.f32.mrf.mxu0
    %712 = vmatprep.mubr.f32.mxu0 0.0
    %713 = vmatmul.mubr.f32.gmra.mxu0 %v460
    %v714 = vpop.f32.mrf.mxu0
    %v715 = vadd.f32 0.0, %v714
    %v716 = vpop.f32.mrf.mxu0
    %717 = vmatprep.mubr.f32.mxu0 0.0
    %718 = vmatmul.mubr.f32.gmra.mxu0 %v489
    %v719 = vpop.f32.mrf.mxu0
    %v720 = vadd.f32 0.0, %v719
    %v721 = vpop.f32.mrf.mxu0
    %722 = vmatprep.mubr.f32.mxu0 0.0
    %723 = vmatmul.mubr.f32.gmra.mxu0 %v490
    %v724 = vpop.f32.mrf.mxu0
    %v725 = vadd.f32 0.0, %v724
    %v726 = vpop.f32.mrf.mxu0
    %727 = vmatprep.mubr.f32.mxu0 0.0
    %728 = vmatmul.mubr.f32.gmra.mxu0 %v519
    %v729 = vpop.f32.mrf.mxu0
    %v730 = vadd.f32 0.0, %v729
    %v731 = vpop.f32.mrf.mxu0
    %732 = vmatprep.mubr.f32.mxu0 0.0
    %733 = vmatmul.mubr.f32.gmra.mxu0 %v520
    %v734 = vpop.f32.mrf.mxu0
    %v735 = vadd.f32 0.0, %v734
    %v736 = vpop.f32.mrf.mxu0
    %737 = vmatprep.mubr.f32.mxu0 0.0
    %738 = vmatmul.mubr.f32.gmra.mxu0 %v549
    %v739 = vpop.f32.mrf.mxu0
    %v740 = vadd.f32 0.0, %v739
    %v741 = vpop.f32.mrf.mxu0
    %742 = vmatprep.mubr.f32.mxu0 0.0
    %743 = vmatmul.mubr.f32.gmra.mxu0 %v550
    %v744 = vpop.f32.mrf.mxu0
    %v745 = vadd.f32 0.0, %v744
    %v746 = vpop.f32.mrf.mxu0
    %747 = vmatprep.mubr.f32.mxu0 0.0
    %748 = vmatmul.mubr.f32.gmra.mxu0 %v579
    %v749 = vpop.f32.mrf.mxu0
    %v750 = vadd.f32 0.0, %v749
    %v751 = vpop.f32.mrf.mxu0
    %752 = vmatprep.mubr.f32.mxu0 0.0
    %753 = vmatmul.mubr.f32.gmra.mxu0 %v580
    %v754 = vpop.f32.mrf.mxu0
    %v755 = vadd.f32 0.0, %v754
    %v756 = vpop.f32.mrf.mxu0
    %757 = vmatprep.mubr.f32.mxu0 0.0
    %758 = vmatmul.mubr.f32.gmra.mxu0 %v605
    %v759 = vpop.f32.mrf.mxu0
    %v760 = vadd.f32 0.0, %v759
    %v761 = vpop.f32.mrf.mxu0
    %762 = vmatprep.mubr.f32.mxu0 0.0
    %763 = vmatmul.mubr.f32.gmra.mxu0 %v606
    %v764 = vpop.f32.mrf.mxu0
    %v765 = vadd.f32 0.0, %v764
    %v766 = vpop.f32.mrf.mxu0
    %767 = vdwg.mxu0
    %v768 = vld [vmem:[%s2 + $0x8] sm:$0x7]
    %v769 = vld [vmem:[%s2 + $0x210] sm:$0x1]
    %v770 = vlaneseq
    %v771 = vshrl.u32 %v770, 7
    %v772 = vsub.s32 0, %v771
    %v773 = vrot.slane %v769, %v772
    %vm774 = vcmask 23552
    %v775 = vsel %vm774, %v298, 0
    %v777 = vsel %vm774, %v299, 0
    %vm779 = vcmask 1042432
    %v781 = vsel %vm779, %v768, 0
    %783 = vmatprep.subr.mxu0 0.0
    %784 = vmatpush1.msra.mxu0 0.0
    %785 = vmatprep.subr.mxu0 0.0
    %786 = vmatpush1.msra.mxu0 0.0
    %787 = vmatprep.subr.mxu0 0.0
    %788 = vmatpush1.msra.mxu0 0.0
    %789 = vmatprep.subr.mxu0 0.0
    %790 = vmatpush1.msra.mxu0 0.0
    %791 = vmatprep.subr.mxu0 0.0
    %792 = vmatpush1.msra.mxu0 0.0
    %793 = vmatprep.subr.mxu0 0.0
    %794 = vmatpush1.msra.mxu0 0.0
    %795 = vmatprep.subr.mxu0 0.0
    %796 = vmatpush1.msra.mxu0 0.0
    %797 = vmatprep.subr.mxu0 0.0
    %798 = vmatpush1.msra.mxu0 0.0
    %799 = vmatprep.subr.mxu0 0.0
    %800 = vmatpush1.msra.mxu0 0.0
    %801 = vmatprep.subr.mxu0 0.0
    %802 = vmatpush1.msra.mxu0 0.0
    %803 = vmatprep.subr.mxu0 0.0
    %804 = vmatpush1.msra.mxu0 0.0
    %805 = vmatprep.subr.mxu0 0.0
    %806 = vmatpush1.msra.mxu0 0.0
    %807 = vmatprep.subr.mxu0 0.0
    %808 = vmatpush1.msra.mxu0 0.0
    %809 = vmatprep.subr.mxu0 0.0
    %810 = vmatpush1.msra.mxu0 0.0
    %811 = vmatprep.subr.mxu0 0.0
    %812 = vmatpush1.msra.mxu0 0.0
    %813 = vmatprep.subr.mxu0 0.0
    %814 = vmatpush1.msra.mxu0 %v781
    %815 = vmatprep.subr.mxu0 0.0
    %816 = vmatpush2.msra.mxu0 0.0
    %817 = vmatprep.subr.mxu0 0.0
    %818 = vmatpush2.msra.mxu0 0.0
    %819 = vmatprep.subr.mxu0 0.0
    %820 = vmatpush2.msra.mxu0 0.0
    %821 = vmatprep.subr.mxu0 0.0
    %822 = vmatpush2.msra.mxu0 0.0
    %823 = vmatprep.subr.mxu0 0.0
    %824 = vmatpush2.msra.mxu0 0.0
    %825 = vmatprep.subr.mxu0 0.0
    %826 = vmatpush2.msra.mxu0 0.0
    %827 = vmatprep.subr.mxu0 0.0
    %828 = vmatpush2.msra.mxu0 0.0
    %829 = vmatprep.subr.mxu0 0.0
    %830 = vmatpush2.msra.mxu0 0.0
    %831 = vmatprep.subr.mxu0 0.0
    %832 = vmatpush2.msra.mxu0 0.0
    %833 = vmatprep.subr.mxu0 0.0
    %834 = vmatpush2.msra.mxu0 0.0
    %835 = vmatprep.subr.mxu0 0.0
    %836 = vmatpush2.msra.mxu0 0.0
    %837 = vmatprep.subr.mxu0 0.0
    %838 = vmatpush2.msra.mxu0 0.0
    %839 = vmatprep.subr.mxu0 0.0
    %840 = vmatpush2.msra.mxu0 0.0
    %841 = vmatprep.subr.mxu0 0.0
    %842 = vmatpush2.msra.mxu0 0.0
    %843 = vmatprep.subr.mxu0 0.0
    %844 = vmatpush2.msra.mxu0 0.0
    %845 = vmatprep.subr.mxu0 0.0
    %846 = vmatpush2.msra.mxu0 0.0
    %847 = vmatprep.mubr.f32.mxu0 0.0
    %848 = vmatmul.mubr.f32.gmra.mxu0 %v775
    %v849 = vpop.f32.mrf.mxu0
    %v850 = vadd.f32 %v773, %v849
    %v851 = vpop.f32.mrf.mxu0
    %852 = vmatprep.mubr.f32.mxu0 0.0
    %853 = vmatmul.mubr.f32.gmra.mxu0 %v777
    %v854 = vpop.f32.mrf.mxu0
    %v855 = vadd.f32 %v773, %v854
    %v856 = vpop.f32.mrf.mxu0
    %857 = vdwg.mxu0
    %v858 = vld [vmem:[%s2] sm:$0x7]
    %v860 = vsel %vm774, %v690, 0
    %v863 = vsel %vm774, %v695, 0
    %v866 = vsel %vm774, %v700, 0
    %v869 = vsel %vm774, %v705, 0
    %v872 = vsel %vm774, %v710, 0
    %v875 = vsel %vm774, %v715, 0
    %v878 = vsel %vm774, %v720, 0
    %v881 = vsel %vm774, %v725, 0
    %v884 = vsel %vm774, %v730, 0
    %v887 = vsel %vm774, %v735, 0
    %v890 = vsel %vm774, %v740, 0
    %v893 = vsel %vm774, %v745, 0
    %v896 = vsel %vm774, %v750, 0
    %v899 = vsel %vm774, %v755, 0
    %v902 = vsel %vm774, %v760, 0
    %v905 = vsel %vm774, %v765, 0
    %v908 = vsel %vm779, %v858, 0
    %910 = vmatprep.subr.mxu0 0.0
    %911 = vmatpush1.msra.mxu0 0.0
    %912 = vmatprep.subr.mxu0 0.0
    %913 = vmatpush1.msra.mxu0 0.0
    %914 = vmatprep.subr.mxu0 0.0
    %915 = vmatpush1.msra.mxu0 0.0
    %916 = vmatprep.subr.mxu0 0.0
    %917 = vmatpush1.msra.mxu0 0.0
    %918 = vmatprep.subr.mxu0 0.0
    %919 = vmatpush1.msra.mxu0 0.0
    %920 = vmatprep.subr.mxu0 0.0
    %921 = vmatpush1.msra.mxu0 0.0
    %922 = vmatprep.subr.mxu0 0.0
    %923 = vmatpush1.msra.mxu0 0.0
    %924 = vmatprep.subr.mxu0 0.0
    %925 = vmatpush1.msra.mxu0 0.0
    %926 = vmatprep.subr.mxu0 0.0
    %927 = vmatpush1.msra.mxu0 0.0
    %928 = vmatprep.subr.mxu0 0.0
    %929 = vmatpush1.msra.mxu0 0.0
    %930 = vmatprep.subr.mxu0 0.0
    %931 = vmatpush1.msra.mxu0 0.0
    %932 = vmatprep.subr.mxu0 0.0
    %933 = vmatpush1.msra.mxu0 0.0
    %934 = vmatprep.subr.mxu0 0.0
    %935 = vmatpush1.msra.mxu0 0.0
    %936 = vmatprep.subr.mxu0 0.0
    %937 = vmatpush1.msra.mxu0 0.0
    %938 = vmatprep.subr.mxu0 0.0
    %939 = vmatpush1.msra.mxu0 0.0
    %940 = vmatprep.subr.mxu0 0.0
    %941 = vmatpush1.msra.mxu0 %v908
    %942 = vmatprep.subr.mxu0 0.0
    %943 = vmatpush2.msra.mxu0 0.0
    %944 = vmatprep.subr.mxu0 0.0
    %945 = vmatpush2.msra.mxu0 0.0
    %946 = vmatprep.subr.mxu0 0.0
    %947 = vmatpush2.msra.mxu0 0.0
    %948 = vmatprep.subr.mxu0 0.0
    %949 = vmatpush2.msra.mxu0 0.0
    %950 = vmatprep.subr.mxu0 0.0
    %951 = vmatpush2.msra.mxu0 0.0
    %952 = vmatprep.subr.mxu0 0.0
    %953 = vmatpush2.msra.mxu0 0.0
    %954 = vmatprep.subr.mxu0 0.0
    %955 = vmatpush2.msra.mxu0 0.0
    %956 = vmatprep.subr.mxu0 0.0
    %957 = vmatpush2.msra.mxu0 0.0
    %958 = vmatprep.subr.mxu0 0.0
    %959 = vmatpush2.msra.mxu0 0.0
    %960 = vmatprep.subr.mxu0 0.0
    %961 = vmatpush2.msra.mxu0 0.0
    %962 = vmatprep.subr.mxu0 0.0
    %963 = vmatpush2.msra.mxu0 0.0
    %964 = vmatprep.subr.mxu0 0.0
    %965 = vmatpush2.msra.mxu0 0.0
    %966 = vmatprep.subr.mxu0 0.0
    %967 = vmatpush2.msra.mxu0 0.0
    %968 = vmatprep.subr.mxu0 0.0
    %969 = vmatpush2.msra.mxu0 0.0
    %970 = vmatprep.subr.mxu0 0.0
    %971 = vmatpush2.msra.mxu0 0.0
    %972 = vmatprep.subr.mxu0 0.0
    %973 = vmatpush2.msra.mxu0 0.0
    %974 = vmatprep.mubr.f32.mxu0 0.0
    %975 = vmatmul.mubr.f32.gmra.mxu0 %v860
    %v976 = vpop.f32.mrf.mxu0
    %v977 = vadd.f32 %v850, %v976
    %v978 = vpop.f32.mrf.mxu0
    %979 = vmatprep.mubr.f32.mxu0 0.0
    %980 = vmatmul.mubr.f32.gmra.mxu0 %v863
    %v981 = vpop.f32.mrf.mxu0
    %v982 = vadd.f32 %v855, %v981
    %v983 = vpop.f32.mrf.mxu0
    %984 = vmatprep.mubr.f32.mxu0 0.0
    %985 = vmatmul.mubr.f32.gmra.mxu0 %v866
    %v986 = vpop.f32.mrf.mxu0
    %v987 = vadd.f32 %v850, %v986
    %v988 = vpop.f32.mrf.mxu0
    %989 = vmatprep.mubr.f32.mxu0 0.0
    %990 = vmatmul.mubr.f32.gmra.mxu0 %v869
    %v991 = vpop.f32.mrf.mxu0
    %v992 = vadd.f32 %v855, %v991
    %v993 = vpop.f32.mrf.mxu0
    %994 = vmatprep.mubr.f32.mxu0 0.0
    %995 = vmatmul.mubr.f32.gmra.mxu0 %v872
    %v996 = vpop.f32.mrf.mxu0
    %v997 = vadd.f32 %v850, %v996
    %v998 = vpop.f32.mrf.mxu0
    %999 = vmatprep.mubr.f32.mxu0 0.0
    %1000 = vmatmul.mubr.f32.gmra.mxu0 %v875
    %v1001 = vpop.f32.mrf.mxu0
    %v1002 = vadd.f32 %v855, %v1001
    %v1003 = vpop.f32.mrf.mxu0
    %1004 = vmatprep.mubr.f32.mxu0 0.0
    %1005 = vmatmul.mubr.f32.gmra.mxu0 %v878
    %v1006 = vpop.f32.mrf.mxu0
    %v1007 = vadd.f32 %v850, %v1006
    %v1008 = vpop.f32.mrf.mxu0
    %1009 = vmatprep.mubr.f32.mxu0 0.0
    %1010 = vmatmul.mubr.f32.gmra.mxu0 %v881
    %v1011 = vpop.f32.mrf.mxu0
    %v1012 = vadd.f32 %v855, %v1011
    %v1013 = vpop.f32.mrf.mxu0
    %1014 = vmatprep.mubr.f32.mxu0 0.0
    %1015 = vmatmul.mubr.f32.gmra.mxu0 %v884
    %v1016 = vpop.f32.mrf.mxu0
    %v1017 = vadd.f32 %v850, %v1016
    %v1018 = vpop.f32.mrf.mxu0
    %1019 = vmatprep.mubr.f32.mxu0 0.0
    %1020 = vmatmul.mubr.f32.gmra.mxu0 %v887
    %v1021 = vpop.f32.mrf.mxu0
    %v1022 = vadd.f32 %v855, %v1021
    %v1023 = vpop.f32.mrf.mxu0
    %1024 = vmatprep.mubr.f32.mxu0 0.0
    %1025 = vmatmul.mubr.f32.gmra.mxu0 %v890
    %v1026 = vpop.f32.mrf.mxu0
    %v1027 = vadd.f32 %v850, %v1026
    %v1028 = vpop.f32.mrf.mxu0
    %1029 = vmatprep.mubr.f32.mxu0 0.0
    %1030 = vmatmul.mubr.f32.gmra.mxu0 %v893
    %v1031 = vpop.f32.mrf.mxu0
    %v1032 = vadd.f32 %v855, %v1031
    %v1033 = vpop.f32.mrf.mxu0
    %1034 = vmatprep.mubr.f32.mxu0 0.0
    %1035 = vmatmul.mubr.f32.gmra.mxu0 %v896
    %v1036 = vpop.f32.mrf.mxu0
    %v1037 = vadd.f32 %v850, %v1036
    %v1038 = vpop.f32.mrf.mxu0
    %1039 = vmatprep.mubr.f32.mxu0 0.0
    %1040 = vmatmul.mubr.f32.gmra.mxu0 %v899
    %v1041 = vpop.f32.mrf.mxu0
    %v1042 = vadd.f32 %v855, %v1041
    %v1043 = vpop.f32.mrf.mxu0
    %1044 = vmatprep.mubr.f32.mxu0 0.0
    %1045 = vmatmul.mubr.f32.gmra.mxu0 %v902
    %v1046 = vpop.f32.mrf.mxu0
    %v1047 = vadd.f32 %v850, %v1046
    %v1048 = vpop.f32.mrf.mxu0
    %1049 = vmatprep.mubr.f32.mxu0 0.0
    %1050 = vmatmul.mubr.f32.gmra.mxu0 %v905
    %v1051 = vpop.f32.mrf.mxu0
    %v1052 = vadd.f32 %v855, %v1051
    %v1053 = vpop.f32.mrf.mxu0
    %1054 = vdwg.mxu0
    %v1055 = vmax.f32 %v977, 0.0
    %v1056 = vmax.f32 %v982, 0.0
    %v1057 = vmax.f32 %v987, 0.0
    %v1058 = vmax.f32 %v992, 0.0
    %v1059 = vmax.f32 %v997, 0.0
    %v1060 = vmax.f32 %v1002, 0.0
    %v1061 = vmax.f32 %v1007, 0.0
    %v1062 = vmax.f32 %v1012, 0.0
    %v1063 = vmax.f32 %v1017, 0.0
    %v1064 = vmax.f32 %v1022, 0.0
    %v1065 = vmax.f32 %v1027, 0.0
    %v1066 = vmax.f32 %v1032, 0.0
    %v1067 = vmax.f32 %v1037, 0.0
    %v1068 = vmax.f32 %v1042, 0.0
    %v1069 = vmax.f32 %v1047, 0.0
    %v1070 = vmax.f32 %v1052, 0.0
    %v1071 = vld [vmem:[%s2 + $0x10] sm:$0xff]
    %v1072 = vld [vmem:[%s2 + $0x18] sm:$0xff]
    %v1073 = vld [vmem:[%s2 + $0x20] sm:$0xff]
    %v1074 = vld [vmem:[%s2 + $0x28] sm:$0xff]
    %v1075 = vld [vmem:[%s2 + $0x30] sm:$0xff]
    %v1076 = vld [vmem:[%s2 + $0x38] sm:$0xff]
    %v1077 = vld [vmem:[%s2 + $0x40] sm:$0xff]
    %v1078 = vld [vmem:[%s2 + $0x48] sm:$0xff]
    %v1079 = vld [vmem:[%s2 + $0x211] sm:$0x1]
    %v1080 = vlaneseq
    %v1081 = vshrl.u32 %v1080, 7
    %v1082 = vsub.s32 0, %v1081
    %v1083 = vrot.slane %v1079, %v1082
    %v1085 = vsel %vm374, %v1055, 0
    %v1088 = vsel %vm374, %v1056, 0
    %v1091 = vsel %vm374, %v1057, 0
    %v1094 = vsel %vm374, %v1058, 0
    %v1097 = vsel %vm374, %v1059, 0
    %v1100 = vsel %vm374, %v1060, 0
    %v1103 = vsel %vm374, %v1061, 0
    %v1106 = vsel %vm374, %v1062, 0
    %v1109 = vsel %vm374, %v1063, 0
    %v1112 = vsel %vm374, %v1064, 0
    %v1115 = vsel %vm374, %v1065, 0
    %v1118 = vsel %vm374, %v1066, 0
    %v1121 = vsel %vm374, %v1067, 0
    %v1124 = vsel %vm374, %v1068, 0
    %v1127 = vsel %vm374, %v1069, 0
    %v1130 = vsel %vm374, %v1070, 0
    %1132 = vmatprep.subr.mxu0 0.0
    %1133 = vmatpush1.msra.mxu0 0.0
    %1134 = vmatprep.subr.mxu0 0.0
    %1135 = vmatpush1.msra.mxu0 0.0
    %1136 = vmatprep.subr.mxu0 0.0
    %1137 = vmatpush1.msra.mxu0 0.0
    %1138 = vmatprep.subr.mxu0 0.0
    %1139 = vmatpush1.msra.mxu0 0.0
    %1140 = vmatprep.subr.mxu0 0.0
    %1141 = vmatpush1.msra.mxu0 0.0
    %1142 = vmatprep.subr.mxu0 0.0
    %1143 = vmatpush1.msra.mxu0 0.0
    %1144 = vmatprep.subr.mxu0 0.0
    %1145 = vmatpush1.msra.mxu0 0.0
    %1146 = vmatprep.subr.mxu0 0.0
    %1147 = vmatpush1.msra.mxu0 0.0
    %1148 = vmatprep.subr.mxu0 0.0
    %1149 = vmatpush1.msra.mxu0 %v1078
    %1150 = vmatprep.subr.mxu0 0.0
    %1151 = vmatpush1.msra.mxu0 %v1077
    %1152 = vmatprep.subr.mxu0 0.0
    %1153 = vmatpush1.msra.mxu0 %v1076
    %1154 = vmatprep.subr.mxu0 0.0
    %1155 = vmatpush1.msra.mxu0 %v1075
    %1156 = vmatprep.subr.mxu0 0.0
    %1157 = vmatpush1.msra.mxu0 %v1074
    %1158 = vmatprep.subr.mxu0 0.0
    %1159 = vmatpush1.msra.mxu0 %v1073
    %1160 = vmatprep.subr.mxu0 0.0
    %1161 = vmatpush1.msra.mxu0 %v1072
    %1162 = vmatprep.subr.mxu0 0.0
    %1163 = vmatpush1.msra.mxu0 %v1071
    %1164 = vmatprep.subr.mxu0 0.0
    %1165 = vmatpush2.msra.mxu0 0.0
    %1166 = vmatprep.subr.mxu0 0.0
    %1167 = vmatpush2.msra.mxu0 0.0
    %1168 = vmatprep.subr.mxu0 0.0
    %1169 = vmatpush2.msra.mxu0 0.0
    %1170 = vmatprep.subr.mxu0 0.0
    %1171 = vmatpush2.msra.mxu0 0.0
    %1172 = vmatprep.subr.mxu0 0.0
    %1173 = vmatpush2.msra.mxu0 0.0
    %1174 = vmatprep.subr.mxu0 0.0
    %1175 = vmatpush2.msra.mxu0 0.0
    %1176 = vmatprep.subr.mxu0 0.0
    %1177 = vmatpush2.msra.mxu0 0.0
    %1178 = vmatprep.subr.mxu0 0.0
    %1179 = vmatpush2.msra.mxu0 0.0
    %1180 = vmatprep.subr.mxu0 0.0
    %1181 = vmatpush2.msra.mxu0 0.0
    %1182 = vmatprep.subr.mxu0 0.0
    %1183 = vmatpush2.msra.mxu0 0.0
    %1184 = vmatprep.subr.mxu0 0.0
    %1185 = vmatpush2.msra.mxu0 0.0
    %1186 = vmatprep.subr.mxu0 0.0
    %1187 = vmatpush2.msra.mxu0 0.0
    %1188 = vmatprep.subr.mxu0 0.0
    %1189 = vmatpush2.msra.mxu0 0.0
    %1190 = vmatprep.subr.mxu0 0.0
    %1191 = vmatpush2.msra.mxu0 0.0
    %1192 = vmatprep.subr.mxu0 0.0
    %1193 = vmatpush2.msra.mxu0 0.0
    %1194 = vmatprep.subr.mxu0 0.0
    %1195 = vmatpush2.msra.mxu0 0.0
    %1196 = vmatprep.mubr.f32.mxu0 0.0
    %1197 = vmatmul.mubr.f32.gmra.mxu0 %v1085
    %v1198 = vpop.f32.mrf.mxu0
    %v1199 = vadd.f32 %v1083, %v1198
    %v1200 = vpop.f32.mrf.mxu0
    %1201 = vmatprep.mubr.f32.mxu0 0.0
    %1202 = vmatmul.mubr.f32.gmra.mxu0 %v1088
    %v1203 = vpop.f32.mrf.mxu0
    %v1204 = vadd.f32 %v1083, %v1203
    %v1205 = vpop.f32.mrf.mxu0
    %1206 = vmatprep.mubr.f32.mxu0 0.0
    %1207 = vmatmul.mubr.f32.gmra.mxu0 %v1091
    %v1208 = vpop.f32.mrf.mxu0
    %v1209 = vadd.f32 %v1083, %v1208
    %v1210 = vpop.f32.mrf.mxu0
    %1211 = vmatprep.mubr.f32.mxu0 0.0
    %1212 = vmatmul.mubr.f32.gmra.mxu0 %v1094
    %v1213 = vpop.f32.mrf.mxu0
    %v1214 = vadd.f32 %v1083, %v1213
    %v1215 = vpop.f32.mrf.mxu0
    %1216 = vmatprep.mubr.f32.mxu0 0.0
    %1217 = vmatmul.mubr.f32.gmra.mxu0 %v1097
    %v1218 = vpop.f32.mrf.mxu0
    %v1219 = vadd.f32 %v1083, %v1218
    %v1220 = vpop.f32.mrf.mxu0
    %1221 = vmatprep.mubr.f32.mxu0 0.0
    %1222 = vmatmul.mubr.f32.gmra.mxu0 %v1100
    %v1223 = vpop.f32.mrf.mxu0
    %v1224 = vadd.f32 %v1083, %v1223
    %v1225 = vpop.f32.mrf.mxu0
    %1226 = vmatprep.mubr.f32.mxu0 0.0
    %1227 = vmatmul.mubr.f32.gmra.mxu0 %v1103
    %v1228 = vpop.f32.mrf.mxu0
    %v1229 = vadd.f32 %v1083, %v1228
    %v1230 = vpop.f32.mrf.mxu0
    %1231 = vmatprep.mubr.f32.mxu0 0.0
    %1232 = vmatmul.mubr.f32.gmra.mxu0 %v1106
    %v1233 = vpop.f32.mrf.mxu0
    %v1234 = vadd.f32 %v1083, %v1233
    %v1235 = vpop.f32.mrf.mxu0
    %1236 = vmatprep.mubr.f32.mxu0 0.0
    %1237 = vmatmul.mubr.f32.gmra.mxu0 %v1109
    %v1238 = vpop.f32.mrf.mxu0
    %v1239 = vadd.f32 %v1083, %v1238
    %v1240 = vpop.f32.mrf.mxu0
    %1241 = vmatprep.mubr.f32.mxu0 0.0
    %1242 = vmatmul.mubr.f32.gmra.mxu0 %v1112
    %v1243 = vpop.f32.mrf.mxu0
    %v1244 = vadd.f32 %v1083, %v1243
    %v1245 = vpop.f32.mrf.mxu0
    %1246 = vmatprep.mubr.f32.mxu0 0.0
    %1247 = vmatmul.mubr.f32.gmra.mxu0 %v1115
    %v1248 = vpop.f32.mrf.mxu0
    %v1249 = vadd.f32 %v1083, %v1248
    %v1250 = vpop.f32.mrf.mxu0
    %1251 = vmatprep.mubr.f32.mxu0 0.0
    %1252 = vmatmul.mubr.f32.gmra.mxu0 %v1118
    %v1253 = vpop.f32.mrf.mxu0
    %v1254 = vadd.f32 %v1083, %v1253
    %v1255 = vpop.f32.mrf.mxu0
    %1256 = vmatprep.mubr.f32.mxu0 0.0
    %1257 = vmatmul.mubr.f32.gmra.mxu0 %v1121
    %v1258 = vpop.f32.mrf.mxu0
    %v1259 = vadd.f32 %v1083, %v1258
    %v1260 = vpop.f32.mrf.mxu0
    %1261 = vmatprep.mubr.f32.mxu0 0.0
    %1262 = vmatmul.mubr.f32.gmra.mxu0 %v1124
    %v1263 = vpop.f32.mrf.mxu0
    %v1264 = vadd.f32 %v1083, %v1263
    %v1265 = vpop.f32.mrf.mxu0
    %1266 = vmatprep.mubr.f32.mxu0 0.0
    %1267 = vmatmul.mubr.f32.gmra.mxu0 %v1127
    %v1268 = vpop.f32.mrf.mxu0
    %v1269 = vadd.f32 %v1083, %v1268
    %v1270 = vpop.f32.mrf.mxu0
    %1271 = vmatprep.mubr.f32.mxu0 0.0
    %1272 = vmatmul.mubr.f32.gmra.mxu0 %v1130
    %v1273 = vpop.f32.mrf.mxu0
    %v1274 = vadd.f32 %v1083, %v1273
    %v1275 = vpop.f32.mrf.mxu0
    %1276 = vdwg.mxu0
    %v1277 = vmax.f32 %v1199, 0.0
    %v1278 = vmax.f32 %v1204, 0.0
    %v1279 = vmax.f32 %v1209, 0.0
    %v1280 = vmax.f32 %v1214, 0.0
    %v1281 = vmax.f32 %v1219, 0.0
    %v1282 = vmax.f32 %v1224, 0.0
    %v1283 = vmax.f32 %v1229, 0.0
    %v1284 = vmax.f32 %v1234, 0.0
    %v1285 = vmax.f32 %v1239, 0.0
    %v1286 = vmax.f32 %v1244, 0.0
    %v1287 = vmax.f32 %v1249, 0.0
    %v1288 = vmax.f32 %v1254, 0.0
    %v1289 = vmax.f32 %v1259, 0.0
    %v1290 = vmax.f32 %v1264, 0.0
    %v1291 = vmax.f32 %v1269, 0.0
    %v1292 = vmax.f32 %v1274, 0.0
    %v1293 = vld [vmem:[%s2 + $0x50] sm:$0xff]
    %v1294 = vld [vmem:[%s2 + $0x58] sm:$0xff]
    %v1295 = vld [vmem:[%s2 + $0x60] sm:$0xff]
    %v1296 = vld [vmem:[%s2 + $0x68] sm:$0xff]
    %v1297 = vld [vmem:[%s2 + $0x70] sm:$0xff]
    %v1298 = vld [vmem:[%s2 + $0x78] sm:$0xff]
    %v1299 = vld [vmem:[%s2 + $0x80] sm:$0xff]
    %v1300 = vld [vmem:[%s2 + $0x88] sm:$0xff]
    %v1301 = vld [vmem:[%s2 + $0x212] sm:$0x1]
    %v1302 = vlaneseq
    %v1303 = vshrl.u32 %v1302, 7
    %v1304 = vsub.s32 0, %v1303
    %v1305 = vrot.slane %v1301, %v1304
    %v1307 = vsel %vm374, %v1277, 0
    %v1310 = vsel %vm374, %v1278, 0
    %v1313 = vsel %vm374, %v1279, 0
    %v1316 = vsel %vm374, %v1280, 0
    %v1319 = vsel %vm374, %v1281, 0
    %v1322 = vsel %vm374, %v1282, 0
    %v1325 = vsel %vm374, %v1283, 0
    %v1328 = vsel %vm374, %v1284, 0
    %v1331 = vsel %vm374, %v1285, 0
    %v1334 = vsel %vm374, %v1286, 0
    %v1337 = vsel %vm374, %v1287, 0
    %v1340 = vsel %vm374, %v1288, 0
    %v1343 = vsel %vm374, %v1289, 0
    %v1346 = vsel %vm374, %v1290, 0
    %v1349 = vsel %vm374, %v1291, 0
    %v1352 = vsel %vm374, %v1292, 0
    %1354 = vmatprep.subr.mxu0 0.0
    %1355 = vmatpush1.msra.mxu0 0.0
    %1356 = vmatprep.subr.mxu0 0.0
    %1357 = vmatpush1.msra.mxu0 0.0
    %1358 = vmatprep.subr.mxu0 0.0
    %1359 = vmatpush1.msra.mxu0 0.0
    %1360 = vmatprep.subr.mxu0 0.0
    %1361 = vmatpush1.msra.mxu0 0.0
    %1362 = vmatprep.subr.mxu0 0.0
    %1363 = vmatpush1.msra.mxu0 0.0
    %1364 = vmatprep.subr.mxu0 0.0
    %1365 = vmatpush1.msra.mxu0 0.0
    %1366 = vmatprep.subr.mxu0 0.0
    %1367 = vmatpush1.msra.mxu0 0.0
    %1368 = vmatprep.subr.mxu0 0.0
    %1369 = vmatpush1.msra.mxu0 0.0
    %1370 = vmatprep.subr.mxu0 0.0
    %1371 = vmatpush1.msra.mxu0 %v1300
    %1372 = vmatprep.subr.mxu0 0.0
    %1373 = vmatpush1.msra.mxu0 %v1299
    %1374 = vmatprep.subr.mxu0 0.0
    %1375 = vmatpush1.msra.mxu0 %v1298
    %1376 = vmatprep.subr.mxu0 0.0
    %1377 = vmatpush1.msra.mxu0 %v1297
    %1378 = vmatprep.subr.mxu0 0.0
    %1379 = vmatpush1.msra.mxu0 %v1296
    %1380 = vmatprep.subr.mxu0 0.0
    %1381 = vmatpush1.msra.mxu0 %v1295
    %1382 = vmatprep.subr.mxu0 0.0
    %1383 = vmatpush1.msra.mxu0 %v1294
    %1384 = vmatprep.subr.mxu0 0.0
    %1385 = vmatpush1.msra.mxu0 %v1293
    %1386 = vmatprep.subr.mxu0 0.0
    %1387 = vmatpush2.msra.mxu0 0.0
    %1388 = vmatprep.subr.mxu0 0.0
    %1389 = vmatpush2.msra.mxu0 0.0
    %1390 = vmatprep.subr.mxu0 0.0
    %1391 = vmatpush2.msra.mxu0 0.0
    %1392 = vmatprep.subr.mxu0 0.0
    %1393 = vmatpush2.msra.mxu0 0.0
    %1394 = vmatprep.subr.mxu0 0.0
    %1395 = vmatpush2.msra.mxu0 0.0
    %1396 = vmatprep.subr.mxu0 0.0
    %1397 = vmatpush2.msra.mxu0 0.0
    %1398 = vmatprep.subr.mxu0 0.0
    %1399 = vmatpush2.msra.mxu0 0.0
    %1400 = vmatprep.subr.mxu0 0.0
    %1401 = vmatpush2.msra.mxu0 0.0
    %1402 = vmatprep.subr.mxu0 0.0
    %1403 = vmatpush2.msra.mxu0 0.0
    %1404 = vmatprep.subr.mxu0 0.0
    %1405 = vmatpush2.msra.mxu0 0.0
    %1406 = vmatprep.subr.mxu0 0.0
    %1407 = vmatpush2.msra.mxu0 0.0
    %1408 = vmatprep.subr.mxu0 0.0
    %1409 = vmatpush2.msra.mxu0 0.0
    %1410 = vmatprep.subr.mxu0 0.0
    %1411 = vmatpush2.msra.mxu0 0.0
    %1412 = vmatprep.subr.mxu0 0.0
    %1413 = vmatpush2.msra.mxu0 0.0
    %1414 = vmatprep.subr.mxu0 0.0
    %1415 = vmatpush2.msra.mxu0 0.0
    %1416 = vmatprep.subr.mxu0 0.0
    %1417 = vmatpush2.msra.mxu0 0.0
    %1418 = vmatprep.mubr.f32.mxu0 0.0
    %1419 = vmatmul.mubr.f32.gmra.mxu0 %v1307
    %v1420 = vpop.f32.mrf.mxu0
    %v1421 = vadd.f32 %v1305, %v1420
    %v1422 = vpop.f32.mrf.mxu0
    %1423 = vmatprep.mubr.f32.mxu0 0.0
    %1424 = vmatmul.mubr.f32.gmra.mxu0 %v1310
    %v1425 = vpop.f32.mrf.mxu0
    %v1426 = vadd.f32 %v1305, %v1425
    %v1427 = vpop.f32.mrf.mxu0
    %1428 = vmatprep.mubr.f32.mxu0 0.0
    %1429 = vmatmul.mubr.f32.gmra.mxu0 %v1313
    %v1430 = vpop.f32.mrf.mxu0
    %v1431 = vadd.f32 %v1305, %v1430
    %v1432 = vpop.f32.mrf.mxu0
    %1433 = vmatprep.mubr.f32.mxu0 0.0
    %1434 = vmatmul.mubr.f32.gmra.mxu0 %v1316
    %v1435 = vpop.f32.mrf.mxu0
    %v1436 = vadd.f32 %v1305, %v1435
    %v1437 = vpop.f32.mrf.mxu0
    %1438 = vmatprep.mubr.f32.mxu0 0.0
    %1439 = vmatmul.mubr.f32.gmra.mxu0 %v1319
    %v1440 = vpop.f32.mrf.mxu0
    %v1441 = vadd.f32 %v1305, %v1440
    %v1442 = vpop.f32.mrf.mxu0
    %1443 = vmatprep.mubr.f32.mxu0 0.0
    %1444 = vmatmul.mubr.f32.gmra.mxu0 %v1322
    %v1445 = vpop.f32.mrf.mxu0
    %v1446 = vadd.f32 %v1305, %v1445
    %v1447 = vpop.f32.mrf.mxu0
    %1448 = vmatprep.mubr.f32.mxu0 0.0
    %1449 = vmatmul.mubr.f32.gmra.mxu0 %v1325
    %v1450 = vpop.f32.mrf.mxu0
    %v1451 = vadd.f32 %v1305, %v1450
    %v1452 = vpop.f32.mrf.mxu0
    %1453 = vmatprep.mubr.f32.mxu0 0.0
    %1454 = vmatmul.mubr.f32.gmra.mxu0 %v1328
    %v1455 = vpop.f32.mrf.mxu0
    %v1456 = vadd.f32 %v1305, %v1455
    %v1457 = vpop.f32.mrf.mxu0
    %1458 = vmatprep.mubr.f32.mxu0 0.0
    %1459 = vmatmul.mubr.f32.gmra.mxu0 %v1331
    %v1460 = vpop.f32.mrf.mxu0
    %v1461 = vadd.f32 %v1305, %v1460
    %v1462 = vpop.f32.mrf.mxu0
    %1463 = vmatprep.mubr.f32.mxu0 0.0
    %1464 = vmatmul.mubr.f32.gmra.mxu0 %v1334
    %v1465 = vpop.f32.mrf.mxu0
    %v1466 = vadd.f32 %v1305, %v1465
    %v1467 = vpop.f32.mrf.mxu0
    %1468 = vmatprep.mubr.f32.mxu0 0.0
    %1469 = vmatmul.mubr.f32.gmra.mxu0 %v1337
    %v1470 = vpop.f32.mrf.mxu0
    %v1471 = vadd.f32 %v1305, %v1470
    %v1472 = vpop.f32.mrf.mxu0
    %1473 = vmatprep.mubr.f32.mxu0 0.0
    %1474 = vmatmul.mubr.f32.gmra.mxu0 %v1340
    %v1475 = vpop.f32.mrf.mxu0
    %v1476 = vadd.f32 %v1305, %v1475
    %v1477 = vpop.f32.mrf.mxu0
    %1478 = vmatprep.mubr.f32.mxu0 0.0
    %1479 = vmatmul.mubr.f32.gmra.mxu0 %v1343
    %v1480 = vpop.f32.mrf.mxu0
    %v1481 = vadd.f32 %v1305, %v1480
    %v1482 = vpop.f32.mrf.mxu0
    %1483 = vmatprep.mubr.f32.mxu0 0.0
    %1484 = vmatmul.mubr.f32.gmra.mxu0 %v1346
    %v1485 = vpop.f32.mrf.mxu0
    %v1486 = vadd.f32 %v1305, %v1485
    %v1487 = vpop.f32.mrf.mxu0
    %1488 = vmatprep.mubr.f32.mxu0 0.0
    %1489 = vmatmul.mubr.f32.gmra.mxu0 %v1349
    %v1490 = vpop.f32.mrf.mxu0
    %v1491 = vadd.f32 %v1305, %v1490
    %v1492 = vpop.f32.mrf.mxu0
    %1493 = vmatprep.mubr.f32.mxu0 0.0
    %1494 = vmatmul.mubr.f32.gmra.mxu0 %v1352
    %v1495 = vpop.f32.mrf.mxu0
    %v1496 = vadd.f32 %v1305, %v1495
    %v1497 = vpop.f32.mrf.mxu0
    %1498 = vdwg.mxu0
    %v1499 = vmax.f32 %v1421, 0.0
    %v1500 = vmax.f32 %v1426, 0.0
    %v1501 = vmax.f32 %v1431, 0.0
    %v1502 = vmax.f32 %v1436, 0.0
    %v1503 = vmax.f32 %v1441, 0.0
    %v1504 = vmax.f32 %v1446, 0.0
    %v1505 = vmax.f32 %v1451, 0.0
    %v1506 = vmax.f32 %v1456, 0.0
    %v1507 = vmax.f32 %v1461, 0.0
    %v1508 = vmax.f32 %v1466, 0.0
    %v1509 = vmax.f32 %v1471, 0.0
    %v1510 = vmax.f32 %v1476, 0.0
    %v1511 = vmax.f32 %v1481, 0.0
    %v1512 = vmax.f32 %v1486, 0.0
    %v1513 = vmax.f32 %v1491, 0.0
    %v1514 = vmax.f32 %v1496, 0.0
    %v1515 = vmax.f32 %v1499, %v1507
    %v1516 = vmax.f32 %v1500, %v1508
    %v1517 = vmax.f32 %v1501, %v1509
    %v1518 = vmax.f32 %v1502, %v1510
    %v1519 = vmax.f32 %v1503, %v1511
    %v1520 = vmax.f32 %v1504, %v1512
    %v1521 = vmax.f32 %v1505, %v1513
    %v1522 = vmax.f32 %v1506, %v1514
    %v1523 = vmax.f32 %v1515, %v1519
    %v1524 = vmax.f32 %v1516, %v1520
    %v1525 = vmax.f32 %v1517, %v1521
    %v1526 = vmax.f32 %v1518, %v1522
    %v1527 = vmax.f32 %v1523, %v1525
    %v1528 = vmax.f32 %v1524, %v1526
    %v1529 = vld [vmem:[%s2 + $0x90] sm:$0x7]
    %v1530 = vld [vmem:[%s2 + $0x98] sm:$0xff]
    %v1531 = vld [vmem:[%s2 + $0xa0] sm:$0xff]
    %vm1532 = vcmask 130048
    %v1534 = vsel %vm1532, %v1527, 0
    %v1537 = vsel %vm1532, %v1528, 0
    %1539 = vmatprep.subr.mxu0 0.0
    %1540 = vmatpush1.msra.mxu0 0.0
    %1541 = vmatprep.subr.mxu0 0.0
    %1542 = vmatpush1.msra.mxu0 0.0
    %1543 = vmatprep.subr.mxu0 0.0
    %1544 = vmatpush1.msra.mxu0 0.0
    %1545 = vmatprep.subr.mxu0 0.0
    %1546 = vmatpush1.msra.mxu0 0.0
    %1547 = vmatprep.subr.mxu0 0.0
    %1548 = vmatpush1.msra.mxu0 0.0
    %1549 = vmatprep.subr.mxu0 0.0
    %1550 = vmatpush1.msra.mxu0 0.0
    %1551 = vmatprep.subr.mxu0 0.0
    %1552 = vmatpush1.msra.mxu0 0.0
    %1553 = vmatprep.subr.mxu0 0.0
    %1554 = vmatpush1.msra.mxu0 0.0
    %1555 = vmatprep.subr.mxu0 0.0
    %1556 = vmatpush1.msra.mxu0 0.0
    %1557 = vmatprep.subr.mxu0 0.0
    %1558 = vmatpush1.msra.mxu0 0.0
    %1559 = vmatprep.subr.mxu0 0.0
    %1560 = vmatpush1.msra.mxu0 0.0
    %1561 = vmatprep.subr.mxu0 0.0
    %1562 = vmatpush1.msra.mxu0 0.0
    %1563 = vmatprep.subr.mxu0 0.0
    %1564 = vmatpush1.msra.mxu0 0.0
    %1565 = vmatprep.subr.mxu0 0.0
    %1566 = vmatpush1.msra.mxu0 0.0
    %1567 = vmatprep.subr.mxu0 0.0
    %1568 = vmatpush1.msra.mxu0 %v1531
    %1569 = vmatprep.subr.mxu0 0.0
    %1570 = vmatpush1.msra.mxu0 %v1530
    %1571 = vmatprep.subr.mxu0 0.0
    %1572 = vmatpush2.msra.mxu0 0.0
    %1573 = vmatprep.subr.mxu0 0.0
    %1574 = vmatpush2.msra.mxu0 0.0
    %1575 = vmatprep.subr.mxu0 0.0
    %1576 = vmatpush2.msra.mxu0 0.0
    %1577 = vmatprep.subr.mxu0 0.0
    %1578 = vmatpush2.msra.mxu0 0.0
    %1579 = vmatprep.subr.mxu0 0.0
    %1580 = vmatpush2.msra.mxu0 0.0
    %1581 = vmatprep.subr.mxu0 0.0
    %1582 = vmatpush2.msra.mxu0 0.0
    %1583 = vmatprep.subr.mxu0 0.0
    %1584 = vmatpush2.msra.mxu0 0.0
    %1585 = vmatprep.subr.mxu0 0.0
    %1586 = vmatpush2.msra.mxu0 0.0
    %1587 = vmatprep.subr.mxu0 0.0
    %1588 = vmatpush2.msra.mxu0 0.0
    %1589 = vmatprep.subr.mxu0 0.0
    %1590 = vmatpush2.msra.mxu0 0.0
    %1591 = vmatprep.subr.mxu0 0.0
    %1592 = vmatpush2.msra.mxu0 0.0
    %1593 = vmatprep.subr.mxu0 0.0
    %1594 = vmatpush2.msra.mxu0 0.0
    %1595 = vmatprep.subr.mxu0 0.0
    %1596 = vmatpush2.msra.mxu0 0.0
    %1597 = vmatprep.subr.mxu0 0.0
    %1598 = vmatpush2.msra.mxu0 0.0
    %1599 = vmatprep.subr.mxu0 0.0
    %1600 = vmatpush2.msra.mxu0 0.0
    %1601 = vmatprep.subr.mxu0 0.0
    %1602 = vmatpush2.msra.mxu0 0.0
    %1603 = vmatprep.mubr.f32.mxu0 0.0
    %1604 = vmatmul.mubr.f32.gmra.mxu0 %v1534
    %v1605 = vpop.f32.mrf.mxu0
    %v1606 = vadd.f32 0.0, %v1605
    %v1607 = vpop.f32.mrf.mxu0
    %1608 = vmatprep.mubr.f32.mxu0 0.0
    %1609 = vmatmul.mubr.f32.gmra.mxu0 %v1537
    %v1610 = vpop.f32.mrf.mxu0
    %v1611 = vadd.f32 0.0, %v1610
    %v1612 = vpop.f32.mrf.mxu0
    %1613 = vdwg.mxu0
    %v1615 = vsel %vm779, %v1529, 0
    %1617 = vmatprep.subr.mxu0 0.0
    %1618 = vmatpush1.msra.mxu0 0.0
    %1619 = vmatprep.subr.mxu0 0.0
    %1620 = vmatpush1.msra.mxu0 0.0
    %1621 = vmatprep.subr.mxu0 0.0
    %1622 = vmatpush1.msra.mxu0 0.0
    %1623 = vmatprep.subr.mxu0 0.0
    %1624 = vmatpush1.msra.mxu0 0.0
    %1625 = vmatprep.subr.mxu0 0.0
    %1626 = vmatpush1.msra.mxu0 0.0
    %1627 = vmatprep.subr.mxu0 0.0
    %1628 = vmatpush1.msra.mxu0 0.0
    %1629 = vmatprep.subr.mxu0 0.0
    %1630 = vmatpush1.msra.mxu0 0.0
    %1631 = vmatprep.subr.mxu0 0.0
    %1632 = vmatpush1.msra.mxu0 0.0
    %1633 = vmatprep.subr.mxu0 0.0
    %1634 = vmatpush1.msra.mxu0 0.0
    %1635 = vmatprep.subr.mxu0 0.0
    %1636 = vmatpush1.msra.mxu0 0.0
    %1637 = vmatprep.subr.mxu0 0.0
    %1638 = vmatpush1.msra.mxu0 0.0
    %1639 = vmatprep.subr.mxu0 0.0
    %1640 = vmatpush1.msra.mxu0 0.0
    %1641 = vmatprep.subr.mxu0 0.0
    %1642 = vmatpush1.msra.mxu0 0.0
    %1643 = vmatprep.subr.mxu0 0.0
    %1644 = vmatpush1.msra.mxu0 0.0
    %1645 = vmatprep.subr.mxu0 0.0
    %1646 = vmatpush1.msra.mxu0 0.0
    %1647 = vmatprep.subr.mxu0 0.0
    %1648 = vmatpush1.msra.mxu0 %v1615
    %1649 = vmatprep.subr.mxu0 0.0
    %1650 = vmatpush2.msra.mxu0 0.0
    %1651 = vmatprep.subr.mxu0 0.0
    %1652 = vmatpush2.msra.mxu0 0.0
    %1653 = vmatprep.subr.mxu0 0.0
    %1654 = vmatpush2.msra.mxu0 0.0
    %1655 = vmatprep.subr.mxu0 0.0
    %1656 = vmatpush2.msra.mxu0 0.0
    %1657 = vmatprep.subr.mxu0 0.0
    %1658 = vmatpush2.msra.mxu0 0.0
    %1659 = vmatprep.subr.mxu0 0.0
    %1660 = vmatpush2.msra.mxu0 0.0
    %1661 = vmatprep.subr.mxu0 0.0
    %1662 = vmatpush2.msra.mxu0 0.0
    %1663 = vmatprep.subr.mxu0 0.0
    %1664 = vmatpush2.msra.mxu0 0.0
    %1665 = vmatprep.subr.mxu0 0.0
    %1666 = vmatpush2.msra.mxu0 0.0
    %1667 = vmatprep.subr.mxu0 0.0
    %1668 = vmatpush2.msra.mxu0 0.0
    %1669 = vmatprep.subr.mxu0 0.0
    %1670 = vmatpush2.msra.mxu0 0.0
    %1671 = vmatprep.subr.mxu0 0.0
    %1672 = vmatpush2.msra.mxu0 0.0
    %1673 = vmatprep.subr.mxu0 0.0
    %1674 = vmatpush2.msra.mxu0 0.0
    %1675 = vmatprep.subr.mxu0 0.0
    %1676 = vmatpush2.msra.mxu0 0.0
    %1677 = vmatprep.subr.mxu0 0.0
    %1678 = vmatpush2.msra.mxu0 0.0
    %1679 = vmatprep.subr.mxu0 0.0
    %1680 = vmatpush2.msra.mxu0 0.0
    %1681 = vmatprep.mubr.f32.mxu0 0.0
    %1682 = vmatmul.mubr.f32.gmra.mxu0 %v775
    %v1683 = vpop.f32.mrf.mxu0
    %v1684 = vadd.f32 %v1606, %v1683
    %v1685 = vpop.f32.mrf.mxu0
    %1686 = vmatprep.mubr.f32.mxu0 0.0
    %1687 = vmatmul.mubr.f32.gmra.mxu0 %v777
    %v1688 = vpop.f32.mrf.mxu0
    %v1689 = vadd.f32 %v1611, %v1688
    %v1690 = vpop.f32.mrf.mxu0
    %1691 = vdwg.mxu0
    %v1692 = vld [vmem:[%s2 + $0x213] sm:$0x1]
    %v1693 = vlaneseq
    %v1694 = vshrl.u32 %v1693, 7
    %v1695 = vsub.s32 0, %v1694
    %v1696 = vrot.slane %v1692, %v1695
    %v1697 = vadd.f32 %v1684, %v1696
    %v1698 = vadd.f32 %v1689, %v1696
    %v1699 = vld [vmem:[%s2 + $0x214] sm:$0x1]
    %v1700 = vld [vmem:[%s2 + $0x215] sm:$0x1]
    %vm1701 = vcmask 261120
    %v1702 = vsel %vm1701, %v1697, 0.0
    %1703 = vadd.xlane.f32.xlu0 %v1702
    %v1704 = vpop.xlane.xlu0 %1703
    %v1705 = vsel %vm1701, %v1698, 0.0
    %1706 = vadd.xlane.f32.xlu0 %v1705
    %v1707 = vpop.xlane.xlu0 %1706
    %v1708 = vrcp.pop 32.0
    %v1709 = vmul.f32 %v1704, %v1708
    %v1710 = vmul.f32 %v1707, %v1708
    %v1711 = vsub.f32 %v1697, %v1709
    %v1712 = vsub.f32 %v1698, %v1710
    %v1713 = vmul.f32 %v1711, %v1711
    %v1714 = vmul.f32 %v1712, %v1712
    %v1715 = vsel %vm1701, %v1713, 0.0
    %1716 = vadd.xlane.f32.xlu0 %v1715
    %v1717 = vpop.xlane.xlu0 %1716
    %v1718 = vsel %vm1701, %v1714, 0.0
    %1719 = vadd.xlane.f32.xlu0 %v1718
    %v1720 = vpop.xlane.xlu0 %1719
    %v1721 = vmul.f32 %v1717, %v1708
    %v1722 = vmul.f32 %v1720, %v1708
    %v1723 = vadd.f32 %v1721, 1e-05
    %v1724 = vadd.f32 %v1722, 1e-05
    %v1725 = vrsqrt.pop %v1723
    %v1726 = vrsqrt.pop %v1724
    %v1727 = vmul.f32 %v1711, %v1725
    %v1728 = vmul.f32 %v1712, %v1726
    %v1729 = vlaneseq
    %v1730 = vshrl.u32 %v1729, 7
    %v1731 = vsub.s32 0, %v1730
    %v1732 = vrot.slane %v1699, %v1731
    %v1733 = vmul.f32 %v1727, %v1732
    %v1734 = vmul.f32 %v1728, %v1732
    %v1735 = vlaneseq
    %v1736 = vshrl.u32 %v1735, 7
    %v1737 = vsub.s32 0, %v1736
    %v1738 = vrot.slane %v1700, %v1737
    %v1739 = vadd.f32 %v1733, %v1738
    %v1740 = vadd.f32 %v1734, %v1738
    %v1741 = vld [vmem:[%s2 + $0x216] sm:$0x1]
    %v1742 = vlaneseq
    %v1743 = vshrl.u32 %v1742, 7
    %v1744 = vsub.s32 0, %v1743
    %v1745 = vrot.slane %v1741, %v1744
    %v1746 = vld [vmem:[%s2 + $0xa8] sm:$0xff]
    %v1747 = vld [vmem:[%s2 + $0xb0] sm:$0xff]
    %v1748 = vld [vmem:[%s2 + $0xb8] sm:$0x3]
    %v1749 = vld [vmem:[%s2 + $0x218] sm:$0x1]
    %v1750 = vld [vmem:[%s2 + $0x219] sm:$0x1]
    %v1751 = vsel %vm1701, %v1739, 0.0
    %1752 = vadd.xlane.f32.xlu0 %v1751
    %v1753 = vpop.xlane.xlu0 %1752
    %v1754 = vsel %vm1701, %v1740, 0.0
    %1755 = vadd.xlane.f32.xlu0 %v1754
    %v1756 = vpop.xlane.xlu0 %1755
    %vm1757 = vcmask 254976
    %v1758 = vsel %vm1757, %v1745, 0.0
    %1759 = vadd.xlane.f32.xlu0 %v1758
    %v1760 = vpop.xlane.xlu0 %1759
    %v1761 = vmul.f32 %v1753, %v1708
    %v1762 = vmul.f32 %v1756, %v1708
    %v1763 = vmul.f32 %v1760, %v1708
    %v1764 = vsub.f32 %v1739, %v1761
    %v1765 = vsub.f32 %v1740, %v1762
    %v1766 = vsub.f32 %v1745, %v1763
    %v1767 = vmul.f32 %v1764, %v1764
    %v1768 = vmul.f32 %v1765, %v1765
    %v1769 = vmul.f32 %v1766, %v1766
    %v1770 = vsel %vm1701, %v1767, 0.0
    %1771 = vadd.xlane.f32.xlu0 %v1770
    %v1772 = vpop.xlane.xlu0 %1771
    %v1773 = vsel %vm1701, %v1768, 0.0
    %1774 = vadd.xlane.f32.xlu0 %v1773
    %v1775 = vpop.xlane.xlu0 %1774
    %v1776 = vsel %vm1757, %v1769, 0.0
    %1777 = vadd.xlane.f32.xlu0 %v1776
    %v1778 = vpop.xlane.xlu0 %1777
    %v1779 = vmul.f32 %v1772, %v1708
    %v1780 = vmul.f32 %v1775, %v1708
    %v1781 = vmul.f32 %v1778, %v1708
    %v1782 = vadd.f32 %v1779, 1e-05
    %v1783 = vadd.f32 %v1780, 1e-05
    %v1784 = vadd.f32 %v1781, 1e-05
    %v1785 = vrsqrt.pop %v1782
    %v1786 = vrsqrt.pop %v1783
    %v1787 = vrsqrt.pop %v1784
    %v1788 = vmul.f32 %v1764, %v1785
    %v1789 = vmul.f32 %v1765, %v1786
    %v1790 = vmul.f32 %v1766, %v1787
    %v1791 = vlaneseq
    %v1792 = vshrl.u32 %v1791, 7
    %v1793 = vsub.s32 0, %v1792
    %v1794 = vrot.slane %v1749, %v1793
    %v1795 = vmul.f32 %v1788, %v1794
    %v1796 = vmul.f32 %v1789, %v1794
    %v1797 = vmul.f32 %v1790, %v1794
    %v1798 = vlaneseq
    %v1799 = vshrl.u32 %v1798, 7
    %v1800 = vsub.s32 0, %v1799
    %v1801 = vrot.slane %v1750, %v1800
    %v1802 = vadd.f32 %v1795, %v1801
    %v1803 = vadd.f32 %v1796, %v1801
    %v1804 = vadd.f32 %v1797, %v1801
    %v1805 = vld [vmem:[%s2 + $0xd0] sm:$0xff]
    %v1806 = vld [vmem:[%s2 + $0xd8] sm:$0xff]
    %v1807 = vld [vmem:[%s2 + $0xe0] sm:$0xff]
    %v1808 = vld [vmem:[%s2 + $0xe8] sm:$0xff]
    %v1810 = vsel %vm1701, %v1802, 0
    %v1813 = vsel %vm1701, %v1803, 0
    %v1816 = vsel %vm1701, %v1804, 0
    %1818 = vmatprep.subr.mxu0 0.0
    %1819 = vmatpush1.msra.mxu0 0.0
    %1820 = vmatprep.subr.mxu0 0.0
    %1821 = vmatpush1.msra.mxu0 0.0
    %1822 = vmatprep.subr.mxu0 0.0
    %1823 = vmatpush1.msra.mxu0 0.0
    %1824 = vmatprep.subr.mxu0 0.0
    %1825 = vmatpush1.msra.mxu0 0.0
    %1826 = vmatprep.subr.mxu0 0.0
    %1827 = vmatpush1.msra.mxu0 0.0
    %1828 = vmatprep.subr.mxu0 0.0
    %1829 = vmatpush1.msra.mxu0 0.0
    %1830 = vmatprep.subr.mxu0 0.0
    %1831 = vmatpush1.msra.mxu0 0.0
    %1832 = vmatprep.subr.mxu0 0.0
    %1833 = vmatpush1.msra.mxu0 0.0
    %1834 = vmatprep.subr.mxu0 0.0
    %1835 = vmatpush1.msra.mxu0 0.0
    %1836 = vmatprep.subr.mxu0 0.0
    %1837 = vmatpush1.msra.mxu0 0.0
    %1838 = vmatprep.subr.mxu0 0.0
    %1839 = vmatpush1.msra.mxu0 0.0
    %1840 = vmatprep.subr.mxu0 0.0
    %1841 = vmatpush1.msra.mxu0 0.0
    %1842 = vmatprep.subr.mxu0 0.0
    %1843 = vmatpush1.msra.mxu0 %v1808
    %1844 = vmatprep.subr.mxu0 0.0
    %1845 = vmatpush1.msra.mxu0 %v1807
    %1846 = vmatprep.subr.mxu0 0.0
    %1847 = vmatpush1.msra.mxu0 %v1806
    %1848 = vmatprep.subr.mxu0 0.0
    %1849 = vmatpush1.msra.mxu0 %v1805
    %1850 = vmatprep.subr.mxu0 0.0
    %1851 = vmatpush2.msra.mxu0 0.0
    %1852 = vmatprep.subr.mxu0 0.0
    %1853 = vmatpush2.msra.mxu0 0.0
    %1854 = vmatprep.subr.mxu0 0.0
    %1855 = vmatpush2.msra.mxu0 0.0
    %1856 = vmatprep.subr.mxu0 0.0
    %1857 = vmatpush2.msra.mxu0 0.0
    %1858 = vmatprep.subr.mxu0 0.0
    %1859 = vmatpush2.msra.mxu0 0.0
    %1860 = vmatprep.subr.mxu0 0.0
    %1861 = vmatpush2.msra.mxu0 0.0
    %1862 = vmatprep.subr.mxu0 0.0
    %1863 = vmatpush2.msra.mxu0 0.0
    %1864 = vmatprep.subr.mxu0 0.0
    %1865 = vmatpush2.msra.mxu0 0.0
    %1866 = vmatprep.subr.mxu0 0.0
    %1867 = vmatpush2.msra.mxu0 0.0
    %1868 = vmatprep.subr.mxu0 0.0
    %1869 = vmatpush2.msra.mxu0 0.0
    %1870 = vmatprep.subr.mxu0 0.0
    %1871 = vmatpush2.msra.mxu0 0.0
    %1872 = vmatprep.subr.mxu0 0.0
    %1873 = vmatpush2.msra.mxu0 0.0
    %1874 = vmatprep.subr.mxu0 0.0
    %1875 = vmatpush2.msra.mxu0 0.0
    %1876 = vmatprep.subr.mxu0 0.0
    %1877 = vmatpush2.msra.mxu0 0.0
    %1878 = vmatprep.subr.mxu0 0.0
    %1879 = vmatpush2.msra.mxu0 0.0
    %1880 = vmatprep.subr.mxu0 0.0
    %1881 = vmatpush2.msra.mxu0 0.0
    %1882 = vmatprep.mubr.f32.mxu0 0.0
    %1883 = vmatmul.mubr.f32.gmra.mxu0 %v1810
    %v1884 = vpop.f32.mrf.mxu0
    %v1885 = vadd.f32 0.0, %v1884
    %v1886 = vpop.f32.mrf.mxu0
    %1887 = vmatprep.mubr.f32.mxu0 0.0
    %1888 = vmatmul.mubr.f32.gmra.mxu0 %v1813
    %v1889 = vpop.f32.mrf.mxu0
    %v1890 = vadd.f32 0.0, %v1889
    %v1891 = vpop.f32.mrf.mxu0
    %1892 = vmatprep.mubr.f32.mxu0 0.0
    %1893 = vmatmul.mubr.f32.gmra.mxu0 %v1816
    %v1894 = vpop.f32.mrf.mxu0
    %v1895 = vadd.f32 0.0, %v1894
    %v1896 = vpop.f32.mrf.mxu0
    %1897 = vdwg.mxu0
    %v1898 = vld [vmem:[%s2 + $0xf0] sm:$0xff]
    %v1899 = vld [vmem:[%s2 + $0xf8] sm:$0xff]
    %v1900 = vld [vmem:[%s2 + $0x100] sm:$0xff]
    %v1901 = vld [vmem:[%s2 + $0x108] sm:$0xff]
    %1905 = vrot.lane.b32.xlu0 %v1885, 96
    %v1906 = vpop.permute.xlu0 %1905
    %1907 = vrot.lane.b32.xlu0 %v1890, 96
    %v1908 = vpop.permute.xlu0 %1907
    %1909 = vrot.lane.b32.xlu0 %v1895, 96
    %v1910 = vpop.permute.xlu0 %1909
    %vm1911 = vcmask 64512
    %v1912 = vsel %vm1911, %v1885, 0
    %v1914 = vsel %vm1911, %v1890, 0
    %v1916 = vsel %vm1911, %v1895, 0
    %v1918 = vsel %vm1911, %v1906, 0
    %v1920 = vsel %vm1911, %v1908, 0
    %v1922 = vsel %vm1911, %v1910, 0
    %1924 = vmatprep.subr.mxu0 0.0
    %1925 = vmatpush1.xpose.msra.mxu0 0.0
    %1926 = vmatprep.subr.mxu0 0.0
    %1927 = vmatpush1.xpose.msra.mxu0 0.0
    %1928 = vmatprep.subr.mxu0 0.0
    %1929 = vmatpush1.xpose.msra.mxu0 0.0
    %1930 = vmatprep.subr.mxu0 0.0
    %1931 = vmatpush1.xpose.msra.mxu0 0.0
    %1932 = vmatprep.subr.mxu0 0.0
    %1933 = vmatpush1.xpose.msra.mxu0 0.0
    %1934 = vmatprep.subr.mxu0 0.0
    %1935 = vmatpush1.xpose.msra.mxu0 0.0
    %1936 = vmatprep.subr.mxu0 0.0
    %1937 = vmatpush1.xpose.msra.mxu0 0.0
    %1938 = vmatprep.subr.mxu0 0.0
    %1939 = vmatpush1.xpose.msra.mxu0 0.0
    %1940 = vmatprep.subr.mxu0 0.0
    %1941 = vmatpush1.xpose.msra.mxu0 0.0
    %1942 = vmatprep.subr.mxu0 0.0
    %1943 = vmatpush1.xpose.msra.mxu0 0.0
    %1944 = vmatprep.subr.mxu0 0.0
    %1945 = vmatpush1.xpose.msra.mxu0 0.0
    %1946 = vmatprep.subr.mxu0 0.0
    %1947 = vmatpush1.xpose.msra.mxu0 0.0
    %1948 = vmatprep.subr.mxu0 0.0
    %1949 = vmatpush1.xpose.msra.mxu0 0.0
    %1950 = vmatprep.subr.mxu0 0.0
    %1951 = vmatpush1.xpose.msra.mxu0 %v1922
    %1952 = vmatprep.subr.mxu0 0.0
    %1953 = vmatpush1.xpose.msra.mxu0 %v1920
    %1954 = vmatprep.subr.mxu0 0.0
    %1955 = vmatpush1.xpose.msra.mxu0 %v1918
    %1956 = vmatprep.subr.mxu0 0.0
    %1957 = vmatpush2.xpose.msra.mxu0 0.0
    %1958 = vmatprep.subr.mxu0 0.0
    %1959 = vmatpush2.xpose.msra.mxu0 0.0
    %1960 = vmatprep.subr.mxu0 0.0
    %1961 = vmatpush2.xpose.msra.mxu0 0.0
    %1962 = vmatprep.subr.mxu0 0.0
    %1963 = vmatpush2.xpose.msra.mxu0 0.0
    %1964 = vmatprep.subr.mxu0 0.0
    %1965 = vmatpush2.xpose.msra.mxu0 0.0
    %1966 = vmatprep.subr.mxu0 0.0
    %1967 = vmatpush2.xpose.msra.mxu0 0.0
    %1968 = vmatprep.subr.mxu0 0.0
    %1969 = vmatpush2.xpose.msra.mxu0 0.0
    %1970 = vmatprep.subr.mxu0 0.0
    %1971 = vmatpush2.xpose.msra.mxu0 0.0
    %1972 = vmatprep.subr.mxu0 0.0
    %1973 = vmatpush2.xpose.msra.mxu0 0.0
    %1974 = vmatprep.subr.mxu0 0.0
    %1975 = vmatpush2.xpose.msra.mxu0 0.0
    %1976 = vmatprep.subr.mxu0 0.0
    %1977 = vmatpush2.xpose.msra.mxu0 0.0
    %1978 = vmatprep.subr.mxu0 0.0
    %1979 = vmatpush2.xpose.msra.mxu0 0.0
    %1980 = vmatprep.subr.mxu0 0.0
    %1981 = vmatpush2.xpose.msra.mxu0 0.0
    %1982 = vmatprep.subr.mxu0 0.0
    %1983 = vmatpush2.xpose.msra.mxu0 0.0
    %1984 = vmatprep.subr.mxu0 0.0
    %1985 = vmatpush2.xpose.msra.mxu0 0.0
    %1986 = vmatprep.subr.mxu0 0.0
    %1987 = vmatpush2.xpose.msra.mxu0 0.0
    %1988 = vmatprep.mubr.f32.mxu0 0.0
    %1989 = vmatmul.mubr.f32.gmra.mxu0 %v1912
    %v1990 = vpop.f32.mrf.mxu0
    %v1991 = vadd.f32 %v1746, %v1990
    %v1992 = vpop.f32.mrf.mxu0
    %1993 = vmatprep.mubr.f32.mxu0 0.0
    %1994 = vmatmul.mubr.f32.gmra.mxu0 %v1914
    %v1995 = vpop.f32.mrf.mxu0
    %v1996 = vadd.f32 %v1747, %v1995
    %v1997 = vpop.f32.mrf.mxu0
    %1998 = vmatprep.mubr.f32.mxu0 0.0
    %1999 = vmatmul.mubr.f32.gmra.mxu0 %v1916
    %v2000 = vpop.f32.mrf.mxu0
    %v2001 = vadd.f32 %v1748, %v2000
    %v2002 = vpop.f32.mrf.mxu0
    %2003 = vdwg.mxu0
    %vm2004 = vcmask 146432
    %v2005 = vsel %vm2004, %v1991, -inf
    %2006 = vmax.xlane.f32.xlu0 %v2005
    %v2007 = vpop.xlane.xlu0 %2006
    %v2008 = vsel %vm2004, %v1996, -inf
    %2009 = vmax.xlane.f32.xlu0 %v2008
    %v2010 = vpop.xlane.xlu0 %2009
    %vm2011 = vcmask 140288
    %v2012 = vsel %vm2011, %v2001, -inf
    %2013 = vmax.xlane.f32.xlu0 %v2012
    %v2014 = vpop.xlane.xlu0 %2013
    %v2015 = vsub.f32 %v1991, %v2007
    %v2016 = vsub.f32 %v1996, %v2010
    %v2017 = vsub.f32 %v2001, %v2014
    %v2018 = vmul.f32 %v2015, 1.442695
    %v2019 = vpow.pop %v2018
    %v2020 = vmul.f32 %v2016, 1.442695
    %v2021 = vpow.pop %v2020
    %v2022 = vmul.f32 %v2017, 1.442695
    %v2023 = vpow.pop %v2022
    %v2024 = vsel %vm2004, %v2019, 0.0
    %2025 = vadd.xlane.f32.xlu0 %v2024
    %v2026 = vpop.xlane.xlu0 %2025
    %v2027 = vsel %vm2004, %v2021, 0.0
    %2028 = vadd.xlane.f32.xlu0 %v2027
    %v2029 = vpop.xlane.xlu0 %2028
    %v2030 = vsel %vm2011, %v2023, 0.0
    %2031 = vadd.xlane.f32.xlu0 %v2030
    %v2032 = vpop.xlane.xlu0 %2031
    %v2033 = vrcp.pop %v2026
    %v2034 = vmul.f32 %v2019, %v2033
    %v2035 = vrcp.pop %v2029
    %v2036 = vmul.f32 %v2021, %v2035
    %v2037 = vrcp.pop %v2032
    %v2038 = vmul.f32 %v2023, %v2037
    %2039 = vrot.lane.b32.xlu0 %v1885, 64
    %v2040 = vpop.permute.xlu0 %2039
    %2041 = vrot.lane.b32.xlu0 %v1890, 64
    %v2042 = vpop.permute.xlu0 %2041
    %2043 = vrot.lane.b32.xlu0 %v1895, 64
    %v2044 = vpop.permute.xlu0 %2043
    %v2048 = vsel %vm2004, %v2034, 0
    %v2051 = vsel %vm2004, %v2036, 0
    %v2054 = vsel %vm2004, %v2038, 0
    %vm2056 = vcmask 1041408
    %v2057 = vsel %vm2056, %v2044, 0
    %2059 = vmatprep.subr.mxu0 0.0
    %2060 = vmatpush1.msra.mxu0 0.0
    %2061 = vmatprep.subr.mxu0 0.0
    %2062 = vmatpush1.msra.mxu0 0.0
    %2063 = vmatprep.subr.mxu0 0.0
    %2064 = vmatpush1.msra.mxu0 0.0
    %2065 = vmatprep.subr.mxu0 0.0
    %2066 = vmatpush1.msra.mxu0 0.0
    %2067 = vmatprep.subr.mxu0 0.0
    %2068 = vmatpush1.msra.mxu0 0.0
    %2069 = vmatprep.subr.mxu0 0.0
    %2070 = vmatpush1.msra.mxu0 0.0
    %2071 = vmatprep.subr.mxu0 0.0
    %2072 = vmatpush1.msra.mxu0 0.0
    %2073 = vmatprep.subr.mxu0 0.0
    %2074 = vmatpush1.msra.mxu0 0.0
    %2075 = vmatprep.subr.mxu0 0.0
    %2076 = vmatpush1.msra.mxu0 0.0
    %2077 = vmatprep.subr.mxu0 0.0
    %2078 = vmatpush1.msra.mxu0 0.0
    %2079 = vmatprep.subr.mxu0 0.0
    %2080 = vmatpush1.msra.mxu0 0.0
    %2081 = vmatprep.subr.mxu0 0.0
    %2082 = vmatpush1.msra.mxu0 0.0
    %2083 = vmatprep.subr.mxu0 0.0
    %2084 = vmatpush1.msra.mxu0 0.0
    %2085 = vmatprep.subr.mxu0 0.0
    %2086 = vmatpush1.msra.mxu0 %v2057
    %2087 = vmatprep.subr.mxu0 0.0
    %2088 = vmatpush1.msra.mxu0 %v2042
    %2089 = vmatprep.subr.mxu0 0.0
    %2090 = vmatpush1.msra.mxu0 %v2040
    %2091 = vmatprep.subr.mxu0 0.0
    %2092 = vmatpush2.msra.mxu0 0.0
    %2093 = vmatprep.subr.mxu0 0.0
    %2094 = vmatpush2.msra.mxu0 0.0
    %2095 = vmatprep.subr.mxu0 0.0
    %2096 = vmatpush2.msra.mxu0 0.0
    %2097 = vmatprep.subr.mxu0 0.0
    %2098 = vmatpush2.msra.mxu0 0.0
    %2099 = vmatprep.subr.mxu0 0.0
    %2100 = vmatpush2.msra.mxu0 0.0
    %2101 = vmatprep.subr.mxu0 0.0
    %2102 = vmatpush2.msra.mxu0 0.0
    %2103 = vmatprep.subr.mxu0 0.0
    %2104 = vmatpush2.msra.mxu0 0.0
    %2105 = vmatprep.subr.mxu0 0.0
    %2106 = vmatpush2.msra.mxu0 0.0
    %2107 = vmatprep.subr.mxu0 0.0
    %2108 = vmatpush2.msra.mxu0 0.0
    %2109 = vmatprep.subr.mxu0 0.0
    %2110 = vmatpush2.msra.mxu0 0.0
    %2111 = vmatprep.subr.mxu0 0.0
    %2112 = vmatpush2.msra.mxu0 0.0
    %2113 = vmatprep.subr.mxu0 0.0
    %2114 = vmatpush2.msra.mxu0 0.0
    %2115 = vmatprep.subr.mxu0 0.0
    %2116 = vmatpush2.msra.mxu0 0.0
    %2117 = vmatprep.subr.mxu0 0.0
    %2118 = vmatpush2.msra.mxu0 0.0
    %2119 = vmatprep.subr.mxu0 0.0
    %2120 = vmatpush2.msra.mxu0 0.0
    %2121 = vmatprep.subr.mxu0 0.0
    %2122 = vmatpush2.msra.mxu0 0.0
    %2123 = vmatprep.mubr.f32.mxu0 0.0
    %2124 = vmatmul.mubr.f32.gmra.mxu0 %v2048
    %v2125 = vpop.f32.mrf.mxu0
    %v2126 = vadd.f32 0.0, %v2125
    %v2127 = vpop.f32.mrf.mxu0
    %2128 = vmatprep.mubr.f32.mxu0 0.0
    %2129 = vmatmul.mubr.f32.gmra.mxu0 %v2051
    %v2130 = vpop.f32.mrf.mxu0
    %v2131 = vadd.f32 0.0, %v2130
    %v2132 = vpop.f32.mrf.mxu0
    %2133 = vmatprep.mubr.f32.mxu0 0.0
    %2134 = vmatmul.mubr.f32.gmra.mxu0 %v2054
    %v2135 = vpop.f32.mrf.mxu0
    %v2136 = vadd.f32 0.0, %v2135
    %v2137 = vpop.f32.mrf.mxu0
    %2138 = vdwg.mxu0
    %2139 = vrot.lane.b32.xlu0 %v1885, 120
    %v2140 = vpop.permute.xlu0 %2139
    %2141 = vrot.lane.b32.xlu0 %v1890, 120
    %v2142 = vpop.permute.xlu0 %2141
    %2143 = vrot.lane.b32.xlu0 %v1895, 120
    %v2144 = vpop.permute.xlu0 %2143
    %2145 = vrot.lane.b32.xlu0 %v1885, 88
    %v2146 = vpop.permute.xlu0 %2145
    %2147 = vrot.lane.b32.xlu0 %v1890, 88
    %v2148 = vpop.permute.xlu0 %2147
    %2149 = vrot.lane.b32.xlu0 %v1895, 88
    %v2150 = vpop.permute.xlu0 %2149
    %v2151 = vsel %vm1911, %v2140, 0
    %v2153 = vsel %vm1911, %v2142, 0
    %v2155 = vsel %vm1911, %v2144, 0
    %v2157 = vsel %vm1911, %v2146, 0
    %v2159 = vsel %vm1911, %v2148, 0
    %v2161 = vsel %vm1911, %v2150, 0
    %2163 = vmatprep.subr.mxu0 0.0
    %2164 = vmatpush1.xpose.msra.mxu0 0.0
    %2165 = vmatprep.subr.mxu0 0.0
    %2166 = vmatpush1.xpose.msra.mxu0 0.0
    %2167 = vmatprep.subr.mxu0 0.0
    %2168 = vmatpush1.xpose.msra.mxu0 0.0
    %2169 = vmatprep.subr.mxu0 0.0
    %2170 = vmatpush1.xpose.msra.mxu0 0.0
    %2171 = vmatprep.subr.mxu0 0.0
    %2172 = vmatpush1.xpose.msra.mxu0 0.0
    %2173 = vmatprep.subr.mxu0 0.0
    %2174 = vmatpush1.xpose.msra.mxu0 0.0
    %2175 = vmatprep.subr.mxu0 0.0
    %2176 = vmatpush1.xpose.msra.mxu0 0.0
    %2177 = vmatprep.subr.mxu0 0.0
    %2178 = vmatpush1.xpose.msra.mxu0 0.0
    %2179 = vmatprep.subr.mxu0 0.0
    %2180 = vmatpush1.xpose.msra.mxu0 0.0
    %2181 = vmatprep.subr.mxu0 0.0
    %2182 = vmatpush1.xpose.msra.mxu0 0.0
    %2183 = vmatprep.subr.mxu0 0.0
    %2184 = vmatpush1.xpose.msra.mxu0 0.0
    %2185 = vmatprep.subr.mxu0 0.0
    %2186 = vmatpush1.xpose.msra.mxu0 0.0
    %2187 = vmatprep.subr.mxu0 0.0
    %2188 = vmatpush1.xpose.msra.mxu0 0.0
    %2189 = vmatprep.subr.mxu0 0.0
    %2190 = vmatpush1.xpose.msra.mxu0 %v2161
    %2191 = vmatprep.subr.mxu0 0.0
    %2192 = vmatpush1.xpose.msra.mxu0 %v2159
    %2193 = vmatprep.subr.mxu0 0.0
    %2194 = vmatpush1.xpose.msra.mxu0 %v2157
    %2195 = vmatprep.subr.mxu0 0.0
    %2196 = vmatpush2.xpose.msra.mxu0 0.0
    %2197 = vmatprep.subr.mxu0 0.0
    %2198 = vmatpush2.xpose.msra.mxu0 0.0
    %2199 = vmatprep.subr.mxu0 0.0
    %2200 = vmatpush2.xpose.msra.mxu0 0.0
    %2201 = vmatprep.subr.mxu0 0.0
    %2202 = vmatpush2.xpose.msra.mxu0 0.0
    %2203 = vmatprep.subr.mxu0 0.0
    %2204 = vmatpush2.xpose.msra.mxu0 0.0
    %2205 = vmatprep.subr.mxu0 0.0
    %2206 = vmatpush2.xpose.msra.mxu0 0.0
    %2207 = vmatprep.subr.mxu0 0.0
    %2208 = vmatpush2.xpose.msra.mxu0 0.0
    %2209 = vmatprep.subr.mxu0 0.0
    %2210 = vmatpush2.xpose.msra.mxu0 0.0
    %2211 = vmatprep.subr.mxu0 0.0
    %2212 = vmatpush2.xpose.msra.mxu0 0.0
    %2213 = vmatprep.subr.mxu0 0.0
    %2214 = vmatpush2.xpose.msra.mxu0 0.0
    %2215 = vmatprep.subr.mxu0 0.0
    %2216 = vmatpush2.xpose.msra.mxu0 0.0
    %2217 = vmatprep.subr.mxu0 0.0
    %2218 = vmatpush2.xpose.msra.mxu0 0.0
    %2219 = vmatprep.subr.mxu0 0.0
    %2220 = vmatpush2.xpose.msra.mxu0 0.0
    %2221 = vmatprep.subr.mxu0 0.0
    %2222 = vmatpush2.xpose.msra.mxu0 0.0
    %2223 = vmatprep.subr.mxu0 0.0
    %2224 = vmatpush2.xpose.msra.mxu0 0.0
    %2225 = vmatprep.subr.mxu0 0.0
    %2226 = vmatpush2.xpose.msra.mxu0 0.0
    %2227 = vmatprep.mubr.f32.mxu0 0.0
    %2228 = vmatmul.mubr.f32.gmra.mxu0 %v2151
    %v2229 = vpop.f32.mrf.mxu0
    %v2230 = vadd.f32 %v1746, %v2229
    %v2231 = vpop.f32.mrf.mxu0
    %2232 = vmatprep.mubr.f32.mxu0 0.0
    %2233 = vmatmul.mubr.f32.gmra.mxu0 %v2153
    %v2234 = vpop.f32.mrf.mxu0
    %v2235 = vadd.f32 %v1747, %v2234
    %v2236 = vpop.f32.mrf.mxu0
    %2237 = vmatprep.mubr.f32.mxu0 0.0
    %2238 = vmatmul.mubr.f32.gmra.mxu0 %v2155
    %v2239 = vpop.f32.mrf.mxu0
    %v2240 = vadd.f32 %v1748, %v2239
    %v2241 = vpop.f32.mrf.mxu0
    %2242 = vdwg.mxu0
    %v2243 = vsel %vm2004, %v2230, -inf
    %2244 = vmax.xlane.f32.xlu0 %v2243
    %v2245 = vpop.xlane.xlu0 %2244
    %v2246 = vsel %vm2004, %v2235, -inf
    %2247 = vmax.xlane.f32.xlu0 %v2246
    %v2248 = vpop.xlane.xlu0 %2247
    %v2249 = vsel %vm2011, %v2240, -inf
    %2250 = vmax.xlane.f32.xlu0 %v2249
    %v2251 = vpop.xlane.xlu0 %2250
    %v2252 = vsub.f32 %v2230, %v2245
    %v2253 = vsub.f32 %v2235, %v2248
    %v2254 = vsub.f32 %v2240, %v2251
    %v2255 = vmul.f32 %v2252, 1.442695
    %v2256 = vpow.pop %v2255
    %v2257 = vmul.f32 %v2253, 1.442695
    %v2258 = vpow.pop %v2257
    %v2259 = vmul.f32 %v2254, 1.442695
    %v2260 = vpow.pop %v2259
    %v2261 = vsel %vm2004, %v2256, 0.0
    %2262 = vadd.xlane.f32.xlu0 %v2261
    %v2263 = vpop.xlane.xlu0 %2262
    %v2264 = vsel %vm2004, %v2258, 0.0
    %2265 = vadd.xlane.f32.xlu0 %v2264
    %v2266 = vpop.xlane.xlu0 %2265
    %v2267 = vsel %vm2011, %v2260, 0.0
    %2268 = vadd.xlane.f32.xlu0 %v2267
    %v2269 = vpop.xlane.xlu0 %2268
    %v2270 = vrcp.pop %v2263
    %v2271 = vmul.f32 %v2256, %v2270
    %v2272 = vrcp.pop %v2266
    %v2273 = vmul.f32 %v2258, %v2272
    %v2274 = vrcp.pop %v2269
    %v2275 = vmul.f32 %v2260, %v2274
    %2276 = vrot.lane.b32.xlu0 %v1885, 56
    %v2277 = vpop.permute.xlu0 %2276
    %2278 = vrot.lane.b32.xlu0 %v1890, 56
    %v2279 = vpop.permute.xlu0 %2278
    %2280 = vrot.lane.b32.xlu0 %v1895, 56
    %v2281 = vpop.permute.xlu0 %2280
    %v2285 = vsel %vm2004, %v2271, 0
    %v2288 = vsel %vm2004, %v2273, 0
    %v2291 = vsel %vm2004, %v2275, 0
    %v2293 = vsel %vm2056, %v2281, 0
    %2295 = vmatprep.subr.mxu0 0.0
    %2296 = vmatpush1.msra.mxu0 0.0
    %2297 = vmatprep.subr.mxu0 0.0
    %2298 = vmatpush1.msra.mxu0 0.0
    %2299 = vmatprep.subr.mxu0 0.0
    %2300 = vmatpush1.msra.mxu0 0.0
    %2301 = vmatprep.subr.mxu0 0.0
    %2302 = vmatpush1.msra.mxu0 0.0
    %2303 = vmatprep.subr.mxu0 0.0
    %2304 = vmatpush1.msra.mxu0 0.0
    %2305 = vmatprep.subr.mxu0 0.0
    %2306 = vmatpush1.msra.mxu0 0.0
    %2307 = vmatprep.subr.mxu0 0.0
    %2308 = vmatpush1.msra.mxu0 0.0
    %2309 = vmatprep.subr.mxu0 0.0
    %2310 = vmatpush1.msra.mxu0 0.0
    %2311 = vmatprep.subr.mxu0 0.0
    %2312 = vmatpush1.msra.mxu0 0.0
    %2313 = vmatprep.subr.mxu0 0.0
    %2314 = vmatpush1.msra.mxu0 0.0
    %2315 = vmatprep.subr.mxu0 0.0
    %2316 = vmatpush1.msra.mxu0 0.0
    %2317 = vmatprep.subr.mxu0 0.0
    %2318 = vmatpush1.msra.mxu0 0.0
    %2319 = vmatprep.subr.mxu0 0.0
    %2320 = vmatpush1.msra.mxu0 0.0
    %2321 = vmatprep.subr.mxu0 0.0
    %2322 = vmatpush1.msra.mxu0 %v2293
    %2323 = vmatprep.subr.mxu0 0.0
    %2324 = vmatpush1.msra.mxu0 %v2279
    %2325 = vmatprep.subr.mxu0 0.0
    %2326 = vmatpush1.msra.mxu0 %v2277
    %2327 = vmatprep.subr.mxu0 0.0
    %2328 = vmatpush2.msra.mxu0 0.0
    %2329 = vmatprep.subr.mxu0 0.0
    %2330 = vmatpush2.msra.mxu0 0.0
    %2331 = vmatprep.subr.mxu0 0.0
    %2332 = vmatpush2.msra.mxu0 0.0
    %2333 = vmatprep.subr.mxu0 0.0
    %2334 = vmatpush2.msra.mxu0 0.0
    %2335 = vmatprep.subr.mxu0 0.0
    %2336 = vmatpush2.msra.mxu0 0.0
    %2337 = vmatprep.subr.mxu0 0.0
    %2338 = vmatpush2.msra.mxu0 0.0
    %2339 = vmatprep.subr.mxu0 0.0
    %2340 = vmatpush2.msra.mxu0 0.0
    %2341 = vmatprep.subr.mxu0 0.0
    %2342 = vmatpush2.msra.mxu0 0.0
    %2343 = vmatprep.subr.mxu0 0.0
    %2344 = vmatpush2.msra.mxu0 0.0
    %2345 = vmatprep.subr.mxu0 0.0
    %2346 = vmatpush2.msra.mxu0 0.0
    %2347 = vmatprep.subr.mxu0 0.0
    %2348 = vmatpush2.msra.mxu0 0.0
    %2349 = vmatprep.subr.mxu0 0.0
    %2350 = vmatpush2.msra.mxu0 0.0
    %2351 = vmatprep.subr.mxu0 0.0
    %2352 = vmatpush2.msra.mxu0 0.0
    %2353 = vmatprep.subr.mxu0 0.0
    %2354 = vmatpush2.msra.mxu0 0.0
    %2355 = vmatprep.subr.mxu0 0.0
    %2356 = vmatpush2.msra.mxu0 0.0
    %2357 = vmatprep.subr.mxu0 0.0
    %2358 = vmatpush2.msra.mxu0 0.0
    %2359 = vmatprep.mubr.f32.mxu0 0.0
    %2360 = vmatmul.mubr.f32.gmra.mxu0 %v2285
    %v2361 = vpop.f32.mrf.mxu0
    %v2362 = vadd.f32 0.0, %v2361
    %v2363 = vpop.f32.mrf.mxu0
    %2364 = vmatprep.mubr.f32.mxu0 0.0
    %2365 = vmatmul.mubr.f32.gmra.mxu0 %v2288
    %v2366 = vpop.f32.mrf.mxu0
    %v2367 = vadd.f32 0.0, %v2366
    %v2368 = vpop.f32.mrf.mxu0
    %2369 = vmatprep.mubr.f32.mxu0 0.0
    %2370 = vmatmul.mubr.f32.gmra.mxu0 %v2291
    %v2371 = vpop.f32.mrf.mxu0
    %v2372 = vadd.f32 0.0, %v2371
    %v2373 = vpop.f32.mrf.mxu0
    %2374 = vdwg.mxu0
    %v2376 = vsel %vm1911, %v2362, 0
    %v2379 = vsel %vm1911, %v2367, 0
    %v2382 = vsel %vm1911, %v2372, 0
    %2384 = vmatprep.subr.mxu0 0.0
    %2385 = vmatpush1.msra.mxu0 0.0
    %2386 = vmatprep.subr.mxu0 0.0
    %2387 = vmatpush1.msra.mxu0 0.0
    %2388 = vmatprep.subr.mxu0 0.0
    %2389 = vmatpush1.msra.mxu0 0.0
    %2390 = vmatprep.subr.mxu0 0.0
    %2391 = vmatpush1.msra.mxu0 0.0
    %2392 = vmatprep.subr.mxu0 0.0
    %2393 = vmatpush1.msra.mxu0 0.0
    %2394 = vmatprep.subr.mxu0 0.0
    %2395 = vmatpush1.msra.mxu0 0.0
    %2396 = vmatprep.subr.mxu0 0.0
    %2397 = vmatpush1.msra.mxu0 0.0
    %2398 = vmatprep.subr.mxu0 0.0
    %2399 = vmatpush1.msra.mxu0 0.0
    %2400 = vmatprep.subr.mxu0 0.0
    %2401 = vmatpush1.msra.mxu0 0.0
    %2402 = vmatprep.subr.mxu0 0.0
    %2403 = vmatpush1.msra.mxu0 0.0
    %2404 = vmatprep.subr.mxu0 0.0
    %2405 = vmatpush1.msra.mxu0 0.0
    %2406 = vmatprep.subr.mxu0 0.0
    %2407 = vmatpush1.msra.mxu0 0.0
    %2408 = vmatprep.subr.mxu0 0.0
    %2409 = vmatpush1.msra.mxu0 0.0
    %2410 = vmatprep.subr.mxu0 0.0
    %2411 = vmatpush1.msra.mxu0 0.0
    %2412 = vmatprep.subr.mxu0 0.0
    %2413 = vmatpush1.msra.mxu0 0.0
    %2414 = vmatprep.subr.mxu0 0.0
    %2415 = vmatpush1.msra.mxu0 %v1899
    %2416 = vmatprep.subr.mxu0 0.0
    %2417 = vmatpush2.msra.mxu0 0.0
    %2418 = vmatprep.subr.mxu0 0.0
    %2419 = vmatpush2.msra.mxu0 0.0
    %2420 = vmatprep.subr.mxu0 0.0
    %2421 = vmatpush2.msra.mxu0 0.0
    %2422 = vmatprep.subr.mxu0 0.0
    %2423 = vmatpush2.msra.mxu0 0.0
    %2424 = vmatprep.subr.mxu0 0.0
    %2425 = vmatpush2.msra.mxu0 0.0
    %2426 = vmatprep.subr.mxu0 0.0
    %2427 = vmatpush2.msra.mxu0 0.0
    %2428 = vmatprep.subr.mxu0 0.0
    %2429 = vmatpush2.msra.mxu0 0.0
    %2430 = vmatprep.subr.mxu0 0.0
    %2431 = vmatpush2.msra.mxu0 0.0
    %2432 = vmatprep.subr.mxu0 0.0
    %2433 = vmatpush2.msra.mxu0 0.0
    %2434 = vmatprep.subr.mxu0 0.0
    %2435 = vmatpush2.msra.mxu0 0.0
    %2436 = vmatprep.subr.mxu0 0.0
    %2437 = vmatpush2.msra.mxu0 0.0
    %2438 = vmatprep.subr.mxu0 0.0
    %2439 = vmatpush2.msra.mxu0 0.0
    %2440 = vmatprep.subr.mxu0 0.0
    %2441 = vmatpush2.msra.mxu0 0.0
    %2442 = vmatprep.subr.mxu0 0.0
    %2443 = vmatpush2.msra.mxu0 0.0
    %2444 = vmatprep.subr.mxu0 0.0
    %2445 = vmatpush2.msra.mxu0 0.0
    %2446 = vmatprep.subr.mxu0 0.0
    %2447 = vmatpush2.msra.mxu0 0.0
    %2448 = vmatprep.mubr.f32.mxu0 0.0
    %2449 = vmatmul.mubr.f32.gmra.mxu0 %v2376
    %v2450 = vpop.f32.mrf.mxu0
    %v2451 = vadd.f32 0.0, %v2450
    %v2452 = vpop.f32.mrf.mxu0
    %2453 = vmatprep.mubr.f32.mxu0 0.0
    %2454 = vmatmul.mubr.f32.gmra.mxu0 %v2379
    %v2455 = vpop.f32.mrf.mxu0
    %v2456 = vadd.f32 0.0, %v2455
    %v2457 = vpop.f32.mrf.mxu0
    %2458 = vmatprep.mubr.f32.mxu0 0.0
    %2459 = vmatmul.mubr.f32.gmra.mxu0 %v2382
    %v2460 = vpop.f32.mrf.mxu0
    %v2461 = vadd.f32 0.0, %v2460
    %v2462 = vpop.f32.mrf.mxu0
    %2463 = vdwg.mxu0
    %v2465 = vsel %vm1911, %v2126, 0
    %v2468 = vsel %vm1911, %v2131, 0
    %v2471 = vsel %vm1911, %v2136, 0
    %2473 = vmatprep.subr.mxu0 0.0
    %2474 = vmatpush1.msra.mxu0 0.0
    %2475 = vmatprep.subr.mxu0 0.0
    %2476 = vmatpush1.msra.mxu0 0.0
    %2477 = vmatprep.subr.mxu0 0.0
    %2478 = vmatpush1.msra.mxu0 0.0
    %2479 = vmatprep.subr.mxu0 0.0
    %2480 = vmatpush1.msra.mxu0 0.0
    %2481 = vmatprep.subr.mxu0 0.0
    %2482 = vmatpush1.msra.mxu0 0.0
    %2483 = vmatprep.subr.mxu0 0.0
    %2484 = vmatpush1.msra.mxu0 0.0
    %2485 = vmatprep.subr.mxu0 0.0
    %2486 = vmatpush1.msra.mxu0 0.0
    %2487 = vmatprep.subr.mxu0 0.0
    %2488 = vmatpush1.msra.mxu0 0.0
    %2489 = vmatprep.subr.mxu0 0.0
    %2490 = vmatpush1.msra.mxu0 0.0
    %2491 = vmatprep.subr.mxu0 0.0
    %2492 = vmatpush1.msra.mxu0 0.0
    %2493 = vmatprep.subr.mxu0 0.0
    %2494 = vmatpush1.msra.mxu0 0.0
    %2495 = vmatprep.subr.mxu0 0.0
    %2496 = vmatpush1.msra.mxu0 0.0
    %2497 = vmatprep.subr.mxu0 0.0
    %2498 = vmatpush1.msra.mxu0 0.0
    %2499 = vmatprep.subr.mxu0 0.0
    %2500 = vmatpush1.msra.mxu0 0.0
    %2501 = vmatprep.subr.mxu0 0.0
    %2502 = vmatpush1.msra.mxu0 0.0
    %2503 = vmatprep.subr.mxu0 0.0
    %2504 = vmatpush1.msra.mxu0 %v1898
    %2505 = vmatprep.subr.mxu0 0.0
    %2506 = vmatpush2.msra.mxu0 0.0
    %2507 = vmatprep.subr.mxu0 0.0
    %2508 = vmatpush2.msra.mxu0 0.0
    %2509 = vmatprep.subr.mxu0 0.0
    %2510 = vmatpush2.msra.mxu0 0.0
    %2511 = vmatprep.subr.mxu0 0.0
    %2512 = vmatpush2.msra.mxu0 0.0
    %2513 = vmatprep.subr.mxu0 0.0
    %2514 = vmatpush2.msra.mxu0 0.0
    %2515 = vmatprep.subr.mxu0 0.0
    %2516 = vmatpush2.msra.mxu0 0.0
    %2517 = vmatprep.subr.mxu0 0.0
    %2518 = vmatpush2.msra.mxu0 0.0
    %2519 = vmatprep.subr.mxu0 0.0
    %2520 = vmatpush2.msra.mxu0 0.0
    %2521 = vmatprep.subr.mxu0 0.0
    %2522 = vmatpush2.msra.mxu0 0.0
    %2523 = vmatprep.subr.mxu0 0.0
    %2524 = vmatpush2.msra.mxu0 0.0
    %2525 = vmatprep.subr.mxu0 0.0
    %2526 = vmatpush2.msra.mxu0 0.0
    %2527 = vmatprep.subr.mxu0 0.0
    %2528 = vmatpush2.msra.mxu0 0.0
    %2529 = vmatprep.subr.mxu0 0.0
    %2530 = vmatpush2.msra.mxu0 0.0
    %2531 = vmatprep.subr.mxu0 0.0
    %2532 = vmatpush2.msra.mxu0 0.0
    %2533 = vmatprep.subr.mxu0 0.0
    %2534 = vmatpush2.msra.mxu0 0.0
    %2535 = vmatprep.subr.mxu0 0.0
    %2536 = vmatpush2.msra.mxu0 0.0
    %2537 = vmatprep.mubr.f32.mxu0 0.0
    %2538 = vmatmul.mubr.f32.gmra.mxu0 %v2465
    %v2539 = vpop.f32.mrf.mxu0
    %v2540 = vadd.f32 %v2451, %v2539
    %v2541 = vpop.f32.mrf.mxu0
    %2542 = vmatprep.mubr.f32.mxu0 0.0
    %2543 = vmatmul.mubr.f32.gmra.mxu0 %v2468
    %v2544 = vpop.f32.mrf.mxu0
    %v2545 = vadd.f32 %v2456, %v2544
    %v2546 = vpop.f32.mrf.mxu0
    %2547 = vmatprep.mubr.f32.mxu0 0.0
    %2548 = vmatmul.mubr.f32.gmra.mxu0 %v2471
    %v2549 = vpop.f32.mrf.mxu0
    %v2550 = vadd.f32 %v2461, %v2549
    %v2551 = vpop.f32.mrf.mxu0
    %2552 = vdwg.mxu0
    %2553 = vrot.lane.b32.xlu0 %v1885, 112
    %v2554 = vpop.permute.xlu0 %2553
    %2555 = vrot.lane.b32.xlu0 %v1890, 112
    %v2556 = vpop.permute.xlu0 %2555
    %2557 = vrot.lane.b32.xlu0 %v1895, 112
    %v2558 = vpop.permute.xlu0 %2557
    %2559 = vrot.lane.b32.xlu0 %v1885, 80
    %v2560 = vpop.permute.xlu0 %2559
    %2561 = vrot.lane.b32.xlu0 %v1890, 80
    %v2562 = vpop.permute.xlu0 %2561
    %2563 = vrot.lane.b32.xlu0 %v1895, 80
    %v2564 = vpop.permute.xlu0 %2563
    %v2565 = vsel %vm1911, %v2554, 0
    %v2567 = vsel %vm1911, %v2556, 0
    %v2569 = vsel %vm1911, %v2558, 0
    %v2571 = vsel %vm1911, %v2560, 0
    %v2573 = vsel %vm1911, %v2562, 0
    %v2575 = vsel %vm1911, %v2564, 0
    %2577 = vmatprep.subr.mxu0 0.0
    %2578 = vmatpush1.xpose.msra.mxu0 0.0
    %2579 = vmatprep.subr.mxu0 0.0
    %2580 = vmatpush1.xpose.msra.mxu0 0.0
    %2581 = vmatprep.subr.mxu0 0.0
    %2582 = vmatpush1.xpose.msra.mxu0 0.0
    %2583 = vmatprep.subr.mxu0 0.0
    %2584 = vmatpush1.xpose.msra.mxu0 0.0
    %2585 = vmatprep.subr.mxu0 0.0
    %2586 = vmatpush1.xpose.msra.mxu0 0.0
    %2587 = vmatprep.subr.mxu0 0.0
    %2588 = vmatpush1.xpose.msra.mxu0 0.0
    %2589 = vmatprep.subr.mxu0 0.0
    %2590 = vmatpush1.xpose.msra.mxu0 0.0
    %2591 = vmatprep.subr.mxu0 0.0
    %2592 = vmatpush1.xpose.msra.mxu0 0.0
    %2593 = vmatprep.subr.mxu0 0.0
    %2594 = vmatpush1.xpose.msra.mxu0 0.0
    %2595 = vmatprep.subr.mxu0 0.0
    %2596 = vmatpush1.xpose.msra.mxu0 0.0
    %2597 = vmatprep.subr.mxu0 0.0
    %2598 = vmatpush1.xpose.msra.mxu0 0.0
    %2599 = vmatprep.subr.mxu0 0.0
    %2600 = vmatpush1.xpose.msra.mxu0 0.0
    %2601 = vmatprep.subr.mxu0 0.0
    %2602 = vmatpush1.xpose.msra.mxu0 0.0
    %2603 = vmatprep.subr.mxu0 0.0
    %2604 = vmatpush1.xpose.msra.mxu0 %v2575
    %2605 = vmatprep.subr.mxu0 0.0
    %2606 = vmatpush1.xpose.msra.mxu0 %v2573
    %2607 = vmatprep.subr.mxu0 0.0
    %2608 = vmatpush1.xpose.msra.mxu0 %v2571
    %2609 = vmatprep.subr.mxu0 0.0
    %2610 = vmatpush2.xpose.msra.mxu0 0.0
    %2611 = vmatprep.subr.mxu0 0.0
    %2612 = vmatpush2.xpose.msra.mxu0 0.0
    %2613 = vmatprep.subr.mxu0 0.0
    %2614 = vmatpush2.xpose.msra.mxu0 0.0
    %2615 = vmatprep.subr.mxu0 0.0
    %2616 = vmatpush2.xpose.msra.mxu0 0.0
    %2617 = vmatprep.subr.mxu0 0.0
    %2618 = vmatpush2.xpose.msra.mxu0 0.0
    %2619 = vmatprep.subr.mxu0 0.0
    %2620 = vmatpush2.xpose.msra.mxu0 0.0
    %2621 = vmatprep.subr.mxu0 0.0
    %2622 = vmatpush2.xpose.msra.mxu0 0.0
    %2623 = vmatprep.subr.mxu0 0.0
    %2624 = vmatpush2.xpose.msra.mxu0 0.0
    %2625 = vmatprep.subr.mxu0 0.0
    %2626 = vmatpush2.xpose.msra.mxu0 0.0
    %2627 = vmatprep.subr.mxu0 0.0
    %2628 = vmatpush2.xpose.msra.mxu0 0.0
    %2629 = vmatprep.subr.mxu0 0.0
    %2630 = vmatpush2.xpose.msra.mxu0 0.0
    %2631 = vmatprep.subr.mxu0 0.0
    %2632 = vmatpush2.xpose.msra.mxu0 0.0
    %2633 = vmatprep.subr.mxu0 0.0
    %2634 = vmatpush2.xpose.msra.mxu0 0.0
    %2635 = vmatprep.subr.mxu0 0.0
    %2636 = vmatpush2.xpose.msra.mxu0 0.0
    %2637 = vmatprep.subr.mxu0 0.0
    %2638 = vmatpush2.xpose.msra.mxu0 0.0
    %2639 = vmatprep.subr.mxu0 0.0
    %2640 = vmatpush2.xpose.msra.mxu0 0.0
    %2641 = vmatprep.mubr.f32.mxu0 0.0
    %2642 = vmatmul.mubr.f32.gmra.mxu0 %v2565
    %v2643 = vpop.f32.mrf.mxu0
    %v2644 = vadd.f32 %v1746, %v2643
    %v2645 = vpop.f32.mrf.mxu0
    %2646 = vmatprep.mubr.f32.mxu0 0.0
    %2647 = vmatmul.mubr.f32.gmra.mxu0 %v2567
    %v2648 = vpop.f32.mrf.mxu0
    %v2649 = vadd.f32 %v1747, %v2648
    %v2650 = vpop.f32.mrf.mxu0
    %2651 = vmatprep.mubr.f32.mxu0 0.0
    %2652 = vmatmul.mubr.f32.gmra.mxu0 %v2569
    %v2653 = vpop.f32.mrf.mxu0
    %v2654 = vadd.f32 %v1748, %v2653
    %v2655 = vpop.f32.mrf.mxu0
    %2656 = vdwg.mxu0
    %v2657 = vsel %vm2004, %v2644, -inf
    %2658 = vmax.xlane.f32.xlu0 %v2657
    %v2659 = vpop.xlane.xlu0 %2658
    %v2660 = vsel %vm2004, %v2649, -inf
    %2661 = vmax.xlane.f32.xlu0 %v2660
    %v2662 = vpop.xlane.xlu0 %2661
    %v2663 = vsel %vm2011, %v2654, -inf
    %2664 = vmax.xlane.f32.xlu0 %v2663
    %v2665 = vpop.xlane.xlu0 %2664
    %v2666 = vsub.f32 %v2644, %v2659
    %v2667 = vsub.f32 %v2649, %v2662
    %v2668 = vsub.f32 %v2654, %v2665
    %v2669 = vmul.f32 %v2666, 1.442695
    %v2670 = vpow.pop %v2669
    %v2671 = vmul.f32 %v2667, 1.442695
    %v2672 = vpow.pop %v2671
    %v2673 = vmul.f32 %v2668, 1.442695
    %v2674 = vpow.pop %v2673
    %v2675 = vsel %vm2004, %v2670, 0.0
    %2676 = vadd.xlane.f32.xlu0 %v2675
    %v2677 = vpop.xlane.xlu0 %2676
    %v2678 = vsel %vm2004, %v2672, 0.0
    %2679 = vadd.xlane.f32.xlu0 %v2678
    %v2680 = vpop.xlane.xlu0 %2679
    %v2681 = vsel %vm2011, %v2674, 0.0
    %2682 = vadd.xlane.f32.xlu0 %v2681
    %v2683 = vpop.xlane.xlu0 %2682
    %v2684 = vrcp.pop %v2677
    %v2685 = vmul.f32 %v2670, %v2684
    %v2686 = vrcp.pop %v2680
    %v2687 = vmul.f32 %v2672, %v2686
    %v2688 = vrcp.pop %v2683
    %v2689 = vmul.f32 %v2674, %v2688
    %2690 = vrot.lane.b32.xlu0 %v1885, 48
    %v2691 = vpop.permute.xlu0 %2690
    %2692 = vrot.lane.b32.xlu0 %v1890, 48
    %v2693 = vpop.permute.xlu0 %2692
    %2694 = vrot.lane.b32.xlu0 %v1895, 48
    %v2695 = vpop.permute.xlu0 %2694
    %v2699 = vsel %vm2004, %v2685, 0
    %v2702 = vsel %vm2004, %v2687, 0
    %v2705 = vsel %vm2004, %v2689, 0
    %v2707 = vsel %vm2056, %v2695, 0
    %2709 = vmatprep.subr.mxu0 0.0
    %2710 = vmatpush1.msra.mxu0 0.0
    %2711 = vmatprep.subr.mxu0 0.0
    %2712 = vmatpush1.msra.mxu0 0.0
    %2713 = vmatprep.subr.mxu0 0.0
    %2714 = vmatpush1.msra.mxu0 0.0
    %2715 = vmatprep.subr.mxu0 0.0
    %2716 = vmatpush1.msra.mxu0 0.0
    %2717 = vmatprep.subr.mxu0 0.0
    %2718 = vmatpush1.msra.mxu0 0.0
    %2719 = vmatprep.subr.mxu0 0.0
    %2720 = vmatpush1.msra.mxu0 0.0
    %2721 = vmatprep.subr.mxu0 0.0
    %2722 = vmatpush1.msra.mxu0 0.0
    %2723 = vmatprep.subr.mxu0 0.0
    %2724 = vmatpush1.msra.mxu0 0.0
    %2725 = vmatprep.subr.mxu0 0.0
    %2726 = vmatpush1.msra.mxu0 0.0
    %2727 = vmatprep.subr.mxu0 0.0
    %2728 = vmatpush1.msra.mxu0 0.0
    %2729 = vmatprep.subr.mxu0 0.0
    %2730 = vmatpush1.msra.mxu0 0.0
    %2731 = vmatprep.subr.mxu0 0.0
    %2732 = vmatpush1.msra.mxu0 0.0
    %2733 = vmatprep.subr.mxu0 0.0
    %2734 = vmatpush1.msra.mxu0 0.0
    %2735 = vmatprep.subr.mxu0 0.0
    %2736 = vmatpush1.msra.mxu0 %v2707
    %2737 = vmatprep.subr.mxu0 0.0
    %2738 = vmatpush1.msra.mxu0 %v2693
    %2739 = vmatprep.subr.mxu0 0.0
    %2740 = vmatpush1.msra.mxu0 %v2691
    %2741 = vmatprep.subr.mxu0 0.0
    %2742 = vmatpush2.msra.mxu0 0.0
    %2743 = vmatprep.subr.mxu0 0.0
    %2744 = vmatpush2.msra.mxu0 0.0
    %2745 = vmatprep.subr.mxu0 0.0
    %2746 = vmatpush2.msra.mxu0 0.0
    %2747 = vmatprep.subr.mxu0 0.0
    %2748 = vmatpush2.msra.mxu0 0.0
    %2749 = vmatprep.subr.mxu0 0.0
    %2750 = vmatpush2.msra.mxu0 0.0
    %2751 = vmatprep.subr.mxu0 0.0
    %2752 = vmatpush2.msra.mxu0 0.0
    %2753 = vmatprep.subr.mxu0 0.0
    %2754 = vmatpush2.msra.mxu0 0.0
    %2755 = vmatprep.subr.mxu0 0.0
    %2756 = vmatpush2.msra.mxu0 0.0
    %2757 = vmatprep.subr.mxu0 0.0
    %2758 = vmatpush2.msra.mxu0 0.0
    %2759 = vmatprep.subr.mxu0 0.0
    %2760 = vmatpush2.msra.mxu0 0.0
    %2761 = vmatprep.subr.mxu0 0.0
    %2762 = vmatpush2.msra.mxu0 0.0
    %2763 = vmatprep.subr.mxu0 0.0
    %2764 = vmatpush2.msra.mxu0 0.0
    %2765 = vmatprep.subr.mxu0 0.0
    %2766 = vmatpush2.msra.mxu0 0.0
    %2767 = vmatprep.subr.mxu0 0.0
    %2768 = vmatpush2.msra.mxu0 0.0
    %2769 = vmatprep.subr.mxu0 0.0
    %2770 = vmatpush2.msra.mxu0 0.0
    %2771 = vmatprep.subr.mxu0 0.0
    %2772 = vmatpush2.msra.mxu0 0.0
    %2773 = vmatprep.mubr.f32.mxu0 0.0
    %2774 = vmatmul.mubr.f32.gmra.mxu0 %v2699
    %v2775 = vpop.f32.mrf.mxu0
    %v2776 = vadd.f32 0.0, %v2775
    %v2777 = vpop.f32.mrf.mxu0
    %2778 = vmatprep.mubr.f32.mxu0 0.0
    %2779 = vmatmul.mubr.f32.gmra.mxu0 %v2702
    %v2780 = vpop.f32.mrf.mxu0
    %v2781 = vadd.f32 0.0, %v2780
    %v2782 = vpop.f32.mrf.mxu0
    %2783 = vmatprep.mubr.f32.mxu0 0.0
    %2784 = vmatmul.mubr.f32.gmra.mxu0 %v2705
    %v2785 = vpop.f32.mrf.mxu0
    %v2786 = vadd.f32 0.0, %v2785
    %v2787 = vpop.f32.mrf.mxu0
    %2788 = vdwg.mxu0
    %v2790 = vsel %vm1911, %v2776, 0
    %v2793 = vsel %vm1911, %v2781, 0
    %v2796 = vsel %vm1911, %v2786, 0
    %2798 = vmatprep.subr.mxu0 0.0
    %2799 = vmatpush1.msra.mxu0 0.0
    %2800 = vmatprep.subr.mxu0 0.0
    %2801 = vmatpush1.msra.mxu0 0.0
    %2802 = vmatprep.subr.mxu0 0.0
    %2803 = vmatpush1.msra.mxu0 0.0
    %2804 = vmatprep.subr.mxu0 0.0
    %2805 = vmatpush1.msra.mxu0 0.0
    %2806 = vmatprep.subr.mxu0 0.0
    %2807 = vmatpush1.msra.mxu0 0.0
    %2808 = vmatprep.subr.mxu0 0.0
    %2809 = vmatpush1.msra.mxu0 0.0
    %2810 = vmatprep.subr.mxu0 0.0
    %2811 = vmatpush1.msra.mxu0 0.0
    %2812 = vmatprep.subr.mxu0 0.0
    %2813 = vmatpush1.msra.mxu0 0.0
    %2814 = vmatprep.subr.mxu0 0.0
    %2815 = vmatpush1.msra.mxu0 0.0
    %2816 = vmatprep.subr.mxu0 0.0
    %2817 = vmatpush1.msra.mxu0 0.0
    %2818 = vmatprep.subr.mxu0 0.0
    %2819 = vmatpush1.msra.mxu0 0.0
    %2820 = vmatprep.subr.mxu0 0.0
    %2821 = vmatpush1.msra.mxu0 0.0
    %2822 = vmatprep.subr.mxu0 0.0
    %2823 = vmatpush1.msra.mxu0 0.0
    %2824 = vmatprep.subr.mxu0 0.0
    %2825 = vmatpush1.msra.mxu0 0.0
    %2826 = vmatprep.subr.mxu0 0.0
    %2827 = vmatpush1.msra.mxu0 0.0
    %2828 = vmatprep.subr.mxu0 0.0
    %2829 = vmatpush1.msra.mxu0 %v1900
    %2830 = vmatprep.subr.mxu0 0.0
    %2831 = vmatpush2.msra.mxu0 0.0
    %2832 = vmatprep.subr.mxu0 0.0
    %2833 = vmatpush2.msra.mxu0 0.0
    %2834 = vmatprep.subr.mxu0 0.0
    %2835 = vmatpush2.msra.mxu0 0.0
    %2836 = vmatprep.subr.mxu0 0.0
    %2837 = vmatpush2.msra.mxu0 0.0
    %2838 = vmatprep.subr.mxu0 0.0
    %2839 = vmatpush2.msra.mxu0 0.0
    %2840 = vmatprep.subr.mxu0 0.0
    %2841 = vmatpush2.msra.mxu0 0.0
    %2842 = vmatprep.subr.mxu0 0.0
    %2843 = vmatpush2.msra.mxu0 0.0
    %2844 = vmatprep.subr.mxu0 0.0
    %2845 = vmatpush2.msra.mxu0 0.0
    %2846 = vmatprep.subr.mxu0 0.0
    %2847 = vmatpush2.msra.mxu0 0.0
    %2848 = vmatprep.subr.mxu0 0.0
    %2849 = vmatpush2.msra.mxu0 0.0
    %2850 = vmatprep.subr.mxu0 0.0
    %2851 = vmatpush2.msra.mxu0 0.0
    %2852 = vmatprep.subr.mxu0 0.0
    %2853 = vmatpush2.msra.mxu0 0.0
    %2854 = vmatprep.subr.mxu0 0.0
    %2855 = vmatpush2.msra.mxu0 0.0
    %2856 = vmatprep.subr.mxu0 0.0
    %2857 = vmatpush2.msra.mxu0 0.0
    %2858 = vmatprep.subr.mxu0 0.0
    %2859 = vmatpush2.msra.mxu0 0.0
    %2860 = vmatprep.subr.mxu0 0.0
    %2861 = vmatpush2.msra.mxu0 0.0
    %2862 = vmatprep.mubr.f32.mxu0 0.0
    %2863 = vmatmul.mubr.f32.gmra.mxu0 %v2790
    %v2864 = vpop.f32.mrf.mxu0
    %v2865 = vadd.f32 0.0, %v2864
    %v2866 = vpop.f32.mrf.mxu0
    %2867 = vmatprep.mubr.f32.mxu0 0.0
    %2868 = vmatmul.mubr.f32.gmra.mxu0 %v2793
    %v2869 = vpop.f32.mrf.mxu0
    %v2870 = vadd.f32 0.0, %v2869
    %v2871 = vpop.f32.mrf.mxu0
    %2872 = vmatprep.mubr.f32.mxu0 0.0
    %2873 = vmatmul.mubr.f32.gmra.mxu0 %v2796
    %v2874 = vpop.f32.mrf.mxu0
    %v2875 = vadd.f32 0.0, %v2874
    %v2876 = vpop.f32.mrf.mxu0
    %2877 = vdwg.mxu0
    %v2878 = vadd.f32 %v2540, %v2865
    %v2879 = vadd.f32 %v2545, %v2870
    %v2880 = vadd.f32 %v2550, %v2875
    %2881 = vrot.lane.b32.xlu0 %v1885, 104
    %v2882 = vpop.permute.xlu0 %2881
    %2883 = vrot.lane.b32.xlu0 %v1890, 104
    %v2884 = vpop.permute.xlu0 %2883
    %2885 = vrot.lane.b32.xlu0 %v1895, 104
    %v2886 = vpop.permute.xlu0 %2885
    %2887 = vrot.lane.b32.xlu0 %v1885, 72
    %v2888 = vpop.permute.xlu0 %2887
    %2889 = vrot.lane.b32.xlu0 %v1890, 72
    %v2890 = vpop.permute.xlu0 %2889
    %2891 = vrot.lane.b32.xlu0 %v1895, 72
    %v2892 = vpop.permute.xlu0 %2891
    %v2893 = vsel %vm1911, %v2882, 0
    %v2895 = vsel %vm1911, %v2884, 0
    %v2897 = vsel %vm1911, %v2886, 0
    %v2899 = vsel %vm1911, %v2888, 0
    %v2901 = vsel %vm1911, %v2890, 0
    %v2903 = vsel %vm1911, %v2892, 0
    %2905 = vmatprep.subr.mxu0 0.0
    %2906 = vmatpush1.xpose.msra.mxu0 0.0
    %2907 = vmatprep.subr.mxu0 0.0
    %2908 = vmatpush1.xpose.msra.mxu0 0.0
    %2909 = vmatprep.subr.mxu0 0.0
    %2910 = vmatpush1.xpose.msra.mxu0 0.0
    %2911 = vmatprep.subr.mxu0 0.0
    %2912 = vmatpush1.xpose.msra.mxu0 0.0
    %2913 = vmatprep.subr.mxu0 0.0
    %2914 = vmatpush1.xpose.msra.mxu0 0.0
    %2915 = vmatprep.subr.mxu0 0.0
    %2916 = vmatpush1.xpose.msra.mxu0 0.0
    %2917 = vmatprep.subr.mxu0 0.0
    %2918 = vmatpush1.xpose.msra.mxu0 0.0
    %2919 = vmatprep.subr.mxu0 0.0
    %2920 = vmatpush1.xpose.msra.mxu0 0.0
    %2921 = vmatprep.subr.mxu0 0.0
    %2922 = vmatpush1.xpose.msra.mxu0 0.0
    %2923 = vmatprep.subr.mxu0 0.0
    %2924 = vmatpush1.xpose.msra.mxu0 0.0
    %2925 = vmatprep.subr.mxu0 0.0
    %2926 = vmatpush1.xpose.msra.mxu0 0.0
    %2927 = vmatprep.subr.mxu0 0.0
    %2928 = vmatpush1.xpose.msra.mxu0 0.0
    %2929 = vmatprep.subr.mxu0 0.0
    %2930 = vmatpush1.xpose.msra.mxu0 0.0
    %2931 = vmatprep.subr.mxu0 0.0
    %2932 = vmatpush1.xpose.msra.mxu0 %v2903
    %2933 = vmatprep.subr.mxu0 0.0
    %2934 = vmatpush1.xpose.msra.mxu0 %v2901
    %2935 = vmatprep.subr.mxu0 0.0
    %2936 = vmatpush1.xpose.msra.mxu0 %v2899
    %2937 = vmatprep.subr.mxu0 0.0
    %2938 = vmatpush2.xpose.msra.mxu0 0.0
    %2939 = vmatprep.subr.mxu0 0.0
    %2940 = vmatpush2.xpose.msra.mxu0 0.0
    %2941 = vmatprep.subr.mxu0 0.0
    %2942 = vmatpush2.xpose.msra.mxu0 0.0
    %2943 = vmatprep.subr.mxu0 0.0
    %2944 = vmatpush2.xpose.msra.mxu0 0.0
    %2945 = vmatprep.subr.mxu0 0.0
    %2946 = vmatpush2.xpose.msra.mxu0 0.0
    %2947 = vmatprep.subr.mxu0 0.0
    %2948 = vmatpush2.xpose.msra.mxu0 0.0
    %2949 = vmatprep.subr.mxu0 0.0
    %2950 = vmatpush2.xpose.msra.mxu0 0.0
    %2951 = vmatprep.subr.mxu0 0.0
    %2952 = vmatpush2.xpose.msra.mxu0 0.0
    %2953 = vmatprep.subr.mxu0 0.0
    %2954 = vmatpush2.xpose.msra.mxu0 0.0
    %2955 = vmatprep.subr.mxu0 0.0
    %2956 = vmatpush2.xpose.msra.mxu0 0.0
    %2957 = vmatprep.subr.mxu0 0.0
    %2958 = vmatpush2.xpose.msra.mxu0 0.0
    %2959 = vmatprep.subr.mxu0 0.0
    %2960 = vmatpush2.xpose.msra.mxu0 0.0
    %2961 = vmatprep.subr.mxu0 0.0
    %2962 = vmatpush2.xpose.msra.mxu0 0.0
    %2963 = vmatprep.subr.mxu0 0.0
    %2964 = vmatpush2.xpose.msra.mxu0 0.0
    %2965 = vmatprep.subr.mxu0 0.0
    %2966 = vmatpush2.xpose.msra.mxu0 0.0
    %2967 = vmatprep.subr.mxu0 0.0
    %2968 = vmatpush2.xpose.msra.mxu0 0.0
    %2969 = vmatprep.mubr.f32.mxu0 0.0
    %2970 = vmatmul.mubr.f32.gmra.mxu0 %v2893
    %v2971 = vpop.f32.mrf.mxu0
    %v2972 = vadd.f32 %v1746, %v2971
    %v2973 = vpop.f32.mrf.mxu0
    %2974 = vmatprep.mubr.f32.mxu0 0.0
    %2975 = vmatmul.mubr.f32.gmra.mxu0 %v2895
    %v2976 = vpop.f32.mrf.mxu0
    %v2977 = vadd.f32 %v1747, %v2976
    %v2978 = vpop.f32.mrf.mxu0
    %2979 = vmatprep.mubr.f32.mxu0 0.0
    %2980 = vmatmul.mubr.f32.gmra.mxu0 %v2897
    %v2981 = vpop.f32.mrf.mxu0
    %v2982 = vadd.f32 %v1748, %v2981
    %v2983 = vpop.f32.mrf.mxu0
    %2984 = vdwg.mxu0
    %v2985 = vsel %vm2004, %v2972, -inf
    %2986 = vmax.xlane.f32.xlu0 %v2985
    %v2987 = vpop.xlane.xlu0 %2986
    %v2988 = vsel %vm2004, %v2977, -inf
    %2989 = vmax.xlane.f32.xlu0 %v2988
    %v2990 = vpop.xlane.xlu0 %2989
    %v2991 = vsel %vm2011, %v2982, -inf
    %2992 = vmax.xlane.f32.xlu0 %v2991
    %v2993 = vpop.xlane.xlu0 %2992
    %v2994 = vsub.f32 %v2972, %v2987
    %v2995 = vsub.f32 %v2977, %v2990
    %v2996 = vsub.f32 %v2982, %v2993
    %v2997 = vmul.f32 %v2994, 1.442695
    %v2998 = vpow.pop %v2997
    %v2999 = vmul.f32 %v2995, 1.442695
    %v3000 = vpow.pop %v2999
    %v3001 = vmul.f32 %v2996, 1.442695
    %v3002 = vpow.pop %v3001
    %v3003 = vsel %vm2004, %v2998, 0.0
    %3004 = vadd.xlane.f32.xlu0 %v3003
    %v3005 = vpop.xlane.xlu0 %3004
    %v3006 = vsel %vm2004, %v3000, 0.0
    %3007 = vadd.xlane.f32.xlu0 %v3006
    %v3008 = vpop.xlane.xlu0 %3007
    %v3009 = vsel %vm2011, %v3002, 0.0
    %3010 = vadd.xlane.f32.xlu0 %v3009
    %v3011 = vpop.xlane.xlu0 %3010
    %v3012 = vrcp.pop %v3005
    %v3013 = vmul.f32 %v2998, %v3012
    %v3014 = vrcp.pop %v3008
    %v3015 = vmul.f32 %v3000, %v3014
    %v3016 = vrcp.pop %v3011
    %v3017 = vmul.f32 %v3002, %v3016
    %3018 = vrot.lane.b32.xlu0 %v1885, 40
    %v3019 = vpop.permute.xlu0 %3018
    %3020 = vrot.lane.b32.xlu0 %v1890, 40
    %v3021 = vpop.permute.xlu0 %3020
    %3022 = vrot.lane.b32.xlu0 %v1895, 40
    %v3023 = vpop.permute.xlu0 %3022
    %v3027 = vsel %vm2004, %v3013, 0
    %v3030 = vsel %vm2004, %v3015, 0
    %v3033 = vsel %vm2004, %v3017, 0
    %v3035 = vsel %vm2056, %v3023, 0
    %3037 = vmatprep.subr.mxu0 0.0
    %3038 = vmatpush1.msra.mxu0 0.0
    %3039 = vmatprep.subr.mxu0 0.0
    %3040 = vmatpush1.msra.mxu0 0.0
    %3041 = vmatprep.subr.mxu0 0.0
    %3042 = vmatpush1.msra.mxu0 0.0
    %3043 = vmatprep.subr.mxu0 0.0
    %3044 = vmatpush1.msra.mxu0 0.0
    %3045 = vmatprep.subr.mxu0 0.0
    %3046 = vmatpush1.msra.mxu0 0.0
    %3047 = vmatprep.subr.mxu0 0.0
    %3048 = vmatpush1.msra.mxu0 0.0
    %3049 = vmatprep.subr.mxu0 0.0
    %3050 = vmatpush1.msra.mxu0 0.0
    %3051 = vmatprep.subr.mxu0 0.0
    %3052 = vmatpush1.msra.mxu0 0.0
    %3053 = vmatprep.subr.mxu0 0.0
    %3054 = vmatpush1.msra.mxu0 0.0
    %3055 = vmatprep.subr.mxu0 0.0
    %3056 = vmatpush1.msra.mxu0 0.0
    %3057 = vmatprep.subr.mxu0 0.0
    %3058 = vmatpush1.msra.mxu0 0.0
    %3059 = vmatprep.subr.mxu0 0.0
    %3060 = vmatpush1.msra.mxu0 0.0
    %3061 = vmatprep.subr.mxu0 0.0
    %3062 = vmatpush1.msra.mxu0 0.0
    %3063 = vmatprep.subr.mxu0 0.0
    %3064 = vmatpush1.msra.mxu0 %v3035
    %3065 = vmatprep.subr.mxu0 0.0
    %3066 = vmatpush1.msra.mxu0 %v3021
    %3067 = vmatprep.subr.mxu0 0.0
    %3068 = vmatpush1.msra.mxu0 %v3019
    %3069 = vmatprep.subr.mxu0 0.0
    %3070 = vmatpush2.msra.mxu0 0.0
    %3071 = vmatprep.subr.mxu0 0.0
    %3072 = vmatpush2.msra.mxu0 0.0
    %3073 = vmatprep.subr.mxu0 0.0
    %3074 = vmatpush2.msra.mxu0 0.0
    %3075 = vmatprep.subr.mxu0 0.0
    %3076 = vmatpush2.msra.mxu0 0.0
    %3077 = vmatprep.subr.mxu0 0.0
    %3078 = vmatpush2.msra.mxu0 0.0
    %3079 = vmatprep.subr.mxu0 0.0
    %3080 = vmatpush2.msra.mxu0 0.0
    %3081 = vmatprep.subr.mxu0 0.0
    %3082 = vmatpush2.msra.mxu0 0.0
    %3083 = vmatprep.subr.mxu0 0.0
    %3084 = vmatpush2.msra.mxu0 0.0
    %3085 = vmatprep.subr.mxu0 0.0
    %3086 = vmatpush2.msra.mxu0 0.0
    %3087 = vmatprep.subr.mxu0 0.0
    %3088 = vmatpush2.msra.mxu0 0.0
    %3089 = vmatprep.subr.mxu0 0.0
    %3090 = vmatpush2.msra.mxu0 0.0
    %3091 = vmatprep.subr.mxu0 0.0
    %3092 = vmatpush2.msra.mxu0 0.0
    %3093 = vmatprep.subr.mxu0 0.0
    %3094 = vmatpush2.msra.mxu0 0.0
    %3095 = vmatprep.subr.mxu0 0.0
    %3096 = vmatpush2.msra.mxu0 0.0
    %3097 = vmatprep.subr.mxu0 0.0
    %3098 = vmatpush2.msra.mxu0 0.0
    %3099 = vmatprep.subr.mxu0 0.0
    %3100 = vmatpush2.msra.mxu0 0.0
    %3101 = vmatprep.mubr.f32.mxu0 0.0
    %3102 = vmatmul.mubr.f32.gmra.mxu0 %v3027
    %v3103 = vpop.f32.mrf.mxu0
    %v3104 = vadd.f32 0.0, %v3103
    %v3105 = vpop.f32.mrf.mxu0
    %3106 = vmatprep.mubr.f32.mxu0 0.0
    %3107 = vmatmul.mubr.f32.gmra.mxu0 %v3030
    %v3108 = vpop.f32.mrf.mxu0
    %v3109 = vadd.f32 0.0, %v3108
    %v3110 = vpop.f32.mrf.mxu0
    %3111 = vmatprep.mubr.f32.mxu0 0.0
    %3112 = vmatmul.mubr.f32.gmra.mxu0 %v3033
    %v3113 = vpop.f32.mrf.mxu0
    %v3114 = vadd.f32 0.0, %v3113
    %v3115 = vpop.f32.mrf.mxu0
    %3116 = vdwg.mxu0
    %v3118 = vsel %vm1911, %v3104, 0
    %v3121 = vsel %vm1911, %v3109, 0
    %v3124 = vsel %vm1911, %v3114, 0
    %3126 = vmatprep.subr.mxu0 0.0
    %3127 = vmatpush1.msra.mxu0 0.0
    %3128 = vmatprep.subr.mxu0 0.0
    %3129 = vmatpush1.msra.mxu0 0.0
    %3130 = vmatprep.subr.mxu0 0.0
    %3131 = vmatpush1.msra.mxu0 0.0
    %3132 = vmatprep.subr.mxu0 0.0
    %3133 = vmatpush1.msra.mxu0 0.0
    %3134 = vmatprep.subr.mxu0 0.0
    %3135 = vmatpush1.msra.mxu0 0.0
    %3136 = vmatprep.subr.mxu0 0.0
    %3137 = vmatpush1.msra.mxu0 0.0
    %3138 = vmatprep.subr.mxu0 0.0
    %3139 = vmatpush1.msra.mxu0 0.0
    %3140 = vmatprep.subr.mxu0 0.0
    %3141 = vmatpush1.msra.mxu0 0.0
    %3142 = vmatprep.subr.mxu0 0.0
    %3143 = vmatpush1.msra.mxu0 0.0
    %3144 = vmatprep.subr.mxu0 0.0
    %3145 = vmatpush1.msra.mxu0 0.0
    %3146 = vmatprep.subr.mxu0 0.0
    %3147 = vmatpush1.msra.mxu0 0.0
    %3148 = vmatprep.subr.mxu0 0.0
    %3149 = vmatpush1.msra.mxu0 0.0
    %3150 = vmatprep.subr.mxu0 0.0
    %3151 = vmatpush1.msra.mxu0 0.0
    %3152 = vmatprep.subr.mxu0 0.0
    %3153 = vmatpush1.msra.mxu0 0.0
    %3154 = vmatprep.subr.mxu0 0.0
    %3155 = vmatpush1.msra.mxu0 0.0
    %3156 = vmatprep.subr.mxu0 0.0
    %3157 = vmatpush1.msra.mxu0 %v1901
    %3158 = vmatprep.subr.mxu0 0.0
    %3159 = vmatpush2.msra.mxu0 0.0
    %3160 = vmatprep.subr.mxu0 0.0
    %3161 = vmatpush2.msra.mxu0 0.0
    %3162 = vmatprep.subr.mxu0 0.0
    %3163 = vmatpush2.msra.mxu0 0.0
    %3164 = vmatprep.subr.mxu0 0.0
    %3165 = vmatpush2.msra.mxu0 0.0
    %3166 = vmatprep.subr.mxu0 0.0
    %3167 = vmatpush2.msra.mxu0 0.0
    %3168 = vmatprep.subr.mxu0 0.0
    %3169 = vmatpush2.msra.mxu0 0.0
    %3170 = vmatprep.subr.mxu0 0.0
    %3171 = vmatpush2.msra.mxu0 0.0
    %3172 = vmatprep.subr.mxu0 0.0
    %3173 = vmatpush2.msra.mxu0 0.0
    %3174 = vmatprep.subr.mxu0 0.0
    %3175 = vmatpush2.msra.mxu0 0.0
    %3176 = vmatprep.subr.mxu0 0.0
    %3177 = vmatpush2.msra.mxu0 0.0
    %3178 = vmatprep.subr.mxu0 0.0
    %3179 = vmatpush2.msra.mxu0 0.0
    %3180 = vmatprep.subr.mxu0 0.0
    %3181 = vmatpush2.msra.mxu0 0.0
    %3182 = vmatprep.subr.mxu0 0.0
    %3183 = vmatpush2.msra.mxu0 0.0
    %3184 = vmatprep.subr.mxu0 0.0
    %3185 = vmatpush2.msra.mxu0 0.0
    %3186 = vmatprep.subr.mxu0 0.0
    %3187 = vmatpush2.msra.mxu0 0.0
    %3188 = vmatprep.subr.mxu0 0.0
    %3189 = vmatpush2.msra.mxu0 0.0
    %3190 = vmatprep.mubr.f32.mxu0 0.0
    %3191 = vmatmul.mubr.f32.gmra.mxu0 %v3118
    %v3192 = vpop.f32.mrf.mxu0
    %v3193 = vadd.f32 0.0, %v3192
    %v3194 = vpop.f32.mrf.mxu0
    %3195 = vmatprep.mubr.f32.mxu0 0.0
    %3196 = vmatmul.mubr.f32.gmra.mxu0 %v3121
    %v3197 = vpop.f32.mrf.mxu0
    %v3198 = vadd.f32 0.0, %v3197
    %v3199 = vpop.f32.mrf.mxu0
    %3200 = vmatprep.mubr.f32.mxu0 0.0
    %3201 = vmatmul.mubr.f32.gmra.mxu0 %v3124
    %v3202 = vpop.f32.mrf.mxu0
    %v3203 = vadd.f32 0.0, %v3202
    %v3204 = vpop.f32.mrf.mxu0
    %3205 = vdwg.mxu0
    %v3206 = vadd.f32 %v2878, %v3193
    %v3207 = vadd.f32 %v2879, %v3198
    %v3208 = vadd.f32 %v2880, %v3203
    %v3209 = vadd.f32 %v1739, %v3206
    %v3210 = vadd.f32 %v1740, %v3207
    %v3211 = vadd.f32 %v1745, %v3208
    %v3212 = vld [vmem:[%s2 + $0x217] sm:$0x1]
    %v3213 = vlaneseq
    %v3214 = vshrl.u32 %v3213, 7
    %v3215 = vsub.s32 0, %v3214
    %v3216 = vrot.slane %v3212, %v3215
    %v3217 = vadd.f32 %v3209, %v3216
    %v3218 = vadd.f32 %v3210, %v3216
    %v3219 = vadd.f32 %v3211, %v3216
    %v3220 = vld [vmem:[%s2 + $0x21a] sm:$0x1]
    %v3221 = vld [vmem:[%s2 + $0x21b] sm:$0x1]
    %v3222 = vsel %vm1701, %v3217, 0.0
    %3223 = vadd.xlane.f32.xlu0 %v3222
    %v3224 = vpop.xlane.xlu0 %3223
    %v3225 = vsel %vm1701, %v3218, 0.0
    %3226 = vadd.xlane.f32.xlu0 %v3225
    %v3227 = vpop.xlane.xlu0 %3226
    %v3228 = vsel %vm1757, %v3219, 0.0
    %3229 = vadd.xlane.f32.xlu0 %v3228
    %v3230 = vpop.xlane.xlu0 %3229
    %v3231 = vmul.f32 %v3224, %v1708
    %v3232 = vmul.f32 %v3227, %v1708
    %v3233 = vmul.f32 %v3230, %v1708
    %v3234 = vsub.f32 %v3217, %v3231
    %v3235 = vsub.f32 %v3218, %v3232
    %v3236 = vsub.f32 %v3219, %v3233
    %v3237 = vmul.f32 %v3234, %v3234
    %v3238 = vmul.f32 %v3235, %v3235
    %v3239 = vmul.f32 %v3236, %v3236
    %v3240 = vsel %vm1701, %v3237, 0.0
    %3241 = vadd.xlane.f32.xlu0 %v3240
    %v3242 = vpop.xlane.xlu0 %3241
    %v3243 = vsel %vm1701, %v3238, 0.0
    %3244 = vadd.xlane.f32.xlu0 %v3243
    %v3245 = vpop.xlane.xlu0 %3244
    %v3246 = vsel %vm1757, %v3239, 0.0
    %3247 = vadd.xlane.f32.xlu0 %v3246
    %v3248 = vpop.xlane.xlu0 %3247
    %v3249 = vmul.f32 %v3242, %v1708
    %v3250 = vmul.f32 %v3245, %v1708
    %v3251 = vmul.f32 %v3248, %v1708
    %v3252 = vadd.f32 %v3249, 1e-05
    %v3253 = vadd.f32 %v3250, 1e-05
    %v3254 = vadd.f32 %v3251, 1e-05
    %v3255 = vrsqrt.pop %v3252
    %v3256 = vrsqrt.pop %v3253
    %v3257 = vrsqrt.pop %v3254
    %v3258 = vmul.f32 %v3234, %v3255
    %v3259 = vmul.f32 %v3235, %v3256
    %v3260 = vmul.f32 %v3236, %v3257
    %v3261 = vlaneseq
    %v3262 = vshrl.u32 %v3261, 7
    %v3263 = vsub.s32 0, %v3262
    %v3264 = vrot.slane %v3220, %v3263
    %v3265 = vmul.f32 %v3258, %v3264
    %v3266 = vmul.f32 %v3259, %v3264
    %v3267 = vmul.f32 %v3260, %v3264
    %v3268 = vlaneseq
    %v3269 = vshrl.u32 %v3268, 7
    %v3270 = vsub.s32 0, %v3269
    %v3271 = vrot.slane %v3221, %v3270
    %v3272 = vadd.f32 %v3265, %v3271
    %v3273 = vadd.f32 %v3266, %v3271
    %v3274 = vadd.f32 %v3267, %v3271
    %v3275 = vld [vmem:[%s2 + $0x110] sm:$0xff]
    %v3276 = vld [vmem:[%s2 + $0x118] sm:$0xff]
    %v3277 = vld [vmem:[%s2 + $0x120] sm:$0xff]
    %v3278 = vld [vmem:[%s2 + $0x128] sm:$0xff]
    %v3279 = vld [vmem:[%s2 + $0x21c] sm:$0x1]
    %v3280 = vlaneseq
    %v3281 = vshrl.u32 %v3280, 7
    %v3282 = vsub.s32 0, %v3281
    %v3283 = vrot.slane %v3279, %v3282
    %v3285 = vsel %vm1701, %v3272, 0
    %v3288 = vsel %vm1701, %v3273, 0
    %v3291 = vsel %vm1701, %v3274, 0
    %3293 = vmatprep.subr.mxu0 0.0
    %3294 = vmatpush1.msra.mxu0 0.0
    %3295 = vmatprep.subr.mxu0 0.0
    %3296 = vmatpush1.msra.mxu0 0.0
    %3297 = vmatprep.subr.mxu0 0.0
    %3298 = vmatpush1.msra.mxu0 0.0
    %3299 = vmatprep.subr.mxu0 0.0
    %3300 = vmatpush1.msra.mxu0 0.0
    %3301 = vmatprep.subr.mxu0 0.0
    %3302 = vmatpush1.msra.mxu0 0.0
    %3303 = vmatprep.subr.mxu0 0.0
    %3304 = vmatpush1.msra.mxu0 0.0
    %3305 = vmatprep.subr.mxu0 0.0
    %3306 = vmatpush1.msra.mxu0 0.0
    %3307 = vmatprep.subr.mxu0 0.0
    %3308 = vmatpush1.msra.mxu0 0.0
    %3309 = vmatprep.subr.mxu0 0.0
    %3310 = vmatpush1.msra.mxu0 0.0
    %3311 = vmatprep.subr.mxu0 0.0
    %3312 = vmatpush1.msra.mxu0 0.0
    %3313 = vmatprep.subr.mxu0 0.0
    %3314 = vmatpush1.msra.mxu0 0.0
    %3315 = vmatprep.subr.mxu0 0.0
    %3316 = vmatpush1.msra.mxu0 0.0
    %3317 = vmatprep.subr.mxu0 0.0
    %3318 = vmatpush1.msra.mxu0 %v3278
    %3319 = vmatprep.subr.mxu0 0.0
    %3320 = vmatpush1.msra.mxu0 %v3277
    %3321 = vmatprep.subr.mxu0 0.0
    %3322 = vmatpush1.msra.mxu0 %v3276
    %3323 = vmatprep.subr.mxu0 0.0
    %3324 = vmatpush1.msra.mxu0 %v3275
    %3325 = vmatprep.subr.mxu0 0.0
    %3326 = vmatpush2.msra.mxu0 0.0
    %3327 = vmatprep.subr.mxu0 0.0
    %3328 = vmatpush2.msra.mxu0 0.0
    %3329 = vmatprep.subr.mxu0 0.0
    %3330 = vmatpush2.msra.mxu0 0.0
    %3331 = vmatprep.subr.mxu0 0.0
    %3332 = vmatpush2.msra.mxu0 0.0
    %3333 = vmatprep.subr.mxu0 0.0
    %3334 = vmatpush2.msra.mxu0 0.0
    %3335 = vmatprep.subr.mxu0 0.0
    %3336 = vmatpush2.msra.mxu0 0.0
    %3337 = vmatprep.subr.mxu0 0.0
    %3338 = vmatpush2.msra.mxu0 0.0
    %3339 = vmatprep.subr.mxu0 0.0
    %3340 = vmatpush2.msra.mxu0 0.0
    %3341 = vmatprep.subr.mxu0 0.0
    %3342 = vmatpush2.msra.mxu0 0.0
    %3343 = vmatprep.subr.mxu0 0.0
    %3344 = vmatpush2.msra.mxu0 0.0
    %3345 = vmatprep.subr.mxu0 0.0
    %3346 = vmatpush2.msra.mxu0 0.0
    %3347 = vmatprep.subr.mxu0 0.0
    %3348 = vmatpush2.msra.mxu0 0.0
    %3349 = vmatprep.subr.mxu0 0.0
    %3350 = vmatpush2.msra.mxu0 0.0
    %3351 = vmatprep.subr.mxu0 0.0
    %3352 = vmatpush2.msra.mxu0 0.0
    %3353 = vmatprep.subr.mxu0 0.0
    %3354 = vmatpush2.msra.mxu0 0.0
    %3355 = vmatprep.subr.mxu0 0.0
    %3356 = vmatpush2.msra.mxu0 0.0
    %3357 = vmatprep.mubr.f32.mxu0 0.0
    %3358 = vmatmul.mubr.f32.gmra.mxu0 %v3285
    %v3359 = vpop.f32.mrf.mxu0
    %v3360 = vadd.f32 %v3283, %v3359
    %v3361 = vpop.f32.mrf.mxu0
    %3362 = vmatprep.mubr.f32.mxu0 0.0
    %3363 = vmatmul.mubr.f32.gmra.mxu0 %v3288
    %v3364 = vpop.f32.mrf.mxu0
    %v3365 = vadd.f32 %v3283, %v3364
    %v3366 = vpop.f32.mrf.mxu0
    %3367 = vmatprep.mubr.f32.mxu0 0.0
    %3368 = vmatmul.mubr.f32.gmra.mxu0 %v3291
    %v3369 = vpop.f32.mrf.mxu0
    %v3370 = vadd.f32 %v3283, %v3369
    %v3371 = vpop.f32.mrf.mxu0
    %3372 = vdwg.mxu0
    %v3373 = vmul.f32 %v3360, 0.5
    %v3374 = vmul.f32 %v3365, 0.5
    %v3375 = vmul.f32 %v3370, 0.5
    %v3376 = vmul.f32 %v3360, 0.044715
    %v3377 = vmul.f32 %v3365, 0.044715
    %v3378 = vmul.f32 %v3370, 0.044715
    %v3379 = vmul.f32 %v3376, %v3360
    %v3380 = vmul.f32 %v3377, %v3365
    %v3381 = vmul.f32 %v3378, %v3370
    %v3382 = vmul.f32 %v3379, %v3360
    %v3383 = vmul.f32 %v3380, %v3365
    %v3384 = vmul.f32 %v3381, %v3370
    %v3385 = vadd.f32 %v3360, %v3382
    %v3386 = vadd.f32 %v3365, %v3383
    %v3387 = vadd.f32 %v3370, %v3384
    %v3388 = vmul.f32 %v3385, 0.7978846
    %v3389 = vmul.f32 %v3386, 0.7978846
    %v3390 = vmul.f32 %v3387, 0.7978846
    %v3391 = vtanh.pop %v3388
    %v3392 = vtanh.pop %v3389
    %v3393 = vtanh.pop %v3390
    %v3394 = vadd.f32 %v3391, 1.0
    %v3395 = vadd.f32 %v3392, 1.0
    %v3396 = vadd.f32 %v3393, 1.0
    %v3397 = vmul.f32 %v3373, %v3394
    %v3398 = vmul.f32 %v3374, %v3395
    %v3399 = vmul.f32 %v3375, %v3396
    %v3400 = vld [vmem:[%s2 + $0x130] sm:$0xff]
    %v3401 = vld [vmem:[%s2 + $0x138] sm:$0xff]
    %v3402 = vld [vmem:[%s2 + $0x140] sm:$0xff]
    %v3403 = vld [vmem:[%s2 + $0x148] sm:$0xff]
    %v3404 = vld [vmem:[%s2 + $0x150] sm:$0xff]
    %v3405 = vld [vmem:[%s2 + $0x158] sm:$0xff]
    %v3406 = vld [vmem:[%s2 + $0x160] sm:$0xff]
    %v3407 = vld [vmem:[%s2 + $0x168] sm:$0xff]
    %v3409 = vsel %vm374, %v3397, 0
    %v3412 = vsel %vm374, %v3398, 0
    %v3415 = vsel %vm374, %v3399, 0
    %3417 = vmatprep.subr.mxu0 0.0
    %3418 = vmatpush1.msra.mxu0 0.0
    %3419 = vmatprep.subr.mxu0 0.0
    %3420 = vmatpush1.msra.mxu0 0.0
    %3421 = vmatprep.subr.mxu0 0.0
    %3422 = vmatpush1.msra.mxu0 0.0
    %3423 = vmatprep.subr.mxu0 0.0
    %3424 = vmatpush1.msra.mxu0 0.0
    %3425 = vmatprep.subr.mxu0 0.0
    %3426 = vmatpush1.msra.mxu0 0.0
    %3427 = vmatprep.subr.mxu0 0.0
    %3428 = vmatpush1.msra.mxu0 0.0
    %3429 = vmatprep.subr.mxu0 0.0
    %3430 = vmatpush1.msra.mxu0 0.0
    %3431 = vmatprep.subr.mxu0 0.0
    %3432 = vmatpush1.msra.mxu0 0.0
    %3433 = vmatprep.subr.mxu0 0.0
    %3434 = vmatpush1.msra.mxu0 %v3407
    %3435 = vmatprep.subr.mxu0 0.0
    %3436 = vmatpush1.msra.mxu0 %v3406
    %3437 = vmatprep.subr.mxu0 0.0
    %3438 = vmatpush1.msra.mxu0 %v3405
    %3439 = vmatprep.subr.mxu0 0.0
    %3440 = vmatpush1.msra.mxu0 %v3404
    %3441 = vmatprep.subr.mxu0 0.0
    %3442 = vmatpush1.msra.mxu0 %v3403
    %3443 = vmatprep.subr.mxu0 0.0
    %3444 = vmatpush1.msra.mxu0 %v3402
    %3445 = vmatprep.subr.mxu0 0.0
    %3446 = vmatpush1.msra.mxu0 %v3401
    %3447 = vmatprep.subr.mxu0 0.0
    %3448 = vmatpush1.msra.mxu0 %v3400
    %3449 = vmatprep.subr.mxu0 0.0
    %3450 = vmatpush2.msra.mxu0 0.0
    %3451 = vmatprep.subr.mxu0 0.0
    %3452 = vmatpush2.msra.mxu0 0.0
    %3453 = vmatprep.subr.mxu0 0.0
    %3454 = vmatpush2.msra.mxu0 0.0
    %3455 = vmatprep.subr.mxu0 0.0
    %3456 = vmatpush2.msra.mxu0 0.0
    %3457 = vmatprep.subr.mxu0 0.0
    %3458 = vmatpush2.msra.mxu0 0.0
    %3459 = vmatprep.subr.mxu0 0.0
    %3460 = vmatpush2.msra.mxu0 0.0
    %3461 = vmatprep.subr.mxu0 0.0
    %3462 = vmatpush2.msra.mxu0 0.0
    %3463 = vmatprep.subr.mxu0 0.0
    %3464 = vmatpush2.msra.mxu0 0.0
    %3465 = vmatprep.subr.mxu0 0.0
    %3466 = vmatpush2.msra.mxu0 0.0
    %3467 = vmatprep.subr.mxu0 0.0
    %3468 = vmatpush2.msra.mxu0 0.0
    %3469 = vmatprep.subr.mxu0 0.0
    %3470 = vmatpush2.msra.mxu0 0.0
    %3471 = vmatprep.subr.mxu0 0.0
    %3472 = vmatpush2.msra.mxu0 0.0
    %3473 = vmatprep.subr.mxu0 0.0
    %3474 = vmatpush2.msra.mxu0 0.0
    %3475 = vmatprep.subr.mxu0 0.0
    %3476 = vmatpush2.msra.mxu0 0.0
    %3477 = vmatprep.subr.mxu0 0.0
    %3478 = vmatpush2.msra.mxu0 0.0
    %3479 = vmatprep.subr.mxu0 0.0
    %3480 = vmatpush2.msra.mxu0 0.0
    %3481 = vmatprep.mubr.f32.mxu0 0.0
    %3482 = vmatmul.mubr.f32.gmra.mxu0 %v3409
    %v3483 = vpop.f32.mrf.mxu0
    %v3484 = vadd.f32 0.0, %v3483
    %v3485 = vpop.f32.mrf.mxu0
    %3486 = vmatprep.mubr.f32.mxu0 0.0
    %3487 = vmatmul.mubr.f32.gmra.mxu0 %v3412
    %v3488 = vpop.f32.mrf.mxu0
    %v3489 = vadd.f32 0.0, %v3488
    %v3490 = vpop.f32.mrf.mxu0
    %3491 = vmatprep.mubr.f32.mxu0 0.0
    %3492 = vmatmul.mubr.f32.gmra.mxu0 %v3415
    %v3493 = vpop.f32.mrf.mxu0
    %v3494 = vadd.f32 0.0, %v3493
    %v3495 = vpop.f32.mrf.mxu0
    %3496 = vdwg.mxu0
    %v3497 = vadd.f32 %v3217, %v3484
    %v3498 = vadd.f32 %v3218, %v3489
    %v3499 = vadd.f32 %v3219, %v3494
    %v3500 = vld [vmem:[%s2 + $0x21d] sm:$0x1]
    %v3501 = vlaneseq
    %v3502 = vshrl.u32 %v3501, 7
    %v3503 = vsub.s32 0, %v3502
    %v3504 = vrot.slane %v3500, %v3503
    %v3505 = vadd.f32 %v3497, %v3504
    %v3506 = vadd.f32 %v3498, %v3504
    %v3507 = vadd.f32 %v3499, %v3504
    %v3508 = vld [vmem:[%s2 + $0x21f] sm:$0x1]
    %v3509 = vld [vmem:[%s2 + $0x220] sm:$0x1]
    %v3510 = vsel %vm1701, %v3505, 0.0
    %3511 = vadd.xlane.f32.xlu0 %v3510
    %v3512 = vpop.xlane.xlu0 %3511
    %v3513 = vsel %vm1701, %v3506, 0.0
    %3514 = vadd.xlane.f32.xlu0 %v3513
    %v3515 = vpop.xlane.xlu0 %3514
    %v3516 = vsel %vm1757, %v3507, 0.0
    %3517 = vadd.xlane.f32.xlu0 %v3516
    %v3518 = vpop.xlane.xlu0 %3517
    %v3519 = vmul.f32 %v3512, %v1708
    %v3520 = vmul.f32 %v3515, %v1708
    %v3521 = vmul.f32 %v3518, %v1708
    %v3522 = vsub.f32 %v3505, %v3519
    %v3523 = vsub.f32 %v3506, %v3520
    %v3524 = vsub.f32 %v3507, %v3521
    %v3525 = vmul.f32 %v3522, %v3522
    %v3526 = vmul.f32 %v3523, %v3523
    %v3527 = vmul.f32 %v3524, %v3524
    %v3528 = vsel %vm1701, %v3525, 0.0
    %3529 = vadd.xlane.f32.xlu0 %v3528
    %v3530 = vpop.xlane.xlu0 %3529
    %v3531 = vsel %vm1701, %v3526, 0.0
    %3532 = vadd.xlane.f32.xlu0 %v3531
    %v3533 = vpop.xlane.xlu0 %3532
    %v3534 = vsel %vm1757, %v3527, 0.0
    %3535 = vadd.xlane.f32.xlu0 %v3534
    %v3536 = vpop.xlane.xlu0 %3535
    %v3537 = vmul.f32 %v3530, %v1708
    %v3538 = vmul.f32 %v3533, %v1708
    %v3539 = vmul.f32 %v3536, %v1708
    %v3540 = vadd.f32 %v3537, 1e-05
    %v3541 = vadd.f32 %v3538, 1e-05
    %v3542 = vadd.f32 %v3539, 1e-05
    %v3543 = vrsqrt.pop %v3540
    %v3544 = vrsqrt.pop %v3541
    %v3545 = vrsqrt.pop %v3542
    %v3546 = vmul.f32 %v3522, %v3543
    %v3547 = vmul.f32 %v3523, %v3544
    %v3548 = vmul.f32 %v3524, %v3545
    %v3549 = vlaneseq
    %v3550 = vshrl.u32 %v3549, 7
    %v3551 = vsub.s32 0, %v3550
    %v3552 = vrot.slane %v3508, %v3551
    %v3553 = vmul.f32 %v3546, %v3552
    %v3554 = vmul.f32 %v3547, %v3552
    %v3555 = vmul.f32 %v3548, %v3552
    %v3556 = vlaneseq
    %v3557 = vshrl.u32 %v3556, 7
    %v3558 = vsub.s32 0, %v3557
    %v3559 = vrot.slane %v3509, %v3558
    %v3560 = vadd.f32 %v3553, %v3559
    %v3561 = vadd.f32 %v3554, %v3559
    %v3562 = vadd.f32 %v3555, %v3559
    %v3563 = vld [vmem:[%s2 + $0x170] sm:$0xff]
    %v3564 = vld [vmem:[%s2 + $0x178] sm:$0xff]
    %v3565 = vld [vmem:[%s2 + $0x180] sm:$0xff]
    %v3566 = vld [vmem:[%s2 + $0x188] sm:$0xff]
    %v3568 = vsel %vm1701, %v3560, 0
    %v3571 = vsel %vm1701, %v3561, 0
    %v3574 = vsel %vm1701, %v3562, 0
    %3576 = vmatprep.subr.mxu0 0.0
    %3577 = vmatpush1.msra.mxu0 0.0
    %3578 = vmatprep.subr.mxu0 0.0
    %3579 = vmatpush1.msra.mxu0 0.0
    %3580 = vmatprep.subr.mxu0 0.0
    %3581 = vmatpush1.msra.mxu0 0.0
    %3582 = vmatprep.subr.mxu0 0.0
    %3583 = vmatpush1.msra.mxu0 0.0
    %3584 = vmatprep.subr.mxu0 0.0
    %3585 = vmatpush1.msra.mxu0 0.0
    %3586 = vmatprep.subr.mxu0 0.0
    %3587 = vmatpush1.msra.mxu0 0.0
    %3588 = vmatprep.subr.mxu0 0.0
    %3589 = vmatpush1.msra.mxu0 0.0
    %3590 = vmatprep.subr.mxu0 0.0
    %3591 = vmatpush1.msra.mxu0 0.0
    %3592 = vmatprep.subr.mxu0 0.0
    %3593 = vmatpush1.msra.mxu0 0.0
    %3594 = vmatprep.subr.mxu0 0.0
    %3595 = vmatpush1.msra.mxu0 0.0
    %3596 = vmatprep.subr.mxu0 0.0
    %3597 = vmatpush1.msra.mxu0 0.0
    %3598 = vmatprep.subr.mxu0 0.0
    %3599 = vmatpush1.msra.mxu0 0.0
    %3600 = vmatprep.subr.mxu0 0.0
    %3601 = vmatpush1.msra.mxu0 %v3566
    %3602 = vmatprep.subr.mxu0 0.0
    %3603 = vmatpush1.msra.mxu0 %v3565
    %3604 = vmatprep.subr.mxu0 0.0
    %3605 = vmatpush1.msra.mxu0 %v3564
    %3606 = vmatprep.subr.mxu0 0.0
    %3607 = vmatpush1.msra.mxu0 %v3563
    %3608 = vmatprep.subr.mxu0 0.0
    %3609 = vmatpush2.msra.mxu0 0.0
    %3610 = vmatprep.subr.mxu0 0.0
    %3611 = vmatpush2.msra.mxu0 0.0
    %3612 = vmatprep.subr.mxu0 0.0
    %3613 = vmatpush2.msra.mxu0 0.0
    %3614 = vmatprep.subr.mxu0 0.0
    %3615 = vmatpush2.msra.mxu0 0.0
    %3616 = vmatprep.subr.mxu0 0.0
    %3617 = vmatpush2.msra.mxu0 0.0
    %3618 = vmatprep.subr.mxu0 0.0
    %3619 = vmatpush2.msra.mxu0 0.0
    %3620 = vmatprep.subr.mxu0 0.0
    %3621 = vmatpush2.msra.mxu0 0.0
    %3622 = vmatprep.subr.mxu0 0.0
    %3623 = vmatpush2.msra.mxu0 0.0
    %3624 = vmatprep.subr.mxu0 0.0
    %3625 = vmatpush2.msra.mxu0 0.0
    %3626 = vmatprep.subr.mxu0 0.0
    %3627 = vmatpush2.msra.mxu0 0.0
    %3628 = vmatprep.subr.mxu0 0.0
    %3629 = vmatpush2.msra.mxu0 0.0
    %3630 = vmatprep.subr.mxu0 0.0
    %3631 = vmatpush2.msra.mxu0 0.0
    %3632 = vmatprep.subr.mxu0 0.0
    %3633 = vmatpush2.msra.mxu0 0.0
    %3634 = vmatprep.subr.mxu0 0.0
    %3635 = vmatpush2.msra.mxu0 0.0
    %3636 = vmatprep.subr.mxu0 0.0
    %3637 = vmatpush2.msra.mxu0 0.0
    %3638 = vmatprep.subr.mxu0 0.0
    %3639 = vmatpush2.msra.mxu0 0.0
    %3640 = vmatprep.mubr.f32.mxu0 0.0
    %3641 = vmatmul.mubr.f32.gmra.mxu0 %v3568
    %v3642 = vpop.f32.mrf.mxu0
    %v3643 = vadd.f32 0.0, %v3642
    %v3644 = vpop.f32.mrf.mxu0
    %3645 = vmatprep.mubr.f32.mxu0 0.0
    %3646 = vmatmul.mubr.f32.gmra.mxu0 %v3571
    %v3647 = vpop.f32.mrf.mxu0
    %v3648 = vadd.f32 0.0, %v3647
    %v3649 = vpop.f32.mrf.mxu0
    %3650 = vmatprep.mubr.f32.mxu0 0.0
    %3651 = vmatmul.mubr.f32.gmra.mxu0 %v3574
    %v3652 = vpop.f32.mrf.mxu0
    %v3653 = vadd.f32 0.0, %v3652
    %v3654 = vpop.f32.mrf.mxu0
    %3655 = vdwg.mxu0
    %v3656 = vld [vmem:[%s2 + $0x190] sm:$0xff]
    %v3657 = vld [vmem:[%s2 + $0x198] sm:$0xff]
    %v3658 = vld [vmem:[%s2 + $0x1a0] sm:$0xff]
    %v3659 = vld [vmem:[%s2 + $0x1a8] sm:$0xff]
    %3663 = vrot.lane.b32.xlu0 %v3643, 96
    %v3664 = vpop.permute.xlu0 %3663
    %3665 = vrot.lane.b32.xlu0 %v3648, 96
    %v3666 = vpop.permute.xlu0 %3665
    %3667 = vrot.lane.b32.xlu0 %v3653, 96
    %v3668 = vpop.permute.xlu0 %3667
    %v3669 = vsel %vm1911, %v3643, 0
    %v3671 = vsel %vm1911, %v3648, 0
    %v3673 = vsel %vm1911, %v3653, 0
    %v3675 = vsel %vm1911, %v3664, 0
    %v3677 = vsel %vm1911, %v3666, 0
    %v3679 = vsel %vm1911, %v3668, 0
    %3681 = vmatprep.subr.mxu0 0.0
    %3682 = vmatpush1.xpose.msra.mxu0 0.0
    %3683 = vmatprep.subr.mxu0 0.0
    %3684 = vmatpush1.xpose.msra.mxu0 0.0
    %3685 = vmatprep.subr.mxu0 0.0
    %3686 = vmatpush1.xpose.msra.mxu0 0.0
    %3687 = vmatprep.subr.mxu0 0.0
    %3688 = vmatpush1.xpose.msra.mxu0 0.0
    %3689 = vmatprep.subr.mxu0 0.0
    %3690 = vmatpush1.xpose.msra.mxu0 0.0
    %3691 = vmatprep.subr.mxu0 0.0
    %3692 = vmatpush1.xpose.msra.mxu0 0.0
    %3693 = vmatprep.subr.mxu0 0.0
    %3694 = vmatpush1.xpose.msra.mxu0 0.0
    %3695 = vmatprep.subr.mxu0 0.0
    %3696 = vmatpush1.xpose.msra.mxu0 0.0
    %3697 = vmatprep.subr.mxu0 0.0
    %3698 = vmatpush1.xpose.msra.mxu0 0.0
    %3699 = vmatprep.subr.mxu0 0.0
    %3700 = vmatpush1.xpose.msra.mxu0 0.0
    %3701 = vmatprep.subr.mxu0 0.0
    %3702 = vmatpush1.xpose.msra.mxu0 0.0
    %3703 = vmatprep.subr.mxu0 0.0
    %3704 = vmatpush1.xpose.msra.mxu0 0.0
    %3705 = vmatprep.subr.mxu0 0.0
    %3706 = vmatpush1.xpose.msra.mxu0 0.0
    %3707 = vmatprep.subr.mxu0 0.0
    %3708 = vmatpush1.xpose.msra.mxu0 %v3679
    %3709 = vmatprep.subr.mxu0 0.0
    %3710 = vmatpush1.xpose.msra.mxu0 %v3677
    %3711 = vmatprep.subr.mxu0 0.0
    %3712 = vmatpush1.xpose.msra.mxu0 %v3675
    %3713 = vmatprep.subr.mxu0 0.0
    %3714 = vmatpush2.xpose.msra.mxu0 0.0
    %3715 = vmatprep.subr.mxu0 0.0
    %3716 = vmatpush2.xpose.msra.mxu0 0.0
    %3717 = vmatprep.subr.mxu0 0.0
    %3718 = vmatpush2.xpose.msra.mxu0 0.0
    %3719 = vmatprep.subr.mxu0 0.0
    %3720 = vmatpush2.xpose.msra.mxu0 0.0
    %3721 = vmatprep.subr.mxu0 0.0
    %3722 = vmatpush2.xpose.msra.mxu0 0.0
    %3723 = vmatprep.subr.mxu0 0.0
    %3724 = vmatpush2.xpose.msra.mxu0 0.0
    %3725 = vmatprep.subr.mxu0 0.0
    %3726 = vmatpush2.xpose.msra.mxu0 0.0
    %3727 = vmatprep.subr.mxu0 0.0
    %3728 = vmatpush2.xpose.msra.mxu0 0.0
    %3729 = vmatprep.subr.mxu0 0.0
    %3730 = vmatpush2.xpose.msra.mxu0 0.0
    %3731 = vmatprep.subr.mxu0 0.0
    %3732 = vmatpush2.xpose.msra.mxu0 0.0
    %3733 = vmatprep.subr.mxu0 0.0
    %3734 = vmatpush2.xpose.msra.mxu0 0.0
    %3735 = vmatprep.subr.mxu0 0.0
    %3736 = vmatpush2.xpose.msra.mxu0 0.0
    %3737 = vmatprep.subr.mxu0 0.0
    %3738 = vmatpush2.xpose.msra.mxu0 0.0
    %3739 = vmatprep.subr.mxu0 0.0
    %3740 = vmatpush2.xpose.msra.mxu0 0.0
    %3741 = vmatprep.subr.mxu0 0.0
    %3742 = vmatpush2.xpose.msra.mxu0 0.0
    %3743 = vmatprep.subr.mxu0 0.0
    %3744 = vmatpush2.xpose.msra.mxu0 0.0
    %3745 = vmatprep.mubr.f32.mxu0 0.0
    %3746 = vmatmul.mubr.f32.gmra.mxu0 %v3669
    %v3747 = vpop.f32.mrf.mxu0
    %v3748 = vadd.f32 %v1746, %v3747
    %v3749 = vpop.f32.mrf.mxu0
    %3750 = vmatprep.mubr.f32.mxu0 0.0
    %3751 = vmatmul.mubr.f32.gmra.mxu0 %v3671
    %v3752 = vpop.f32.mrf.mxu0
    %v3753 = vadd.f32 %v1747, %v3752
    %v3754 = vpop.f32.mrf.mxu0
    %3755 = vmatprep.mubr.f32.mxu0 0.0
    %3756 = vmatmul.mubr.f32.gmra.mxu0 %v3673
    %v3757 = vpop.f32.mrf.mxu0
    %v3758 = vadd.f32 %v1748, %v3757
    %v3759 = vpop.f32.mrf.mxu0
    %3760 = vdwg.mxu0
    %v3761 = vsel %vm2004, %v3748, -inf
    %3762 = vmax.xlane.f32.xlu0 %v3761
    %v3763 = vpop.xlane.xlu0 %3762
    %v3764 = vsel %vm2004, %v3753, -inf
    %3765 = vmax.xlane.f32.xlu0 %v3764
    %v3766 = vpop.xlane.xlu0 %3765
    %v3767 = vsel %vm2011, %v3758, -inf
    %3768 = vmax.xlane.f32.xlu0 %v3767
    %v3769 = vpop.xlane.xlu0 %3768
    %v3770 = vsub.f32 %v3748, %v3763
    %v3771 = vsub.f32 %v3753, %v3766
    %v3772 = vsub.f32 %v3758, %v3769
    %v3773 = vmul.f32 %v3770, 1.442695
    %v3774 = vpow.pop %v3773
    %v3775 = vmul.f32 %v3771, 1.442695
    %v3776 = vpow.pop %v3775
    %v3777 = vmul.f32 %v3772, 1.442695
    %v3778 = vpow.pop %v3777
    %v3779 = vsel %vm2004, %v3774, 0.0
    %3780 = vadd.xlane.f32.xlu0 %v3779
    %v3781 = vpop.xlane.xlu0 %3780
    %v3782 = vsel %vm2004, %v3776, 0.0
    %3783 = vadd.xlane.f32.xlu0 %v3782
    %v3784 = vpop.xlane.xlu0 %3783
    %v3785 = vsel %vm2011, %v3778, 0.0
    %3786 = vadd.xlane.f32.xlu0 %v3785
    %v3787 = vpop.xlane.xlu0 %3786
    %v3788 = vrcp.pop %v3781
    %v3789 = vmul.f32 %v3774, %v3788
    %v3790 = vrcp.pop %v3784
    %v3791 = vmul.f32 %v3776, %v3790
    %v3792 = vrcp.pop %v3787
    %v3793 = vmul.f32 %v3778, %v3792
    %3794 = vrot.lane.b32.xlu0 %v3643, 64
    %v3795 = vpop.permute.xlu0 %3794
    %3796 = vrot.lane.b32.xlu0 %v3648, 64
    %v3797 = vpop.permute.xlu0 %3796
    %3798 = vrot.lane.b32.xlu0 %v3653, 64
    %v3799 = vpop.permute.xlu0 %3798
    %v3803 = vsel %vm2004, %v3789, 0
    %v3806 = vsel %vm2004, %v3791, 0
    %v3809 = vsel %vm2004, %v3793, 0
    %v3811 = vsel %vm2056, %v3799, 0
    %3813 = vmatprep.subr.mxu0 0.0
    %3814 = vmatpush1.msra.mxu0 0.0
    %3815 = vmatprep.subr.mxu0 0.0
    %3816 = vmatpush1.msra.mxu0 0.0
    %3817 = vmatprep.subr.mxu0 0.0
    %3818 = vmatpush1.msra.mxu0 0.0
    %3819 = vmatprep.subr.mxu0 0.0
    %3820 = vmatpush1.msra.mxu0 0.0
    %3821 = vmatprep.subr.mxu0 0.0
    %3822 = vmatpush1.msra.mxu0 0.0
    %3823 = vmatprep.subr.mxu0 0.0
    %3824 = vmatpush1.msra.mxu0 0.0
    %3825 = vmatprep.subr.mxu0 0.0
    %3826 = vmatpush1.msra.mxu0 0.0
    %3827 = vmatprep.subr.mxu0 0.0
    %3828 = vmatpush1.msra.mxu0 0.0
    %3829 = vmatprep.subr.mxu0 0.0
    %3830 = vmatpush1.msra.mxu0 0.0
    %3831 = vmatprep.subr.mxu0 0.0
    %3832 = vmatpush1.msra.mxu0 0.0
    %3833 = vmatprep.subr.mxu0 0.0
    %3834 = vmatpush1.msra.mxu0 0.0
    %3835 = vmatprep.subr.mxu0 0.0
    %3836 = vmatpush1.msra.mxu0 0.0
    %3837 = vmatprep.subr.mxu0 0.0
    %3838 = vmatpush1.msra.mxu0 0.0
    %3839 = vmatprep.subr.mxu0 0.0
    %3840 = vmatpush1.msra.mxu0 %v3811
    %3841 = vmatprep.subr.mxu0 0.0
    %3842 = vmatpush1.msra.mxu0 %v3797
    %3843 = vmatprep.subr.mxu0 0.0
    %3844 = vmatpush1.msra.mxu0 %v3795
    %3845 = vmatprep.subr.mxu0 0.0
    %3846 = vmatpush2.msra.mxu0 0.0
    %3847 = vmatprep.subr.mxu0 0.0
    %3848 = vmatpush2.msra.mxu0 0.0
    %3849 = vmatprep.subr.mxu0 0.0
    %3850 = vmatpush2.msra.mxu0 0.0
    %3851 = vmatprep.subr.mxu0 0.0
    %3852 = vmatpush2.msra.mxu0 0.0
    %3853 = vmatprep.subr.mxu0 0.0
    %3854 = vmatpush2.msra.mxu0 0.0
    %3855 = vmatprep.subr.mxu0 0.0
    %3856 = vmatpush2.msra.mxu0 0.0
    %3857 = vmatprep.subr.mxu0 0.0
    %3858 = vmatpush2.msra.mxu0 0.0
    %3859 = vmatprep.subr.mxu0 0.0
    %3860 = vmatpush2.msra.mxu0 0.0
    %3861 = vmatprep.subr.mxu0 0.0
    %3862 = vmatpush2.msra.mxu0 0.0
    %3863 = vmatprep.subr.mxu0 0.0
    %3864 = vmatpush2.msra.mxu0 0.0
    %3865 = vmatprep.subr.mxu0 0.0
    %3866 = vmatpush2.msra.mxu0 0.0
    %3867 = vmatprep.subr.mxu0 0.0
    %3868 = vmatpush2.msra.mxu0 0.0
    %3869 = vmatprep.subr.mxu0 0.0
    %3870 = vmatpush2.msra.mxu0 0.0
    %3871 = vmatprep.subr.mxu0 0.0
    %3872 = vmatpush2.msra.mxu0 0.0
    %3873 = vmatprep.subr.mxu0 0.0
    %3874 = vmatpush2.msra.mxu0 0.0
    %3875 = vmatprep.subr.mxu0 0.0
    %3876 = vmatpush2.msra.mxu0 0.0
    %3877 = vmatprep.mubr.f32.mxu0 0.0
    %3878 = vmatmul.mubr.f32.gmra.mxu0 %v3803
    %v3879 = vpop.f32.mrf.mxu0
    %v3880 = vadd.f32 0.0, %v3879
    %v3881 = vpop.f32.mrf.mxu0
    %3882 = vmatprep.mubr.f32.mxu0 0.0
    %3883 = vmatmul.mubr.f32.gmra.mxu0 %v3806
    %v3884 = vpop.f32.mrf.mxu0
    %v3885 = vadd.f32 0.0, %v3884
    %v3886 = vpop.f32.mrf.mxu0
    %3887 = vmatprep.mubr.f32.mxu0 0.0
    %3888 = vmatmul.mubr.f32.gmra.mxu0 %v3809
    %v3889 = vpop.f32.mrf.mxu0
    %v3890 = vadd.f32 0.0, %v3889
    %v3891 = vpop.f32.mrf.mxu0
    %3892 = vdwg.mxu0
    %3893 = vrot.lane.b32.xlu0 %v3643, 120
    %v3894 = vpop.permute.xlu0 %3893
    %3895 = vrot.lane.b32.xlu0 %v3648, 120
    %v3896 = vpop.permute.xlu0 %3895
    %3897 = vrot.lane.b32.xlu0 %v3653, 120
    %v3898 = vpop.permute.xlu0 %3897
    %3899 = vrot.lane.b32.xlu0 %v3643, 88
    %v3900 = vpop.permute.xlu0 %3899
    %3901 = vrot.lane.b32.xlu0 %v3648, 88
    %v3902 = vpop.permute.xlu0 %3901
    %3903 = vrot.lane.b32.xlu0 %v3653, 88
    %v3904 = vpop.permute.xlu0 %3903
    %v3905 = vsel %vm1911, %v3894, 0
    %v3907 = vsel %vm1911, %v3896, 0
    %v3909 = vsel %vm1911, %v3898, 0
    %v3911 = vsel %vm1911, %v3900, 0
    %v3913 = vsel %vm1911, %v3902, 0
    %v3915 = vsel %vm1911, %v3904, 0
    %3917 = vmatprep.subr.mxu0 0.0
    %3918 = vmatpush1.xpose.msra.mxu0 0.0
    %3919 = vmatprep.subr.mxu0 0.0
    %3920 = vmatpush1.xpose.msra.mxu0 0.0
    %3921 = vmatprep.subr.mxu0 0.0
    %3922 = vmatpush1.xpose.msra.mxu0 0.0
    %3923 = vmatprep.subr.mxu0 0.0
    %3924 = vmatpush1.xpose.msra.mxu0 0.0
    %3925 = vmatprep.subr.mxu0 0.0
    %3926 = vmatpush1.xpose.msra.mxu0 0.0
    %3927 = vmatprep.subr.mxu0 0.0
    %3928 = vmatpush1.xpose.msra.mxu0 0.0
    %3929 = vmatprep.subr.mxu0 0.0
    %3930 = vmatpush1.xpose.msra.mxu0 0.0
    %3931 = vmatprep.subr.mxu0 0.0
    %3932 = vmatpush1.xpose.msra.mxu0 0.0
    %3933 = vmatprep.subr.mxu0 0.0
    %3934 = vmatpush1.xpose.msra.mxu0 0.0
    %3935 = vmatprep.subr.mxu0 0.0
    %3936 = vmatpush1.xpose.msra.mxu0 0.0
    %3937 = vmatprep.subr.mxu0 0.0
    %3938 = vmatpush1.xpose.msra.mxu0 0.0
    %3939 = vmatprep.subr.mxu0 0.0
    %3940 = vmatpush1.xpose.msra.mxu0 0.0
    %3941 = vmatprep.subr.mxu0 0.0
    %3942 = vmatpush1.xpose.msra.mxu0 0.0
    %3943 = vmatprep.subr.mxu0 0.0
    %3944 = vmatpush1.xpose.msra.mxu0 %v3915
    %3945 = vmatprep.subr.mxu0 0.0
    %3946 = vmatpush1.xpose.msra.mxu0 %v3913
    %3947 = vmatprep.subr.mxu0 0.0
    %3948 = vmatpush1.xpose.msra.mxu0 %v3911
    %3949 = vmatprep.subr.mxu0 0.0
    %3950 = vmatpush2.xpose.msra.mxu0 0.0
    %3951 = vmatprep.subr.mxu0 0.0
    %3952 = vmatpush2.xpose.msra.mxu0 0.0
    %3953 = vmatprep.subr.mxu0 0.0
    %3954 = vmatpush2.xpose.msra.mxu0 0.0
    %3955 = vmatprep.subr.mxu0 0.0
    %3956 = vmatpush2.xpose.msra.mxu0 0.0
    %3957 = vmatprep.subr.mxu0 0.0
    %3958 = vmatpush2.xpose.msra.mxu0 0.0
    %3959 = vmatprep.subr.mxu0 0.0
    %3960 = vmatpush2.xpose.msra.mxu0 0.0
    %3961 = vmatprep.subr.mxu0 0.0
    %3962 = vmatpush2.xpose.msra.mxu0 0.0
    %3963 = vmatprep.subr.mxu0 0.0
    %3964 = vmatpush2.xpose.msra.mxu0 0.0
    %3965 = vmatprep.subr.mxu0 0.0
    %3966 = vmatpush2.xpose.msra.mxu0 0.0
    %3967 = vmatprep.subr.mxu0 0.0
    %3968 = vmatpush2.xpose.msra.mxu0 0.0
    %3969 = vmatprep.subr.mxu0 0.0
    %3970 = vmatpush2.xpose.msra.mxu0 0.0
    %3971 = vmatprep.subr.mxu0 0.0
    %3972 = vmatpush2.xpose.msra.mxu0 0.0
    %3973 = vmatprep.subr.mxu0 0.0
    %3974 = vmatpush2.xpose.msra.mxu0 0.0
    %3975 = vmatprep.subr.mxu0 0.0
    %3976 = vmatpush2.xpose.msra.mxu0 0.0
    %3977 = vmatprep.subr.mxu0 0.0
    %3978 = vmatpush2.xpose.msra.mxu0 0.0
    %3979 = vmatprep.subr.mxu0 0.0
    %3980 = vmatpush2.xpose.msra.mxu0 0.0
    %3981 = vmatprep.mubr.f32.mxu0 0.0
    %3982 = vmatmul.mubr.f32.gmra.mxu0 %v3905
    %v3983 = vpop.f32.mrf.mxu0
    %v3984 = vadd.f32 %v1746, %v3983
    %v3985 = vpop.f32.mrf.mxu0
    %3986 = vmatprep.mubr.f32.mxu0 0.0
    %3987 = vmatmul.mubr.f32.gmra.mxu0 %v3907
    %v3988 = vpop.f32.mrf.mxu0
    %v3989 = vadd.f32 %v1747, %v3988
    %v3990 = vpop.f32.mrf.mxu0
    %3991 = vmatprep.mubr.f32.mxu0 0.0
    %3992 = vmatmul.mubr.f32.gmra.mxu0 %v3909
    %v3993 = vpop.f32.mrf.mxu0
    %v3994 = vadd.f32 %v1748, %v3993
    %v3995 = vpop.f32.mrf.mxu0
    %3996 = vdwg.mxu0
    %v3997 = vsel %vm2004, %v3984, -inf
    %3998 = vmax.xlane.f32.xlu0 %v3997
    %v3999 = vpop.xlane.xlu0 %3998
    %v4000 = vsel %vm2004, %v3989, -inf
    %4001 = vmax.xlane.f32.xlu0 %v4000
    %v4002 = vpop.xlane.xlu0 %4001
    %v4003 = vsel %vm2011, %v3994, -inf
    %4004 = vmax.xlane.f32.xlu0 %v4003
    %v4005 = vpop.xlane.xlu0 %4004
    %v4006 = vsub.f32 %v3984, %v3999
    %v4007 = vsub.f32 %v3989, %v4002
    %v4008 = vsub.f32 %v3994, %v4005
    %v4009 = vmul.f32 %v4006, 1.442695
    %v4010 = vpow.pop %v4009
    %v4011 = vmul.f32 %v4007, 1.442695
    %v4012 = vpow.pop %v4011
    %v4013 = vmul.f32 %v4008, 1.442695
    %v4014 = vpow.pop %v4013
    %v4015 = vsel %vm2004, %v4010, 0.0
    %4016 = vadd.xlane.f32.xlu0 %v4015
    %v4017 = vpop.xlane.xlu0 %4016
    %v4018 = vsel %vm2004, %v4012, 0.0
    %4019 = vadd.xlane.f32.xlu0 %v4018
    %v4020 = vpop.xlane.xlu0 %4019
    %v4021 = vsel %vm2011, %v4014, 0.0
    %4022 = vadd.xlane.f32.xlu0 %v4021
    %v4023 = vpop.xlane.xlu0 %4022
    %v4024 = vrcp.pop %v4017
    %v4025 = vmul.f32 %v4010, %v4024
    %v4026 = vrcp.pop %v4020
    %v4027 = vmul.f32 %v4012, %v4026
    %v4028 = vrcp.pop %v4023
    %v4029 = vmul.f32 %v4014, %v4028
    %4030 = vrot.lane.b32.xlu0 %v3643, 56
    %v4031 = vpop.permute.xlu0 %4030
    %4032 = vrot.lane.b32.xlu0 %v3648, 56
    %v4033 = vpop.permute.xlu0 %4032
    %4034 = vrot.lane.b32.xlu0 %v3653, 56
    %v4035 = vpop.permute.xlu0 %4034
    %v4039 = vsel %vm2004, %v4025, 0
    %v4042 = vsel %vm2004, %v4027, 0
    %v4045 = vsel %vm2004, %v4029, 0
    %v4047 = vsel %vm2056, %v4035, 0
    %4049 = vmatprep.subr.mxu0 0.0
    %4050 = vmatpush1.msra.mxu0 0.0
    %4051 = vmatprep.subr.mxu0 0.0
    %4052 = vmatpush1.msra.mxu0 0.0
    %4053 = vmatprep.subr.mxu0 0.0
    %4054 = vmatpush1.msra.mxu0 0.0
    %4055 = vmatprep.subr.mxu0 0.0
    %4056 = vmatpush1.msra.mxu0 0.0
    %4057 = vmatprep.subr.mxu0 0.0
    %4058 = vmatpush1.msra.mxu0 0.0
    %4059 = vmatprep.subr.mxu0 0.0
    %4060 = vmatpush1.msra.mxu0 0.0
    %4061 = vmatprep.subr.mxu0 0.0
    %4062 = vmatpush1.msra.mxu0 0.0
    %4063 = vmatprep.subr.mxu0 0.0
    %4064 = vmatpush1.msra.mxu0 0.0
    %4065 = vmatprep.subr.mxu0 0.0
    %4066 = vmatpush1.msra.mxu0 0.0
    %4067 = vmatprep.subr.mxu0 0.0
    %4068 = vmatpush1.msra.mxu0 0.0
    %4069 = vmatprep.subr.mxu0 0.0
    %4070 = vmatpush1.msra.mxu0 0.0
    %4071 = vmatprep.subr.mxu0 0.0
    %4072 = vmatpush1.msra.mxu0 0.0
    %4073 = vmatprep.subr.mxu0 0.0
    %4074 = vmatpush1.msra.mxu0 0.0
    %4075 = vmatprep.subr.mxu0 0.0
    %4076 = vmatpush1.msra.mxu0 %v4047
    %4077 = vmatprep.subr.mxu0 0.0
    %4078 = vmatpush1.msra.mxu0 %v4033
    %4079 = vmatprep.subr.mxu0 0.0
    %4080 = vmatpush1.msra.mxu0 %v4031
    %4081 = vmatprep.subr.mxu0 0.0
    %4082 = vmatpush2.msra.mxu0 0.0
    %4083 = vmatprep.subr.mxu0 0.0
    %4084 = vmatpush2.msra.mxu0 0.0
    %4085 = vmatprep.subr.mxu0 0.0
    %4086 = vmatpush2.msra.mxu0 0.0
    %4087 = vmatprep.subr.mxu0 0.0
    %4088 = vmatpush2.msra.mxu0 0.0
    %4089 = vmatprep.subr.mxu0 0.0
    %4090 = vmatpush2.msra.mxu0 0.0
    %4091 = vmatprep.subr.mxu0 0.0
    %4092 = vmatpush2.msra.mxu0 0.0
    %4093 = vmatprep.subr.mxu0 0.0
    %4094 = vmatpush2.msra.mxu0 0.0
    %4095 = vmatprep.subr.mxu0 0.0
    %4096 = vmatpush2.msra.mxu0 0.0
    %4097 = vmatprep.subr.mxu0 0.0
    %4098 = vmatpush2.msra.mxu0 0.0
    %4099 = vmatprep.subr.mxu0 0.0
    %4100 = vmatpush2.msra.mxu0 0.0
    %4101 = vmatprep.subr.mxu0 0.0
    %4102 = vmatpush2.msra.mxu0 0.0
    %4103 = vmatprep.subr.mxu0 0.0
    %4104 = vmatpush2.msra.mxu0 0.0
    %4105 = vmatprep.subr.mxu0 0.0
    %4106 = vmatpush2.msra.mxu0 0.0
    %4107 = vmatprep.subr.mxu0 0.0
    %4108 = vmatpush2.msra.mxu0 0.0
    %4109 = vmatprep.subr.mxu0 0.0
    %4110 = vmatpush2.msra.mxu0 0.0
    %4111 = vmatprep.subr.mxu0 0.0
    %4112 = vmatpush2.msra.mxu0 0.0
    %4113 = vmatprep.mubr.f32.mxu0 0.0
    %4114 = vmatmul.mubr.f32.gmra.mxu0 %v4039
    %v4115 = vpop.f32.mrf.mxu0
    %v4116 = vadd.f32 0.0, %v4115
    %v4117 = vpop.f32.mrf.mxu0
    %4118 = vmatprep.mubr.f32.mxu0 0.0
    %4119 = vmatmul.mubr.f32.gmra.mxu0 %v4042
    %v4120 = vpop.f32.mrf.mxu0
    %v4121 = vadd.f32 0.0, %v4120
    %v4122 = vpop.f32.mrf.mxu0
    %4123 = vmatprep.mubr.f32.mxu0 0.0
    %4124 = vmatmul.mubr.f32.gmra.mxu0 %v4045
    %v4125 = vpop.f32.mrf.mxu0
    %v4126 = vadd.f32 0.0, %v4125
    %v4127 = vpop.f32.mrf.mxu0
    %4128 = vdwg.mxu0
    %v4130 = vsel %vm1911, %v4116, 0
    %v4133 = vsel %vm1911, %v4121, 0
    %v4136 = vsel %vm1911, %v4126, 0
    %4138 = vmatprep.subr.mxu0 0.0
    %4139 = vmatpush1.msra.mxu0 0.0
    %4140 = vmatprep.subr.mxu0 0.0
    %4141 = vmatpush1.msra.mxu0 0.0
    %4142 = vmatprep.subr.mxu0 0.0
    %4143 = vmatpush1.msra.mxu0 0.0
    %4144 = vmatprep.subr.mxu0 0.0
    %4145 = vmatpush1.msra.mxu0 0.0
    %4146 = vmatprep.subr.mxu0 0.0
    %4147 = vmatpush1.msra.mxu0 0.0
    %4148 = vmatprep.subr.mxu0 0.0
    %4149 = vmatpush1.msra.mxu0 0.0
    %4150 = vmatprep.subr.mxu0 0.0
    %4151 = vmatpush1.msra.mxu0 0.0
    %4152 = vmatprep.subr.mxu0 0.0
    %4153 = vmatpush1.msra.mxu0 0.0
    %4154 = vmatprep.subr.mxu0 0.0
    %4155 = vmatpush1.msra.mxu0 0.0
    %4156 = vmatprep.subr.mxu0 0.0
    %4157 = vmatpush1.msra.mxu0 0.0
    %4158 = vmatprep.subr.mxu0 0.0
    %4159 = vmatpush1.msra.mxu0 0.0
    %4160 = vmatprep.subr.mxu0 0.0
    %4161 = vmatpush1.msra.mxu0 0.0
    %4162 = vmatprep.subr.mxu0 0.0
    %4163 = vmatpush1.msra.mxu0 0.0
    %4164 = vmatprep.subr.mxu0 0.0
    %4165 = vmatpush1.msra.mxu0 0.0
    %4166 = vmatprep.subr.mxu0 0.0
    %4167 = vmatpush1.msra.mxu0 0.0
    %4168 = vmatprep.subr.mxu0 0.0
    %4169 = vmatpush1.msra.mxu0 %v3657
    %4170 = vmatprep.subr.mxu0 0.0
    %4171 = vmatpush2.msra.mxu0 0.0
    %4172 = vmatprep.subr.mxu0 0.0
    %4173 = vmatpush2.msra.mxu0 0.0
    %4174 = vmatprep.subr.mxu0 0.0
    %4175 = vmatpush2.msra.mxu0 0.0
    %4176 = vmatprep.subr.mxu0 0.0
    %4177 = vmatpush2.msra.mxu0 0.0
    %4178 = vmatprep.subr.mxu0 0.0
    %4179 = vmatpush2.msra.mxu0 0.0
    %4180 = vmatprep.subr.mxu0 0.0
    %4181 = vmatpush2.msra.mxu0 0.0
    %4182 = vmatprep.subr.mxu0 0.0
    %4183 = vmatpush2.msra.mxu0 0.0
    %4184 = vmatprep.subr.mxu0 0.0
    %4185 = vmatpush2.msra.mxu0 0.0
    %4186 = vmatprep.subr.mxu0 0.0
    %4187 = vmatpush2.msra.mxu0 0.0
    %4188 = vmatprep.subr.mxu0 0.0
    %4189 = vmatpush2.msra.mxu0 0.0
    %4190 = vmatprep.subr.mxu0 0.0
    %4191 = vmatpush2.msra.mxu0 0.0
    %4192 = vmatprep.subr.mxu0 0.0
    %4193 = vmatpush2.msra.mxu0 0.0
    %4194 = vmatprep.subr.mxu0 0.0
    %4195 = vmatpush2.msra.mxu0 0.0
    %4196 = vmatprep.subr.mxu0 0.0
    %4197 = vmatpush2.msra.mxu0 0.0
    %4198 = vmatprep.subr.mxu0 0.0
    %4199 = vmatpush2.msra.mxu0 0.0
    %4200 = vmatprep.subr.mxu0 0.0
    %4201 = vmatpush2.msra.mxu0 0.0
    %4202 = vmatprep.mubr.f32.mxu0 0.0
    %4203 = vmatmul.mubr.f32.gmra.mxu0 %v4130
    %v4204 = vpop.f32.mrf.mxu0
    %v4205 = vadd.f32 0.0, %v4204
    %v4206 = vpop.f32.mrf.mxu0
    %4207 = vmatprep.mubr.f32.mxu0 0.0
    %4208 = vmatmul.mubr.f32.gmra.mxu0 %v4133
    %v4209 = vpop.f32.mrf.mxu0
    %v4210 = vadd.f32 0.0, %v4209
    %v4211 = vpop.f32.mrf.mxu0
    %4212 = vmatprep.mubr.f32.mxu0 0.0
    %4213 = vmatmul.mubr.f32.gmra.mxu0 %v4136
    %v4214 = vpop.f32.mrf.mxu0
    %v4215 = vadd.f32 0.0, %v4214
    %v4216 = vpop.f32.mrf.mxu0
    %4217 = vdwg.mxu0
    %v4219 = vsel %vm1911, %v3880, 0
    %v4222 = vsel %vm1911, %v3885, 0
    %v4225 = vsel %vm1911, %v3890, 0
    %4227 = vmatprep.subr.mxu0 0.0
    %4228 = vmatpush1.msra.mxu0 0.0
    %4229 = vmatprep.subr.mxu0 0.0
    %4230 = vmatpush1.msra.mxu0 0.0
    %4231 = vmatprep.subr.mxu0 0.0
    %4232 = vmatpush1.msra.mxu0 0.0
    %4233 = vmatprep.subr.mxu0 0.0
    %4234 = vmatpush1.msra.mxu0 0.0
    %4235 = vmatprep.subr.mxu0 0.0
    %4236 = vmatpush1.msra.mxu0 0.0
    %4237 = vmatprep.subr.mxu0 0.0
    %4238 = vmatpush1.msra.mxu0 0.0
    %4239 = vmatprep.subr.mxu0 0.0
    %4240 = vmatpush1.msra.mxu0 0.0
    %4241 = vmatprep.subr.mxu0 0.0
    %4242 = vmatpush1.msra.mxu0 0.0
    %4243 = vmatprep.subr.mxu0 0.0
    %4244 = vmatpush1.msra.mxu0 0.0
    %4245 = vmatprep.subr.mxu0 0.0
    %4246 = vmatpush1.msra.mxu0 0.0
    %4247 = vmatprep.subr.mxu0 0.0
    %4248 = vmatpush1.msra.mxu0 0.0
    %4249 = vmatprep.subr.mxu0 0.0
    %4250 = vmatpush1.msra.mxu0 0.0
    %4251 = vmatprep.subr.mxu0 0.0
    %4252 = vmatpush1.msra.mxu0 0.0
    %4253 = vmatprep.subr.mxu0 0.0
    %4254 = vmatpush1.msra.mxu0 0.0
    %4255 = vmatprep.subr.mxu0 0.0
    %4256 = vmatpush1.msra.mxu0 0.0
    %4257 = vmatprep.subr.mxu0 0.0
    %4258 = vmatpush1.msra.mxu0 %v3656
    %4259 = vmatprep.subr.mxu0 0.0
    %4260 = vmatpush2.msra.mxu0 0.0
    %4261 = vmatprep.subr.mxu0 0.0
    %4262 = vmatpush2.msra.mxu0 0.0
    %4263 = vmatprep.subr.mxu0 0.0
    %4264 = vmatpush2.msra.mxu0 0.0
    %4265 = vmatprep.subr.mxu0 0.0
    %4266 = vmatpush2.msra.mxu0 0.0
    %4267 = vmatprep.subr.mxu0 0.0
    %4268 = vmatpush2.msra.mxu0 0.0
    %4269 = vmatprep.subr.mxu0 0.0
    %4270 = vmatpush2.msra.mxu0 0.0
    %4271 = vmatprep.subr.mxu0 0.0
    %4272 = vmatpush2.msra.mxu0 0.0
    %4273 = vmatprep.subr.mxu0 0.0
    %4274 = vmatpush2.msra.mxu0 0.0
    %4275 = vmatprep.subr.mxu0 0.0
    %4276 = vmatpush2.msra.mxu0 0.0
    %4277 = vmatprep.subr.mxu0 0.0
    %4278 = vmatpush2.msra.mxu0 0.0
    %4279 = vmatprep.subr.mxu0 0.0
    %4280 = vmatpush2.msra.mxu0 0.0
    %4281 = vmatprep.subr.mxu0 0.0
    %4282 = vmatpush2.msra.mxu0 0.0
    %4283 = vmatprep.subr.mxu0 0.0
    %4284 = vmatpush2.msra.mxu0 0.0
    %4285 = vmatprep.subr.mxu0 0.0
    %4286 = vmatpush2.msra.mxu0 0.0
    %4287 = vmatprep.subr.mxu0 0.0
    %4288 = vmatpush2.msra.mxu0 0.0
    %4289 = vmatprep.subr.mxu0 0.0
    %4290 = vmatpush2.msra.mxu0 0.0
    %4291 = vmatprep.mubr.f32.mxu0 0.0
    %4292 = vmatmul.mubr.f32.gmra.mxu0 %v4219
    %v4293 = vpop.f32.mrf.mxu0
    %v4294 = vadd.f32 %v4205, %v4293
    %v4295 = vpop.f32.mrf.mxu0
    %4296 = vmatprep.mubr.f32.mxu0 0.0
    %4297 = vmatmul.mubr.f32.gmra.mxu0 %v4222
    %v4298 = vpop.f32.mrf.mxu0
    %v4299 = vadd.f32 %v4210, %v4298
    %v4300 = vpop.f32.mrf.mxu0
    %4301 = vmatprep.mubr.f32.mxu0 0.0
    %4302 = vmatmul.mubr.f32.gmra.mxu0 %v4225
    %v4303 = vpop.f32.mrf.mxu0
    %v4304 = vadd.f32 %v4215, %v4303
    %v4305 = vpop.f32.mrf.mxu0
    %4306 = vdwg.mxu0
    %4307 = vrot.lane.b32.xlu0 %v3643, 112
    %v4308 = vpop.permute.xlu0 %4307
    %4309 = vrot.lane.b32.xlu0 %v3648, 112
    %v4310 = vpop.permute.xlu0 %4309
    %4311 = vrot.lane.b32.xlu0 %v3653, 112
    %v4312 = vpop.permute.xlu0 %4311
    %4313 = vrot.lane.b32.xlu0 %v3643, 80
    %v4314 = vpop.permute.xlu0 %4313
    %4315 = vrot.lane.b32.xlu0 %v3648, 80
    %v4316 = vpop.permute.xlu0 %4315
    %4317 = vrot.lane.b32.xlu0 %v3653, 80
    %v4318 = vpop.permute.xlu0 %4317
    %v4319 = vsel %vm1911, %v4308, 0
    %v4321 = vsel %vm1911, %v4310, 0
    %v4323 = vsel %vm1911, %v4312, 0
    %v4325 = vsel %vm1911, %v4314, 0
    %v4327 = vsel %vm1911, %v4316, 0
    %v4329 = vsel %vm1911, %v4318, 0
    %4331 = vmatprep.subr.mxu0 0.0
    %4332 = vmatpush1.xpose.msra.mxu0 0.0
    %4333 = vmatprep.subr.mxu0 0.0
    %4334 = vmatpush1.xpose.msra.mxu0 0.0
    %4335 = vmatprep.subr.mxu0 0.0
    %4336 = vmatpush1.xpose.msra.mxu0 0.0
    %4337 = vmatprep.subr.mxu0 0.0
    %4338 = vmatpush1.xpose.msra.mxu0 0.0
    %4339 = vmatprep.subr.mxu0 0.0
    %4340 = vmatpush1.xpose.msra.mxu0 0.0
    %4341 = vmatprep.subr.mxu0 0.0
    %4342 = vmatpush1.xpose.msra.mxu0 0.0
    %4343 = vmatprep.subr.mxu0 0.0
    %4344 = vmatpush1.xpose.msra.mxu0 0.0
    %4345 = vmatprep.subr.mxu0 0.0
    %4346 = vmatpush1.xpose.msra.mxu0 0.0
    %4347 = vmatprep.subr.mxu0 0.0
    %4348 = vmatpush1.xpose.msra.mxu0 0.0
    %4349 = vmatprep.subr.mxu0 0.0
    %4350 = vmatpush1.xpose.msra.mxu0 0.0
    %4351 = vmatprep.subr.mxu0 0.0
    %4352 = vmatpush1.xpose.msra.mxu0 0.0
    %4353 = vmatprep.subr.mxu0 0.0
    %4354 = vmatpush1.xpose.msra.mxu0 0.0
    %4355 = vmatprep.subr.mxu0 0.0
    %4356 = vmatpush1.xpose.msra.mxu0 0.0
    %4357 = vmatprep.subr.mxu0 0.0
    %4358 = vmatpush1.xpose.msra.mxu0 %v4329
    %4359 = vmatprep.subr.mxu0 0.0
    %4360 = vmatpush1.xpose.msra.mxu0 %v4327
    %4361 = vmatprep.subr.mxu0 0.0
    %4362 = vmatpush1.xpose.msra.mxu0 %v4325
    %4363 = vmatprep.subr.mxu0 0.0
    %4364 = vmatpush2.xpose.msra.mxu0 0.0
    %4365 = vmatprep.subr.mxu0 0.0
    %4366 = vmatpush2.xpose.msra.mxu0 0.0
    %4367 = vmatprep.subr.mxu0 0.0
    %4368 = vmatpush2.xpose.msra.mxu0 0.0
    %4369 = vmatprep.subr.mxu0 0.0
    %4370 = vmatpush2.xpose.msra.mxu0 0.0
    %4371 = vmatprep.subr.mxu0 0.0
    %4372 = vmatpush2.xpose.msra.mxu0 0.0
    %4373 = vmatprep.subr.mxu0 0.0
    %4374 = vmatpush2.xpose.msra.mxu0 0.0
    %4375 = vmatprep.subr.mxu0 0.0
    %4376 = vmatpush2.xpose.msra.mxu0 0.0
    %4377 = vmatprep.subr.mxu0 0.0
    %4378 = vmatpush2.xpose.msra.mxu0 0.0
    %4379 = vmatprep.subr.mxu0 0.0
    %4380 = vmatpush2.xpose.msra.mxu0 0.0
    %4381 = vmatprep.subr.mxu0 0.0
    %4382 = vmatpush2.xpose.msra.mxu0 0.0
    %4383 = vmatprep.subr.mxu0 0.0
    %4384 = vmatpush2.xpose.msra.mxu0 0.0
    %4385 = vmatprep.subr.mxu0 0.0
    %4386 = vmatpush2.xpose.msra.mxu0 0.0
    %4387 = vmatprep.subr.mxu0 0.0
    %4388 = vmatpush2.xpose.msra.mxu0 0.0
    %4389 = vmatprep.subr.mxu0 0.0
    %4390 = vmatpush2.xpose.msra.mxu0 0.0
    %4391 = vmatprep.subr.mxu0 0.0
    %4392 = vmatpush2.xpose.msra.mxu0 0.0
    %4393 = vmatprep.subr.mxu0 0.0
    %4394 = vmatpush2.xpose.msra.mxu0 0.0
    %4395 = vmatprep.mubr.f32.mxu0 0.0
    %4396 = vmatmul.mubr.f32.gmra.mxu0 %v4319
    %v4397 = vpop.f32.mrf.mxu0
    %v4398 = vadd.f32 %v1746, %v4397
    %v4399 = vpop.f32.mrf.mxu0
    %4400 = vmatprep.mubr.f32.mxu0 0.0
    %4401 = vmatmul.mubr.f32.gmra.mxu0 %v4321
    %v4402 = vpop.f32.mrf.mxu0
    %v4403 = vadd.f32 %v1747, %v4402
    %v4404 = vpop.f32.mrf.mxu0
    %4405 = vmatprep.mubr.f32.mxu0 0.0
    %4406 = vmatmul.mubr.f32.gmra.mxu0 %v4323
    %v4407 = vpop.f32.mrf.mxu0
    %v4408 = vadd.f32 %v1748, %v4407
    %v4409 = vpop.f32.mrf.mxu0
    %4410 = vdwg.mxu0
    %v4411 = vsel %vm2004, %v4398, -inf
    %4412 = vmax.xlane.f32.xlu0 %v4411
    %v4413 = vpop.xlane.xlu0 %4412
    %v4414 = vsel %vm2004, %v4403, -inf
    %4415 = vmax.xlane.f32.xlu0 %v4414
    %v4416 = vpop.xlane.xlu0 %4415
    %v4417 = vsel %vm2011, %v4408, -inf
    %4418 = vmax.xlane.f32.xlu0 %v4417
    %v4419 = vpop.xlane.xlu0 %4418
    %v4420 = vsub.f32 %v4398, %v4413
    %v4421 = vsub.f32 %v4403, %v4416
    %v4422 = vsub.f32 %v4408, %v4419
    %v4423 = vmul.f32 %v4420, 1.442695
    %v4424 = vpow.pop %v4423
    %v4425 = vmul.f32 %v4421, 1.442695
    %v4426 = vpow.pop %v4425
    %v4427 = vmul.f32 %v4422, 1.442695
    %v4428 = vpow.pop %v4427
    %v4429 = vsel %vm2004, %v4424, 0.0
    %4430 = vadd.xlane.f32.xlu0 %v4429
    %v4431 = vpop.xlane.xlu0 %4430
    %v4432 = vsel %vm2004, %v4426, 0.0
    %4433 = vadd.xlane.f32.xlu0 %v4432
    %v4434 = vpop.xlane.xlu0 %4433
    %v4435 = vsel %vm2011, %v4428, 0.0
    %4436 = vadd.xlane.f32.xlu0 %v4435
    %v4437 = vpop.xlane.xlu0 %4436
    %v4438 = vrcp.pop %v4431
    %v4439 = vmul.f32 %v4424, %v4438
    %v4440 = vrcp.pop %v4434
    %v4441 = vmul.f32 %v4426, %v4440
    %v4442 = vrcp.pop %v4437
    %v4443 = vmul.f32 %v4428, %v4442
    %4444 = vrot.lane.b32.xlu0 %v3643, 48
    %v4445 = vpop.permute.xlu0 %4444
    %4446 = vrot.lane.b32.xlu0 %v3648, 48
    %v4447 = vpop.permute.xlu0 %4446
    %4448 = vrot.lane.b32.xlu0 %v3653, 48
    %v4449 = vpop.permute.xlu0 %4448
    %v4453 = vsel %vm2004, %v4439, 0
    %v4456 = vsel %vm2004, %v4441, 0
    %v4459 = vsel %vm2004, %v4443, 0
    %v4461 = vsel %vm2056, %v4449, 0
    %4463 = vmatprep.subr.mxu0 0.0
    %4464 = vmatpush1.msra.mxu0 0.0
    %4465 = vmatprep.subr.mxu0 0.0
    %4466 = vmatpush1.msra.mxu0 0.0
    %4467 = vmatprep.subr.mxu0 0.0
    %4468 = vmatpush1.msra.mxu0 0.0
    %4469 = vmatprep.subr.mxu0 0.0
    %4470 = vmatpush1.msra.mxu0 0.0
    %4471 = vmatprep.subr.mxu0 0.0
    %4472 = vmatpush1.msra.mxu0 0.0
    %4473 = vmatprep.subr.mxu0 0.0
    %4474 = vmatpush1.msra.mxu0 0.0
    %4475 = vmatprep.subr.mxu0 0.0
    %4476 = vmatpush1.msra.mxu0 0.0
    %4477 = vmatprep.subr.mxu0 0.0
    %4478 = vmatpush1.msra.mxu0 0.0
    %4479 = vmatprep.subr.mxu0 0.0
    %4480 = vmatpush1.msra.mxu0 0.0
    %4481 = vmatprep.subr.mxu0 0.0
    %4482 = vmatpush1.msra.mxu0 0.0
    %4483 = vmatprep.subr.mxu0 0.0
    %4484 = vmatpush1.msra.mxu0 0.0
    %4485 = vmatprep.subr.mxu0 0.0
    %4486 = vmatpush1.msra.mxu0 0.0
    %4487 = vmatprep.subr.mxu0 0.0
    %4488 = vmatpush1.msra.mxu0 0.0
    %4489 = vmatprep.subr.mxu0 0.0
    %4490 = vmatpush1.msra.mxu0 %v4461
    %4491 = vmatprep.subr.mxu0 0.0
    %4492 = vmatpush1.msra.mxu0 %v4447
    %4493 = vmatprep.subr.mxu0 0.0
    %4494 = vmatpush1.msra.mxu0 %v4445
    %4495 = vmatprep.subr.mxu0 0.0
    %4496 = vmatpush2.msra.mxu0 0.0
    %4497 = vmatprep.subr.mxu0 0.0
    %4498 = vmatpush2.msra.mxu0 0.0
    %4499 = vmatprep.subr.mxu0 0.0
    %4500 = vmatpush2.msra.mxu0 0.0
    %4501 = vmatprep.subr.mxu0 0.0
    %4502 = vmatpush2.msra.mxu0 0.0
    %4503 = vmatprep.subr.mxu0 0.0
    %4504 = vmatpush2.msra.mxu0 0.0
    %4505 = vmatprep.subr.mxu0 0.0
    %4506 = vmatpush2.msra.mxu0 0.0
    %4507 = vmatprep.subr.mxu0 0.0
    %4508 = vmatpush2.msra.mxu0 0.0
    %4509 = vmatprep.subr.mxu0 0.0
    %4510 = vmatpush2.msra.mxu0 0.0
    %4511 = vmatprep.subr.mxu0 0.0
    %4512 = vmatpush2.msra.mxu0 0.0
    %4513 = vmatprep.subr.mxu0 0.0
    %4514 = vmatpush2.msra.mxu0 0.0
    %4515 = vmatprep.subr.mxu0 0.0
    %4516 = vmatpush2.msra.mxu0 0.0
    %4517 = vmatprep.subr.mxu0 0.0
    %4518 = vmatpush2.msra.mxu0 0.0
    %4519 = vmatprep.subr.mxu0 0.0
    %4520 = vmatpush2.msra.mxu0 0.0
    %4521 = vmatprep.subr.mxu0 0.0
    %4522 = vmatpush2.msra.mxu0 0.0
    %4523 = vmatprep.subr.mxu0 0.0
    %4524 = vmatpush2.msra.mxu0 0.0
    %4525 = vmatprep.subr.mxu0 0.0
    %4526 = vmatpush2.msra.mxu0 0.0
    %4527 = vmatprep.mubr.f32.mxu0 0.0
    %4528 = vmatmul.mubr.f32.gmra.mxu0 %v4453
    %v4529 = vpop.f32.mrf.mxu0
    %v4530 = vadd.f32 0.0, %v4529
    %v4531 = vpop.f32.mrf.mxu0
    %4532 = vmatprep.mubr.f32.mxu0 0.0
    %4533 = vmatmul.mubr.f32.gmra.mxu0 %v4456
    %v4534 = vpop.f32.mrf.mxu0
    %v4535 = vadd.f32 0.0, %v4534
    %v4536 = vpop.f32.mrf.mxu0
    %4537 = vmatprep.mubr.f32.mxu0 0.0
    %4538 = vmatmul.mubr.f32.gmra.mxu0 %v4459
    %v4539 = vpop.f32.mrf.mxu0
    %v4540 = vadd.f32 0.0, %v4539
    %v4541 = vpop.f32.mrf.mxu0
    %4542 = vdwg.mxu0
    %v4544 = vsel %vm1911, %v4530, 0
    %v4547 = vsel %vm1911, %v4535, 0
    %v4550 = vsel %vm1911, %v4540, 0
    %4552 = vmatprep.subr.mxu0 0.0
    %4553 = vmatpush1.msra.mxu0 0.0
    %4554 = vmatprep.subr.mxu0 0.0
    %4555 = vmatpush1.msra.mxu0 0.0
    %4556 = vmatprep.subr.mxu0 0.0
    %4557 = vmatpush1.msra.mxu0 0.0
    %4558 = vmatprep.subr.mxu0 0.0
    %4559 = vmatpush1.msra.mxu0 0.0
    %4560 = vmatprep.subr.mxu0 0.0
    %4561 = vmatpush1.msra.mxu0 0.0
    %4562 = vmatprep.subr.mxu0 0.0
    %4563 = vmatpush1.msra.mxu0 0.0
    %4564 = vmatprep.subr.mxu0 0.0
    %4565 = vmatpush1.msra.mxu0 0.0
    %4566 = vmatprep.subr.mxu0 0.0
    %4567 = vmatpush1.msra.mxu0 0.0
    %4568 = vmatprep.subr.mxu0 0.0
    %4569 = vmatpush1.msra.mxu0 0.0
    %4570 = vmatprep.subr.mxu0 0.0
    %4571 = vmatpush1.msra.mxu0 0.0
    %4572 = vmatprep.subr.mxu0 0.0
    %4573 = vmatpush1.msra.mxu0 0.0
    %4574 = vmatprep.subr.mxu0 0.0
    %4575 = vmatpush1.msra.mxu0 0.0
    %4576 = vmatprep.subr.mxu0 0.0
    %4577 = vmatpush1.msra.mxu0 0.0
    %4578 = vmatprep.subr.mxu0 0.0
    %4579 = vmatpush1.msra.mxu0 0.0
    %4580 = vmatprep.subr.mxu0 0.0
    %4581 = vmatpush1.msra.mxu0 0.0
    %4582 = vmatprep.subr.mxu0 0.0
    %4583 = vmatpush1.msra.mxu0 %v3658
    %4584 = vmatprep.subr.mxu0 0.0
    %4585 = vmatpush2.msra.mxu0 0.0
    %4586 = vmatprep.subr.mxu0 0.0
    %4587 = vmatpush2.msra.mxu0 0.0
    %4588 = vmatprep.subr.mxu0 0.0
    %4589 = vmatpush2.msra.mxu0 0.0
    %4590 = vmatprep.subr.mxu0 0.0
    %4591 = vmatpush2.msra.mxu0 0.0
    %4592 = vmatprep.subr.mxu0 0.0
    %4593 = vmatpush2.msra.mxu0 0.0
    %4594 = vmatprep.subr.mxu0 0.0
    %4595 = vmatpush2.msra.mxu0 0.0
    %4596 = vmatprep.subr.mxu0 0.0
    %4597 = vmatpush2.msra.mxu0 0.0
    %4598 = vmatprep.subr.mxu0 0.0
    %4599 = vmatpush2.msra.mxu0 0.0
    %4600 = vmatprep.subr.mxu0 0.0
    %4601 = vmatpush2.msra.mxu0 0.0
    %4602 = vmatprep.subr.mxu0 0.0
    %4603 = vmatpush2.msra.mxu0 0.0
    %4604 = vmatprep.subr.mxu0 0.0
    %4605 = vmatpush2.msra.mxu0 0.0
    %4606 = vmatprep.subr.mxu0 0.0
    %4607 = vmatpush2.msra.mxu0 0.0
    %4608 = vmatprep.subr.mxu0 0.0
    %4609 = vmatpush2.msra.mxu0 0.0
    %4610 = vmatprep.subr.mxu0 0.0
    %4611 = vmatpush2.msra.mxu0 0.0
    %4612 = vmatprep.subr.mxu0 0.0
    %4613 = vmatpush2.msra.mxu0 0.0
    %4614 = vmatprep.subr.mxu0 0.0
    %4615 = vmatpush2.msra.mxu0 0.0
    %4616 = vmatprep.mubr.f32.mxu0 0.0
    %4617 = vmatmul.mubr.f32.gmra.mxu0 %v4544
    %v4618 = vpop.f32.mrf.mxu0
    %v4619 = vadd.f32 0.0, %v4618
    %v4620 = vpop.f32.mrf.mxu0
    %4621 = vmatprep.mubr.f32.mxu0 0.0
    %4622 = vmatmul.mubr.f32.gmra.mxu0 %v4547
    %v4623 = vpop.f32.mrf.mxu0
    %v4624 = vadd.f32 0.0, %v4623
    %v4625 = vpop.f32.mrf.mxu0
    %4626 = vmatprep.mubr.f32.mxu0 0.0
    %4627 = vmatmul.mubr.f32.gmra.mxu0 %v4550
    %v4628 = vpop.f32.mrf.mxu0
    %v4629 = vadd.f32 0.0, %v4628
    %v4630 = vpop.f32.mrf.mxu0
    %4631 = vdwg.mxu0
    %v4632 = vadd.f32 %v4294, %v4619
    %v4633 = vadd.f32 %v4299, %v4624
    %v4634 = vadd.f32 %v4304, %v4629
    %4635 = vrot.lane.b32.xlu0 %v3643, 104
    %v4636 = vpop.permute.xlu0 %4635
    %4637 = vrot.lane.b32.xlu0 %v3648, 104
    %v4638 = vpop.permute.xlu0 %4637
    %4639 = vrot.lane.b32.xlu0 %v3653, 104
    %v4640 = vpop.permute.xlu0 %4639
    %4641 = vrot.lane.b32.xlu0 %v3643, 72
    %v4642 = vpop.permute.xlu0 %4641
    %4643 = vrot.lane.b32.xlu0 %v3648, 72
    %v4644 = vpop.permute.xlu0 %4643
    %4645 = vrot.lane.b32.xlu0 %v3653, 72
    %v4646 = vpop.permute.xlu0 %4645
    %v4647 = vsel %vm1911, %v4636, 0
    %v4649 = vsel %vm1911, %v4638, 0
    %v4651 = vsel %vm1911, %v4640, 0
    %v4653 = vsel %vm1911, %v4642, 0
    %v4655 = vsel %vm1911, %v4644, 0
    %v4657 = vsel %vm1911, %v4646, 0
    %4659 = vmatprep.subr.mxu0 0.0
    %4660 = vmatpush1.xpose.msra.mxu0 0.0
    %4661 = vmatprep.subr.mxu0 0.0
    %4662 = vmatpush1.xpose.msra.mxu0 0.0
    %4663 = vmatprep.subr.mxu0 0.0
    %4664 = vmatpush1.xpose.msra.mxu0 0.0
    %4665 = vmatprep.subr.mxu0 0.0
    %4666 = vmatpush1.xpose.msra.mxu0 0.0
    %4667 = vmatprep.subr.mxu0 0.0
    %4668 = vmatpush1.xpose.msra.mxu0 0.0
    %4669 = vmatprep.subr.mxu0 0.0
    %4670 = vmatpush1.xpose.msra.mxu0 0.0
    %4671 = vmatprep.subr.mxu0 0.0
    %4672 = vmatpush1.xpose.msra.mxu0 0.0
    %4673 = vmatprep.subr.mxu0 0.0
    %4674 = vmatpush1.xpose.msra.mxu0 0.0
    %4675 = vmatprep.subr.mxu0 0.0
    %4676 = vmatpush1.xpose.msra.mxu0 0.0
    %4677 = vmatprep.subr.mxu0 0.0
    %4678 = vmatpush1.xpose.msra.mxu0 0.0
    %4679 = vmatprep.subr.mxu0 0.0
    %4680 = vmatpush1.xpose.msra.mxu0 0.0
    %4681 = vmatprep.subr.mxu0 0.0
    %4682 = vmatpush1.xpose.msra.mxu0 0.0
    %4683 = vmatprep.subr.mxu0 0.0
    %4684 = vmatpush1.xpose.msra.mxu0 0.0
    %4685 = vmatprep.subr.mxu0 0.0
    %4686 = vmatpush1.xpose.msra.mxu0 %v4657
    %4687 = vmatprep.subr.mxu0 0.0
    %4688 = vmatpush1.xpose.msra.mxu0 %v4655
    %4689 = vmatprep.subr.mxu0 0.0
    %4690 = vmatpush1.xpose.msra.mxu0 %v4653
    %4691 = vmatprep.subr.mxu0 0.0
    %4692 = vmatpush2.xpose.msra.mxu0 0.0
    %4693 = vmatprep.subr.mxu0 0.0
    %4694 = vmatpush2.xpose.msra.mxu0 0.0
    %4695 = vmatprep.subr.mxu0 0.0
    %4696 = vmatpush2.xpose.msra.mxu0 0.0
    %4697 = vmatprep.subr.mxu0 0.0
    %4698 = vmatpush2.xpose.msra.mxu0 0.0
    %4699 = vmatprep.subr.mxu0 0.0
    %4700 = vmatpush2.xpose.msra.mxu0 0.0
    %4701 = vmatprep.subr.mxu0 0.0
    %4702 = vmatpush2.xpose.msra.mxu0 0.0
    %4703 = vmatprep.subr.mxu0 0.0
    %4704 = vmatpush2.xpose.msra.mxu0 0.0
    %4705 = vmatprep.subr.mxu0 0.0
    %4706 = vmatpush2.xpose.msra.mxu0 0.0
    %4707 = vmatprep.subr.mxu0 0.0
    %4708 = vmatpush2.xpose.msra.mxu0 0.0
    %4709 = vmatprep.subr.mxu0 0.0
    %4710 = vmatpush2.xpose.msra.mxu0 0.0
    %4711 = vmatprep.subr.mxu0 0.0
    %4712 = vmatpush2.xpose.msra.mxu0 0.0
    %4713 = vmatprep.subr.mxu0 0.0
    %4714 = vmatpush2.xpose.msra.mxu0 0.0
    %4715 = vmatprep.subr.mxu0 0.0
    %4716 = vmatpush2.xpose.msra.mxu0 0.0
    %4717 = vmatprep.subr.mxu0 0.0
    %4718 = vmatpush2.xpose.msra.mxu0 0.0
    %4719 = vmatprep.subr.mxu0 0.0
    %4720 = vmatpush2.xpose.msra.mxu0 0.0
    %4721 = vmatprep.subr.mxu0 0.0
    %4722 = vmatpush2.xpose.msra.mxu0 0.0
    %4723 = vmatprep.mubr.f32.mxu0 0.0
    %4724 = vmatmul.mubr.f32.gmra.mxu0 %v4647
    %v4725 = vpop.f32.mrf.mxu0
    %v4726 = vadd.f32 %v1746, %v4725
    %v4727 = vpop.f32.mrf.mxu0
    %4728 = vmatprep.mubr.f32.mxu0 0.0
    %4729 = vmatmul.mubr.f32.gmra.mxu0 %v4649
    %v4730 = vpop.f32.mrf.mxu0
    %v4731 = vadd.f32 %v1747, %v4730
    %v4732 = vpop.f32.mrf.mxu0
    %4733 = vmatprep.mubr.f32.mxu0 0.0
    %4734 = vmatmul.mubr.f32.gmra.mxu0 %v4651
    %v4735 = vpop.f32.mrf.mxu0
    %v4736 = vadd.f32 %v1748, %v4735
    %v4737 = vpop.f32.mrf.mxu0
    %4738 = vdwg.mxu0
    %v4739 = vsel %vm2004, %v4726, -inf
    %4740 = vmax.xlane.f32.xlu0 %v4739
    %v4741 = vpop.xlane.xlu0 %4740
    %v4742 = vsel %vm2004, %v4731, -inf
    %4743 = vmax.xlane.f32.xlu0 %v4742
    %v4744 = vpop.xlane.xlu0 %4743
    %v4745 = vsel %vm2011, %v4736, -inf
    %4746 = vmax.xlane.f32.xlu0 %v4745
    %v4747 = vpop.xlane.xlu0 %4746
    %v4748 = vsub.f32 %v4726, %v4741
    %v4749 = vsub.f32 %v4731, %v4744
    %v4750 = vsub.f32 %v4736, %v4747
    %v4751 = vmul.f32 %v4748, 1.442695
    %v4752 = vpow.pop %v4751
    %v4753 = vmul.f32 %v4749, 1.442695
    %v4754 = vpow.pop %v4753
    %v4755 = vmul.f32 %v4750, 1.442695
    %v4756 = vpow.pop %v4755
    %v4757 = vsel %vm2004, %v4752, 0.0
    %4758 = vadd.xlane.f32.xlu0 %v4757
    %v4759 = vpop.xlane.xlu0 %4758
    %v4760 = vsel %vm2004, %v4754, 0.0
    %4761 = vadd.xlane.f32.xlu0 %v4760
    %v4762 = vpop.xlane.xlu0 %4761
    %v4763 = vsel %vm2011, %v4756, 0.0
    %4764 = vadd.xlane.f32.xlu0 %v4763
    %v4765 = vpop.xlane.xlu0 %4764
    %v4766 = vrcp.pop %v4759
    %v4767 = vmul.f32 %v4752, %v4766
    %v4768 = vrcp.pop %v4762
    %v4769 = vmul.f32 %v4754, %v4768
    %v4770 = vrcp.pop %v4765
    %v4771 = vmul.f32 %v4756, %v4770
    %4772 = vrot.lane.b32.xlu0 %v3643, 40
    %v4773 = vpop.permute.xlu0 %4772
    %4774 = vrot.lane.b32.xlu0 %v3648, 40
    %v4775 = vpop.permute.xlu0 %4774
    %4776 = vrot.lane.b32.xlu0 %v3653, 40
    %v4777 = vpop.permute.xlu0 %4776
    %v4781 = vsel %vm2004, %v4767, 0
    %v4784 = vsel %vm2004, %v4769, 0
    %v4787 = vsel %vm2004, %v4771, 0
    %v4789 = vsel %vm2056, %v4777, 0
    %4791 = vmatprep.subr.mxu0 0.0
    %4792 = vmatpush1.msra.mxu0 0.0
    %4793 = vmatprep.subr.mxu0 0.0
    %4794 = vmatpush1.msra.mxu0 0.0
    %4795 = vmatprep.subr.mxu0 0.0
    %4796 = vmatpush1.msra.mxu0 0.0
    %4797 = vmatprep.subr.mxu0 0.0
    %4798 = vmatpush1.msra.mxu0 0.0
    %4799 = vmatprep.subr.mxu0 0.0
    %4800 = vmatpush1.msra.mxu0 0.0
    %4801 = vmatprep.subr.mxu0 0.0
    %4802 = vmatpush1.msra.mxu0 0.0
    %4803 = vmatprep.subr.mxu0 0.0
    %4804 = vmatpush1.msra.mxu0 0.0
    %4805 = vmatprep.subr.mxu0 0.0
    %4806 = vmatpush1.msra.mxu0 0.0
    %4807 = vmatprep.subr.mxu0 0.0
    %4808 = vmatpush1.msra.mxu0 0.0
    %4809 = vmatprep.subr.mxu0 0.0
    %4810 = vmatpush1.msra.mxu0 0.0
    %4811 = vmatprep.subr.mxu0 0.0
    %4812 = vmatpush1.msra.mxu0 0.0
    %4813 = vmatprep.subr.mxu0 0.0
    %4814 = vmatpush1.msra.mxu0 0.0
    %4815 = vmatprep.subr.mxu0 0.0
    %4816 = vmatpush1.msra.mxu0 0.0
    %4817 = vmatprep.subr.mxu0 0.0
    %4818 = vmatpush1.msra.mxu0 %v4789
    %4819 = vmatprep.subr.mxu0 0.0
    %4820 = vmatpush1.msra.mxu0 %v4775
    %4821 = vmatprep.subr.mxu0 0.0
    %4822 = vmatpush1.msra.mxu0 %v4773
    %4823 = vmatprep.subr.mxu0 0.0
    %4824 = vmatpush2.msra.mxu0 0.0
    %4825 = vmatprep.subr.mxu0 0.0
    %4826 = vmatpush2.msra.mxu0 0.0
    %4827 = vmatprep.subr.mxu0 0.0
    %4828 = vmatpush2.msra.mxu0 0.0
    %4829 = vmatprep.subr.mxu0 0.0
    %4830 = vmatpush2.msra.mxu0 0.0
    %4831 = vmatprep.subr.mxu0 0.0
    %4832 = vmatpush2.msra.mxu0 0.0
    %4833 = vmatprep.subr.mxu0 0.0
    %4834 = vmatpush2.msra.mxu0 0.0
    %4835 = vmatprep.subr.mxu0 0.0
    %4836 = vmatpush2.msra.mxu0 0.0
    %4837 = vmatprep.subr.mxu0 0.0
    %4838 = vmatpush2.msra.mxu0 0.0
    %4839 = vmatprep.subr.mxu0 0.0
    %4840 = vmatpush2.msra.mxu0 0.0
    %4841 = vmatprep.subr.mxu0 0.0
    %4842 = vmatpush2.msra.mxu0 0.0
    %4843 = vmatprep.subr.mxu0 0.0
    %4844 = vmatpush2.msra.mxu0 0.0
    %4845 = vmatprep.subr.mxu0 0.0
    %4846 = vmatpush2.msra.mxu0 0.0
    %4847 = vmatprep.subr.mxu0 0.0
    %4848 = vmatpush2.msra.mxu0 0.0
    %4849 = vmatprep.subr.mxu0 0.0
    %4850 = vmatpush2.msra.mxu0 0.0
    %4851 = vmatprep.subr.mxu0 0.0
    %4852 = vmatpush2.msra.mxu0 0.0
    %4853 = vmatprep.subr.mxu0 0.0
    %4854 = vmatpush2.msra.mxu0 0.0
    %4855 = vmatprep.mubr.f32.mxu0 0.0
    %4856 = vmatmul.mubr.f32.gmra.mxu0 %v4781
    %v4857 = vpop.f32.mrf.mxu0
    %v4858 = vadd.f32 0.0, %v4857
    %v4859 = vpop.f32.mrf.mxu0
    %4860 = vmatprep.mubr.f32.mxu0 0.0
    %4861 = vmatmul.mubr.f32.gmra.mxu0 %v4784
    %v4862 = vpop.f32.mrf.mxu0
    %v4863 = vadd.f32 0.0, %v4862
    %v4864 = vpop.f32.mrf.mxu0
    %4865 = vmatprep.mubr.f32.mxu0 0.0
    %4866 = vmatmul.mubr.f32.gmra.mxu0 %v4787
    %v4867 = vpop.f32.mrf.mxu0
    %v4868 = vadd.f32 0.0, %v4867
    %v4869 = vpop.f32.mrf.mxu0
    %4870 = vdwg.mxu0
    %v4872 = vsel %vm1911, %v4858, 0
    %v4875 = vsel %vm1911, %v4863, 0
    %v4878 = vsel %vm1911, %v4868, 0
    %4880 = vmatprep.subr.mxu0 0.0
    %4881 = vmatpush1.msra.mxu0 0.0
    %4882 = vmatprep.subr.mxu0 0.0
    %4883 = vmatpush1.msra.mxu0 0.0
    %4884 = vmatprep.subr.mxu0 0.0
    %4885 = vmatpush1.msra.mxu0 0.0
    %4886 = vmatprep.subr.mxu0 0.0
    %4887 = vmatpush1.msra.mxu0 0.0
    %4888 = vmatprep.subr.mxu0 0.0
    %4889 = vmatpush1.msra.mxu0 0.0
    %4890 = vmatprep.subr.mxu0 0.0
    %4891 = vmatpush1.msra.mxu0 0.0
    %4892 = vmatprep.subr.mxu0 0.0
    %4893 = vmatpush1.msra.mxu0 0.0
    %4894 = vmatprep.subr.mxu0 0.0
    %4895 = vmatpush1.msra.mxu0 0.0
    %4896 = vmatprep.subr.mxu0 0.0
    %4897 = vmatpush1.msra.mxu0 0.0
    %4898 = vmatprep.subr.mxu0 0.0
    %4899 = vmatpush1.msra.mxu0 0.0
    %4900 = vmatprep.subr.mxu0 0.0
    %4901 = vmatpush1.msra.mxu0 0.0
    %4902 = vmatprep.subr.mxu0 0.0
    %4903 = vmatpush1.msra.mxu0 0.0
    %4904 = vmatprep.subr.mxu0 0.0
    %4905 = vmatpush1.msra.mxu0 0.0
    %4906 = vmatprep.subr.mxu0 0.0
    %4907 = vmatpush1.msra.mxu0 0.0
    %4908 = vmatprep.subr.mxu0 0.0
    %4909 = vmatpush1.msra.mxu0 0.0
    %4910 = vmatprep.subr.mxu0 0.0
    %4911 = vmatpush1.msra.mxu0 %v3659
    %4912 = vmatprep.subr.mxu0 0.0
    %4913 = vmatpush2.msra.mxu0 0.0
    %4914 = vmatprep.subr.mxu0 0.0
    %4915 = vmatpush2.msra.mxu0 0.0
    %4916 = vmatprep.subr.mxu0 0.0
    %4917 = vmatpush2.msra.mxu0 0.0
    %4918 = vmatprep.subr.mxu0 0.0
    %4919 = vmatpush2.msra.mxu0 0.0
    %4920 = vmatprep.subr.mxu0 0.0
    %4921 = vmatpush2.msra.mxu0 0.0
    %4922 = vmatprep.subr.mxu0 0.0
    %4923 = vmatpush2.msra.mxu0 0.0
    %4924 = vmatprep.subr.mxu0 0.0
    %4925 = vmatpush2.msra.mxu0 0.0
    %4926 = vmatprep.subr.mxu0 0.0
    %4927 = vmatpush2.msra.mxu0 0.0
    %4928 = vmatprep.subr.mxu0 0.0
    %4929 = vmatpush2.msra.mxu0 0.0
    %4930 = vmatprep.subr.mxu0 0.0
    %4931 = vmatpush2.msra.mxu0 0.0
    %4932 = vmatprep.subr.mxu0 0.0
    %4933 = vmatpush2.msra.mxu0 0.0
    %4934 = vmatprep.subr.mxu0 0.0
    %4935 = vmatpush2.msra.mxu0 0.0
    %4936 = vmatprep.subr.mxu0 0.0
    %4937 = vmatpush2.msra.mxu0 0.0
    %4938 = vmatprep.subr.mxu0 0.0
    %4939 = vmatpush2.msra.mxu0 0.0
    %4940 = vmatprep.subr.mxu0 0.0
    %4941 = vmatpush2.msra.mxu0 0.0
    %4942 = vmatprep.subr.mxu0 0.0
    %4943 = vmatpush2.msra.mxu0 0.0
    %4944 = vmatprep.mubr.f32.mxu0 0.0
    %4945 = vmatmul.mubr.f32.gmra.mxu0 %v4872
    %v4946 = vpop.f32.mrf.mxu0
    %v4947 = vadd.f32 0.0, %v4946
    %v4948 = vpop.f32.mrf.mxu0
    %4949 = vmatprep.mubr.f32.mxu0 0.0
    %4950 = vmatmul.mubr.f32.gmra.mxu0 %v4875
    %v4951 = vpop.f32.mrf.mxu0
    %v4952 = vadd.f32 0.0, %v4951
    %v4953 = vpop.f32.mrf.mxu0
    %4954 = vmatprep.mubr.f32.mxu0 0.0
    %4955 = vmatmul.mubr.f32.gmra.mxu0 %v4878
    %v4956 = vpop.f32.mrf.mxu0
    %v4957 = vadd.f32 0.0, %v4956
    %v4958 = vpop.f32.mrf.mxu0
    %4959 = vdwg.mxu0
    %v4960 = vadd.f32 %v4632, %v4947
    %v4961 = vadd.f32 %v4633, %v4952
    %v4962 = vadd.f32 %v4634, %v4957
    %v4963 = vadd.f32 %v3505, %v4960
    %v4964 = vadd.f32 %v3506, %v4961
    %v4965 = vadd.f32 %v3507, %v4962
    %v4966 = vld [vmem:[%s2 + $0x21e] sm:$0x1]
    %v4967 = vlaneseq
    %v4968 = vshrl.u32 %v4967, 7
    %v4969 = vsub.s32 0, %v4968
    %v4970 = vrot.slane %v4966, %v4969
    %v4971 = vadd.f32 %v4963, %v4970
    %v4972 = vadd.f32 %v4964, %v4970
    %v4973 = vadd.f32 %v4965, %v4970
    %v4974 = vld [vmem:[%s2 + $0x221] sm:$0x1]
    %v4975 = vld [vmem:[%s2 + $0x222] sm:$0x1]
    %v4976 = vsel %vm1701, %v4971, 0.0
    %4977 = vadd.xlane.f32.xlu0 %v4976
    %v4978 = vpop.xlane.xlu0 %4977
    %v4979 = vsel %vm1701, %v4972, 0.0
    %4980 = vadd.xlane.f32.xlu0 %v4979
    %v4981 = vpop.xlane.xlu0 %4980
    %v4982 = vsel %vm1757, %v4973, 0.0
    %4983 = vadd.xlane.f32.xlu0 %v4982
    %v4984 = vpop.xlane.xlu0 %4983
    %v4985 = vmul.f32 %v4978, %v1708
    %v4986 = vmul.f32 %v4981, %v1708
    %v4987 = vmul.f32 %v4984, %v1708
    %v4988 = vsub.f32 %v4971, %v4985
    %v4989 = vsub.f32 %v4972, %v4986
    %v4990 = vsub.f32 %v4973, %v4987
    %v4991 = vmul.f32 %v4988, %v4988
    %v4992 = vmul.f32 %v4989, %v4989
    %v4993 = vmul.f32 %v4990, %v4990
    %v4994 = vsel %vm1701, %v4991, 0.0
    %4995 = vadd.xlane.f32.xlu0 %v4994
    %v4996 = vpop.xlane.xlu0 %4995
    %v4997 = vsel %vm1701, %v4992, 0.0
    %4998 = vadd.xlane.f32.xlu0 %v4997
    %v4999 = vpop.xlane.xlu0 %4998
    %v5000 = vsel %vm1757, %v4993, 0.0
    %5001 = vadd.xlane.f32.xlu0 %v5000
    %v5002 = vpop.xlane.xlu0 %5001
    %v5003 = vmul.f32 %v4996, %v1708
    %v5004 = vmul.f32 %v4999, %v1708
    %v5005 = vmul.f32 %v5002, %v1708
    %v5006 = vadd.f32 %v5003, 1e-05
    %v5007 = vadd.f32 %v5004, 1e-05
    %v5008 = vadd.f32 %v5005, 1e-05
    %v5009 = vrsqrt.pop %v5006
    %v5010 = vrsqrt.pop %v5007
    %v5011 = vrsqrt.pop %v5008
    %v5012 = vmul.f32 %v4988, %v5009
    %v5013 = vmul.f32 %v4989, %v5010
    %v5014 = vmul.f32 %v4990, %v5011
    %v5015 = vlaneseq
    %v5016 = vshrl.u32 %v5015, 7
    %v5017 = vsub.s32 0, %v5016
    %v5018 = vrot.slane %v4974, %v5017
    %v5019 = vmul.f32 %v5012, %v5018
    %v5020 = vmul.f32 %v5013, %v5018
    %v5021 = vmul.f32 %v5014, %v5018
    %v5022 = vlaneseq
    %v5023 = vshrl.u32 %v5022, 7
    %v5024 = vsub.s32 0, %v5023
    %v5025 = vrot.slane %v4975, %v5024
    %v5026 = vadd.f32 %v5019, %v5025
    %v5027 = vadd.f32 %v5020, %v5025
    %v5028 = vadd.f32 %v5021, %v5025
    %v5029 = vld [vmem:[%s2 + $0x1b0] sm:$0xff]
    %v5030 = vld [vmem:[%s2 + $0x1b8] sm:$0xff]
    %v5031 = vld [vmem:[%s2 + $0x1c0] sm:$0xff]
    %v5032 = vld [vmem:[%s2 + $0x1c8] sm:$0xff]
    %v5033 = vld [vmem:[%s2 + $0x223] sm:$0x1]
    %v5034 = vlaneseq
    %v5035 = vshrl.u32 %v5034, 7
    %v5036 = vsub.s32 0, %v5035
    %v5037 = vrot.slane %v5033, %v5036
    %v5039 = vsel %vm1701, %v5026, 0
    %v5042 = vsel %vm1701, %v5027, 0
    %v5045 = vsel %vm1701, %v5028, 0
    %5047 = vmatprep.subr.mxu0 0.0
    %5048 = vmatpush1.msra.mxu0 0.0
    %5049 = vmatprep.subr.mxu0 0.0
    %5050 = vmatpush1.msra.mxu0 0.0
    %5051 = vmatprep.subr.mxu0 0.0
    %5052 = vmatpush1.msra.mxu0 0.0
    %5053 = vmatprep.subr.mxu0 0.0
    %5054 = vmatpush1.msra.mxu0 0.0
    %5055 = vmatprep.subr.mxu0 0.0
    %5056 = vmatpush1.msra.mxu0 0.0
    %5057 = vmatprep.subr.mxu0 0.0
    %5058 = vmatpush1.msra.mxu0 0.0
    %5059 = vmatprep.subr.mxu0 0.0
    %5060 = vmatpush1.msra.mxu0 0.0
    %5061 = vmatprep.subr.mxu0 0.0
    %5062 = vmatpush1.msra.mxu0 0.0
    %5063 = vmatprep.subr.mxu0 0.0
    %5064 = vmatpush1.msra.mxu0 0.0
    %5065 = vmatprep.subr.mxu0 0.0
    %5066 = vmatpush1.msra.mxu0 0.0
    %5067 = vmatprep.subr.mxu0 0.0
    %5068 = vmatpush1.msra.mxu0 0.0
    %5069 = vmatprep.subr.mxu0 0.0
    %5070 = vmatpush1.msra.mxu0 0.0
    %5071 = vmatprep.subr.mxu0 0.0
    %5072 = vmatpush1.msra.mxu0 %v5032
    %5073 = vmatprep.subr.mxu0 0.0
    %5074 = vmatpush1.msra.mxu0 %v5031
    %5075 = vmatprep.subr.mxu0 0.0
    %5076 = vmatpush1.msra.mxu0 %v5030
    %5077 = vmatprep.subr.mxu0 0.0
    %5078 = vmatpush1.msra.mxu0 %v5029
    %5079 = vmatprep.subr.mxu0 0.0
    %5080 = vmatpush2.msra.mxu0 0.0
    %5081 = vmatprep.subr.mxu0 0.0
    %5082 = vmatpush2.msra.mxu0 0.0
    %5083 = vmatprep.subr.mxu0 0.0
    %5084 = vmatpush2.msra.mxu0 0.0
    %5085 = vmatprep.subr.mxu0 0.0
    %5086 = vmatpush2.msra.mxu0 0.0
    %5087 = vmatprep.subr.mxu0 0.0
    %5088 = vmatpush2.msra.mxu0 0.0
    %5089 = vmatprep.subr.mxu0 0.0
    %5090 = vmatpush2.msra.mxu0 0.0
    %5091 = vmatprep.subr.mxu0 0.0
    %5092 = vmatpush2.msra.mxu0 0.0
    %5093 = vmatprep.subr.mxu0 0.0
    %5094 = vmatpush2.msra.mxu0 0.0
    %5095 = vmatprep.subr.mxu0 0.0
    %5096 = vmatpush2.msra.mxu0 0.0
    %5097 = vmatprep.subr.mxu0 0.0
    %5098 = vmatpush2.msra.mxu0 0.0
    %5099 = vmatprep.subr.mxu0 0.0
    %5100 = vmatpush2.msra.mxu0 0.0
    %5101 = vmatprep.subr.mxu0 0.0
    %5102 = vmatpush2.msra.mxu0 0.0
    %5103 = vmatprep.subr.mxu0 0.0
    %5104 = vmatpush2.msra.mxu0 0.0
    %5105 = vmatprep.subr.mxu0 0.0
    %5106 = vmatpush2.msra.mxu0 0.0
    %5107 = vmatprep.subr.mxu0 0.0
    %5108 = vmatpush2.msra.mxu0 0.0
    %5109 = vmatprep.subr.mxu0 0.0
    %5110 = vmatpush2.msra.mxu0 0.0
    %5111 = vmatprep.mubr.f32.mxu0 0.0
    %5112 = vmatmul.mubr.f32.gmra.mxu0 %v5039
    %v5113 = vpop.f32.mrf.mxu0
    %v5114 = vadd.f32 %v5037, %v5113
    %v5115 = vpop.f32.mrf.mxu0
    %5116 = vmatprep.mubr.f32.mxu0 0.0
    %5117 = vmatmul.mubr.f32.gmra.mxu0 %v5042
    %v5118 = vpop.f32.mrf.mxu0
    %v5119 = vadd.f32 %v5037, %v5118
    %v5120 = vpop.f32.mrf.mxu0
    %5121 = vmatprep.mubr.f32.mxu0 0.0
    %5122 = vmatmul.mubr.f32.gmra.mxu0 %v5045
    %v5123 = vpop.f32.mrf.mxu0
    %v5124 = vadd.f32 %v5037, %v5123
    %v5125 = vpop.f32.mrf.mxu0
    %5126 = vdwg.mxu0
    %v5127 = vmul.f32 %v5114, 0.5
    %v5128 = vmul.f32 %v5119, 0.5
    %v5129 = vmul.f32 %v5124, 0.5
    %v5130 = vmul.f32 %v5114, 0.044715
    %v5131 = vmul.f32 %v5119, 0.044715
    %v5132 = vmul.f32 %v5124, 0.044715
    %v5133 = vmul.f32 %v5130, %v5114
    %v5134 = vmul.f32 %v5131, %v5119
    %v5135 = vmul.f32 %v5132, %v5124
    %v5136 = vmul.f32 %v5133, %v5114
    %v5137 = vmul.f32 %v5134, %v5119
    %v5138 = vmul.f32 %v5135, %v5124
    %v5139 = vadd.f32 %v5114, %v5136
    %v5140 = vadd.f32 %v5119, %v5137
    %v5141 = vadd.f32 %v5124, %v5138
    %v5142 = vmul.f32 %v5139, 0.7978846
    %v5143 = vmul.f32 %v5140, 0.7978846
    %v5144 = vmul.f32 %v5141, 0.7978846
    %v5145 = vtanh.pop %v5142
    %v5146 = vtanh.pop %v5143
    %v5147 = vtanh.pop %v5144
    %v5148 = vadd.f32 %v5145, 1.0
    %v5149 = vadd.f32 %v5146, 1.0
    %v5150 = vadd.f32 %v5147, 1.0
    %v5151 = vmul.f32 %v5127, %v5148
    %v5152 = vmul.f32 %v5128, %v5149
    %v5153 = vmul.f32 %v5129, %v5150
    %v5154 = vld [vmem:[%s2 + $0x1d0] sm:$0xff]
    %v5155 = vld [vmem:[%s2 + $0x1d8] sm:$0xff]
    %v5156 = vld [vmem:[%s2 + $0x1e0] sm:$0xff]
    %v5157 = vld [vmem:[%s2 + $0x1e8] sm:$0xff]
    %v5158 = vld [vmem:[%s2 + $0x1f0] sm:$0xff]
    %v5159 = vld [vmem:[%s2 + $0x1f8] sm:$0xff]
    %v5160 = vld [vmem:[%s2 + $0x200] sm:$0xff]
    %v5161 = vld [vmem:[%s2 + $0x208] sm:$0xff]
    %v5163 = vsel %vm374, %v5151, 0
    %v5166 = vsel %vm374, %v5152, 0
    %v5169 = vsel %vm374, %v5153, 0
    %5171 = vmatprep.subr.mxu0 0.0
    %5172 = vmatpush1.msra.mxu0 0.0
    %5173 = vmatprep.subr.mxu0 0.0
    %5174 = vmatpush1.msra.mxu0 0.0
    %5175 = vmatprep.subr.mxu0 0.0
    %5176 = vmatpush1.msra.mxu0 0.0
    %5177 = vmatprep.subr.mxu0 0.0
    %5178 = vmatpush1.msra.mxu0 0.0
    %5179 = vmatprep.subr.mxu0 0.0
    %5180 = vmatpush1.msra.mxu0 0.0
    %5181 = vmatprep.subr.mxu0 0.0
    %5182 = vmatpush1.msra.mxu0 0.0
    %5183 = vmatprep.subr.mxu0 0.0
    %5184 = vmatpush1.msra.mxu0 0.0
    %5185 = vmatprep.subr.mxu0 0.0
    %5186 = vmatpush1.msra.mxu0 0.0
    %5187 = vmatprep.subr.mxu0 0.0
    %5188 = vmatpush1.msra.mxu0 %v5161
    %5189 = vmatprep.subr.mxu0 0.0
    %5190 = vmatpush1.msra.mxu0 %v5160
    %5191 = vmatprep.subr.mxu0 0.0
    %5192 = vmatpush1.msra.mxu0 %v5159
    %5193 = vmatprep.subr.mxu0 0.0
    %5194 = vmatpush1.msra.mxu0 %v5158
    %5195 = vmatprep.subr.mxu0 0.0
    %5196 = vmatpush1.msra.mxu0 %v5157
    %5197 = vmatprep.subr.mxu0 0.0
    %5198 = vmatpush1.msra.mxu0 %v5156
    %5199 = vmatprep.subr.mxu0 0.0
    %5200 = vmatpush1.msra.mxu0 %v5155
    %5201 = vmatprep.subr.mxu0 0.0
    %5202 = vmatpush1.msra.mxu0 %v5154
    %5203 = vmatprep.subr.mxu0 0.0
    %5204 = vmatpush2.msra.mxu0 0.0
    %5205 = vmatprep.subr.mxu0 0.0
    %5206 = vmatpush2.msra.mxu0 0.0
    %5207 = vmatprep.subr.mxu0 0.0
    %5208 = vmatpush2.msra.mxu0 0.0
    %5209 = vmatprep.subr.mxu0 0.0
    %5210 = vmatpush2.msra.mxu0 0.0
    %5211 = vmatprep.subr.mxu0 0.0
    %5212 = vmatpush2.msra.mxu0 0.0
    %5213 = vmatprep.subr.mxu0 0.0
    %5214 = vmatpush2.msra.mxu0 0.0
    %5215 = vmatprep.subr.mxu0 0.0
    %5216 = vmatpush2.msra.mxu0 0.0
    %5217 = vmatprep.subr.mxu0 0.0
    %5218 = vmatpush2.msra.mxu0 0.0
    %5219 = vmatprep.subr.mxu0 0.0
    %5220 = vmatpush2.msra.mxu0 0.0
    %5221 = vmatprep.subr.mxu0 0.0
    %5222 = vmatpush2.msra.mxu0 0.0
    %5223 = vmatprep.subr.mxu0 0.0
    %5224 = vmatpush2.msra.mxu0 0.0
    %5225 = vmatprep.subr.mxu0 0.0
    %5226 = vmatpush2.msra.mxu0 0.0
    %5227 = vmatprep.subr.mxu0 0.0
    %5228 = vmatpush2.msra.mxu0 0.0
    %5229 = vmatprep.subr.mxu0 0.0
    %5230 = vmatpush2.msra.mxu0 0.0
    %5231 = vmatprep.subr.mxu0 0.0
    %5232 = vmatpush2.msra.mxu0 0.0
    %5233 = vmatprep.subr.mxu0 0.0
    %5234 = vmatpush2.msra.mxu0 0.0
    %5235 = vmatprep.mubr.f32.mxu0 0.0
    %5236 = vmatmul.mubr.f32.gmra.mxu0 %v5163
    %v5237 = vpop.f32.mrf.mxu0
    %v5238 = vpop.f32.mrf.mxu0
    %5239 = vmatprep.mubr.f32.mxu0 0.0
    %5240 = vmatmul.mubr.f32.gmra.mxu0 %v5166
    %v5241 = vpop.f32.mrf.mxu0
    %v5242 = vpop.f32.mrf.mxu0
    %5243 = vmatprep.mubr.f32.mxu0 0.0
    %5244 = vmatmul.mubr.f32.gmra.mxu0 %v5169
    %v5245 = vpop.f32.mrf.mxu0
    %v5246 = vadd.f32 0.0, %v5245
    %v5247 = vpop.f32.mrf.mxu0
    %5248 = vdwg.mxu0
    %v5249 = vadd.f32 %v4973, %v5246
    %v5250 = vld [vmem:[%s2 + $0x224] sm:$0x1]
    %v5251 = vlaneseq
    %v5252 = vshrl.u32 %v5251, 7
    %v5253 = vsub.s32 0, %v5252
    %v5254 = vrot.slane %v5250, %v5253
    %v5255 = vadd.f32 %v5249, %v5254
    %5256 = vst.msk [vmem:[#allocation3] sm:$0x3] %vm1757, %v5255
    // Predicated region
    $region14: #{ppat_forward.1} parent=1 // pred_check
      _
    $region15: #{ppat_forward.1} parent=1 // pred_check_branch
      %5258 = sbr.rel (0) target = $region17
    $region16: #{ppat_forward.1} parent=1 // pred_region
      %s5260 = ssub.s32 32, 32
      %5261 = vsyncadd [#allocation4], %s5260
      %s5263 = sshll.u32 [#allocation3], 4
      %s5264 = int_to_ptr.vmem [resolvable:$true] %s5263
      %5266 = dma.vmem_to_hbm [thread:$0]  %s5264, 32, %s3, [#allocation4]
    $region17: #{ppat_forward.1} parent=1 // pred_fallthru
      _
    // Predicated region
    $region18: #{ppat_forward.1} parent=1 // pred_check
      _
    $region19: #{ppat_forward.1} parent=1 // pred_check_branch
      %5268 = sbr.rel (0) target = $region21
    $region20: #{ppat_forward.1} parent=1 // pred_region
      %5269 = dma.done [#allocation4], 32
    $region21: #{ppat_forward.1} parent=1 // pred_fallthru
      _
    %5270 = vsyncpa [#allocation4], 1

</llo_original>
